<compile_context>
chip_gen: v7x
topology: tpu7x:2x2x1
jax: 0.10.0
libtpu: 0.0.40
codegen_flags: <defaults>
</compile_context>

<pallas_src>
import functools

import jax
import jax.numpy as jnp
from jax import lax
from jax.experimental import pallas as pl
from jax.experimental.pallas import tpu as pltpu


def _round_up(x, m):
    return ((x + m - 1) // m) * m


def _vmem_capacity_bytes():
    try:
        cap = int(getattr(pltpu.get_tpu_info(), "vmem_capacity_bytes", 0))
        if cap > 0:
            return cap
    except Exception:
        pass
    return 64 * 1024 * 1024  # conservative fallback (v7x-sized)


def _sum_embed_kernel_t(tok_ref, emb_ref, out_ref, *, precision):
    # tok_ref: (8, tm)   int32 token ids, channel-major (rows live on lanes)
    # emb_ref: (8, E, V) per-channel transposed embedding tables
    # out_ref: (E, tm)   transposed output tile (lane-dense store)
    n_ch, _, vocab = emb_ref.shape
    tm = tok_ref.shape[1]
    cdt = emb_ref.dtype

    # One shared (V, tm) iota (values vary along sublanes), hoisted out of the
    # channel loop.
    iota_v = lax.broadcasted_iota(jnp.int32, (vocab, tm), 0)

    acc = None
    for c in range(n_ch):  # static unroll over the 8 channels
        # One V-wide compare per channel; the channel row (1, tm) broadcasts
        # across sublanes.  Out-of-range ids produce an all-zero column.
        onehot = (tok_ref[c:c + 1, :] == iota_v).astype(cdt)        # (V, tm)
        part = jnp.dot(emb_ref[c], onehot,
                       preferred_element_type=jnp.float32,
                       precision=precision)                          # (E, tm) f32
        acc = part if acc is None else acc + part
    out_ref[...] = acc.astype(out_ref.dtype)


def sum_token_embedding(tokens, emb_tables, *, tm=4096):
    """tokens: (B, T, 8) int ids; emb_tables: (8, V, E) -> (B, T, E)."""
    B, T, C = tokens.shape
    n_ch, V, E = emb_tables.shape
    assert C == n_ch == 8, "SumTokenEmbedding uses exactly 8 channels"

    N = B * T
    dt = emb_tables.dtype
    itemsize = jnp.dtype(dt).itemsize

    # ---- VMEM budget (generation-aware: 128 MiB on v5e/v6e, 64 MiB on v7x) ----
    cap = _vmem_capacity_bytes()
    usable = max(min(int(cap * 0.85), cap - (12 << 20)), 24 << 20)

    table_bytes = n_ch * V * E * itemsize                 # single-buffered table
    # Per-row VMEM: 2x token tile + 2x out tile + one-hot/compare temps + f32 acc.
    per_row = 2 * n_ch * 4 + 2 * E * itemsize + V * (itemsize + 4) + 4 * E
    per_row = int(per_row * 1.25) + 64                    # slack
    avail = usable - table_bytes - (4 << 20)              # Mosaic scratch reserve
    if avail <= 0 or avail // per_row < min(128, max(N, 1)):
        # TODO(synk): large-vocab path -- add a second ("arbitrary") grid axis
        # that tiles the vocab dim with a pl.when-initialized f32 accumulator,
        # or keep the tables in HBM (memory_space=pl.ANY) and DMA-gather rows.
        raise NotImplementedError(
            "embedding tables too large for the VMEM-resident one-hot path")

    tm_max = max(128, (avail // per_row) // 128 * 128)
    tm_limit = max(128, min(_round_up(max(tm, 128), 128), tm_max))

    # ---- row tile / grid (natural partial last block, no wrapper padding) ----
    if N <= 256:
        tm_eff = N                                        # single full block
    elif N <= 2 * tm_limit:
        # at least 2 grid steps so both v7x TensorCores get work
        tm_eff = _round_up(pl.cdiv(N, 2), 128)
    else:
        tm_eff = tm_limit
    grid = pl.cdiv(N, tm_eff)

    # ---- wrapper-side layout prep (one small pass over tokens, one over table) ----
    tok_t = tokens.reshape(N, C).astype(jnp.int32).T      # (8, N)
    emb_t = jnp.swapaxes(emb_tables, 1, 2)                # (8, E, V)

    prec = lax.Precision.HIGHEST if dt == jnp.float32 else None
    kernel = functools.partial(_sum_embed_kernel_t, precision=prec)

    need = (table_bytes
            + 2 * n_ch * tm_eff * 4                       # token tiles (dbl-buf)
            + 2 * E * tm_eff * itemsize                   # out tiles (dbl-buf)
            + tm_eff * (V * (itemsize + 4) + 4 * E)       # kernel intermediates
            + (4 << 20))
    vmem_limit = int(min(usable, max(int(need * 1.5), 32 << 20)))

    def call(table_spec):
        return pl.pallas_call(
            kernel,
            out_shape=jax.ShapeDtypeStruct((E, N), dt),
            grid_spec=pltpu.PrefetchScalarGridSpec(
                num_scalar_prefetch=0,
                grid=(grid,),
                in_specs=[
                    pl.BlockSpec((n_ch, tm_eff), lambda i: (0, i)),   # token cols
                    table_spec,                                       # full table
                ],
                out_specs=pl.BlockSpec((E, tm_eff), lambda i: (0, i)),
            ),
            compiler_params=pltpu.CompilerParams(
                dimension_semantics=("parallel",),
                vmem_limit_bytes=vmem_limit,
            ),
        )(tok_t, emb_t)

    try:
        # constant across the grid -> single-buffer it (halves table VMEM)
        out_t = call(pl.BlockSpec((n_ch, E, V), lambda i: (0, 0, 0),
                                  pipeline_mode=pl.Buffered(1)))
    except Exception:
        out_t = call(pl.BlockSpec((n_ch, E, V), lambda i: (0, 0, 0)))

    # (E, N) -> (N, E) -> (B, T, E).  (For E >= 128 a row-major kernel variant
    # would skip this transpose; E < 128 is the regime this module targets.)
    return out_t.T.reshape(B, T, E)


def reference_sum_token_embedding(tokens, emb_tables):
    # pure-JAX reference matching the PyTorch forward
    outs = [jnp.take(emb_tables[c], tokens[:, :, c], axis=0) for c in range(8)]
    return jnp.sum(jnp.stack(outs, axis=-1), axis=-1)


if __name__ == "__main__":
    # small config consistent with the module
    B, T = 2, 8          # batch, sequence length
    VOCAB = 32           # config['model']['vocab_size']
    N_EMBED = 32         # config['model']['n_embed']

    key = jax.random.PRNGKey(0)
    k_tok, k_emb = jax.random.split(key)

    # deterministic parameter init: nn.Embedding default is N(0, 1)
    emb_tables = jax.random.normal(k_emb, (8, VOCAB, N_EMBED), dtype=jnp.float32)
    tokens = jax.random.randint(k_tok, (B, T, 8), 0, VOCAB, dtype=jnp.int32)

    # 1) f32 path (single full block)
    out = jax.block_until_ready(sum_token_embedding(tokens, emb_tables))
    ref = reference_sum_token_embedding(tokens, emb_tables)
    assert out.shape == (B, T, N_EMBED)
    assert jnp.allclose(out, ref, atol=2e-3, rtol=2e-3)

    # 2) multi-tile path with a natural partial last block (N=300, tile 256)
    B2, T2 = 3, 100
    tokens2 = jax.random.randint(k_tok, (B2, T2, 8), 0, VOCAB, dtype=jnp.int32)
    out2 = jax.block_until_ready(sum_token_embedding(tokens2, emb_tables, tm=256))
    ref2 = reference_sum_token_embedding(tokens2, emb_tables)
    assert out2.shape == (B2, T2, N_EMBED)
    assert jnp.allclose(out2, ref2, atol=2e-3, rtol=2e-3)

    # 3) bf16 tables -> single-pass bf16 MXU matmul with f32 accumulation
    emb_bf16 = emb_tables.astype(jnp.bfloat16)
    out3 = jax.block_until_ready(sum_token_embedding(tokens, emb_bf16))
    ref3 = reference_sum_token_embedding(tokens, emb_bf16.astype(jnp.float32))
    assert jnp.allclose(out3.astype(jnp.float32), ref3, atol=0.1, rtol=0.1)

    print("KERNEL_OK")
</pallas_src>

<mosaic_0001>
module attributes {stable_mosaic.version = 11 : i64} {
  func.func @_sum_embed_kernel_t(%arg0: i32, %arg1: memref<8x16xi32, #tpu.memory_space<vmem>>, %arg2: memref<8x32x32xf32, #tpu.memory_space<vmem>>, %arg3: memref<32x16xf32, #tpu.memory_space<vmem>>) attributes {dimension_semantics = [#tpu.dimension_semantics<parallel>], iteration_bounds = array<i64: 1>, scalar_prefetch = 0 : i64, scratch_operands = 0 : i64, tpu.core_type = #tpu.core_type<tc>, window_params = [{transform_indices = @transform_0, window_bounds = array<i64: 8, 16>}, {pipeline_mode = #tpu.pipeline_mode<synchronous>, transform_indices = @transform_1, window_bounds = array<i64: 8, 32, 32>}, {transform_indices = @transform_2, window_bounds = array<i64: 32, 16>}]} {
    %0 = tpu.iota {dimensions = array<i32: 0>} : vector<32x16xi32>
    %c0 = arith.constant 0 : index
    %c0_0 = arith.constant 0 : index
    %1 = vector.load %arg1[%c0, %c0_0] : memref<8x16xi32, #tpu.memory_space<vmem>>, vector<1x16xi32>
    %2 = vector.broadcast %1 : vector<1x16xi32> to vector<32x16xi32>
    %3 = arith.cmpi eq, %2, %0 : vector<32x16xi32>
    %4 = arith.extui %3 : vector<32x16xi1> to vector<32x16xi32>
    %5 = arith.sitofp %4 : vector<32x16xi32> to vector<32x16xf32>
    %c0_1 = arith.constant 0 : index
    %c0_2 = arith.constant 0 : index
    %c0_3 = arith.constant 0 : index
    %6 = vector.load %arg2[%c0_1, %c0_2, %c0_3] : memref<8x32x32xf32, #tpu.memory_space<vmem>>, vector<1x32x32xf32>
    %7 = vector.shape_cast %6 : vector<1x32x32xf32> to vector<32x32xf32>
    %cst = arith.constant dense<0.000000e+00> : vector<32x16xf32>
    %8 = tpu.matmul %7, %5, %cst {dimension_numbers = #tpu.dot_dimension_numbers<[1], [0], [0], [1], [0, 0, 1, 1], [], []>, precision = #tpu.contract_precision<fp32>} : vector<32x32xf32>, vector<32x16xf32>, vector<32x16xf32> -> vector<32x16xf32>
    %c1 = arith.constant 1 : index
    %c0_4 = arith.constant 0 : index
    %9 = vector.load %arg1[%c1, %c0_4] : memref<8x16xi32, #tpu.memory_space<vmem>>, vector<1x16xi32>
    %10 = vector.broadcast %9 : vector<1x16xi32> to vector<32x16xi32>
    %11 = arith.cmpi eq, %10, %0 : vector<32x16xi32>
    %12 = arith.extui %11 : vector<32x16xi1> to vector<32x16xi32>
    %13 = arith.sitofp %12 : vector<32x16xi32> to vector<32x16xf32>
    %c1_5 = arith.constant 1 : index
    %c0_6 = arith.constant 0 : index
    %c0_7 = arith.constant 0 : index
    %14 = vector.load %arg2[%c1_5, %c0_6, %c0_7] : memref<8x32x32xf32, #tpu.memory_space<vmem>>, vector<1x32x32xf32>
    %15 = vector.shape_cast %14 : vector<1x32x32xf32> to vector<32x32xf32>
    %cst_8 = arith.constant dense<0.000000e+00> : vector<32x16xf32>
    %16 = tpu.matmul %15, %13, %cst_8 {dimension_numbers = #tpu.dot_dimension_numbers<[1], [0], [0], [1], [0, 0, 1, 1], [], []>, precision = #tpu.contract_precision<fp32>} : vector<32x32xf32>, vector<32x16xf32>, vector<32x16xf32> -> vector<32x16xf32>
    %17 = arith.addf %8, %16 : vector<32x16xf32>
    %c2 = arith.constant 2 : index
    %c0_9 = arith.constant 0 : index
    %18 = vector.load %arg1[%c2, %c0_9] : memref<8x16xi32, #tpu.memory_space<vmem>>, vector<1x16xi32>
    %19 = vector.broadcast %18 : vector<1x16xi32> to vector<32x16xi32>
    %20 = arith.cmpi eq, %19, %0 : vector<32x16xi32>
    %21 = arith.extui %20 : vector<32x16xi1> to vector<32x16xi32>
    %22 = arith.sitofp %21 : vector<32x16xi32> to vector<32x16xf32>
    %c2_10 = arith.constant 2 : index
    %c0_11 = arith.constant 0 : index
    %c0_12 = arith.constant 0 : index
    %23 = vector.load %arg2[%c2_10, %c0_11, %c0_12] : memref<8x32x32xf32, #tpu.memory_space<vmem>>, vector<1x32x32xf32>
    %24 = vector.shape_cast %23 : vector<1x32x32xf32> to vector<32x32xf32>
    %cst_13 = arith.constant dense<0.000000e+00> : vector<32x16xf32>
    %25 = tpu.matmul %24, %22, %cst_13 {dimension_numbers = #tpu.dot_dimension_numbers<[1], [0], [0], [1], [0, 0, 1, 1], [], []>, precision = #tpu.contract_precision<fp32>} : vector<32x32xf32>, vector<32x16xf32>, vector<32x16xf32> -> vector<32x16xf32>
    %26 = arith.addf %17, %25 : vector<32x16xf32>
    %c3 = arith.constant 3 : index
    %c0_14 = arith.constant 0 : index
    %27 = vector.load %arg1[%c3, %c0_14] : memref<8x16xi32, #tpu.memory_space<vmem>>, vector<1x16xi32>
    %28 = vector.broadcast %27 : vector<1x16xi32> to vector<32x16xi32>
    %29 = arith.cmpi eq, %28, %0 : vector<32x16xi32>
    %30 = arith.extui %29 : vector<32x16xi1> to vector<32x16xi32>
    %31 = arith.sitofp %30 : vector<32x16xi32> to vector<32x16xf32>
    %c3_15 = arith.constant 3 : index
    %c0_16 = arith.constant 0 : index
    %c0_17 = arith.constant 0 : index
    %32 = vector.load %arg2[%c3_15, %c0_16, %c0_17] : memref<8x32x32xf32, #tpu.memory_space<vmem>>, vector<1x32x32xf32>
    %33 = vector.shape_cast %32 : vector<1x32x32xf32> to vector<32x32xf32>
    %cst_18 = arith.constant dense<0.000000e+00> : vector<32x16xf32>
    %34 = tpu.matmul %33, %31, %cst_18 {dimension_numbers = #tpu.dot_dimension_numbers<[1], [0], [0], [1], [0, 0, 1, 1], [], []>, precision = #tpu.contract_precision<fp32>} : vector<32x32xf32>, vector<32x16xf32>, vector<32x16xf32> -> vector<32x16xf32>
    %35 = arith.addf %26, %34 : vector<32x16xf32>
    %c4 = arith.constant 4 : index
    %c0_19 = arith.constant 0 : index
    %36 = vector.load %arg1[%c4, %c0_19] : memref<8x16xi32, #tpu.memory_space<vmem>>, vector<1x16xi32>
    %37 = vector.broadcast %36 : vector<1x16xi32> to vector<32x16xi32>
    %38 = arith.cmpi eq, %37, %0 : vector<32x16xi32>
    %39 = arith.extui %38 : vector<32x16xi1> to vector<32x16xi32>
    %40 = arith.sitofp %39 : vector<32x16xi32> to vector<32x16xf32>
    %c4_20 = arith.constant 4 : index
    %c0_21 = arith.constant 0 : index
    %c0_22 = arith.constant 0 : index
    %41 = vector.load %arg2[%c4_20, %c0_21, %c0_22] : memref<8x32x32xf32, #tpu.memory_space<vmem>>, vector<1x32x32xf32>
    %42 = vector.shape_cast %41 : vector<1x32x32xf32> to vector<32x32xf32>
    %cst_23 = arith.constant dense<0.000000e+00> : vector<32x16xf32>
    %43 = tpu.matmul %42, %40, %cst_23 {dimension_numbers = #tpu.dot_dimension_numbers<[1], [0], [0], [1], [0, 0, 1, 1], [], []>, precision = #tpu.contract_precision<fp32>} : vector<32x32xf32>, vector<32x16xf32>, vector<32x16xf32> -> vector<32x16xf32>
    %44 = arith.addf %35, %43 : vector<32x16xf32>
    %c5 = arith.constant 5 : index
    %c0_24 = arith.constant 0 : index
    %45 = vector.load %arg1[%c5, %c0_24] : memref<8x16xi32, #tpu.memory_space<vmem>>, vector<1x16xi32>
    %46 = vector.broadcast %45 : vector<1x16xi32> to vector<32x16xi32>
    %47 = arith.cmpi eq, %46, %0 : vector<32x16xi32>
    %48 = arith.extui %47 : vector<32x16xi1> to vector<32x16xi32>
    %49 = arith.sitofp %48 : vector<32x16xi32> to vector<32x16xf32>
    %c5_25 = arith.constant 5 : index
    %c0_26 = arith.constant 0 : index
    %c0_27 = arith.constant 0 : index
    %50 = vector.load %arg2[%c5_25, %c0_26, %c0_27] : memref<8x32x32xf32, #tpu.memory_space<vmem>>, vector<1x32x32xf32>
    %51 = vector.shape_cast %50 : vector<1x32x32xf32> to vector<32x32xf32>
    %cst_28 = arith.constant dense<0.000000e+00> : vector<32x16xf32>
    %52 = tpu.matmul %51, %49, %cst_28 {dimension_numbers = #tpu.dot_dimension_numbers<[1], [0], [0], [1], [0, 0, 1, 1], [], []>, precision = #tpu.contract_precision<fp32>} : vector<32x32xf32>, vector<32x16xf32>, vector<32x16xf32> -> vector<32x16xf32>
    %53 = arith.addf %44, %52 : vector<32x16xf32>
    %c6 = arith.constant 6 : index
    %c0_29 = arith.constant 0 : index
    %54 = vector.load %arg1[%c6, %c0_29] : memref<8x16xi32, #tpu.memory_space<vmem>>, vector<1x16xi32>
    %55 = vector.broadcast %54 : vector<1x16xi32> to vector<32x16xi32>
    %56 = arith.cmpi eq, %55, %0 : vector<32x16xi32>
    %57 = arith.extui %56 : vector<32x16xi1> to vector<32x16xi32>
    %58 = arith.sitofp %57 : vector<32x16xi32> to vector<32x16xf32>
    %c6_30 = arith.constant 6 : index
    %c0_31 = arith.constant 0 : index
    %c0_32 = arith.constant 0 : index
    %59 = vector.load %arg2[%c6_30, %c0_31, %c0_32] : memref<8x32x32xf32, #tpu.memory_space<vmem>>, vector<1x32x32xf32>
    %60 = vector.shape_cast %59 : vector<1x32x32xf32> to vector<32x32xf32>
    %cst_33 = arith.constant dense<0.000000e+00> : vector<32x16xf32>
    %61 = tpu.matmul %60, %58, %cst_33 {dimension_numbers = #tpu.dot_dimension_numbers<[1], [0], [0], [1], [0, 0, 1, 1], [], []>, precision = #tpu.contract_precision<fp32>} : vector<32x32xf32>, vector<32x16xf32>, vector<32x16xf32> -> vector<32x16xf32>
    %62 = arith.addf %53, %61 : vector<32x16xf32>
    %c7 = arith.constant 7 : index
    %c0_34 = arith.constant 0 : index
    %63 = vector.load %arg1[%c7, %c0_34] : memref<8x16xi32, #tpu.memory_space<vmem>>, vector<1x16xi32>
    %64 = vector.broadcast %63 : vector<1x16xi32> to vector<32x16xi32>
    %65 = arith.cmpi eq, %64, %0 : vector<32x16xi32>
    %66 = arith.extui %65 : vector<32x16xi1> to vector<32x16xi32>
    %67 = arith.sitofp %66 : vector<32x16xi32> to vector<32x16xf32>
    %c7_35 = arith.constant 7 : index
    %c0_36 = arith.constant 0 : index
    %c0_37 = arith.constant 0 : index
    %68 = vector.load %arg2[%c7_35, %c0_36, %c0_37] : memref<8x32x32xf32, #tpu.memory_space<vmem>>, vector<1x32x32xf32>
    %69 = vector.shape_cast %68 : vector<1x32x32xf32> to vector<32x32xf32>
    %cst_38 = arith.constant dense<0.000000e+00> : vector<32x16xf32>
    %70 = tpu.matmul %69, %67, %cst_38 {dimension_numbers = #tpu.dot_dimension_numbers<[1], [0], [0], [1], [0, 0, 1, 1], [], []>, precision = #tpu.contract_precision<fp32>} : vector<32x32xf32>, vector<32x16xf32>, vector<32x16xf32> -> vector<32x16xf32>
    %71 = arith.addf %62, %70 : vector<32x16xf32>
    %c0_39 = arith.constant 0 : index
    %c0_40 = arith.constant 0 : index
    %72 = vector.load %arg3[%c0_39, %c0_40] : memref<32x16xf32, #tpu.memory_space<vmem>>, vector<32x16xf32>
    tpu.vector_store %arg3[%c0_39, %c0_40], %71 {strides = array<i32>} : memref<32x16xf32, #tpu.memory_space<vmem>>, vector<32x16xf32>,
    return
  }
  func.func @transform_0(%arg0: i32) -> (i32, i32) {
    %c0_i32 = arith.constant 0 : i32
    %c0_i32_0 = arith.constant 0 : i32
    return %c0_i32, %arg0 : i32, i32
  }
  func.func @transform_1(%arg0: i32) -> (i32, i32, i32) {
    %c0_i32 = arith.constant 0 : i32
    %c0_i32_0 = arith.constant 0 : i32
    %c0_i32_1 = arith.constant 0 : i32
    %c0_i32_2 = arith.constant 0 : i32
    return %c0_i32, %c0_i32_0, %c0_i32_1 : i32, i32, i32
  }
  func.func @transform_2(%arg0: i32) -> (i32, i32) {
    %c0_i32 = arith.constant 0 : i32
    %c0_i32_0 = arith.constant 0 : i32
    return %c0_i32, %arg0 : i32, i32
  }
}

module attributes {stable_mosaic.version = 11 : i64} {
  func.func @_sum_embed_kernel_t(%arg0: i32, %arg1: memref<8x16xi32, #tpu.memory_space<vmem>>, %arg2: memref<8x32x32xf32, #tpu.memory_space<vmem>>, %arg3: memref<32x16xf32, #tpu.memory_space<vmem>>) attributes {dimension_semantics = [#tpu.dimension_semantics<parallel>], iteration_bounds = array<i64: 1>, scalar_prefetch = 0 : i64, scratch_operands = 0 : i64, tpu.core_type = #tpu.core_type<tc>, window_params = [{transform_indices = @transform_0, window_bounds = array<i64: 8, 16>}, {pipeline_mode = #tpu.pipeline_mode<synchronous>, transform_indices = @transform_1, window_bounds = array<i64: 8, 32, 32>}, {transform_indices = @transform_2, window_bounds = array<i64: 32, 16>}]} {
    %0 = tpu.iota {dimensions = array<i32: 0>} : vector<32x16xi32>
    %c0 = arith.constant 0 : index
    %c0_0 = arith.constant 0 : index
    %1 = vector.load %arg1[%c0, %c0_0] : memref<8x16xi32, #tpu.memory_space<vmem>>, vector<1x16xi32>
    %2 = vector.broadcast %1 : vector<1x16xi32> to vector<32x16xi32>
    %3 = arith.cmpi eq, %2, %0 : vector<32x16xi32>
    %4 = arith.extui %3 : vector<32x16xi1> to vector<32x16xi32>
    %5 = arith.sitofp %4 : vector<32x16xi32> to vector<32x16xf32>
    %c0_1 = arith.constant 0 : index
    %c0_2 = arith.constant 0 : index
    %c0_3 = arith.constant 0 : index
    %6 = vector.load %arg2[%c0_1, %c0_2, %c0_3] : memref<8x32x32xf32, #tpu.memory_space<vmem>>, vector<1x32x32xf32>
    %7 = vector.shape_cast %6 : vector<1x32x32xf32> to vector<32x32xf32>
    %cst = arith.constant dense<0.000000e+00> : vector<32x16xf32>
    %8 = tpu.matmul %7, %5, %cst {dimension_numbers = #tpu.dot_dimension_numbers<[1], [0], [0], [1], [0, 0, 1, 1], [], []>, precision = #tpu.contract_precision<fp32>} : vector<32x32xf32>, vector<32x16xf32>, vector<32x16xf32> -> vector<32x16xf32>
    %c1 = arith.constant 1 : index
    %c0_4 = arith.constant 0 : index
    %9 = vector.load %arg1[%c1, %c0_4] : memref<8x16xi32, #tpu.memory_space<vmem>>, vector<1x16xi32>
    %10 = vector.broadcast %9 : vector<1x16xi32> to vector<32x16xi32>
    %11 = arith.cmpi eq, %10, %0 : vector<32x16xi32>
    %12 = arith.extui %11 : vector<32x16xi1> to vector<32x16xi32>
    %13 = arith.sitofp %12 : vector<32x16xi32> to vector<32x16xf32>
    %c1_5 = arith.constant 1 : index
    %c0_6 = arith.constant 0 : index
    %c0_7 = arith.constant 0 : index
    %14 = vector.load %arg2[%c1_5, %c0_6, %c0_7] : memref<8x32x32xf32, #tpu.memory_space<vmem>>, vector<1x32x32xf32>
    %15 = vector.shape_cast %14 : vector<1x32x32xf32> to vector<32x32xf32>
    %cst_8 = arith.constant dense<0.000000e+00> : vector<32x16xf32>
    %16 = tpu.matmul %15, %13, %cst_8 {dimension_numbers = #tpu.dot_dimension_numbers<[1], [0], [0], [1], [0, 0, 1, 1], [], []>, precision = #tpu.contract_precision<fp32>} : vector<32x32xf32>, vector<32x16xf32>, vector<32x16xf32> -> vector<32x16xf32>
    %17 = arith.addf %8, %16 : vector<32x16xf32>
    %c2 = arith.constant 2 : index
    %c0_9 = arith.constant 0 : index
    %18 = vector.load %arg1[%c2, %c0_9] : memref<8x16xi32, #tpu.memory_space<vmem>>, vector<1x16xi32>
    %19 = vector.broadcast %18 : vector<1x16xi32> to vector<32x16xi32>
    %20 = arith.cmpi eq, %19, %0 : vector<32x16xi32>
    %21 = arith.extui %20 : vector<32x16xi1> to vector<32x16xi32>
    %22 = arith.sitofp %21 : vector<32x16xi32> to vector<32x16xf32>
    %c2_10 = arith.constant 2 : index
    %c0_11 = arith.constant 0 : index
    %c0_12 = arith.constant 0 : index
    %23 = vector.load %arg2[%c2_10, %c0_11, %c0_12] : memref<8x32x32xf32, #tpu.memory_space<vmem>>, vector<1x32x32xf32>
    %24 = vector.shape_cast %23 : vector<1x32x32xf32> to vector<32x32xf32>
    %cst_13 = arith.constant dense<0.000000e+00> : vector<32x16xf32>
    %25 = tpu.matmul %24, %22, %cst_13 {dimension_numbers = #tpu.dot_dimension_numbers<[1], [0], [0], [1], [0, 0, 1, 1], [], []>, precision = #tpu.contract_precision<fp32>} : vector<32x32xf32>, vector<32x16xf32>, vector<32x16xf32> -> vector<32x16xf32>
    %26 = arith.addf %17, %25 : vector<32x16xf32>
    %c3 = arith.constant 3 : index
    %c0_14 = arith.constant 0 : index
    %27 = vector.load %arg1[%c3, %c0_14] : memref<8x16xi32, #tpu.memory_space<vmem>>, vector<1x16xi32>
    %28 = vector.broadcast %27 : vector<1x16xi32> to vector<32x16xi32>
    %29 = arith.cmpi eq, %28, %0 : vector<32x16xi32>
    %30 = arith.extui %29 : vector<32x16xi1> to vector<32x16xi32>
    %31 = arith.sitofp %30 : vector<32x16xi32> to vector<32x16xf32>
    %c3_15 = arith.constant 3 : index
    %c0_16 = arith.constant 0 : index
    %c0_17 = arith.constant 0 : index
    %32 = vector.load %arg2[%c3_15, %c0_16, %c0_17] : memref<8x32x32xf32, #tpu.memory_space<vmem>>, vector<1x32x32xf32>
    %33 = vector.shape_cast %32 : vector<1x32x32xf32> to vector<32x32xf32>
    %cst_18 = arith.constant dense<0.000000e+00> : vector<32x16xf32>
    %34 = tpu.matmul %33, %31, %cst_18 {dimension_numbers = #tpu.dot_dimension_numbers<[1], [0], [0], [1], [0, 0, 1, 1], [], []>, precision = #tpu.contract_precision<fp32>} : vector<32x32xf32>, vector<32x16xf32>, vector<32x16xf32> -> vector<32x16xf32>
    %35 = arith.addf %26, %34 : vector<32x16xf32>
    %c4 = arith.constant 4 : index
    %c0_19 = arith.constant 0 : index
    %36 = vector.load %arg1[%c4, %c0_19] : memref<8x16xi32, #tpu.memory_space<vmem>>, vector<1x16xi32>
    %37 = vector.broadcast %36 : vector<1x16xi32> to vector<32x16xi32>
    %38 = arith.cmpi eq, %37, %0 : vector<32x16xi32>
    %39 = arith.extui %38 : vector<32x16xi1> to vector<32x16xi32>
    %40 = arith.sitofp %39 : vector<32x16xi32> to vector<32x16xf32>
    %c4_20 = arith.constant 4 : index
    %c0_21 = arith.constant 0 : index
    %c0_22 = arith.constant 0 : index
    %41 = vector.load %arg2[%c4_20, %c0_21, %c0_22] : memref<8x32x32xf32, #tpu.memory_space<vmem>>, vector<1x32x32xf32>
    %42 = vector.shape_cast %41 : vector<1x32x32xf32> to vector<32x32xf32>
    %cst_23 = arith.constant dense<0.000000e+00> : vector<32x16xf32>
    %43 = tpu.matmul %42, %40, %cst_23 {dimension_numbers = #tpu.dot_dimension_numbers<[1], [0], [0], [1], [0, 0, 1, 1], [], []>, precision = #tpu.contract_precision<fp32>} : vector<32x32xf32>, vector<32x16xf32>, vector<32x16xf32> -> vector<32x16xf32>
    %44 = arith.addf %35, %43 : vector<32x16xf32>
    %c5 = arith.constant 5 : index
    %c0_24 = arith.constant 0 : index
    %45 = vector.load %arg1[%c5, %c0_24] : memref<8x16xi32, #tpu.memory_space<vmem>>, vector<1x16xi32>
    %46 = vector.broadcast %45 : vector<1x16xi32> to vector<32x16xi32>
    %47 = arith.cmpi eq, %46, %0 : vector<32x16xi32>
    %48 = arith.extui %47 : vector<32x16xi1> to vector<32x16xi32>
    %49 = arith.sitofp %48 : vector<32x16xi32> to vector<32x16xf32>
    %c5_25 = arith.constant 5 : index
    %c0_26 = arith.constant 0 : index
    %c0_27 = arith.constant 0 : index
    %50 = vector.load %arg2[%c5_25, %c0_26, %c0_27] : memref<8x32x32xf32, #tpu.memory_space<vmem>>, vector<1x32x32xf32>
    %51 = vector.shape_cast %50 : vector<1x32x32xf32> to vector<32x32xf32>
    %cst_28 = arith.constant dense<0.000000e+00> : vector<32x16xf32>
    %52 = tpu.matmul %51, %49, %cst_28 {dimension_numbers = #tpu.dot_dimension_numbers<[1], [0], [0], [1], [0, 0, 1, 1], [], []>, precision = #tpu.contract_precision<fp32>} : vector<32x32xf32>, vector<32x16xf32>, vector<32x16xf32> -> vector<32x16xf32>
    %53 = arith.addf %44, %52 : vector<32x16xf32>
    %c6 = arith.constant 6 : index
    %c0_29 = arith.constant 0 : index
    %54 = vector.load %arg1[%c6, %c0_29] : memref<8x16xi32, #tpu.memory_space<vmem>>, vector<1x16xi32>
    %55 = vector.broadcast %54 : vector<1x16xi32> to vector<32x16xi32>
    %56 = arith.cmpi eq, %55, %0 : vector<32x16xi32>
    %57 = arith.extui %56 : vector<32x16xi1> to vector<32x16xi32>
    %58 = arith.sitofp %57 : vector<32x16xi32> to vector<32x16xf32>
    %c6_30 = arith.constant 6 : index
    %c0_31 = arith.constant 0 : index
    %c0_32 = arith.constant 0 : index
    %59 = vector.load %arg2[%c6_30, %c0_31, %c0_32] : memref<8x32x32xf32, #tpu.memory_space<vmem>>, vector<1x32x32xf32>
    %60 = vector.shape_cast %59 : vector<1x32x32xf32> to vector<32x32xf32>
    %cst_33 = arith.constant dense<0.000000e+00> : vector<32x16xf32>
    %61 = tpu.matmul %60, %58, %cst_33 {dimension_numbers = #tpu.dot_dimension_numbers<[1], [0], [0], [1], [0, 0, 1, 1], [], []>, precision = #tpu.contract_precision<fp32>} : vector<32x32xf32>, vector<32x16xf32>, vector<32x16xf32> -> vector<32x16xf32>
    %62 = arith.addf %53, %61 : vector<32x16xf32>
    %c7 = arith.constant 7 : index
    %c0_34 = arith.constant 0 : index
    %63 = vector.load %arg1[%c7, %c0_34] : memref<8x16xi32, #tpu.memory_space<vmem>>, vector<1x16xi32>
    %64 = vector.broadcast %63 : vector<1x16xi32> to vector<32x16xi32>
    %65 = arith.cmpi eq, %64, %0 : vector<32x16xi32>
    %66 = arith.extui %65 : vector<32x16xi1> to vector<32x16xi32>
    %67 = arith.sitofp %66 : vector<32x16xi32> to vector<32x16xf32>
    %c7_35 = arith.constant 7 : index
    %c0_36 = arith.constant 0 : index
    %c0_37 = arith.constant 0 : index
    %68 = vector.load %arg2[%c7_35, %c0_36, %c0_37] : memref<8x32x32xf32, #tpu.memory_space<vmem>>, vector<1x32x32xf32>
    %69 = vector.shape_cast %68 : vector<1x32x32xf32> to vector<32x32xf32>
    %cst_38 = arith.constant dense<0.000000e+00> : vector<32x16xf32>
    %70 = tpu.matmul %69, %67, %cst_38 {dimension_numbers = #tpu.dot_dimension_numbers<[1], [0], [0], [1], [0, 0, 1, 1], [], []>, precision = #tpu.contract_precision<fp32>} : vector<32x32xf32>, vector<32x16xf32>, vector<32x16xf32> -> vector<32x16xf32>
    %71 = arith.addf %62, %70 : vector<32x16xf32>
    %c0_39 = arith.constant 0 : index
    %c0_40 = arith.constant 0 : index
    %72 = vector.load %arg3[%c0_39, %c0_40] : memref<32x16xf32, #tpu.memory_space<vmem>>, vector<32x16xf32>
    tpu.vector_store %arg3[%c0_39, %c0_40], %71 {strides = array<i32>} : memref<32x16xf32, #tpu.memory_space<vmem>>, vector<32x16xf32>,
    return
  }
  func.func @transform_0(%arg0: i32) -> (i32, i32) {
    %c0_i32 = arith.constant 0 : i32
    %c0_i32_0 = arith.constant 0 : i32
    return %c0_i32, %arg0 : i32, i32
  }
  func.func @transform_1(%arg0: i32) -> (i32, i32, i32) {
    %c0_i32 = arith.constant 0 : i32
    %c0_i32_0 = arith.constant 0 : i32
    %c0_i32_1 = arith.constant 0 : i32
    %c0_i32_2 = arith.constant 0 : i32
    return %c0_i32, %c0_i32_0, %c0_i32_1 : i32, i32, i32
  }
  func.func @transform_2(%arg0: i32) -> (i32, i32) {
    %c0_i32 = arith.constant 0 : i32
    %c0_i32_0 = arith.constant 0 : i32
    return %c0_i32, %arg0 : i32, i32
  }
}

</mosaic_0001>

<llo_original>
// kernel: tpu_custom_call.1
$region0: #{tpu_custom_call.1}
  #allocation0 [shape = 'u32[]', space=smem, size = 0x4, offset = 0x4, fixed_abs, tag = 'smem constant byte address 0x4 - core index']
  #allocation1 [shape = 'u32[144,128]{1,0:T(1,128)}', space=vmem, size = 0x12000, scoped, tag = 'internal scratch']
  %s0 = inlined_call_operand.hbm [shape: s32[8,16], index: 0, kind: input, shape index: {}]
  %s1 = inlined_call_operand.hbm [shape: f32[8,32,32], index: 1, kind: input, shape index: {}]
  %s2 = inlined_call_operand.vmem [shape: f32[32,16], index: 2, kind: output, shape index: {}]
  %s3 = sld [smem:[#allocation0]]
  $region26: #{tpu_custom_call.1} parent=0
    _
  %s5 = ssub.s32 1, %s3
  %s6 = scalar_select 0, %s5, %s3
  $region1: #{tpu_custom_call.1} parent=0
    #allocation2 [shape = 'u8[4096]{0}', space=vmem, size = 0x1000, scoped, tag = 'input window, operand 0, single buffered']
    #allocation3 [shape = 's32[1]{0}', space=sflag, size = 0x4, scoped, tag = 'scoped memory for tpu_custom_call.1']
    #allocation4 [shape = 'u8[131072]{0}', space=vmem, size = 0x20000, scoped, tag = 'input window, operand 1, single buffered']
    #allocation5 [shape = 's32[1]{0}', space=sflag, size = 0x4, scoped, tag = 'scoped memory for tpu_custom_call.1']
    %7 = vsyncpa [#allocation3], 0
    %8 = vsyncpa [#allocation5], 0
    // Predicated region
    $region2: #{tpu_custom_call.1} parent=1 // pred_check
      _
    $region3: #{tpu_custom_call.1} parent=1 // pred_check_branch
      %10 = sbr.rel (0) target = $region5
    $region4: #{tpu_custom_call.1} parent=1 // pred_region
      %s12 = ssub.s32 128, 128
      %13 = vsyncadd [#allocation3], %s12
      %s15 = sshll.u32 [#allocation2], 4
      %s16 = int_to_ptr.vmem [resolvable:$true] %s15
      %18 = dma.hbm_to_vmem [thread:$0]  %s0, 128, %s16, [#allocation3]
    $region5: #{tpu_custom_call.1} parent=1 // pred_fallthru
      _
    // Predicated region
    $region6: #{tpu_custom_call.1} parent=1 // pred_check
      _
    $region7: #{tpu_custom_call.1} parent=1 // pred_check_branch
      %20 = sbr.rel (0) target = $region9
    $region8: #{tpu_custom_call.1} parent=1 // pred_region
      %s22 = ssub.s32 4096, 4096
      %23 = vsyncadd [#allocation5], %s22
      %s24 = sshll.u32 [#allocation4], 4
      %s25 = int_to_ptr.vmem [resolvable:$true] %s24
      %30 = dma.hbm_to_vmem [thread:$0]  %s1, 4096, %s25, [#allocation5], 128, 128, 8
    $region9: #{tpu_custom_call.1} parent=1 // pred_fallthru
      _
    // Predicated region
    $region10: #{tpu_custom_call.1} parent=1 // pred_check
      _
    $region11: #{tpu_custom_call.1} parent=1 // pred_check_branch
      %32 = sbr.rel (0) target = $region13
    $region12: #{tpu_custom_call.1} parent=1 // pred_region
      %33 = dma.done [#allocation3], 128
    $region13: #{tpu_custom_call.1} parent=1 // pred_fallthru
      _
    // Predicated region
    $region14: #{tpu_custom_call.1} parent=1 // pred_check
      _
    $region15: #{tpu_custom_call.1} parent=1 // pred_check_branch
      %35 = sbr.rel (0) target = $region17
    $region16: #{tpu_custom_call.1} parent=1 // pred_region
      %36 = dma.done [#allocation5], 4096
    $region17: #{tpu_custom_call.1} parent=1 // pred_fallthru
      _
    %v37 = vlaneseq
    %v38 = vshrl.u32 %v37, 7
    %v39 = vadd.s32 %v38, 8
    %v40 = vadd.s32 %v38, 16
    %v41 = vadd.s32 %v38, 24
    %v42 = vld [vmem:[#allocation2] sm:$0x1]
    %v43 = vlaneseq
    %v44 = vshrl.u32 %v43, 7
    %v45 = vsub.s32 0, %v44
    %v46 = vrot.slane %v42, %v45
    %vm47 = vcmp.eq.s32.totalorder %v46, %v38
    %vm48 = vcmp.eq.s32.totalorder %v46, %v39
    %vm49 = vcmp.eq.s32.totalorder %v46, %v40
    %vm50 = vcmp.eq.s32.totalorder %v46, %v41
    %v51 = vsel %vm47, 1, 0
    %v52 = vsel %vm48, 1, 0
    %v53 = vsel %vm49, 1, 0
    %v54 = vsel %vm50, 1, 0
    %v55 = vcvt.s32.f32 %v51
    %v56 = vcvt.s32.f32 %v52
    %v57 = vcvt.s32.f32 %v53
    %v58 = vcvt.s32.f32 %v54
    %v59 = vld [vmem:[#allocation4] sm:$0xff]
    %v60 = vld [vmem:[#allocation4 + $0x8] sm:$0xff]
    %v61 = vld [vmem:[#allocation4 + $0x10] sm:$0xff]
    %v62 = vld [vmem:[#allocation4 + $0x18] sm:$0xff]
    %v63 = vld [vmem:[#allocation2 + $0x1] sm:$0x1]
    %v64 = vlaneseq
    %v65 = vshrl.u32 %v64, 7
    %v66 = vsub.s32 0, %v65
    %v67 = vrot.slane %v63, %v66
    %vm68 = vcmp.eq.s32.totalorder %v67, %v38
    %vm69 = vcmp.eq.s32.totalorder %v67, %v39
    %vm70 = vcmp.eq.s32.totalorder %v67, %v40
    %vm71 = vcmp.eq.s32.totalorder %v67, %v41
    %v72 = vsel %vm68, 1, 0
    %v73 = vsel %vm69, 1, 0
    %v74 = vsel %vm70, 1, 0
    %v75 = vsel %vm71, 1, 0
    %v76 = vcvt.s32.f32 %v72
    %v77 = vcvt.s32.f32 %v73
    %v78 = vcvt.s32.f32 %v74
    %v79 = vcvt.s32.f32 %v75
    %s80 = scalar_lea.vmem [#allocation4], 32
    %v81 = vld [vmem:[%s80] sm:$0xff]
    %v82 = vld [vmem:[%s80 + $0x8] sm:$0xff]
    %v83 = vld [vmem:[%s80 + $0x10] sm:$0xff]
    %v84 = vld [vmem:[%s80 + $0x18] sm:$0xff]
    %vm85 = vcmask 261120
    %v87 = vsel %vm85, %v81, 0
    %v90 = vsel %vm85, %v82, 0
    %v93 = vsel %vm85, %v83, 0
    %v96 = vsel %vm85, %v84, 0
    %98 = vmatprep.subr.mxu0 0.0
    %v99 = vand.u32 %v76, 4294901760
    %100 = vmatpush1.msra.mxu0 %v99
    %101 = vmatprep.subr.mxu0 0.0
    %v102 = vand.u32 %v77, 4294901760
    %103 = vmatpush1.msra.mxu0 %v102
    %104 = vmatprep.subr.mxu0 0.0
    %v105 = vand.u32 %v78, 4294901760
    %106 = vmatpush1.msra.mxu0 %v105
    %107 = vmatprep.subr.mxu0 0.0
    %v108 = vand.u32 %v79, 4294901760
    %109 = vmatpush1.msra.mxu0 %v108
    %110 = vmatprep.subr.mxu0 0.0
    %111 = vmatpush1.msra.mxu0 0.0
    %112 = vmatprep.subr.mxu0 0.0
    %113 = vmatpush1.msra.mxu0 0.0
    %114 = vmatprep.subr.mxu0 0.0
    %115 = vmatpush1.msra.mxu0 0.0
    %116 = vmatprep.subr.mxu0 0.0
    %117 = vmatpush1.msra.mxu0 0.0
    %118 = vmatprep.subr.mxu0 0.0
    %119 = vmatpush1.msra.mxu0 0.0
    %120 = vmatprep.subr.mxu0 0.0
    %121 = vmatpush1.msra.mxu0 0.0
    %122 = vmatprep.subr.mxu0 0.0
    %123 = vmatpush1.msra.mxu0 0.0
    %124 = vmatprep.subr.mxu0 0.0
    %125 = vmatpush1.msra.mxu0 0.0
    %126 = vmatprep.subr.mxu0 0.0
    %127 = vmatpush1.msra.mxu0 0.0
    %128 = vmatprep.subr.mxu0 0.0
    %129 = vmatpush1.msra.mxu0 0.0
    %130 = vmatprep.subr.mxu0 0.0
    %131 = vmatpush1.msra.mxu0 0.0
    %132 = vmatprep.subr.mxu0 0.0
    %133 = vmatpush1.msra.mxu0 0.0
    %134 = vmatprep.subr.mxu0 0.0
    %135 = vmatpush1.msra.mxu0 0.0
    %136 = vmatprep.subr.mxu0 0.0
    %137 = vmatpush1.msra.mxu0 0.0
    %138 = vmatprep.subr.mxu0 0.0
    %139 = vmatpush1.msra.mxu0 0.0
    %140 = vmatprep.subr.mxu0 0.0
    %141 = vmatpush1.msra.mxu0 0.0
    %142 = vmatprep.subr.mxu0 0.0
    %143 = vmatpush1.msra.mxu0 0.0
    %144 = vmatprep.subr.mxu0 0.0
    %145 = vmatpush1.msra.mxu0 0.0
    %146 = vmatprep.subr.mxu0 0.0
    %147 = vmatpush1.msra.mxu0 0.0
    %148 = vmatprep.subr.mxu0 0.0
    %149 = vmatpush1.msra.mxu0 0.0
    %150 = vmatprep.subr.mxu0 0.0
    %151 = vmatpush1.msra.mxu0 0.0
    %152 = vmatprep.subr.mxu0 0.0
    %153 = vmatpush1.msra.mxu0 0.0
    %154 = vmatprep.subr.mxu0 0.0
    %155 = vmatpush1.msra.mxu0 0.0
    %156 = vmatprep.subr.mxu0 0.0
    %157 = vmatpush1.msra.mxu0 0.0
    %158 = vmatprep.subr.mxu0 0.0
    %159 = vmatpush1.msra.mxu0 0.0
    %160 = vmatprep.subr.mxu0 0.0
    %161 = vmatpush1.msra.mxu0 0.0
    %162 = vmatprep.subr.mxu0 0.0
    %163 = vmatpush1.msra.mxu0 0.0
    %164 = vmatprep.subr.mxu0 0.0
    %165 = vmatpush1.msra.mxu0 0.0
    %166 = vmatprep.mubr.f32.mxu0 0.0
    %v167 = vand.u32 %v87, 4294901760
    %v168 = vsub.f32 %v87, %v167
    %v169 = vand.u32 %v168, 4294901760
    %v170 = vsub.f32 %v168, %v169
    %v171 = vand.u32 %v170, 4294901760
    %172 = vmatmul.mubr.f32.gmra.mrb[0].mxu0 %v171
    %v173 = vpop.f32.mrb[0].mxu0
    %v174 = vadd.f32 0.0, %v173
    %v175 = vpop.f32.mrb[0].mxu0
    %176 = vmatprep.mubr.f32.mxu0 0.0
    %v177 = vand.u32 %v90, 4294901760
    %v178 = vsub.f32 %v90, %v177
    %v179 = vand.u32 %v178, 4294901760
    %v180 = vsub.f32 %v178, %v179
    %v181 = vand.u32 %v180, 4294901760
    %182 = vmatmul.mubr.f32.gmra.mrb[0].mxu0 %v181
    %v183 = vpop.f32.mrb[0].mxu0
    %v184 = vadd.f32 0.0, %v183
    %v185 = vpop.f32.mrb[0].mxu0
    %186 = vmatprep.mubr.f32.mxu0 0.0
    %v187 = vand.u32 %v93, 4294901760
    %v188 = vsub.f32 %v93, %v187
    %v189 = vand.u32 %v188, 4294901760
    %v190 = vsub.f32 %v188, %v189
    %v191 = vand.u32 %v190, 4294901760
    %192 = vmatmul.mubr.f32.gmra.mrb[0].mxu0 %v191
    %v193 = vpop.f32.mrb[0].mxu0
    %v194 = vadd.f32 0.0, %v193
    %v195 = vpop.f32.mrb[0].mxu0
    %196 = vmatprep.mubr.f32.mxu0 0.0
    %v197 = vand.u32 %v96, 4294901760
    %v198 = vsub.f32 %v96, %v197
    %v199 = vand.u32 %v198, 4294901760
    %v200 = vsub.f32 %v198, %v199
    %v201 = vand.u32 %v200, 4294901760
    %202 = vmatmul.mubr.f32.gmra.mrb[0].mxu0 %v201
    %v203 = vpop.f32.mrb[0].mxu0
    %v204 = vadd.f32 0.0, %v203
    %v205 = vpop.f32.mrb[0].mxu0
    %206 = vdwg.mxu0
    %207 = vmatprep.subr.mxu0 0.0
    %v208 = vand.u32 %v76, 4294901760
    %v209 = vsub.f32 %v76, %v208
    %v210 = vand.u32 %v209, 4294901760
    %v211 = vsub.f32 %v209, %v210
    %v212 = vand.u32 %v211, 4294901760
    %213 = vmatpush1.msra.mxu0 %v212
    %214 = vmatprep.subr.mxu0 0.0
    %v215 = vand.u32 %v77, 4294901760
    %v216 = vsub.f32 %v77, %v215
    %v217 = vand.u32 %v216, 4294901760
    %v218 = vsub.f32 %v216, %v217
    %v219 = vand.u32 %v218, 4294901760
    %220 = vmatpush1.msra.mxu0 %v219
    %221 = vmatprep.subr.mxu0 0.0
    %v222 = vand.u32 %v78, 4294901760
    %v223 = vsub.f32 %v78, %v222
    %v224 = vand.u32 %v223, 4294901760
    %v225 = vsub.f32 %v223, %v224
    %v226 = vand.u32 %v225, 4294901760
    %227 = vmatpush1.msra.mxu0 %v226
    %228 = vmatprep.subr.mxu0 0.0
    %v229 = vand.u32 %v79, 4294901760
    %v230 = vsub.f32 %v79, %v229
    %v231 = vand.u32 %v230, 4294901760
    %v232 = vsub.f32 %v230, %v231
    %v233 = vand.u32 %v232, 4294901760
    %234 = vmatpush1.msra.mxu0 %v233
    %235 = vmatprep.subr.mxu0 0.0
    %236 = vmatpush1.msra.mxu0 0.0
    %237 = vmatprep.subr.mxu0 0.0
    %238 = vmatpush1.msra.mxu0 0.0
    %239 = vmatprep.subr.mxu0 0.0
    %240 = vmatpush1.msra.mxu0 0.0
    %241 = vmatprep.subr.mxu0 0.0
    %242 = vmatpush1.msra.mxu0 0.0
    %243 = vmatprep.subr.mxu0 0.0
    %244 = vmatpush1.msra.mxu0 0.0
    %245 = vmatprep.subr.mxu0 0.0
    %246 = vmatpush1.msra.mxu0 0.0
    %247 = vmatprep.subr.mxu0 0.0
    %248 = vmatpush1.msra.mxu0 0.0
    %249 = vmatprep.subr.mxu0 0.0
    %250 = vmatpush1.msra.mxu0 0.0
    %251 = vmatprep.subr.mxu0 0.0
    %252 = vmatpush1.msra.mxu0 0.0
    %253 = vmatprep.subr.mxu0 0.0
    %254 = vmatpush1.msra.mxu0 0.0
    %255 = vmatprep.subr.mxu0 0.0
    %256 = vmatpush1.msra.mxu0 0.0
    %257 = vmatprep.subr.mxu0 0.0
    %258 = vmatpush1.msra.mxu0 0.0
    %259 = vmatprep.subr.mxu0 0.0
    %260 = vmatpush1.msra.mxu0 0.0
    %261 = vmatprep.subr.mxu0 0.0
    %262 = vmatpush1.msra.mxu0 0.0
    %263 = vmatprep.subr.mxu0 0.0
    %264 = vmatpush1.msra.mxu0 0.0
    %265 = vmatprep.subr.mxu0 0.0
    %266 = vmatpush1.msra.mxu0 0.0
    %267 = vmatprep.subr.mxu0 0.0
    %268 = vmatpush1.msra.mxu0 0.0
    %269 = vmatprep.subr.mxu0 0.0
    %270 = vmatpush1.msra.mxu0 0.0
    %271 = vmatprep.subr.mxu0 0.0
    %272 = vmatpush1.msra.mxu0 0.0
    %273 = vmatprep.subr.mxu0 0.0
    %274 = vmatpush1.msra.mxu0 0.0
    %275 = vmatprep.subr.mxu0 0.0
    %276 = vmatpush1.msra.mxu0 0.0
    %277 = vmatprep.subr.mxu0 0.0
    %278 = vmatpush1.msra.mxu0 0.0
    %279 = vmatprep.subr.mxu0 0.0
    %280 = vmatpush1.msra.mxu0 0.0
    %281 = vmatprep.subr.mxu0 0.0
    %282 = vmatpush1.msra.mxu0 0.0
    %283 = vmatprep.subr.mxu0 0.0
    %284 = vmatpush1.msra.mxu0 0.0
    %285 = vmatprep.subr.mxu0 0.0
    %286 = vmatpush1.msra.mxu0 0.0
    %287 = vmatprep.subr.mxu0 0.0
    %288 = vmatpush1.msra.mxu0 0.0
    %289 = vmatprep.subr.mxu0 0.0
    %290 = vmatpush1.msra.mxu0 0.0
    %291 = vmatprep.mubr.f32.mxu0 0.0
    %v292 = vand.u32 %v87, 4294901760
    %293 = vmatmul.mubr.f32.gmra.mrb[0].mxu0 %v292
    %v294 = vpop.f32.mrb[0].mxu0
    %v295 = vadd.f32 %v174, %v294
    %v296 = vpop.f32.mrb[0].mxu0
    %297 = vmatprep.mubr.f32.mxu0 0.0
    %v298 = vand.u32 %v90, 4294901760
    %299 = vmatmul.mubr.f32.gmra.mrb[0].mxu0 %v298
    %v300 = vpop.f32.mrb[0].mxu0
    %v301 = vadd.f32 %v184, %v300
    %v302 = vpop.f32.mrb[0].mxu0
    %303 = vmatprep.mubr.f32.mxu0 0.0
    %v304 = vand.u32 %v93, 4294901760
    %305 = vmatmul.mubr.f32.gmra.mrb[0].mxu0 %v304
    %v306 = vpop.f32.mrb[0].mxu0
    %v307 = vadd.f32 %v194, %v306
    %v308 = vpop.f32.mrb[0].mxu0
    %309 = vmatprep.mubr.f32.mxu0 0.0
    %v310 = vand.u32 %v96, 4294901760
    %311 = vmatmul.mubr.f32.gmra.mrb[0].mxu0 %v310
    %v312 = vpop.f32.mrb[0].mxu0
    %v313 = vadd.f32 %v204, %v312
    %v314 = vpop.f32.mrb[0].mxu0
    %315 = vdwg.mxu0
    %316 = vmatprep.subr.mxu0 0.0
    %v317 = vand.u32 %v76, 4294901760
    %v318 = vsub.f32 %v76, %v317
    %319 = vmatpush1.msra.mxu0 %v318
    %320 = vmatprep.subr.mxu0 0.0
    %v321 = vand.u32 %v77, 4294901760
    %v322 = vsub.f32 %v77, %v321
    %323 = vmatpush1.msra.mxu0 %v322
    %324 = vmatprep.subr.mxu0 0.0
    %v325 = vand.u32 %v78, 4294901760
    %v326 = vsub.f32 %v78, %v325
    %327 = vmatpush1.msra.mxu0 %v326
    %328 = vmatprep.subr.mxu0 0.0
    %v329 = vand.u32 %v79, 4294901760
    %v330 = vsub.f32 %v79, %v329
    %331 = vmatpush1.msra.mxu0 %v330
    %332 = vmatprep.subr.mxu0 0.0
    %333 = vmatpush1.msra.mxu0 0.0
    %334 = vmatprep.subr.mxu0 0.0
    %335 = vmatpush1.msra.mxu0 0.0
    %336 = vmatprep.subr.mxu0 0.0
    %337 = vmatpush1.msra.mxu0 0.0
    %338 = vmatprep.subr.mxu0 0.0
    %339 = vmatpush1.msra.mxu0 0.0
    %340 = vmatprep.subr.mxu0 0.0
    %341 = vmatpush1.msra.mxu0 0.0
    %342 = vmatprep.subr.mxu0 0.0
    %343 = vmatpush1.msra.mxu0 0.0
    %344 = vmatprep.subr.mxu0 0.0
    %345 = vmatpush1.msra.mxu0 0.0
    %346 = vmatprep.subr.mxu0 0.0
    %347 = vmatpush1.msra.mxu0 0.0
    %348 = vmatprep.subr.mxu0 0.0
    %349 = vmatpush1.msra.mxu0 0.0
    %350 = vmatprep.subr.mxu0 0.0
    %351 = vmatpush1.msra.mxu0 0.0
    %352 = vmatprep.subr.mxu0 0.0
    %353 = vmatpush1.msra.mxu0 0.0
    %354 = vmatprep.subr.mxu0 0.0
    %355 = vmatpush1.msra.mxu0 0.0
    %356 = vmatprep.subr.mxu0 0.0
    %357 = vmatpush1.msra.mxu0 0.0
    %358 = vmatprep.subr.mxu0 0.0
    %359 = vmatpush1.msra.mxu0 0.0
    %360 = vmatprep.subr.mxu0 0.0
    %361 = vmatpush1.msra.mxu0 0.0
    %362 = vmatprep.subr.mxu0 0.0
    %363 = vmatpush1.msra.mxu0 0.0
    %364 = vmatprep.subr.mxu0 0.0
    %365 = vmatpush1.msra.mxu0 0.0
    %366 = vmatprep.subr.mxu0 0.0
    %367 = vmatpush1.msra.mxu0 0.0
    %368 = vmatprep.subr.mxu0 0.0
    %369 = vmatpush1.msra.mxu0 0.0
    %370 = vmatprep.subr.mxu0 0.0
    %371 = vmatpush1.msra.mxu0 0.0
    %372 = vmatprep.subr.mxu0 0.0
    %373 = vmatpush1.msra.mxu0 0.0
    %374 = vmatprep.subr.mxu0 0.0
    %375 = vmatpush1.msra.mxu0 0.0
    %376 = vmatprep.subr.mxu0 0.0
    %377 = vmatpush1.msra.mxu0 0.0
    %378 = vmatprep.subr.mxu0 0.0
    %379 = vmatpush1.msra.mxu0 0.0
    %380 = vmatprep.subr.mxu0 0.0
    %381 = vmatpush1.msra.mxu0 0.0
    %382 = vmatprep.subr.mxu0 0.0
    %383 = vmatpush1.msra.mxu0 0.0
    %384 = vmatprep.subr.mxu0 0.0
    %385 = vmatpush1.msra.mxu0 0.0
    %386 = vmatprep.subr.mxu0 0.0
    %387 = vmatpush1.msra.mxu0 0.0
    %388 = vmatprep.mubr.f32.mxu0 0.0
    %v389 = vand.u32 %v87, 4294901760
    %v390 = vsub.f32 %v87, %v389
    %391 = vmatmul.mubr.f32.gmra.mrb[0].mxu0 %v390
    %v392 = vpop.f32.mrb[0].mxu0
    %v393 = vadd.f32 %v295, %v392
    %v394 = vpop.f32.mrb[0].mxu0
    %395 = vmatprep.mubr.f32.mxu0 0.0
    %v396 = vand.u32 %v90, 4294901760
    %v397 = vsub.f32 %v90, %v396
    %398 = vmatmul.mubr.f32.gmra.mrb[0].mxu0 %v397
    %v399 = vpop.f32.mrb[0].mxu0
    %v400 = vadd.f32 %v301, %v399
    %v401 = vpop.f32.mrb[0].mxu0
    %402 = vmatprep.mubr.f32.mxu0 0.0
    %v403 = vand.u32 %v93, 4294901760
    %v404 = vsub.f32 %v93, %v403
    %405 = vmatmul.mubr.f32.gmra.mrb[0].mxu0 %v404
    %v406 = vpop.f32.mrb[0].mxu0
    %v407 = vadd.f32 %v307, %v406
    %v408 = vpop.f32.mrb[0].mxu0
    %409 = vmatprep.mubr.f32.mxu0 0.0
    %v410 = vand.u32 %v96, 4294901760
    %v411 = vsub.f32 %v96, %v410
    %412 = vmatmul.mubr.f32.gmra.mrb[0].mxu0 %v411
    %v413 = vpop.f32.mrb[0].mxu0
    %v414 = vadd.f32 %v313, %v413
    %v415 = vpop.f32.mrb[0].mxu0
    %416 = vdwg.mxu0
    %417 = vmatprep.subr.mxu0 0.0
    %v418 = vand.u32 %v76, 4294901760
    %419 = vmatpush1.msra.mxu0 %v418
    %420 = vmatprep.subr.mxu0 0.0
    %v421 = vand.u32 %v77, 4294901760
    %422 = vmatpush1.msra.mxu0 %v421
    %423 = vmatprep.subr.mxu0 0.0
    %v424 = vand.u32 %v78, 4294901760
    %425 = vmatpush1.msra.mxu0 %v424
    %426 = vmatprep.subr.mxu0 0.0
    %v427 = vand.u32 %v79, 4294901760
    %428 = vmatpush1.msra.mxu0 %v427
    %429 = vmatprep.subr.mxu0 0.0
    %430 = vmatpush1.msra.mxu0 0.0
    %431 = vmatprep.subr.mxu0 0.0
    %432 = vmatpush1.msra.mxu0 0.0
    %433 = vmatprep.subr.mxu0 0.0
    %434 = vmatpush1.msra.mxu0 0.0
    %435 = vmatprep.subr.mxu0 0.0
    %436 = vmatpush1.msra.mxu0 0.0
    %437 = vmatprep.subr.mxu0 0.0
    %438 = vmatpush1.msra.mxu0 0.0
    %439 = vmatprep.subr.mxu0 0.0
    %440 = vmatpush1.msra.mxu0 0.0
    %441 = vmatprep.subr.mxu0 0.0
    %442 = vmatpush1.msra.mxu0 0.0
    %443 = vmatprep.subr.mxu0 0.0
    %444 = vmatpush1.msra.mxu0 0.0
    %445 = vmatprep.subr.mxu0 0.0
    %446 = vmatpush1.msra.mxu0 0.0
    %447 = vmatprep.subr.mxu0 0.0
    %448 = vmatpush1.msra.mxu0 0.0
    %449 = vmatprep.subr.mxu0 0.0
    %450 = vmatpush1.msra.mxu0 0.0
    %451 = vmatprep.subr.mxu0 0.0
    %452 = vmatpush1.msra.mxu0 0.0
    %453 = vmatprep.subr.mxu0 0.0
    %454 = vmatpush1.msra.mxu0 0.0
    %455 = vmatprep.subr.mxu0 0.0
    %456 = vmatpush1.msra.mxu0 0.0
    %457 = vmatprep.subr.mxu0 0.0
    %458 = vmatpush1.msra.mxu0 0.0
    %459 = vmatprep.subr.mxu0 0.0
    %460 = vmatpush1.msra.mxu0 0.0
    %461 = vmatprep.subr.mxu0 0.0
    %462 = vmatpush1.msra.mxu0 0.0
    %463 = vmatprep.subr.mxu0 0.0
    %464 = vmatpush1.msra.mxu0 0.0
    %465 = vmatprep.subr.mxu0 0.0
    %466 = vmatpush1.msra.mxu0 0.0
    %467 = vmatprep.subr.mxu0 0.0
    %468 = vmatpush1.msra.mxu0 0.0
    %469 = vmatprep.subr.mxu0 0.0
    %470 = vmatpush1.msra.mxu0 0.0
    %471 = vmatprep.subr.mxu0 0.0
    %472 = vmatpush1.msra.mxu0 0.0
    %473 = vmatprep.subr.mxu0 0.0
    %474 = vmatpush1.msra.mxu0 0.0
    %475 = vmatprep.subr.mxu0 0.0
    %476 = vmatpush1.msra.mxu0 0.0
    %477 = vmatprep.subr.mxu0 0.0
    %478 = vmatpush1.msra.mxu0 0.0
    %479 = vmatprep.subr.mxu0 0.0
    %480 = vmatpush1.msra.mxu0 0.0
    %481 = vmatprep.subr.mxu0 0.0
    %482 = vmatpush1.msra.mxu0 0.0
    %483 = vmatprep.subr.mxu0 0.0
    %484 = vmatpush1.msra.mxu0 0.0
    %485 = vmatprep.mubr.f32.mxu0 0.0
    %v486 = vand.u32 %v87, 4294901760
    %v487 = vsub.f32 %v87, %v486
    %v488 = vand.u32 %v487, 4294901760
    %489 = vmatmul.mubr.f32.gmra.mrb[0].mxu0 %v488
    %v490 = vpop.f32.mrb[0].mxu0
    %v491 = vadd.f32 %v393, %v490
    %v492 = vpop.f32.mrb[0].mxu0
    %493 = vmatprep.mubr.f32.mxu0 0.0
    %v494 = vand.u32 %v90, 4294901760
    %v495 = vsub.f32 %v90, %v494
    %v496 = vand.u32 %v495, 4294901760
    %497 = vmatmul.mubr.f32.gmra.mrb[0].mxu0 %v496
    %v498 = vpop.f32.mrb[0].mxu0
    %v499 = vadd.f32 %v400, %v498
    %v500 = vpop.f32.mrb[0].mxu0
    %501 = vmatprep.mubr.f32.mxu0 0.0
    %v502 = vand.u32 %v93, 4294901760
    %v503 = vsub.f32 %v93, %v502
    %v504 = vand.u32 %v503, 4294901760
    %505 = vmatmul.mubr.f32.gmra.mrb[0].mxu0 %v504
    %v506 = vpop.f32.mrb[0].mxu0
    %v507 = vadd.f32 %v407, %v506
    %v508 = vpop.f32.mrb[0].mxu0
    %509 = vmatprep.mubr.f32.mxu0 0.0
    %v510 = vand.u32 %v96, 4294901760
    %v511 = vsub.f32 %v96, %v510
    %v512 = vand.u32 %v511, 4294901760
    %513 = vmatmul.mubr.f32.gmra.mrb[0].mxu0 %v512
    %v514 = vpop.f32.mrb[0].mxu0
    %v515 = vadd.f32 %v414, %v514
    %v516 = vpop.f32.mrb[0].mxu0
    %517 = vdwg.mxu0
    %518 = vmatprep.subr.mxu0 0.0
    %v519 = vand.u32 %v76, 4294901760
    %v520 = vsub.f32 %v76, %v519
    %v521 = vand.u32 %v520, 4294901760
    %522 = vmatpush1.msra.mxu0 %v521
    %523 = vmatprep.subr.mxu0 0.0
    %v524 = vand.u32 %v77, 4294901760
    %v525 = vsub.f32 %v77, %v524
    %v526 = vand.u32 %v525, 4294901760
    %527 = vmatpush1.msra.mxu0 %v526
    %528 = vmatprep.subr.mxu0 0.0
    %v529 = vand.u32 %v78, 4294901760
    %v530 = vsub.f32 %v78, %v529
    %v531 = vand.u32 %v530, 4294901760
    %532 = vmatpush1.msra.mxu0 %v531
    %533 = vmatprep.subr.mxu0 0.0
    %v534 = vand.u32 %v79, 4294901760
    %v535 = vsub.f32 %v79, %v534
    %v536 = vand.u32 %v535, 4294901760
    %537 = vmatpush1.msra.mxu0 %v536
    %538 = vmatprep.subr.mxu0 0.0
    %539 = vmatpush1.msra.mxu0 0.0
    %540 = vmatprep.subr.mxu0 0.0
    %541 = vmatpush1.msra.mxu0 0.0
    %542 = vmatprep.subr.mxu0 0.0
    %543 = vmatpush1.msra.mxu0 0.0
    %544 = vmatprep.subr.mxu0 0.0
    %545 = vmatpush1.msra.mxu0 0.0
    %546 = vmatprep.subr.mxu0 0.0
    %547 = vmatpush1.msra.mxu0 0.0
    %548 = vmatprep.subr.mxu0 0.0
    %549 = vmatpush1.msra.mxu0 0.0
    %550 = vmatprep.subr.mxu0 0.0
    %551 = vmatpush1.msra.mxu0 0.0
    %552 = vmatprep.subr.mxu0 0.0
    %553 = vmatpush1.msra.mxu0 0.0
    %554 = vmatprep.subr.mxu0 0.0
    %555 = vmatpush1.msra.mxu0 0.0
    %556 = vmatprep.subr.mxu0 0.0
    %557 = vmatpush1.msra.mxu0 0.0
    %558 = vmatprep.subr.mxu0 0.0
    %559 = vmatpush1.msra.mxu0 0.0
    %560 = vmatprep.subr.mxu0 0.0
    %561 = vmatpush1.msra.mxu0 0.0
    %562 = vmatprep.subr.mxu0 0.0
    %563 = vmatpush1.msra.mxu0 0.0
    %564 = vmatprep.subr.mxu0 0.0
    %565 = vmatpush1.msra.mxu0 0.0
    %566 = vmatprep.subr.mxu0 0.0
    %567 = vmatpush1.msra.mxu0 0.0
    %568 = vmatprep.subr.mxu0 0.0
    %569 = vmatpush1.msra.mxu0 0.0
    %570 = vmatprep.subr.mxu0 0.0
    %571 = vmatpush1.msra.mxu0 0.0
    %572 = vmatprep.subr.mxu0 0.0
    %573 = vmatpush1.msra.mxu0 0.0
    %574 = vmatprep.subr.mxu0 0.0
    %575 = vmatpush1.msra.mxu0 0.0
    %576 = vmatprep.subr.mxu0 0.0
    %577 = vmatpush1.msra.mxu0 0.0
    %578 = vmatprep.subr.mxu0 0.0
    %579 = vmatpush1.msra.mxu0 0.0
    %580 = vmatprep.subr.mxu0 0.0
    %581 = vmatpush1.msra.mxu0 0.0
    %582 = vmatprep.subr.mxu0 0.0
    %583 = vmatpush1.msra.mxu0 0.0
    %584 = vmatprep.subr.mxu0 0.0
    %585 = vmatpush1.msra.mxu0 0.0
    %586 = vmatprep.subr.mxu0 0.0
    %587 = vmatpush1.msra.mxu0 0.0
    %588 = vmatprep.subr.mxu0 0.0
    %589 = vmatpush1.msra.mxu0 0.0
    %590 = vmatprep.subr.mxu0 0.0
    %591 = vmatpush1.msra.mxu0 0.0
    %592 = vmatprep.subr.mxu0 0.0
    %593 = vmatpush1.msra.mxu0 0.0
    %594 = vmatprep.mubr.f32.mxu0 0.0
    %v595 = vand.u32 %v87, 4294901760
    %596 = vmatmul.mubr.f32.gmra.mrb[0].mxu0 %v595
    %v597 = vpop.f32.mrb[0].mxu0
    %v598 = vadd.f32 %v491, %v597
    %v599 = vpop.f32.mrb[0].mxu0
    %600 = vmatprep.mubr.f32.mxu0 0.0
    %v601 = vand.u32 %v90, 4294901760
    %602 = vmatmul.mubr.f32.gmra.mrb[0].mxu0 %v601
    %v603 = vpop.f32.mrb[0].mxu0
    %v604 = vadd.f32 %v499, %v603
    %v605 = vpop.f32.mrb[0].mxu0
    %606 = vmatprep.mubr.f32.mxu0 0.0
    %v607 = vand.u32 %v93, 4294901760
    %608 = vmatmul.mubr.f32.gmra.mrb[0].mxu0 %v607
    %v609 = vpop.f32.mrb[0].mxu0
    %v610 = vadd.f32 %v507, %v609
    %v611 = vpop.f32.mrb[0].mxu0
    %612 = vmatprep.mubr.f32.mxu0 0.0
    %v613 = vand.u32 %v96, 4294901760
    %614 = vmatmul.mubr.f32.gmra.mrb[0].mxu0 %v613
    %v615 = vpop.f32.mrb[0].mxu0
    %v616 = vadd.f32 %v515, %v615
    %v617 = vpop.f32.mrb[0].mxu0
    %618 = vdwg.mxu0
    %619 = vmatprep.subr.mxu0 0.0
    %v620 = vand.u32 %v76, 4294901760
    %621 = vmatpush1.msra.mxu0 %v620
    %622 = vmatprep.subr.mxu0 0.0
    %v623 = vand.u32 %v77, 4294901760
    %624 = vmatpush1.msra.mxu0 %v623
    %625 = vmatprep.subr.mxu0 0.0
    %v626 = vand.u32 %v78, 4294901760
    %627 = vmatpush1.msra.mxu0 %v626
    %628 = vmatprep.subr.mxu0 0.0
    %v629 = vand.u32 %v79, 4294901760
    %630 = vmatpush1.msra.mxu0 %v629
    %631 = vmatprep.subr.mxu0 0.0
    %632 = vmatpush1.msra.mxu0 0.0
    %633 = vmatprep.subr.mxu0 0.0
    %634 = vmatpush1.msra.mxu0 0.0
    %635 = vmatprep.subr.mxu0 0.0
    %636 = vmatpush1.msra.mxu0 0.0
    %637 = vmatprep.subr.mxu0 0.0
    %638 = vmatpush1.msra.mxu0 0.0
    %639 = vmatprep.subr.mxu0 0.0
    %640 = vmatpush1.msra.mxu0 0.0
    %641 = vmatprep.subr.mxu0 0.0
    %642 = vmatpush1.msra.mxu0 0.0
    %643 = vmatprep.subr.mxu0 0.0
    %644 = vmatpush1.msra.mxu0 0.0
    %645 = vmatprep.subr.mxu0 0.0
    %646 = vmatpush1.msra.mxu0 0.0
    %647 = vmatprep.subr.mxu0 0.0
    %648 = vmatpush1.msra.mxu0 0.0
    %649 = vmatprep.subr.mxu0 0.0
    %650 = vmatpush1.msra.mxu0 0.0
    %651 = vmatprep.subr.mxu0 0.0
    %652 = vmatpush1.msra.mxu0 0.0
    %653 = vmatprep.subr.mxu0 0.0
    %654 = vmatpush1.msra.mxu0 0.0
    %655 = vmatprep.subr.mxu0 0.0
    %656 = vmatpush1.msra.mxu0 0.0
    %657 = vmatprep.subr.mxu0 0.0
    %658 = vmatpush1.msra.mxu0 0.0
    %659 = vmatprep.subr.mxu0 0.0
    %660 = vmatpush1.msra.mxu0 0.0
    %661 = vmatprep.subr.mxu0 0.0
    %662 = vmatpush1.msra.mxu0 0.0
    %663 = vmatprep.subr.mxu0 0.0
    %664 = vmatpush1.msra.mxu0 0.0
    %665 = vmatprep.subr.mxu0 0.0
    %666 = vmatpush1.msra.mxu0 0.0
    %667 = vmatprep.subr.mxu0 0.0
    %668 = vmatpush1.msra.mxu0 0.0
    %669 = vmatprep.subr.mxu0 0.0
    %670 = vmatpush1.msra.mxu0 0.0
    %671 = vmatprep.subr.mxu0 0.0
    %672 = vmatpush1.msra.mxu0 0.0
    %673 = vmatprep.subr.mxu0 0.0
    %674 = vmatpush1.msra.mxu0 0.0
    %675 = vmatprep.subr.mxu0 0.0
    %676 = vmatpush1.msra.mxu0 0.0
    %677 = vmatprep.subr.mxu0 0.0
    %678 = vmatpush1.msra.mxu0 0.0
    %679 = vmatprep.subr.mxu0 0.0
    %680 = vmatpush1.msra.mxu0 0.0
    %681 = vmatprep.subr.mxu0 0.0
    %682 = vmatpush1.msra.mxu0 0.0
    %683 = vmatprep.subr.mxu0 0.0
    %684 = vmatpush1.msra.mxu0 0.0
    %685 = vmatprep.subr.mxu0 0.0
    %686 = vmatpush1.msra.mxu0 0.0
    %687 = vmatprep.mubr.f32.mxu0 0.0
    %v688 = vand.u32 %v87, 4294901760
    %689 = vmatmul.mubr.f32.gmra.mrb[0].mxu0 %v688
    %v690 = vpop.f32.mrb[0].mxu0
    %v691 = vadd.f32 %v598, %v690
    %v692 = vpop.f32.mrb[0].mxu0
    %693 = vmatprep.mubr.f32.mxu0 0.0
    %v694 = vand.u32 %v90, 4294901760
    %695 = vmatmul.mubr.f32.gmra.mrb[0].mxu0 %v694
    %v696 = vpop.f32.mrb[0].mxu0
    %v697 = vadd.f32 %v604, %v696
    %v698 = vpop.f32.mrb[0].mxu0
    %699 = vmatprep.mubr.f32.mxu0 0.0
    %v700 = vand.u32 %v93, 4294901760
    %701 = vmatmul.mubr.f32.gmra.mrb[0].mxu0 %v700
    %v702 = vpop.f32.mrb[0].mxu0
    %v703 = vadd.f32 %v610, %v702
    %v704 = vpop.f32.mrb[0].mxu0
    %705 = vmatprep.mubr.f32.mxu0 0.0
    %v706 = vand.u32 %v96, 4294901760
    %707 = vmatmul.mubr.f32.gmra.mrb[0].mxu0 %v706
    %v708 = vpop.f32.mrb[0].mxu0
    %v709 = vadd.f32 %v616, %v708
    %v710 = vpop.f32.mrb[0].mxu0
    %711 = vdwg.mxu0
    %v713 = vsel %vm85, %v59, 0
    %v716 = vsel %vm85, %v60, 0
    %v719 = vsel %vm85, %v61, 0
    %v722 = vsel %vm85, %v62, 0
    %724 = vmatprep.subr.mxu0 0.0
    %v725 = vand.u32 %v55, 4294901760
    %726 = vmatpush1.msra.mxu0 %v725
    %727 = vmatprep.subr.mxu0 0.0
    %v728 = vand.u32 %v56, 4294901760
    %729 = vmatpush1.msra.mxu0 %v728
    %730 = vmatprep.subr.mxu0 0.0
    %v731 = vand.u32 %v57, 4294901760
    %732 = vmatpush1.msra.mxu0 %v731
    %733 = vmatprep.subr.mxu0 0.0
    %v734 = vand.u32 %v58, 4294901760
    %735 = vmatpush1.msra.mxu0 %v734
    %736 = vmatprep.subr.mxu0 0.0
    %737 = vmatpush1.msra.mxu0 0.0
    %738 = vmatprep.subr.mxu0 0.0
    %739 = vmatpush1.msra.mxu0 0.0
    %740 = vmatprep.subr.mxu0 0.0
    %741 = vmatpush1.msra.mxu0 0.0
    %742 = vmatprep.subr.mxu0 0.0
    %743 = vmatpush1.msra.mxu0 0.0
    %744 = vmatprep.subr.mxu0 0.0
    %745 = vmatpush1.msra.mxu0 0.0
    %746 = vmatprep.subr.mxu0 0.0
    %747 = vmatpush1.msra.mxu0 0.0
    %748 = vmatprep.subr.mxu0 0.0
    %749 = vmatpush1.msra.mxu0 0.0
    %750 = vmatprep.subr.mxu0 0.0
    %751 = vmatpush1.msra.mxu0 0.0
    %752 = vmatprep.subr.mxu0 0.0
    %753 = vmatpush1.msra.mxu0 0.0
    %754 = vmatprep.subr.mxu0 0.0
    %755 = vmatpush1.msra.mxu0 0.0
    %756 = vmatprep.subr.mxu0 0.0
    %757 = vmatpush1.msra.mxu0 0.0
    %758 = vmatprep.subr.mxu0 0.0
    %759 = vmatpush1.msra.mxu0 0.0
    %760 = vmatprep.subr.mxu0 0.0
    %761 = vmatpush1.msra.mxu0 0.0
    %762 = vmatprep.subr.mxu0 0.0
    %763 = vmatpush1.msra.mxu0 0.0
    %764 = vmatprep.subr.mxu0 0.0
    %765 = vmatpush1.msra.mxu0 0.0
    %766 = vmatprep.subr.mxu0 0.0
    %767 = vmatpush1.msra.mxu0 0.0
    %768 = vmatprep.subr.mxu0 0.0
    %769 = vmatpush1.msra.mxu0 0.0
    %770 = vmatprep.subr.mxu0 0.0
    %771 = vmatpush1.msra.mxu0 0.0
    %772 = vmatprep.subr.mxu0 0.0
    %773 = vmatpush1.msra.mxu0 0.0
    %774 = vmatprep.subr.mxu0 0.0
    %775 = vmatpush1.msra.mxu0 0.0
    %776 = vmatprep.subr.mxu0 0.0
    %777 = vmatpush1.msra.mxu0 0.0
    %778 = vmatprep.subr.mxu0 0.0
    %779 = vmatpush1.msra.mxu0 0.0
    %780 = vmatprep.subr.mxu0 0.0
    %781 = vmatpush1.msra.mxu0 0.0
    %782 = vmatprep.subr.mxu0 0.0
    %783 = vmatpush1.msra.mxu0 0.0
    %784 = vmatprep.subr.mxu0 0.0
    %785 = vmatpush1.msra.mxu0 0.0
    %786 = vmatprep.subr.mxu0 0.0
    %787 = vmatpush1.msra.mxu0 0.0
    %788 = vmatprep.subr.mxu0 0.0
    %789 = vmatpush1.msra.mxu0 0.0
    %790 = vmatprep.subr.mxu0 0.0
    %791 = vmatpush1.msra.mxu0 0.0
    %792 = vmatprep.mubr.f32.mxu0 0.0
    %v793 = vand.u32 %v713, 4294901760
    %v794 = vsub.f32 %v713, %v793
    %v795 = vand.u32 %v794, 4294901760
    %v796 = vsub.f32 %v794, %v795
    %v797 = vand.u32 %v796, 4294901760
    %798 = vmatmul.mubr.f32.gmra.mrb[0].mxu0 %v797
    %v799 = vpop.f32.mrb[0].mxu0
    %v800 = vadd.f32 %v691, %v799
    %v801 = vpop.f32.mrb[0].mxu0
    %802 = vmatprep.mubr.f32.mxu0 0.0
    %v803 = vand.u32 %v716, 4294901760
    %v804 = vsub.f32 %v716, %v803
    %v805 = vand.u32 %v804, 4294901760
    %v806 = vsub.f32 %v804, %v805
    %v807 = vand.u32 %v806, 4294901760
    %808 = vmatmul.mubr.f32.gmra.mrb[0].mxu0 %v807
    %v809 = vpop.f32.mrb[0].mxu0
    %v810 = vadd.f32 %v697, %v809
    %v811 = vpop.f32.mrb[0].mxu0
    %812 = vmatprep.mubr.f32.mxu0 0.0
    %v813 = vand.u32 %v719, 4294901760
    %v814 = vsub.f32 %v719, %v813
    %v815 = vand.u32 %v814, 4294901760
    %v816 = vsub.f32 %v814, %v815
    %v817 = vand.u32 %v816, 4294901760
    %818 = vmatmul.mubr.f32.gmra.mrb[0].mxu0 %v817
    %v819 = vpop.f32.mrb[0].mxu0
    %v820 = vadd.f32 %v703, %v819
    %v821 = vpop.f32.mrb[0].mxu0
    %822 = vmatprep.mubr.f32.mxu0 0.0
    %v823 = vand.u32 %v722, 4294901760
    %v824 = vsub.f32 %v722, %v823
    %v825 = vand.u32 %v824, 4294901760
    %v826 = vsub.f32 %v824, %v825
    %v827 = vand.u32 %v826, 4294901760
    %828 = vmatmul.mubr.f32.gmra.mrb[0].mxu0 %v827
    %v829 = vpop.f32.mrb[0].mxu0
    %v830 = vadd.f32 %v709, %v829
    %v831 = vpop.f32.mrb[0].mxu0
    %832 = vdwg.mxu0
    %833 = vmatprep.subr.mxu0 0.0
    %v834 = vand.u32 %v55, 4294901760
    %v835 = vsub.f32 %v55, %v834
    %v836 = vand.u32 %v835, 4294901760
    %v837 = vsub.f32 %v835, %v836
    %v838 = vand.u32 %v837, 4294901760
    %839 = vmatpush1.msra.mxu0 %v838
    %840 = vmatprep.subr.mxu0 0.0
    %v841 = vand.u32 %v56, 4294901760
    %v842 = vsub.f32 %v56, %v841
    %v843 = vand.u32 %v842, 4294901760
    %v844 = vsub.f32 %v842, %v843
    %v845 = vand.u32 %v844, 4294901760
    %846 = vmatpush1.msra.mxu0 %v845
    %847 = vmatprep.subr.mxu0 0.0
    %v848 = vand.u32 %v57, 4294901760
    %v849 = vsub.f32 %v57, %v848
    %v850 = vand.u32 %v849, 4294901760
    %v851 = vsub.f32 %v849, %v850
    %v852 = vand.u32 %v851, 4294901760
    %853 = vmatpush1.msra.mxu0 %v852
    %854 = vmatprep.subr.mxu0 0.0
    %v855 = vand.u32 %v58, 4294901760
    %v856 = vsub.f32 %v58, %v855
    %v857 = vand.u32 %v856, 4294901760
    %v858 = vsub.f32 %v856, %v857
    %v859 = vand.u32 %v858, 4294901760
    %860 = vmatpush1.msra.mxu0 %v859
    %861 = vmatprep.subr.mxu0 0.0
    %862 = vmatpush1.msra.mxu0 0.0
    %863 = vmatprep.subr.mxu0 0.0
    %864 = vmatpush1.msra.mxu0 0.0
    %865 = vmatprep.subr.mxu0 0.0
    %866 = vmatpush1.msra.mxu0 0.0
    %867 = vmatprep.subr.mxu0 0.0
    %868 = vmatpush1.msra.mxu0 0.0
    %869 = vmatprep.subr.mxu0 0.0
    %870 = vmatpush1.msra.mxu0 0.0
    %871 = vmatprep.subr.mxu0 0.0
    %872 = vmatpush1.msra.mxu0 0.0
    %873 = vmatprep.subr.mxu0 0.0
    %874 = vmatpush1.msra.mxu0 0.0
    %875 = vmatprep.subr.mxu0 0.0
    %876 = vmatpush1.msra.mxu0 0.0
    %877 = vmatprep.subr.mxu0 0.0
    %878 = vmatpush1.msra.mxu0 0.0
    %879 = vmatprep.subr.mxu0 0.0
    %880 = vmatpush1.msra.mxu0 0.0
    %881 = vmatprep.subr.mxu0 0.0
    %882 = vmatpush1.msra.mxu0 0.0
    %883 = vmatprep.subr.mxu0 0.0
    %884 = vmatpush1.msra.mxu0 0.0
    %885 = vmatprep.subr.mxu0 0.0
    %886 = vmatpush1.msra.mxu0 0.0
    %887 = vmatprep.subr.mxu0 0.0
    %888 = vmatpush1.msra.mxu0 0.0
    %889 = vmatprep.subr.mxu0 0.0
    %890 = vmatpush1.msra.mxu0 0.0
    %891 = vmatprep.subr.mxu0 0.0
    %892 = vmatpush1.msra.mxu0 0.0
    %893 = vmatprep.subr.mxu0 0.0
    %894 = vmatpush1.msra.mxu0 0.0
    %895 = vmatprep.subr.mxu0 0.0
    %896 = vmatpush1.msra.mxu0 0.0
    %897 = vmatprep.subr.mxu0 0.0
    %898 = vmatpush1.msra.mxu0 0.0
    %899 = vmatprep.subr.mxu0 0.0
    %900 = vmatpush1.msra.mxu0 0.0
    %901 = vmatprep.subr.mxu0 0.0
    %902 = vmatpush1.msra.mxu0 0.0
    %903 = vmatprep.subr.mxu0 0.0
    %904 = vmatpush1.msra.mxu0 0.0
    %905 = vmatprep.subr.mxu0 0.0
    %906 = vmatpush1.msra.mxu0 0.0
    %907 = vmatprep.subr.mxu0 0.0
    %908 = vmatpush1.msra.mxu0 0.0
    %909 = vmatprep.subr.mxu0 0.0
    %910 = vmatpush1.msra.mxu0 0.0
    %911 = vmatprep.subr.mxu0 0.0
    %912 = vmatpush1.msra.mxu0 0.0
    %913 = vmatprep.subr.mxu0 0.0
    %914 = vmatpush1.msra.mxu0 0.0
    %915 = vmatprep.subr.mxu0 0.0
    %916 = vmatpush1.msra.mxu0 0.0
    %917 = vmatprep.mubr.f32.mxu0 0.0
    %v918 = vand.u32 %v713, 4294901760
    %919 = vmatmul.mubr.f32.gmra.mrb[0].mxu0 %v918
    %v920 = vpop.f32.mrb[0].mxu0
    %v921 = vadd.f32 %v800, %v920
    %v922 = vpop.f32.mrb[0].mxu0
    %923 = vmatprep.mubr.f32.mxu0 0.0
    %v924 = vand.u32 %v716, 4294901760
    %925 = vmatmul.mubr.f32.gmra.mrb[0].mxu0 %v924
    %v926 = vpop.f32.mrb[0].mxu0
    %v927 = vadd.f32 %v810, %v926
    %v928 = vpop.f32.mrb[0].mxu0
    %929 = vmatprep.mubr.f32.mxu0 0.0
    %v930 = vand.u32 %v719, 4294901760
    %931 = vmatmul.mubr.f32.gmra.mrb[0].mxu0 %v930
    %v932 = vpop.f32.mrb[0].mxu0
    %v933 = vadd.f32 %v820, %v932
    %v934 = vpop.f32.mrb[0].mxu0
    %935 = vmatprep.mubr.f32.mxu0 0.0
    %v936 = vand.u32 %v722, 4294901760
    %937 = vmatmul.mubr.f32.gmra.mrb[0].mxu0 %v936
    %v938 = vpop.f32.mrb[0].mxu0
    %v939 = vadd.f32 %v830, %v938
    %v940 = vpop.f32.mrb[0].mxu0
    %941 = vdwg.mxu0
    %942 = vmatprep.subr.mxu0 0.0
    %v943 = vand.u32 %v55, 4294901760
    %v944 = vsub.f32 %v55, %v943
    %945 = vmatpush1.msra.mxu0 %v944
    %946 = vmatprep.subr.mxu0 0.0
    %v947 = vand.u32 %v56, 4294901760
    %v948 = vsub.f32 %v56, %v947
    %949 = vmatpush1.msra.mxu0 %v948
    %950 = vmatprep.subr.mxu0 0.0
    %v951 = vand.u32 %v57, 4294901760
    %v952 = vsub.f32 %v57, %v951
    %953 = vmatpush1.msra.mxu0 %v952
    %954 = vmatprep.subr.mxu0 0.0
    %v955 = vand.u32 %v58, 4294901760
    %v956 = vsub.f32 %v58, %v955
    %957 = vmatpush1.msra.mxu0 %v956
    %958 = vmatprep.subr.mxu0 0.0
    %959 = vmatpush1.msra.mxu0 0.0
    %960 = vmatprep.subr.mxu0 0.0
    %961 = vmatpush1.msra.mxu0 0.0
    %962 = vmatprep.subr.mxu0 0.0
    %963 = vmatpush1.msra.mxu0 0.0
    %964 = vmatprep.subr.mxu0 0.0
    %965 = vmatpush1.msra.mxu0 0.0
    %966 = vmatprep.subr.mxu0 0.0
    %967 = vmatpush1.msra.mxu0 0.0
    %968 = vmatprep.subr.mxu0 0.0
    %969 = vmatpush1.msra.mxu0 0.0
    %970 = vmatprep.subr.mxu0 0.0
    %971 = vmatpush1.msra.mxu0 0.0
    %972 = vmatprep.subr.mxu0 0.0
    %973 = vmatpush1.msra.mxu0 0.0
    %974 = vmatprep.subr.mxu0 0.0
    %975 = vmatpush1.msra.mxu0 0.0
    %976 = vmatprep.subr.mxu0 0.0
    %977 = vmatpush1.msra.mxu0 0.0
    %978 = vmatprep.subr.mxu0 0.0
    %979 = vmatpush1.msra.mxu0 0.0
    %980 = vmatprep.subr.mxu0 0.0
    %981 = vmatpush1.msra.mxu0 0.0
    %982 = vmatprep.subr.mxu0 0.0
    %983 = vmatpush1.msra.mxu0 0.0
    %984 = vmatprep.subr.mxu0 0.0
    %985 = vmatpush1.msra.mxu0 0.0
    %986 = vmatprep.subr.mxu0 0.0
    %987 = vmatpush1.msra.mxu0 0.0
    %988 = vmatprep.subr.mxu0 0.0
    %989 = vmatpush1.msra.mxu0 0.0
    %990 = vmatprep.subr.mxu0 0.0
    %991 = vmatpush1.msra.mxu0 0.0
    %992 = vmatprep.subr.mxu0 0.0
    %993 = vmatpush1.msra.mxu0 0.0
    %994 = vmatprep.subr.mxu0 0.0
    %995 = vmatpush1.msra.mxu0 0.0
    %996 = vmatprep.subr.mxu0 0.0
    %997 = vmatpush1.msra.mxu0 0.0
    %998 = vmatprep.subr.mxu0 0.0
    %999 = vmatpush1.msra.mxu0 0.0
    %1000 = vmatprep.subr.mxu0 0.0
    %1001 = vmatpush1.msra.mxu0 0.0
    %1002 = vmatprep.subr.mxu0 0.0
    %1003 = vmatpush1.msra.mxu0 0.0
    %1004 = vmatprep.subr.mxu0 0.0
    %1005 = vmatpush1.msra.mxu0 0.0
    %1006 = vmatprep.subr.mxu0 0.0
    %1007 = vmatpush1.msra.mxu0 0.0
    %1008 = vmatprep.subr.mxu0 0.0
    %1009 = vmatpush1.msra.mxu0 0.0
    %1010 = vmatprep.subr.mxu0 0.0
    %1011 = vmatpush1.msra.mxu0 0.0
    %1012 = vmatprep.subr.mxu0 0.0
    %1013 = vmatpush1.msra.mxu0 0.0
    %1014 = vmatprep.mubr.f32.mxu0 0.0
    %v1015 = vand.u32 %v713, 4294901760
    %v1016 = vsub.f32 %v713, %v1015
    %1017 = vmatmul.mubr.f32.gmra.mrb[0].mxu0 %v1016
    %v1018 = vpop.f32.mrb[0].mxu0
    %v1019 = vadd.f32 %v921, %v1018
    %v1020 = vpop.f32.mrb[0].mxu0
    %1021 = vmatprep.mubr.f32.mxu0 0.0
    %v1022 = vand.u32 %v716, 4294901760
    %v1023 = vsub.f32 %v716, %v1022
    %1024 = vmatmul.mubr.f32.gmra.mrb[0].mxu0 %v1023
    %v1025 = vpop.f32.mrb[0].mxu0
    %v1026 = vadd.f32 %v927, %v1025
    %v1027 = vpop.f32.mrb[0].mxu0
    %1028 = vmatprep.mubr.f32.mxu0 0.0
    %v1029 = vand.u32 %v719, 4294901760
    %v1030 = vsub.f32 %v719, %v1029
    %1031 = vmatmul.mubr.f32.gmra.mrb[0].mxu0 %v1030
    %v1032 = vpop.f32.mrb[0].mxu0
    %v1033 = vadd.f32 %v933, %v1032
    %v1034 = vpop.f32.mrb[0].mxu0
    %1035 = vmatprep.mubr.f32.mxu0 0.0
    %v1036 = vand.u32 %v722, 4294901760
    %v1037 = vsub.f32 %v722, %v1036
    %1038 = vmatmul.mubr.f32.gmra.mrb[0].mxu0 %v1037
    %v1039 = vpop.f32.mrb[0].mxu0
    %v1040 = vadd.f32 %v939, %v1039
    %v1041 = vpop.f32.mrb[0].mxu0
    %1042 = vdwg.mxu0
    %1043 = vmatprep.subr.mxu0 0.0
    %v1044 = vand.u32 %v55, 4294901760
    %1045 = vmatpush1.msra.mxu0 %v1044
    %1046 = vmatprep.subr.mxu0 0.0
    %v1047 = vand.u32 %v56, 4294901760
    %1048 = vmatpush1.msra.mxu0 %v1047
    %1049 = vmatprep.subr.mxu0 0.0
    %v1050 = vand.u32 %v57, 4294901760
    %1051 = vmatpush1.msra.mxu0 %v1050
    %1052 = vmatprep.subr.mxu0 0.0
    %v1053 = vand.u32 %v58, 4294901760
    %1054 = vmatpush1.msra.mxu0 %v1053
    %1055 = vmatprep.subr.mxu0 0.0
    %1056 = vmatpush1.msra.mxu0 0.0
    %1057 = vmatprep.subr.mxu0 0.0
    %1058 = vmatpush1.msra.mxu0 0.0
    %1059 = vmatprep.subr.mxu0 0.0
    %1060 = vmatpush1.msra.mxu0 0.0
    %1061 = vmatprep.subr.mxu0 0.0
    %1062 = vmatpush1.msra.mxu0 0.0
    %1063 = vmatprep.subr.mxu0 0.0
    %1064 = vmatpush1.msra.mxu0 0.0
    %1065 = vmatprep.subr.mxu0 0.0
    %1066 = vmatpush1.msra.mxu0 0.0
    %1067 = vmatprep.subr.mxu0 0.0
    %1068 = vmatpush1.msra.mxu0 0.0
    %1069 = vmatprep.subr.mxu0 0.0
    %1070 = vmatpush1.msra.mxu0 0.0
    %1071 = vmatprep.subr.mxu0 0.0
    %1072 = vmatpush1.msra.mxu0 0.0
    %1073 = vmatprep.subr.mxu0 0.0
    %1074 = vmatpush1.msra.mxu0 0.0
    %1075 = vmatprep.subr.mxu0 0.0
    %1076 = vmatpush1.msra.mxu0 0.0
    %1077 = vmatprep.subr.mxu0 0.0
    %1078 = vmatpush1.msra.mxu0 0.0
    %1079 = vmatprep.subr.mxu0 0.0
    %1080 = vmatpush1.msra.mxu0 0.0
    %1081 = vmatprep.subr.mxu0 0.0
    %1082 = vmatpush1.msra.mxu0 0.0
    %1083 = vmatprep.subr.mxu0 0.0
    %1084 = vmatpush1.msra.mxu0 0.0
    %1085 = vmatprep.subr.mxu0 0.0
    %1086 = vmatpush1.msra.mxu0 0.0
    %1087 = vmatprep.subr.mxu0 0.0
    %1088 = vmatpush1.msra.mxu0 0.0
    %1089 = vmatprep.subr.mxu0 0.0
    %1090 = vmatpush1.msra.mxu0 0.0
    %1091 = vmatprep.subr.mxu0 0.0
    %1092 = vmatpush1.msra.mxu0 0.0
    %1093 = vmatprep.subr.mxu0 0.0
    %1094 = vmatpush1.msra.mxu0 0.0
    %1095 = vmatprep.subr.mxu0 0.0
    %1096 = vmatpush1.msra.mxu0 0.0
    %1097 = vmatprep.subr.mxu0 0.0
    %1098 = vmatpush1.msra.mxu0 0.0
    %1099 = vmatprep.subr.mxu0 0.0
    %1100 = vmatpush1.msra.mxu0 0.0
    %1101 = vmatprep.subr.mxu0 0.0
    %1102 = vmatpush1.msra.mxu0 0.0
    %1103 = vmatprep.subr.mxu0 0.0
    %1104 = vmatpush1.msra.mxu0 0.0
    %1105 = vmatprep.subr.mxu0 0.0
    %1106 = vmatpush1.msra.mxu0 0.0
    %1107 = vmatprep.subr.mxu0 0.0
    %1108 = vmatpush1.msra.mxu0 0.0
    %1109 = vmatprep.subr.mxu0 0.0
    %1110 = vmatpush1.msra.mxu0 0.0
    %1111 = vmatprep.mubr.f32.mxu0 0.0
    %v1112 = vand.u32 %v713, 4294901760
    %v1113 = vsub.f32 %v713, %v1112
    %v1114 = vand.u32 %v1113, 4294901760
    %1115 = vmatmul.mubr.f32.gmra.mrb[0].mxu0 %v1114
    %v1116 = vpop.f32.mrb[0].mxu0
    %v1117 = vadd.f32 %v1019, %v1116
    %v1118 = vpop.f32.mrb[0].mxu0
    %1119 = vmatprep.mubr.f32.mxu0 0.0
    %v1120 = vand.u32 %v716, 4294901760
    %v1121 = vsub.f32 %v716, %v1120
    %v1122 = vand.u32 %v1121, 4294901760
    %1123 = vmatmul.mubr.f32.gmra.mrb[0].mxu0 %v1122
    %v1124 = vpop.f32.mrb[0].mxu0
    %v1125 = vadd.f32 %v1026, %v1124
    %v1126 = vpop.f32.mrb[0].mxu0
    %1127 = vmatprep.mubr.f32.mxu0 0.0
    %v1128 = vand.u32 %v719, 4294901760
    %v1129 = vsub.f32 %v719, %v1128
    %v1130 = vand.u32 %v1129, 4294901760
    %1131 = vmatmul.mubr.f32.gmra.mrb[0].mxu0 %v1130
    %v1132 = vpop.f32.mrb[0].mxu0
    %v1133 = vadd.f32 %v1033, %v1132
    %v1134 = vpop.f32.mrb[0].mxu0
    %1135 = vmatprep.mubr.f32.mxu0 0.0
    %v1136 = vand.u32 %v722, 4294901760
    %v1137 = vsub.f32 %v722, %v1136
    %v1138 = vand.u32 %v1137, 4294901760
    %1139 = vmatmul.mubr.f32.gmra.mrb[0].mxu0 %v1138
    %v1140 = vpop.f32.mrb[0].mxu0
    %v1141 = vadd.f32 %v1040, %v1140
    %v1142 = vpop.f32.mrb[0].mxu0
    %1143 = vdwg.mxu0
    %1144 = vmatprep.subr.mxu0 0.0
    %v1145 = vand.u32 %v55, 4294901760
    %v1146 = vsub.f32 %v55, %v1145
    %v1147 = vand.u32 %v1146, 4294901760
    %1148 = vmatpush1.msra.mxu0 %v1147
    %1149 = vmatprep.subr.mxu0 0.0
    %v1150 = vand.u32 %v56, 4294901760
    %v1151 = vsub.f32 %v56, %v1150
    %v1152 = vand.u32 %v1151, 4294901760
    %1153 = vmatpush1.msra.mxu0 %v1152
    %1154 = vmatprep.subr.mxu0 0.0
    %v1155 = vand.u32 %v57, 4294901760
    %v1156 = vsub.f32 %v57, %v1155
    %v1157 = vand.u32 %v1156, 4294901760
    %1158 = vmatpush1.msra.mxu0 %v1157
    %1159 = vmatprep.subr.mxu0 0.0
    %v1160 = vand.u32 %v58, 4294901760
    %v1161 = vsub.f32 %v58, %v1160
    %v1162 = vand.u32 %v1161, 4294901760
    %1163 = vmatpush1.msra.mxu0 %v1162
    %1164 = vmatprep.subr.mxu0 0.0
    %1165 = vmatpush1.msra.mxu0 0.0
    %1166 = vmatprep.subr.mxu0 0.0
    %1167 = vmatpush1.msra.mxu0 0.0
    %1168 = vmatprep.subr.mxu0 0.0
    %1169 = vmatpush1.msra.mxu0 0.0
    %1170 = vmatprep.subr.mxu0 0.0
    %1171 = vmatpush1.msra.mxu0 0.0
    %1172 = vmatprep.subr.mxu0 0.0
    %1173 = vmatpush1.msra.mxu0 0.0
    %1174 = vmatprep.subr.mxu0 0.0
    %1175 = vmatpush1.msra.mxu0 0.0
    %1176 = vmatprep.subr.mxu0 0.0
    %1177 = vmatpush1.msra.mxu0 0.0
    %1178 = vmatprep.subr.mxu0 0.0
    %1179 = vmatpush1.msra.mxu0 0.0
    %1180 = vmatprep.subr.mxu0 0.0
    %1181 = vmatpush1.msra.mxu0 0.0
    %1182 = vmatprep.subr.mxu0 0.0
    %1183 = vmatpush1.msra.mxu0 0.0
    %1184 = vmatprep.subr.mxu0 0.0
    %1185 = vmatpush1.msra.mxu0 0.0
    %1186 = vmatprep.subr.mxu0 0.0
    %1187 = vmatpush1.msra.mxu0 0.0
    %1188 = vmatprep.subr.mxu0 0.0
    %1189 = vmatpush1.msra.mxu0 0.0
    %1190 = vmatprep.subr.mxu0 0.0
    %1191 = vmatpush1.msra.mxu0 0.0
    %1192 = vmatprep.subr.mxu0 0.0
    %1193 = vmatpush1.msra.mxu0 0.0
    %1194 = vmatprep.subr.mxu0 0.0
    %1195 = vmatpush1.msra.mxu0 0.0
    %1196 = vmatprep.subr.mxu0 0.0
    %1197 = vmatpush1.msra.mxu0 0.0
    %1198 = vmatprep.subr.mxu0 0.0
    %1199 = vmatpush1.msra.mxu0 0.0
    %1200 = vmatprep.subr.mxu0 0.0
    %1201 = vmatpush1.msra.mxu0 0.0
    %1202 = vmatprep.subr.mxu0 0.0
    %1203 = vmatpush1.msra.mxu0 0.0
    %1204 = vmatprep.subr.mxu0 0.0
    %1205 = vmatpush1.msra.mxu0 0.0
    %1206 = vmatprep.subr.mxu0 0.0
    %1207 = vmatpush1.msra.mxu0 0.0
    %1208 = vmatprep.subr.mxu0 0.0
    %1209 = vmatpush1.msra.mxu0 0.0
    %1210 = vmatprep.subr.mxu0 0.0
    %1211 = vmatpush1.msra.mxu0 0.0
    %1212 = vmatprep.subr.mxu0 0.0
    %1213 = vmatpush1.msra.mxu0 0.0
    %1214 = vmatprep.subr.mxu0 0.0
    %1215 = vmatpush1.msra.mxu0 0.0
    %1216 = vmatprep.subr.mxu0 0.0
    %1217 = vmatpush1.msra.mxu0 0.0
    %1218 = vmatprep.subr.mxu0 0.0
    %1219 = vmatpush1.msra.mxu0 0.0
    %1220 = vmatprep.mubr.f32.mxu0 0.0
    %v1221 = vand.u32 %v713, 4294901760
    %1222 = vmatmul.mubr.f32.gmra.mrb[0].mxu0 %v1221
    %v1223 = vpop.f32.mrb[0].mxu0
    %v1224 = vadd.f32 %v1117, %v1223
    %v1225 = vpop.f32.mrb[0].mxu0
    %1226 = vmatprep.mubr.f32.mxu0 0.0
    %v1227 = vand.u32 %v716, 4294901760
    %1228 = vmatmul.mubr.f32.gmra.mrb[0].mxu0 %v1227
    %v1229 = vpop.f32.mrb[0].mxu0
    %v1230 = vadd.f32 %v1125, %v1229
    %v1231 = vpop.f32.mrb[0].mxu0
    %1232 = vmatprep.mubr.f32.mxu0 0.0
    %v1233 = vand.u32 %v719, 4294901760
    %1234 = vmatmul.mubr.f32.gmra.mrb[0].mxu0 %v1233
    %v1235 = vpop.f32.mrb[0].mxu0
    %v1236 = vadd.f32 %v1133, %v1235
    %v1237 = vpop.f32.mrb[0].mxu0
    %1238 = vmatprep.mubr.f32.mxu0 0.0
    %v1239 = vand.u32 %v722, 4294901760
    %1240 = vmatmul.mubr.f32.gmra.mrb[0].mxu0 %v1239
    %v1241 = vpop.f32.mrb[0].mxu0
    %v1242 = vadd.f32 %v1141, %v1241
    %v1243 = vpop.f32.mrb[0].mxu0
    %1244 = vdwg.mxu0
    %1245 = vmatprep.subr.mxu0 0.0
    %v1246 = vand.u32 %v55, 4294901760
    %1247 = vmatpush1.msra.mxu0 %v1246
    %1248 = vmatprep.subr.mxu0 0.0
    %v1249 = vand.u32 %v56, 4294901760
    %1250 = vmatpush1.msra.mxu0 %v1249
    %1251 = vmatprep.subr.mxu0 0.0
    %v1252 = vand.u32 %v57, 4294901760
    %1253 = vmatpush1.msra.mxu0 %v1252
    %1254 = vmatprep.subr.mxu0 0.0
    %v1255 = vand.u32 %v58, 4294901760
    %1256 = vmatpush1.msra.mxu0 %v1255
    %1257 = vmatprep.subr.mxu0 0.0
    %1258 = vmatpush1.msra.mxu0 0.0
    %1259 = vmatprep.subr.mxu0 0.0
    %1260 = vmatpush1.msra.mxu0 0.0
    %1261 = vmatprep.subr.mxu0 0.0
    %1262 = vmatpush1.msra.mxu0 0.0
    %1263 = vmatprep.subr.mxu0 0.0
    %1264 = vmatpush1.msra.mxu0 0.0
    %1265 = vmatprep.subr.mxu0 0.0
    %1266 = vmatpush1.msra.mxu0 0.0
    %1267 = vmatprep.subr.mxu0 0.0
    %1268 = vmatpush1.msra.mxu0 0.0
    %1269 = vmatprep.subr.mxu0 0.0
    %1270 = vmatpush1.msra.mxu0 0.0
    %1271 = vmatprep.subr.mxu0 0.0
    %1272 = vmatpush1.msra.mxu0 0.0
    %1273 = vmatprep.subr.mxu0 0.0
    %1274 = vmatpush1.msra.mxu0 0.0
    %1275 = vmatprep.subr.mxu0 0.0
    %1276 = vmatpush1.msra.mxu0 0.0
    %1277 = vmatprep.subr.mxu0 0.0
    %1278 = vmatpush1.msra.mxu0 0.0
    %1279 = vmatprep.subr.mxu0 0.0
    %1280 = vmatpush1.msra.mxu0 0.0
    %1281 = vmatprep.subr.mxu0 0.0
    %1282 = vmatpush1.msra.mxu0 0.0
    %1283 = vmatprep.subr.mxu0 0.0
    %1284 = vmatpush1.msra.mxu0 0.0
    %1285 = vmatprep.subr.mxu0 0.0
    %1286 = vmatpush1.msra.mxu0 0.0
    %1287 = vmatprep.subr.mxu0 0.0
    %1288 = vmatpush1.msra.mxu0 0.0
    %1289 = vmatprep.subr.mxu0 0.0
    %1290 = vmatpush1.msra.mxu0 0.0
    %1291 = vmatprep.subr.mxu0 0.0
    %1292 = vmatpush1.msra.mxu0 0.0
    %1293 = vmatprep.subr.mxu0 0.0
    %1294 = vmatpush1.msra.mxu0 0.0
    %1295 = vmatprep.subr.mxu0 0.0
    %1296 = vmatpush1.msra.mxu0 0.0
    %1297 = vmatprep.subr.mxu0 0.0
    %1298 = vmatpush1.msra.mxu0 0.0
    %1299 = vmatprep.subr.mxu0 0.0
    %1300 = vmatpush1.msra.mxu0 0.0
    %1301 = vmatprep.subr.mxu0 0.0
    %1302 = vmatpush1.msra.mxu0 0.0
    %1303 = vmatprep.subr.mxu0 0.0
    %1304 = vmatpush1.msra.mxu0 0.0
    %1305 = vmatprep.subr.mxu0 0.0
    %1306 = vmatpush1.msra.mxu0 0.0
    %1307 = vmatprep.subr.mxu0 0.0
    %1308 = vmatpush1.msra.mxu0 0.0
    %1309 = vmatprep.subr.mxu0 0.0
    %1310 = vmatpush1.msra.mxu0 0.0
    %1311 = vmatprep.subr.mxu0 0.0
    %1312 = vmatpush1.msra.mxu0 0.0
    %1313 = vmatprep.mubr.f32.mxu0 0.0
    %v1314 = vand.u32 %v713, 4294901760
    %1315 = vmatmul.mubr.f32.gmra.mrb[0].mxu0 %v1314
    %v1316 = vpop.f32.mrb[0].mxu0
    %v1317 = vadd.f32 %v1224, %v1316
    %v1318 = vpop.f32.mrb[0].mxu0
    %1319 = vmatprep.mubr.f32.mxu0 0.0
    %v1320 = vand.u32 %v716, 4294901760
    %1321 = vmatmul.mubr.f32.gmra.mrb[0].mxu0 %v1320
    %v1322 = vpop.f32.mrb[0].mxu0
    %v1323 = vadd.f32 %v1230, %v1322
    %v1324 = vpop.f32.mrb[0].mxu0
    %1325 = vmatprep.mubr.f32.mxu0 0.0
    %v1326 = vand.u32 %v719, 4294901760
    %1327 = vmatmul.mubr.f32.gmra.mrb[0].mxu0 %v1326
    %v1328 = vpop.f32.mrb[0].mxu0
    %v1329 = vadd.f32 %v1236, %v1328
    %v1330 = vpop.f32.mrb[0].mxu0
    %1331 = vmatprep.mubr.f32.mxu0 0.0
    %v1332 = vand.u32 %v722, 4294901760
    %1333 = vmatmul.mubr.f32.gmra.mrb[0].mxu0 %v1332
    %v1334 = vpop.f32.mrb[0].mxu0
    %v1335 = vadd.f32 %v1242, %v1334
    %v1336 = vpop.f32.mrb[0].mxu0
    %1337 = vdwg.mxu0
    %v1338 = vld [vmem:[#allocation2 + $0x2] sm:$0x1]
    %v1339 = vlaneseq
    %v1340 = vshrl.u32 %v1339, 7
    %v1341 = vsub.s32 0, %v1340
    %v1342 = vrot.slane %v1338, %v1341
    %vm1343 = vcmp.eq.s32.totalorder %v1342, %v38
    %vm1344 = vcmp.eq.s32.totalorder %v1342, %v39
    %vm1345 = vcmp.eq.s32.totalorder %v1342, %v40
    %vm1346 = vcmp.eq.s32.totalorder %v1342, %v41
    %v1347 = vsel %vm1343, 1, 0
    %v1348 = vsel %vm1344, 1, 0
    %v1349 = vsel %vm1345, 1, 0
    %v1350 = vsel %vm1346, 1, 0
    %v1351 = vcvt.s32.f32 %v1347
    %v1352 = vcvt.s32.f32 %v1348
    %v1353 = vcvt.s32.f32 %v1349
    %v1354 = vcvt.s32.f32 %v1350
    %s1355 = scalar_lea.vmem [#allocation4], 64
    %v1356 = vld [vmem:[%s1355] sm:$0xff]
    %v1357 = vld [vmem:[%s1355 + $0x8] sm:$0xff]
    %v1358 = vld [vmem:[%s1355 + $0x10] sm:$0xff]
    %v1359 = vld [vmem:[%s1355 + $0x18] sm:$0xff]
    %v1361 = vsel %vm85, %v1356, 0
    %v1364 = vsel %vm85, %v1357, 0
    %v1367 = vsel %vm85, %v1358, 0
    %v1370 = vsel %vm85, %v1359, 0
    %1372 = vmatprep.subr.mxu0 0.0
    %v1373 = vand.u32 %v1351, 4294901760
    %1374 = vmatpush1.msra.mxu0 %v1373
    %1375 = vmatprep.subr.mxu0 0.0
    %v1376 = vand.u32 %v1352, 4294901760
    %1377 = vmatpush1.msra.mxu0 %v1376
    %1378 = vmatprep.subr.mxu0 0.0
    %v1379 = vand.u32 %v1353, 4294901760
    %1380 = vmatpush1.msra.mxu0 %v1379
    %1381 = vmatprep.subr.mxu0 0.0
    %v1382 = vand.u32 %v1354, 4294901760
    %1383 = vmatpush1.msra.mxu0 %v1382
    %1384 = vmatprep.subr.mxu0 0.0
    %1385 = vmatpush1.msra.mxu0 0.0
    %1386 = vmatprep.subr.mxu0 0.0
    %1387 = vmatpush1.msra.mxu0 0.0
    %1388 = vmatprep.subr.mxu0 0.0
    %1389 = vmatpush1.msra.mxu0 0.0
    %1390 = vmatprep.subr.mxu0 0.0
    %1391 = vmatpush1.msra.mxu0 0.0
    %1392 = vmatprep.subr.mxu0 0.0
    %1393 = vmatpush1.msra.mxu0 0.0
    %1394 = vmatprep.subr.mxu0 0.0
    %1395 = vmatpush1.msra.mxu0 0.0
    %1396 = vmatprep.subr.mxu0 0.0
    %1397 = vmatpush1.msra.mxu0 0.0
    %1398 = vmatprep.subr.mxu0 0.0
    %1399 = vmatpush1.msra.mxu0 0.0
    %1400 = vmatprep.subr.mxu0 0.0
    %1401 = vmatpush1.msra.mxu0 0.0
    %1402 = vmatprep.subr.mxu0 0.0
    %1403 = vmatpush1.msra.mxu0 0.0
    %1404 = vmatprep.subr.mxu0 0.0
    %1405 = vmatpush1.msra.mxu0 0.0
    %1406 = vmatprep.subr.mxu0 0.0
    %1407 = vmatpush1.msra.mxu0 0.0
    %1408 = vmatprep.subr.mxu0 0.0
    %1409 = vmatpush1.msra.mxu0 0.0
    %1410 = vmatprep.subr.mxu0 0.0
    %1411 = vmatpush1.msra.mxu0 0.0
    %1412 = vmatprep.subr.mxu0 0.0
    %1413 = vmatpush1.msra.mxu0 0.0
    %1414 = vmatprep.subr.mxu0 0.0
    %1415 = vmatpush1.msra.mxu0 0.0
    %1416 = vmatprep.subr.mxu0 0.0
    %1417 = vmatpush1.msra.mxu0 0.0
    %1418 = vmatprep.subr.mxu0 0.0
    %1419 = vmatpush1.msra.mxu0 0.0
    %1420 = vmatprep.subr.mxu0 0.0
    %1421 = vmatpush1.msra.mxu0 0.0
    %1422 = vmatprep.subr.mxu0 0.0
    %1423 = vmatpush1.msra.mxu0 0.0
    %1424 = vmatprep.subr.mxu0 0.0
    %1425 = vmatpush1.msra.mxu0 0.0
    %1426 = vmatprep.subr.mxu0 0.0
    %1427 = vmatpush1.msra.mxu0 0.0
    %1428 = vmatprep.subr.mxu0 0.0
    %1429 = vmatpush1.msra.mxu0 0.0
    %1430 = vmatprep.subr.mxu0 0.0
    %1431 = vmatpush1.msra.mxu0 0.0
    %1432 = vmatprep.subr.mxu0 0.0
    %1433 = vmatpush1.msra.mxu0 0.0
    %1434 = vmatprep.subr.mxu0 0.0
    %1435 = vmatpush1.msra.mxu0 0.0
    %1436 = vmatprep.subr.mxu0 0.0
    %1437 = vmatpush1.msra.mxu0 0.0
    %1438 = vmatprep.subr.mxu0 0.0
    %1439 = vmatpush1.msra.mxu0 0.0
    %1440 = vmatprep.mubr.f32.mxu0 0.0
    %v1441 = vand.u32 %v1361, 4294901760
    %v1442 = vsub.f32 %v1361, %v1441
    %v1443 = vand.u32 %v1442, 4294901760
    %v1444 = vsub.f32 %v1442, %v1443
    %v1445 = vand.u32 %v1444, 4294901760
    %1446 = vmatmul.mubr.f32.gmra.mrb[0].mxu0 %v1445
    %v1447 = vpop.f32.mrb[0].mxu0
    %v1448 = vadd.f32 0.0, %v1447
    %v1449 = vpop.f32.mrb[0].mxu0
    %1450 = vmatprep.mubr.f32.mxu0 0.0
    %v1451 = vand.u32 %v1364, 4294901760
    %v1452 = vsub.f32 %v1364, %v1451
    %v1453 = vand.u32 %v1452, 4294901760
    %v1454 = vsub.f32 %v1452, %v1453
    %v1455 = vand.u32 %v1454, 4294901760
    %1456 = vmatmul.mubr.f32.gmra.mrb[0].mxu0 %v1455
    %v1457 = vpop.f32.mrb[0].mxu0
    %v1458 = vadd.f32 0.0, %v1457
    %v1459 = vpop.f32.mrb[0].mxu0
    %1460 = vmatprep.mubr.f32.mxu0 0.0
    %v1461 = vand.u32 %v1367, 4294901760
    %v1462 = vsub.f32 %v1367, %v1461
    %v1463 = vand.u32 %v1462, 4294901760
    %v1464 = vsub.f32 %v1462, %v1463
    %v1465 = vand.u32 %v1464, 4294901760
    %1466 = vmatmul.mubr.f32.gmra.mrb[0].mxu0 %v1465
    %v1467 = vpop.f32.mrb[0].mxu0
    %v1468 = vadd.f32 0.0, %v1467
    %v1469 = vpop.f32.mrb[0].mxu0
    %1470 = vmatprep.mubr.f32.mxu0 0.0
    %v1471 = vand.u32 %v1370, 4294901760
    %v1472 = vsub.f32 %v1370, %v1471
    %v1473 = vand.u32 %v1472, 4294901760
    %v1474 = vsub.f32 %v1472, %v1473
    %v1475 = vand.u32 %v1474, 4294901760
    %1476 = vmatmul.mubr.f32.gmra.mrb[0].mxu0 %v1475
    %v1477 = vpop.f32.mrb[0].mxu0
    %v1478 = vadd.f32 0.0, %v1477
    %v1479 = vpop.f32.mrb[0].mxu0
    %1480 = vdwg.mxu0
    %1481 = vmatprep.subr.mxu0 0.0
    %v1482 = vand.u32 %v1351, 4294901760
    %v1483 = vsub.f32 %v1351, %v1482
    %v1484 = vand.u32 %v1483, 4294901760
    %v1485 = vsub.f32 %v1483, %v1484
    %v1486 = vand.u32 %v1485, 4294901760
    %1487 = vmatpush1.msra.mxu0 %v1486
    %1488 = vmatprep.subr.mxu0 0.0
    %v1489 = vand.u32 %v1352, 4294901760
    %v1490 = vsub.f32 %v1352, %v1489
    %v1491 = vand.u32 %v1490, 4294901760
    %v1492 = vsub.f32 %v1490, %v1491
    %v1493 = vand.u32 %v1492, 4294901760
    %1494 = vmatpush1.msra.mxu0 %v1493
    %1495 = vmatprep.subr.mxu0 0.0
    %v1496 = vand.u32 %v1353, 4294901760
    %v1497 = vsub.f32 %v1353, %v1496
    %v1498 = vand.u32 %v1497, 4294901760
    %v1499 = vsub.f32 %v1497, %v1498
    %v1500 = vand.u32 %v1499, 4294901760
    %1501 = vmatpush1.msra.mxu0 %v1500
    %1502 = vmatprep.subr.mxu0 0.0
    %v1503 = vand.u32 %v1354, 4294901760
    %v1504 = vsub.f32 %v1354, %v1503
    %v1505 = vand.u32 %v1504, 4294901760
    %v1506 = vsub.f32 %v1504, %v1505
    %v1507 = vand.u32 %v1506, 4294901760
    %1508 = vmatpush1.msra.mxu0 %v1507
    %1509 = vmatprep.subr.mxu0 0.0
    %1510 = vmatpush1.msra.mxu0 0.0
    %1511 = vmatprep.subr.mxu0 0.0
    %1512 = vmatpush1.msra.mxu0 0.0
    %1513 = vmatprep.subr.mxu0 0.0
    %1514 = vmatpush1.msra.mxu0 0.0
    %1515 = vmatprep.subr.mxu0 0.0
    %1516 = vmatpush1.msra.mxu0 0.0
    %1517 = vmatprep.subr.mxu0 0.0
    %1518 = vmatpush1.msra.mxu0 0.0
    %1519 = vmatprep.subr.mxu0 0.0
    %1520 = vmatpush1.msra.mxu0 0.0
    %1521 = vmatprep.subr.mxu0 0.0
    %1522 = vmatpush1.msra.mxu0 0.0
    %1523 = vmatprep.subr.mxu0 0.0
    %1524 = vmatpush1.msra.mxu0 0.0
    %1525 = vmatprep.subr.mxu0 0.0
    %1526 = vmatpush1.msra.mxu0 0.0
    %1527 = vmatprep.subr.mxu0 0.0
    %1528 = vmatpush1.msra.mxu0 0.0
    %1529 = vmatprep.subr.mxu0 0.0
    %1530 = vmatpush1.msra.mxu0 0.0
    %1531 = vmatprep.subr.mxu0 0.0
    %1532 = vmatpush1.msra.mxu0 0.0
    %1533 = vmatprep.subr.mxu0 0.0
    %1534 = vmatpush1.msra.mxu0 0.0
    %1535 = vmatprep.subr.mxu0 0.0
    %1536 = vmatpush1.msra.mxu0 0.0
    %1537 = vmatprep.subr.mxu0 0.0
    %1538 = vmatpush1.msra.mxu0 0.0
    %1539 = vmatprep.subr.mxu0 0.0
    %1540 = vmatpush1.msra.mxu0 0.0
    %1541 = vmatprep.subr.mxu0 0.0
    %1542 = vmatpush1.msra.mxu0 0.0
    %1543 = vmatprep.subr.mxu0 0.0
    %1544 = vmatpush1.msra.mxu0 0.0
    %1545 = vmatprep.subr.mxu0 0.0
    %1546 = vmatpush1.msra.mxu0 0.0
    %1547 = vmatprep.subr.mxu0 0.0
    %1548 = vmatpush1.msra.mxu0 0.0
    %1549 = vmatprep.subr.mxu0 0.0
    %1550 = vmatpush1.msra.mxu0 0.0
    %1551 = vmatprep.subr.mxu0 0.0
    %1552 = vmatpush1.msra.mxu0 0.0
    %1553 = vmatprep.subr.mxu0 0.0
    %1554 = vmatpush1.msra.mxu0 0.0
    %1555 = vmatprep.subr.mxu0 0.0
    %1556 = vmatpush1.msra.mxu0 0.0
    %1557 = vmatprep.subr.mxu0 0.0
    %1558 = vmatpush1.msra.mxu0 0.0
    %1559 = vmatprep.subr.mxu0 0.0
    %1560 = vmatpush1.msra.mxu0 0.0
    %1561 = vmatprep.subr.mxu0 0.0
    %1562 = vmatpush1.msra.mxu0 0.0
    %1563 = vmatprep.subr.mxu0 0.0
    %1564 = vmatpush1.msra.mxu0 0.0
    %1565 = vmatprep.mubr.f32.mxu0 0.0
    %v1566 = vand.u32 %v1361, 4294901760
    %1567 = vmatmul.mubr.f32.gmra.mrb[0].mxu0 %v1566
    %v1568 = vpop.f32.mrb[0].mxu0
    %v1569 = vadd.f32 %v1448, %v1568
    %v1570 = vpop.f32.mrb[0].mxu0
    %1571 = vmatprep.mubr.f32.mxu0 0.0
    %v1572 = vand.u32 %v1364, 4294901760
    %1573 = vmatmul.mubr.f32.gmra.mrb[0].mxu0 %v1572
    %v1574 = vpop.f32.mrb[0].mxu0
    %v1575 = vadd.f32 %v1458, %v1574
    %v1576 = vpop.f32.mrb[0].mxu0
    %1577 = vmatprep.mubr.f32.mxu0 0.0
    %v1578 = vand.u32 %v1367, 4294901760
    %1579 = vmatmul.mubr.f32.gmra.mrb[0].mxu0 %v1578
    %v1580 = vpop.f32.mrb[0].mxu0
    %v1581 = vadd.f32 %v1468, %v1580
    %v1582 = vpop.f32.mrb[0].mxu0
    %1583 = vmatprep.mubr.f32.mxu0 0.0
    %v1584 = vand.u32 %v1370, 4294901760
    %1585 = vmatmul.mubr.f32.gmra.mrb[0].mxu0 %v1584
    %v1586 = vpop.f32.mrb[0].mxu0
    %v1587 = vadd.f32 %v1478, %v1586
    %v1588 = vpop.f32.mrb[0].mxu0
    %1589 = vdwg.mxu0
    %1590 = vmatprep.subr.mxu0 0.0
    %v1591 = vand.u32 %v1351, 4294901760
    %v1592 = vsub.f32 %v1351, %v1591
    %1593 = vmatpush1.msra.mxu0 %v1592
    %1594 = vmatprep.subr.mxu0 0.0
    %v1595 = vand.u32 %v1352, 4294901760
    %v1596 = vsub.f32 %v1352, %v1595
    %1597 = vmatpush1.msra.mxu0 %v1596
    %1598 = vmatprep.subr.mxu0 0.0
    %v1599 = vand.u32 %v1353, 4294901760
    %v1600 = vsub.f32 %v1353, %v1599
    %1601 = vmatpush1.msra.mxu0 %v1600
    %1602 = vmatprep.subr.mxu0 0.0
    %v1603 = vand.u32 %v1354, 4294901760
    %v1604 = vsub.f32 %v1354, %v1603
    %1605 = vmatpush1.msra.mxu0 %v1604
    %1606 = vmatprep.subr.mxu0 0.0
    %1607 = vmatpush1.msra.mxu0 0.0
    %1608 = vmatprep.subr.mxu0 0.0
    %1609 = vmatpush1.msra.mxu0 0.0
    %1610 = vmatprep.subr.mxu0 0.0
    %1611 = vmatpush1.msra.mxu0 0.0
    %1612 = vmatprep.subr.mxu0 0.0
    %1613 = vmatpush1.msra.mxu0 0.0
    %1614 = vmatprep.subr.mxu0 0.0
    %1615 = vmatpush1.msra.mxu0 0.0
    %1616 = vmatprep.subr.mxu0 0.0
    %1617 = vmatpush1.msra.mxu0 0.0
    %1618 = vmatprep.subr.mxu0 0.0
    %1619 = vmatpush1.msra.mxu0 0.0
    %1620 = vmatprep.subr.mxu0 0.0
    %1621 = vmatpush1.msra.mxu0 0.0
    %1622 = vmatprep.subr.mxu0 0.0
    %1623 = vmatpush1.msra.mxu0 0.0
    %1624 = vmatprep.subr.mxu0 0.0
    %1625 = vmatpush1.msra.mxu0 0.0
    %1626 = vmatprep.subr.mxu0 0.0
    %1627 = vmatpush1.msra.mxu0 0.0
    %1628 = vmatprep.subr.mxu0 0.0
    %1629 = vmatpush1.msra.mxu0 0.0
    %1630 = vmatprep.subr.mxu0 0.0
    %1631 = vmatpush1.msra.mxu0 0.0
    %1632 = vmatprep.subr.mxu0 0.0
    %1633 = vmatpush1.msra.mxu0 0.0
    %1634 = vmatprep.subr.mxu0 0.0
    %1635 = vmatpush1.msra.mxu0 0.0
    %1636 = vmatprep.subr.mxu0 0.0
    %1637 = vmatpush1.msra.mxu0 0.0
    %1638 = vmatprep.subr.mxu0 0.0
    %1639 = vmatpush1.msra.mxu0 0.0
    %1640 = vmatprep.subr.mxu0 0.0
    %1641 = vmatpush1.msra.mxu0 0.0
    %1642 = vmatprep.subr.mxu0 0.0
    %1643 = vmatpush1.msra.mxu0 0.0
    %1644 = vmatprep.subr.mxu0 0.0
    %1645 = vmatpush1.msra.mxu0 0.0
    %1646 = vmatprep.subr.mxu0 0.0
    %1647 = vmatpush1.msra.mxu0 0.0
    %1648 = vmatprep.subr.mxu0 0.0
    %1649 = vmatpush1.msra.mxu0 0.0
    %1650 = vmatprep.subr.mxu0 0.0
    %1651 = vmatpush1.msra.mxu0 0.0
    %1652 = vmatprep.subr.mxu0 0.0
    %1653 = vmatpush1.msra.mxu0 0.0
    %1654 = vmatprep.subr.mxu0 0.0
    %1655 = vmatpush1.msra.mxu0 0.0
    %1656 = vmatprep.subr.mxu0 0.0
    %1657 = vmatpush1.msra.mxu0 0.0
    %1658 = vmatprep.subr.mxu0 0.0
    %1659 = vmatpush1.msra.mxu0 0.0
    %1660 = vmatprep.subr.mxu0 0.0
    %1661 = vmatpush1.msra.mxu0 0.0
    %1662 = vmatprep.mubr.f32.mxu0 0.0
    %v1663 = vand.u32 %v1361, 4294901760
    %v1664 = vsub.f32 %v1361, %v1663
    %1665 = vmatmul.mubr.f32.gmra.mrb[0].mxu0 %v1664
    %v1666 = vpop.f32.mrb[0].mxu0
    %v1667 = vadd.f32 %v1569, %v1666
    %v1668 = vpop.f32.mrb[0].mxu0
    %1669 = vmatprep.mubr.f32.mxu0 0.0
    %v1670 = vand.u32 %v1364, 4294901760
    %v1671 = vsub.f32 %v1364, %v1670
    %1672 = vmatmul.mubr.f32.gmra.mrb[0].mxu0 %v1671
    %v1673 = vpop.f32.mrb[0].mxu0
    %v1674 = vadd.f32 %v1575, %v1673
    %v1675 = vpop.f32.mrb[0].mxu0
    %1676 = vmatprep.mubr.f32.mxu0 0.0
    %v1677 = vand.u32 %v1367, 4294901760
    %v1678 = vsub.f32 %v1367, %v1677
    %1679 = vmatmul.mubr.f32.gmra.mrb[0].mxu0 %v1678
    %v1680 = vpop.f32.mrb[0].mxu0
    %v1681 = vadd.f32 %v1581, %v1680
    %v1682 = vpop.f32.mrb[0].mxu0
    %1683 = vmatprep.mubr.f32.mxu0 0.0
    %v1684 = vand.u32 %v1370, 4294901760
    %v1685 = vsub.f32 %v1370, %v1684
    %1686 = vmatmul.mubr.f32.gmra.mrb[0].mxu0 %v1685
    %v1687 = vpop.f32.mrb[0].mxu0
    %v1688 = vadd.f32 %v1587, %v1687
    %v1689 = vpop.f32.mrb[0].mxu0
    %1690 = vdwg.mxu0
    %1691 = vmatprep.subr.mxu0 0.0
    %v1692 = vand.u32 %v1351, 4294901760
    %1693 = vmatpush1.msra.mxu0 %v1692
    %1694 = vmatprep.subr.mxu0 0.0
    %v1695 = vand.u32 %v1352, 4294901760
    %1696 = vmatpush1.msra.mxu0 %v1695
    %1697 = vmatprep.subr.mxu0 0.0
    %v1698 = vand.u32 %v1353, 4294901760
    %1699 = vmatpush1.msra.mxu0 %v1698
    %1700 = vmatprep.subr.mxu0 0.0
    %v1701 = vand.u32 %v1354, 4294901760
    %1702 = vmatpush1.msra.mxu0 %v1701
    %1703 = vmatprep.subr.mxu0 0.0
    %1704 = vmatpush1.msra.mxu0 0.0
    %1705 = vmatprep.subr.mxu0 0.0
    %1706 = vmatpush1.msra.mxu0 0.0
    %1707 = vmatprep.subr.mxu0 0.0
    %1708 = vmatpush1.msra.mxu0 0.0
    %1709 = vmatprep.subr.mxu0 0.0
    %1710 = vmatpush1.msra.mxu0 0.0
    %1711 = vmatprep.subr.mxu0 0.0
    %1712 = vmatpush1.msra.mxu0 0.0
    %1713 = vmatprep.subr.mxu0 0.0
    %1714 = vmatpush1.msra.mxu0 0.0
    %1715 = vmatprep.subr.mxu0 0.0
    %1716 = vmatpush1.msra.mxu0 0.0
    %1717 = vmatprep.subr.mxu0 0.0
    %1718 = vmatpush1.msra.mxu0 0.0
    %1719 = vmatprep.subr.mxu0 0.0
    %1720 = vmatpush1.msra.mxu0 0.0
    %1721 = vmatprep.subr.mxu0 0.0
    %1722 = vmatpush1.msra.mxu0 0.0
    %1723 = vmatprep.subr.mxu0 0.0
    %1724 = vmatpush1.msra.mxu0 0.0
    %1725 = vmatprep.subr.mxu0 0.0
    %1726 = vmatpush1.msra.mxu0 0.0
    %1727 = vmatprep.subr.mxu0 0.0
    %1728 = vmatpush1.msra.mxu0 0.0
    %1729 = vmatprep.subr.mxu0 0.0
    %1730 = vmatpush1.msra.mxu0 0.0
    %1731 = vmatprep.subr.mxu0 0.0
    %1732 = vmatpush1.msra.mxu0 0.0
    %1733 = vmatprep.subr.mxu0 0.0
    %1734 = vmatpush1.msra.mxu0 0.0
    %1735 = vmatprep.subr.mxu0 0.0
    %1736 = vmatpush1.msra.mxu0 0.0
    %1737 = vmatprep.subr.mxu0 0.0
    %1738 = vmatpush1.msra.mxu0 0.0
    %1739 = vmatprep.subr.mxu0 0.0
    %1740 = vmatpush1.msra.mxu0 0.0
    %1741 = vmatprep.subr.mxu0 0.0
    %1742 = vmatpush1.msra.mxu0 0.0
    %1743 = vmatprep.subr.mxu0 0.0
    %1744 = vmatpush1.msra.mxu0 0.0
    %1745 = vmatprep.subr.mxu0 0.0
    %1746 = vmatpush1.msra.mxu0 0.0
    %1747 = vmatprep.subr.mxu0 0.0
    %1748 = vmatpush1.msra.mxu0 0.0
    %1749 = vmatprep.subr.mxu0 0.0
    %1750 = vmatpush1.msra.mxu0 0.0
    %1751 = vmatprep.subr.mxu0 0.0
    %1752 = vmatpush1.msra.mxu0 0.0
    %1753 = vmatprep.subr.mxu0 0.0
    %1754 = vmatpush1.msra.mxu0 0.0
    %1755 = vmatprep.subr.mxu0 0.0
    %1756 = vmatpush1.msra.mxu0 0.0
    %1757 = vmatprep.subr.mxu0 0.0
    %1758 = vmatpush1.msra.mxu0 0.0
    %1759 = vmatprep.mubr.f32.mxu0 0.0
    %v1760 = vand.u32 %v1361, 4294901760
    %v1761 = vsub.f32 %v1361, %v1760
    %v1762 = vand.u32 %v1761, 4294901760
    %1763 = vmatmul.mubr.f32.gmra.mrb[0].mxu0 %v1762
    %v1764 = vpop.f32.mrb[0].mxu0
    %v1765 = vadd.f32 %v1667, %v1764
    %v1766 = vpop.f32.mrb[0].mxu0
    %1767 = vmatprep.mubr.f32.mxu0 0.0
    %v1768 = vand.u32 %v1364, 4294901760
    %v1769 = vsub.f32 %v1364, %v1768
    %v1770 = vand.u32 %v1769, 4294901760
    %1771 = vmatmul.mubr.f32.gmra.mrb[0].mxu0 %v1770
    %v1772 = vpop.f32.mrb[0].mxu0
    %v1773 = vadd.f32 %v1674, %v1772
    %v1774 = vpop.f32.mrb[0].mxu0
    %1775 = vmatprep.mubr.f32.mxu0 0.0
    %v1776 = vand.u32 %v1367, 4294901760
    %v1777 = vsub.f32 %v1367, %v1776
    %v1778 = vand.u32 %v1777, 4294901760
    %1779 = vmatmul.mubr.f32.gmra.mrb[0].mxu0 %v1778
    %v1780 = vpop.f32.mrb[0].mxu0
    %v1781 = vadd.f32 %v1681, %v1780
    %v1782 = vpop.f32.mrb[0].mxu0
    %1783 = vmatprep.mubr.f32.mxu0 0.0
    %v1784 = vand.u32 %v1370, 4294901760
    %v1785 = vsub.f32 %v1370, %v1784
    %v1786 = vand.u32 %v1785, 4294901760
    %1787 = vmatmul.mubr.f32.gmra.mrb[0].mxu0 %v1786
    %v1788 = vpop.f32.mrb[0].mxu0
    %v1789 = vadd.f32 %v1688, %v1788
    %v1790 = vpop.f32.mrb[0].mxu0
    %1791 = vdwg.mxu0
    %1792 = vmatprep.subr.mxu0 0.0
    %v1793 = vand.u32 %v1351, 4294901760
    %v1794 = vsub.f32 %v1351, %v1793
    %v1795 = vand.u32 %v1794, 4294901760
    %1796 = vmatpush1.msra.mxu0 %v1795
    %1797 = vmatprep.subr.mxu0 0.0
    %v1798 = vand.u32 %v1352, 4294901760
    %v1799 = vsub.f32 %v1352, %v1798
    %v1800 = vand.u32 %v1799, 4294901760
    %1801 = vmatpush1.msra.mxu0 %v1800
    %1802 = vmatprep.subr.mxu0 0.0
    %v1803 = vand.u32 %v1353, 4294901760
    %v1804 = vsub.f32 %v1353, %v1803
    %v1805 = vand.u32 %v1804, 4294901760
    %1806 = vmatpush1.msra.mxu0 %v1805
    %1807 = vmatprep.subr.mxu0 0.0
    %v1808 = vand.u32 %v1354, 4294901760
    %v1809 = vsub.f32 %v1354, %v1808
    %v1810 = vand.u32 %v1809, 4294901760
    %1811 = vmatpush1.msra.mxu0 %v1810
    %1812 = vmatprep.subr.mxu0 0.0
    %1813 = vmatpush1.msra.mxu0 0.0
    %1814 = vmatprep.subr.mxu0 0.0
    %1815 = vmatpush1.msra.mxu0 0.0
    %1816 = vmatprep.subr.mxu0 0.0
    %1817 = vmatpush1.msra.mxu0 0.0
    %1818 = vmatprep.subr.mxu0 0.0
    %1819 = vmatpush1.msra.mxu0 0.0
    %1820 = vmatprep.subr.mxu0 0.0
    %1821 = vmatpush1.msra.mxu0 0.0
    %1822 = vmatprep.subr.mxu0 0.0
    %1823 = vmatpush1.msra.mxu0 0.0
    %1824 = vmatprep.subr.mxu0 0.0
    %1825 = vmatpush1.msra.mxu0 0.0
    %1826 = vmatprep.subr.mxu0 0.0
    %1827 = vmatpush1.msra.mxu0 0.0
    %1828 = vmatprep.subr.mxu0 0.0
    %1829 = vmatpush1.msra.mxu0 0.0
    %1830 = vmatprep.subr.mxu0 0.0
    %1831 = vmatpush1.msra.mxu0 0.0
    %1832 = vmatprep.subr.mxu0 0.0
    %1833 = vmatpush1.msra.mxu0 0.0
    %1834 = vmatprep.subr.mxu0 0.0
    %1835 = vmatpush1.msra.mxu0 0.0
    %1836 = vmatprep.subr.mxu0 0.0
    %1837 = vmatpush1.msra.mxu0 0.0
    %1838 = vmatprep.subr.mxu0 0.0
    %1839 = vmatpush1.msra.mxu0 0.0
    %1840 = vmatprep.subr.mxu0 0.0
    %1841 = vmatpush1.msra.mxu0 0.0
    %1842 = vmatprep.subr.mxu0 0.0
    %1843 = vmatpush1.msra.mxu0 0.0
    %1844 = vmatprep.subr.mxu0 0.0
    %1845 = vmatpush1.msra.mxu0 0.0
    %1846 = vmatprep.subr.mxu0 0.0
    %1847 = vmatpush1.msra.mxu0 0.0
    %1848 = vmatprep.subr.mxu0 0.0
    %1849 = vmatpush1.msra.mxu0 0.0
    %1850 = vmatprep.subr.mxu0 0.0
    %1851 = vmatpush1.msra.mxu0 0.0
    %1852 = vmatprep.subr.mxu0 0.0
    %1853 = vmatpush1.msra.mxu0 0.0
    %1854 = vmatprep.subr.mxu0 0.0
    %1855 = vmatpush1.msra.mxu0 0.0
    %1856 = vmatprep.subr.mxu0 0.0
    %1857 = vmatpush1.msra.mxu0 0.0
    %1858 = vmatprep.subr.mxu0 0.0
    %1859 = vmatpush1.msra.mxu0 0.0
    %1860 = vmatprep.subr.mxu0 0.0
    %1861 = vmatpush1.msra.mxu0 0.0
    %1862 = vmatprep.subr.mxu0 0.0
    %1863 = vmatpush1.msra.mxu0 0.0
    %1864 = vmatprep.subr.mxu0 0.0
    %1865 = vmatpush1.msra.mxu0 0.0
    %1866 = vmatprep.subr.mxu0 0.0
    %1867 = vmatpush1.msra.mxu0 0.0
    %1868 = vmatprep.mubr.f32.mxu0 0.0
    %v1869 = vand.u32 %v1361, 4294901760
    %1870 = vmatmul.mubr.f32.gmra.mrb[0].mxu0 %v1869
    %v1871 = vpop.f32.mrb[0].mxu0
    %v1872 = vadd.f32 %v1765, %v1871
    %v1873 = vpop.f32.mrb[0].mxu0
    %1874 = vmatprep.mubr.f32.mxu0 0.0
    %v1875 = vand.u32 %v1364, 4294901760
    %1876 = vmatmul.mubr.f32.gmra.mrb[0].mxu0 %v1875
    %v1877 = vpop.f32.mrb[0].mxu0
    %v1878 = vadd.f32 %v1773, %v1877
    %v1879 = vpop.f32.mrb[0].mxu0
    %1880 = vmatprep.mubr.f32.mxu0 0.0
    %v1881 = vand.u32 %v1367, 4294901760
    %1882 = vmatmul.mubr.f32.gmra.mrb[0].mxu0 %v1881
    %v1883 = vpop.f32.mrb[0].mxu0
    %v1884 = vadd.f32 %v1781, %v1883
    %v1885 = vpop.f32.mrb[0].mxu0
    %1886 = vmatprep.mubr.f32.mxu0 0.0
    %v1887 = vand.u32 %v1370, 4294901760
    %1888 = vmatmul.mubr.f32.gmra.mrb[0].mxu0 %v1887
    %v1889 = vpop.f32.mrb[0].mxu0
    %v1890 = vadd.f32 %v1789, %v1889
    %v1891 = vpop.f32.mrb[0].mxu0
    %1892 = vdwg.mxu0
    %1893 = vmatprep.subr.mxu0 0.0
    %v1894 = vand.u32 %v1351, 4294901760
    %1895 = vmatpush1.msra.mxu0 %v1894
    %1896 = vmatprep.subr.mxu0 0.0
    %v1897 = vand.u32 %v1352, 4294901760
    %1898 = vmatpush1.msra.mxu0 %v1897
    %1899 = vmatprep.subr.mxu0 0.0
    %v1900 = vand.u32 %v1353, 4294901760
    %1901 = vmatpush1.msra.mxu0 %v1900
    %1902 = vmatprep.subr.mxu0 0.0
    %v1903 = vand.u32 %v1354, 4294901760
    %1904 = vmatpush1.msra.mxu0 %v1903
    %1905 = vmatprep.subr.mxu0 0.0
    %1906 = vmatpush1.msra.mxu0 0.0
    %1907 = vmatprep.subr.mxu0 0.0
    %1908 = vmatpush1.msra.mxu0 0.0
    %1909 = vmatprep.subr.mxu0 0.0
    %1910 = vmatpush1.msra.mxu0 0.0
    %1911 = vmatprep.subr.mxu0 0.0
    %1912 = vmatpush1.msra.mxu0 0.0
    %1913 = vmatprep.subr.mxu0 0.0
    %1914 = vmatpush1.msra.mxu0 0.0
    %1915 = vmatprep.subr.mxu0 0.0
    %1916 = vmatpush1.msra.mxu0 0.0
    %1917 = vmatprep.subr.mxu0 0.0
    %1918 = vmatpush1.msra.mxu0 0.0
    %1919 = vmatprep.subr.mxu0 0.0
    %1920 = vmatpush1.msra.mxu0 0.0
    %1921 = vmatprep.subr.mxu0 0.0
    %1922 = vmatpush1.msra.mxu0 0.0
    %1923 = vmatprep.subr.mxu0 0.0
    %1924 = vmatpush1.msra.mxu0 0.0
    %1925 = vmatprep.subr.mxu0 0.0
    %1926 = vmatpush1.msra.mxu0 0.0
    %1927 = vmatprep.subr.mxu0 0.0
    %1928 = vmatpush1.msra.mxu0 0.0
    %1929 = vmatprep.subr.mxu0 0.0
    %1930 = vmatpush1.msra.mxu0 0.0
    %1931 = vmatprep.subr.mxu0 0.0
    %1932 = vmatpush1.msra.mxu0 0.0
    %1933 = vmatprep.subr.mxu0 0.0
    %1934 = vmatpush1.msra.mxu0 0.0
    %1935 = vmatprep.subr.mxu0 0.0
    %1936 = vmatpush1.msra.mxu0 0.0
    %1937 = vmatprep.subr.mxu0 0.0
    %1938 = vmatpush1.msra.mxu0 0.0
    %1939 = vmatprep.subr.mxu0 0.0
    %1940 = vmatpush1.msra.mxu0 0.0
    %1941 = vmatprep.subr.mxu0 0.0
    %1942 = vmatpush1.msra.mxu0 0.0
    %1943 = vmatprep.subr.mxu0 0.0
    %1944 = vmatpush1.msra.mxu0 0.0
    %1945 = vmatprep.subr.mxu0 0.0
    %1946 = vmatpush1.msra.mxu0 0.0
    %1947 = vmatprep.subr.mxu0 0.0
    %1948 = vmatpush1.msra.mxu0 0.0
    %1949 = vmatprep.subr.mxu0 0.0
    %1950 = vmatpush1.msra.mxu0 0.0
    %1951 = vmatprep.subr.mxu0 0.0
    %1952 = vmatpush1.msra.mxu0 0.0
    %1953 = vmatprep.subr.mxu0 0.0
    %1954 = vmatpush1.msra.mxu0 0.0
    %1955 = vmatprep.subr.mxu0 0.0
    %1956 = vmatpush1.msra.mxu0 0.0
    %1957 = vmatprep.subr.mxu0 0.0
    %1958 = vmatpush1.msra.mxu0 0.0
    %1959 = vmatprep.subr.mxu0 0.0
    %1960 = vmatpush1.msra.mxu0 0.0
    %1961 = vmatprep.mubr.f32.mxu0 0.0
    %v1962 = vand.u32 %v1361, 4294901760
    %1963 = vmatmul.mubr.f32.gmra.mrb[0].mxu0 %v1962
    %v1964 = vpop.f32.mrb[0].mxu0
    %v1965 = vadd.f32 %v1872, %v1964
    %v1966 = vpop.f32.mrb[0].mxu0
    %1967 = vmatprep.mubr.f32.mxu0 0.0
    %v1968 = vand.u32 %v1364, 4294901760
    %1969 = vmatmul.mubr.f32.gmra.mrb[0].mxu0 %v1968
    %v1970 = vpop.f32.mrb[0].mxu0
    %v1971 = vadd.f32 %v1878, %v1970
    %v1972 = vpop.f32.mrb[0].mxu0
    %1973 = vmatprep.mubr.f32.mxu0 0.0
    %v1974 = vand.u32 %v1367, 4294901760
    %1975 = vmatmul.mubr.f32.gmra.mrb[0].mxu0 %v1974
    %v1976 = vpop.f32.mrb[0].mxu0
    %v1977 = vadd.f32 %v1884, %v1976
    %v1978 = vpop.f32.mrb[0].mxu0
    %1979 = vmatprep.mubr.f32.mxu0 0.0
    %v1980 = vand.u32 %v1370, 4294901760
    %1981 = vmatmul.mubr.f32.gmra.mrb[0].mxu0 %v1980
    %v1982 = vpop.f32.mrb[0].mxu0
    %v1983 = vadd.f32 %v1890, %v1982
    %v1984 = vpop.f32.mrb[0].mxu0
    %1985 = vdwg.mxu0
    %v1986 = vadd.f32 %v1317, %v1965
    %v1987 = vadd.f32 %v1323, %v1971
    %v1988 = vadd.f32 %v1329, %v1977
    %v1989 = vadd.f32 %v1335, %v1983
    %v1990 = vld [vmem:[#allocation2 + $0x3] sm:$0x1]
    %v1991 = vlaneseq
    %v1992 = vshrl.u32 %v1991, 7
    %v1993 = vsub.s32 0, %v1992
    %v1994 = vrot.slane %v1990, %v1993
    %vm1995 = vcmp.eq.s32.totalorder %v1994, %v38
    %vm1996 = vcmp.eq.s32.totalorder %v1994, %v39
    %vm1997 = vcmp.eq.s32.totalorder %v1994, %v40
    %vm1998 = vcmp.eq.s32.totalorder %v1994, %v41
    %v1999 = vsel %vm1995, 1, 0
    %v2000 = vsel %vm1996, 1, 0
    %v2001 = vsel %vm1997, 1, 0
    %v2002 = vsel %vm1998, 1, 0
    %v2003 = vcvt.s32.f32 %v1999
    %v2004 = vcvt.s32.f32 %v2000
    %v2005 = vcvt.s32.f32 %v2001
    %v2006 = vcvt.s32.f32 %v2002
    %s2007 = scalar_lea.vmem [#allocation4], 96
    %v2008 = vld [vmem:[%s2007] sm:$0xff]
    %v2009 = vld [vmem:[%s2007 + $0x8] sm:$0xff]
    %v2010 = vld [vmem:[%s2007 + $0x10] sm:$0xff]
    %v2011 = vld [vmem:[%s2007 + $0x18] sm:$0xff]
    %v2013 = vsel %vm85, %v2008, 0
    %v2016 = vsel %vm85, %v2009, 0
    %v2019 = vsel %vm85, %v2010, 0
    %v2022 = vsel %vm85, %v2011, 0
    %2024 = vmatprep.subr.mxu0 0.0
    %v2025 = vand.u32 %v2003, 4294901760
    %2026 = vmatpush1.msra.mxu0 %v2025
    %2027 = vmatprep.subr.mxu0 0.0
    %v2028 = vand.u32 %v2004, 4294901760
    %2029 = vmatpush1.msra.mxu0 %v2028
    %2030 = vmatprep.subr.mxu0 0.0
    %v2031 = vand.u32 %v2005, 4294901760
    %2032 = vmatpush1.msra.mxu0 %v2031
    %2033 = vmatprep.subr.mxu0 0.0
    %v2034 = vand.u32 %v2006, 4294901760
    %2035 = vmatpush1.msra.mxu0 %v2034
    %2036 = vmatprep.subr.mxu0 0.0
    %2037 = vmatpush1.msra.mxu0 0.0
    %2038 = vmatprep.subr.mxu0 0.0
    %2039 = vmatpush1.msra.mxu0 0.0
    %2040 = vmatprep.subr.mxu0 0.0
    %2041 = vmatpush1.msra.mxu0 0.0
    %2042 = vmatprep.subr.mxu0 0.0
    %2043 = vmatpush1.msra.mxu0 0.0
    %2044 = vmatprep.subr.mxu0 0.0
    %2045 = vmatpush1.msra.mxu0 0.0
    %2046 = vmatprep.subr.mxu0 0.0
    %2047 = vmatpush1.msra.mxu0 0.0
    %2048 = vmatprep.subr.mxu0 0.0
    %2049 = vmatpush1.msra.mxu0 0.0
    %2050 = vmatprep.subr.mxu0 0.0
    %2051 = vmatpush1.msra.mxu0 0.0
    %2052 = vmatprep.subr.mxu0 0.0
    %2053 = vmatpush1.msra.mxu0 0.0
    %2054 = vmatprep.subr.mxu0 0.0
    %2055 = vmatpush1.msra.mxu0 0.0
    %2056 = vmatprep.subr.mxu0 0.0
    %2057 = vmatpush1.msra.mxu0 0.0
    %2058 = vmatprep.subr.mxu0 0.0
    %2059 = vmatpush1.msra.mxu0 0.0
    %2060 = vmatprep.subr.mxu0 0.0
    %2061 = vmatpush1.msra.mxu0 0.0
    %2062 = vmatprep.subr.mxu0 0.0
    %2063 = vmatpush1.msra.mxu0 0.0
    %2064 = vmatprep.subr.mxu0 0.0
    %2065 = vmatpush1.msra.mxu0 0.0
    %2066 = vmatprep.subr.mxu0 0.0
    %2067 = vmatpush1.msra.mxu0 0.0
    %2068 = vmatprep.subr.mxu0 0.0
    %2069 = vmatpush1.msra.mxu0 0.0
    %2070 = vmatprep.subr.mxu0 0.0
    %2071 = vmatpush1.msra.mxu0 0.0
    %2072 = vmatprep.subr.mxu0 0.0
    %2073 = vmatpush1.msra.mxu0 0.0
    %2074 = vmatprep.subr.mxu0 0.0
    %2075 = vmatpush1.msra.mxu0 0.0
    %2076 = vmatprep.subr.mxu0 0.0
    %2077 = vmatpush1.msra.mxu0 0.0
    %2078 = vmatprep.subr.mxu0 0.0
    %2079 = vmatpush1.msra.mxu0 0.0
    %2080 = vmatprep.subr.mxu0 0.0
    %2081 = vmatpush1.msra.mxu0 0.0
    %2082 = vmatprep.subr.mxu0 0.0
    %2083 = vmatpush1.msra.mxu0 0.0
    %2084 = vmatprep.subr.mxu0 0.0
    %2085 = vmatpush1.msra.mxu0 0.0
    %2086 = vmatprep.subr.mxu0 0.0
    %2087 = vmatpush1.msra.mxu0 0.0
    %2088 = vmatprep.subr.mxu0 0.0
    %2089 = vmatpush1.msra.mxu0 0.0
    %2090 = vmatprep.subr.mxu0 0.0
    %2091 = vmatpush1.msra.mxu0 0.0
    %2092 = vmatprep.mubr.f32.mxu0 0.0
    %v2093 = vand.u32 %v2013, 4294901760
    %v2094 = vsub.f32 %v2013, %v2093
    %v2095 = vand.u32 %v2094, 4294901760
    %v2096 = vsub.f32 %v2094, %v2095
    %v2097 = vand.u32 %v2096, 4294901760
    %2098 = vmatmul.mubr.f32.gmra.mrb[0].mxu0 %v2097
    %v2099 = vpop.f32.mrb[0].mxu0
    %v2100 = vadd.f32 0.0, %v2099
    %v2101 = vpop.f32.mrb[0].mxu0
    %2102 = vmatprep.mubr.f32.mxu0 0.0
    %v2103 = vand.u32 %v2016, 4294901760
    %v2104 = vsub.f32 %v2016, %v2103
    %v2105 = vand.u32 %v2104, 4294901760
    %v2106 = vsub.f32 %v2104, %v2105
    %v2107 = vand.u32 %v2106, 4294901760
    %2108 = vmatmul.mubr.f32.gmra.mrb[0].mxu0 %v2107
    %v2109 = vpop.f32.mrb[0].mxu0
    %v2110 = vadd.f32 0.0, %v2109
    %v2111 = vpop.f32.mrb[0].mxu0
    %2112 = vmatprep.mubr.f32.mxu0 0.0
    %v2113 = vand.u32 %v2019, 4294901760
    %v2114 = vsub.f32 %v2019, %v2113
    %v2115 = vand.u32 %v2114, 4294901760
    %v2116 = vsub.f32 %v2114, %v2115
    %v2117 = vand.u32 %v2116, 4294901760
    %2118 = vmatmul.mubr.f32.gmra.mrb[0].mxu0 %v2117
    %v2119 = vpop.f32.mrb[0].mxu0
    %v2120 = vadd.f32 0.0, %v2119
    %v2121 = vpop.f32.mrb[0].mxu0
    %2122 = vmatprep.mubr.f32.mxu0 0.0
    %v2123 = vand.u32 %v2022, 4294901760
    %v2124 = vsub.f32 %v2022, %v2123
    %v2125 = vand.u32 %v2124, 4294901760
    %v2126 = vsub.f32 %v2124, %v2125
    %v2127 = vand.u32 %v2126, 4294901760
    %2128 = vmatmul.mubr.f32.gmra.mrb[0].mxu0 %v2127
    %v2129 = vpop.f32.mrb[0].mxu0
    %v2130 = vadd.f32 0.0, %v2129
    %v2131 = vpop.f32.mrb[0].mxu0
    %2132 = vdwg.mxu0
    %2133 = vmatprep.subr.mxu0 0.0
    %v2134 = vand.u32 %v2003, 4294901760
    %v2135 = vsub.f32 %v2003, %v2134
    %v2136 = vand.u32 %v2135, 4294901760
    %v2137 = vsub.f32 %v2135, %v2136
    %v2138 = vand.u32 %v2137, 4294901760
    %2139 = vmatpush1.msra.mxu0 %v2138
    %2140 = vmatprep.subr.mxu0 0.0
    %v2141 = vand.u32 %v2004, 4294901760
    %v2142 = vsub.f32 %v2004, %v2141
    %v2143 = vand.u32 %v2142, 4294901760
    %v2144 = vsub.f32 %v2142, %v2143
    %v2145 = vand.u32 %v2144, 4294901760
    %2146 = vmatpush1.msra.mxu0 %v2145
    %2147 = vmatprep.subr.mxu0 0.0
    %v2148 = vand.u32 %v2005, 4294901760
    %v2149 = vsub.f32 %v2005, %v2148
    %v2150 = vand.u32 %v2149, 4294901760
    %v2151 = vsub.f32 %v2149, %v2150
    %v2152 = vand.u32 %v2151, 4294901760
    %2153 = vmatpush1.msra.mxu0 %v2152
    %2154 = vmatprep.subr.mxu0 0.0
    %v2155 = vand.u32 %v2006, 4294901760
    %v2156 = vsub.f32 %v2006, %v2155
    %v2157 = vand.u32 %v2156, 4294901760
    %v2158 = vsub.f32 %v2156, %v2157
    %v2159 = vand.u32 %v2158, 4294901760
    %2160 = vmatpush1.msra.mxu0 %v2159
    %2161 = vmatprep.subr.mxu0 0.0
    %2162 = vmatpush1.msra.mxu0 0.0
    %2163 = vmatprep.subr.mxu0 0.0
    %2164 = vmatpush1.msra.mxu0 0.0
    %2165 = vmatprep.subr.mxu0 0.0
    %2166 = vmatpush1.msra.mxu0 0.0
    %2167 = vmatprep.subr.mxu0 0.0
    %2168 = vmatpush1.msra.mxu0 0.0
    %2169 = vmatprep.subr.mxu0 0.0
    %2170 = vmatpush1.msra.mxu0 0.0
    %2171 = vmatprep.subr.mxu0 0.0
    %2172 = vmatpush1.msra.mxu0 0.0
    %2173 = vmatprep.subr.mxu0 0.0
    %2174 = vmatpush1.msra.mxu0 0.0
    %2175 = vmatprep.subr.mxu0 0.0
    %2176 = vmatpush1.msra.mxu0 0.0
    %2177 = vmatprep.subr.mxu0 0.0
    %2178 = vmatpush1.msra.mxu0 0.0
    %2179 = vmatprep.subr.mxu0 0.0
    %2180 = vmatpush1.msra.mxu0 0.0
    %2181 = vmatprep.subr.mxu0 0.0
    %2182 = vmatpush1.msra.mxu0 0.0
    %2183 = vmatprep.subr.mxu0 0.0
    %2184 = vmatpush1.msra.mxu0 0.0
    %2185 = vmatprep.subr.mxu0 0.0
    %2186 = vmatpush1.msra.mxu0 0.0
    %2187 = vmatprep.subr.mxu0 0.0
    %2188 = vmatpush1.msra.mxu0 0.0
    %2189 = vmatprep.subr.mxu0 0.0
    %2190 = vmatpush1.msra.mxu0 0.0
    %2191 = vmatprep.subr.mxu0 0.0
    %2192 = vmatpush1.msra.mxu0 0.0
    %2193 = vmatprep.subr.mxu0 0.0
    %2194 = vmatpush1.msra.mxu0 0.0
    %2195 = vmatprep.subr.mxu0 0.0
    %2196 = vmatpush1.msra.mxu0 0.0
    %2197 = vmatprep.subr.mxu0 0.0
    %2198 = vmatpush1.msra.mxu0 0.0
    %2199 = vmatprep.subr.mxu0 0.0
    %2200 = vmatpush1.msra.mxu0 0.0
    %2201 = vmatprep.subr.mxu0 0.0
    %2202 = vmatpush1.msra.mxu0 0.0
    %2203 = vmatprep.subr.mxu0 0.0
    %2204 = vmatpush1.msra.mxu0 0.0
    %2205 = vmatprep.subr.mxu0 0.0
    %2206 = vmatpush1.msra.mxu0 0.0
    %2207 = vmatprep.subr.mxu0 0.0
    %2208 = vmatpush1.msra.mxu0 0.0
    %2209 = vmatprep.subr.mxu0 0.0
    %2210 = vmatpush1.msra.mxu0 0.0
    %2211 = vmatprep.subr.mxu0 0.0
    %2212 = vmatpush1.msra.mxu0 0.0
    %2213 = vmatprep.subr.mxu0 0.0
    %2214 = vmatpush1.msra.mxu0 0.0
    %2215 = vmatprep.subr.mxu0 0.0
    %2216 = vmatpush1.msra.mxu0 0.0
    %2217 = vmatprep.mubr.f32.mxu0 0.0
    %v2218 = vand.u32 %v2013, 4294901760
    %2219 = vmatmul.mubr.f32.gmra.mrb[0].mxu0 %v2218
    %v2220 = vpop.f32.mrb[0].mxu0
    %v2221 = vadd.f32 %v2100, %v2220
    %v2222 = vpop.f32.mrb[0].mxu0
    %2223 = vmatprep.mubr.f32.mxu0 0.0
    %v2224 = vand.u32 %v2016, 4294901760
    %2225 = vmatmul.mubr.f32.gmra.mrb[0].mxu0 %v2224
    %v2226 = vpop.f32.mrb[0].mxu0
    %v2227 = vadd.f32 %v2110, %v2226
    %v2228 = vpop.f32.mrb[0].mxu0
    %2229 = vmatprep.mubr.f32.mxu0 0.0
    %v2230 = vand.u32 %v2019, 4294901760
    %2231 = vmatmul.mubr.f32.gmra.mrb[0].mxu0 %v2230
    %v2232 = vpop.f32.mrb[0].mxu0
    %v2233 = vadd.f32 %v2120, %v2232
    %v2234 = vpop.f32.mrb[0].mxu0
    %2235 = vmatprep.mubr.f32.mxu0 0.0
    %v2236 = vand.u32 %v2022, 4294901760
    %2237 = vmatmul.mubr.f32.gmra.mrb[0].mxu0 %v2236
    %v2238 = vpop.f32.mrb[0].mxu0
    %v2239 = vadd.f32 %v2130, %v2238
    %v2240 = vpop.f32.mrb[0].mxu0
    %2241 = vdwg.mxu0
    %2242 = vmatprep.subr.mxu0 0.0
    %v2243 = vand.u32 %v2003, 4294901760
    %v2244 = vsub.f32 %v2003, %v2243
    %2245 = vmatpush1.msra.mxu0 %v2244
    %2246 = vmatprep.subr.mxu0 0.0
    %v2247 = vand.u32 %v2004, 4294901760
    %v2248 = vsub.f32 %v2004, %v2247
    %2249 = vmatpush1.msra.mxu0 %v2248
    %2250 = vmatprep.subr.mxu0 0.0
    %v2251 = vand.u32 %v2005, 4294901760
    %v2252 = vsub.f32 %v2005, %v2251
    %2253 = vmatpush1.msra.mxu0 %v2252
    %2254 = vmatprep.subr.mxu0 0.0
    %v2255 = vand.u32 %v2006, 4294901760
    %v2256 = vsub.f32 %v2006, %v2255
    %2257 = vmatpush1.msra.mxu0 %v2256
    %2258 = vmatprep.subr.mxu0 0.0
    %2259 = vmatpush1.msra.mxu0 0.0
    %2260 = vmatprep.subr.mxu0 0.0
    %2261 = vmatpush1.msra.mxu0 0.0
    %2262 = vmatprep.subr.mxu0 0.0
    %2263 = vmatpush1.msra.mxu0 0.0
    %2264 = vmatprep.subr.mxu0 0.0
    %2265 = vmatpush1.msra.mxu0 0.0
    %2266 = vmatprep.subr.mxu0 0.0
    %2267 = vmatpush1.msra.mxu0 0.0
    %2268 = vmatprep.subr.mxu0 0.0
    %2269 = vmatpush1.msra.mxu0 0.0
    %2270 = vmatprep.subr.mxu0 0.0
    %2271 = vmatpush1.msra.mxu0 0.0
    %2272 = vmatprep.subr.mxu0 0.0
    %2273 = vmatpush1.msra.mxu0 0.0
    %2274 = vmatprep.subr.mxu0 0.0
    %2275 = vmatpush1.msra.mxu0 0.0
    %2276 = vmatprep.subr.mxu0 0.0
    %2277 = vmatpush1.msra.mxu0 0.0
    %2278 = vmatprep.subr.mxu0 0.0
    %2279 = vmatpush1.msra.mxu0 0.0
    %2280 = vmatprep.subr.mxu0 0.0
    %2281 = vmatpush1.msra.mxu0 0.0
    %2282 = vmatprep.subr.mxu0 0.0
    %2283 = vmatpush1.msra.mxu0 0.0
    %2284 = vmatprep.subr.mxu0 0.0
    %2285 = vmatpush1.msra.mxu0 0.0
    %2286 = vmatprep.subr.mxu0 0.0
    %2287 = vmatpush1.msra.mxu0 0.0
    %2288 = vmatprep.subr.mxu0 0.0
    %2289 = vmatpush1.msra.mxu0 0.0
    %2290 = vmatprep.subr.mxu0 0.0
    %2291 = vmatpush1.msra.mxu0 0.0
    %2292 = vmatprep.subr.mxu0 0.0
    %2293 = vmatpush1.msra.mxu0 0.0
    %2294 = vmatprep.subr.mxu0 0.0
    %2295 = vmatpush1.msra.mxu0 0.0
    %2296 = vmatprep.subr.mxu0 0.0
    %2297 = vmatpush1.msra.mxu0 0.0
    %2298 = vmatprep.subr.mxu0 0.0
    %2299 = vmatpush1.msra.mxu0 0.0
    %2300 = vmatprep.subr.mxu0 0.0
    %2301 = vmatpush1.msra.mxu0 0.0
    %2302 = vmatprep.subr.mxu0 0.0
    %2303 = vmatpush1.msra.mxu0 0.0
    %2304 = vmatprep.subr.mxu0 0.0
    %2305 = vmatpush1.msra.mxu0 0.0
    %2306 = vmatprep.subr.mxu0 0.0
    %2307 = vmatpush1.msra.mxu0 0.0
    %2308 = vmatprep.subr.mxu0 0.0
    %2309 = vmatpush1.msra.mxu0 0.0
    %2310 = vmatprep.subr.mxu0 0.0
    %2311 = vmatpush1.msra.mxu0 0.0
    %2312 = vmatprep.subr.mxu0 0.0
    %2313 = vmatpush1.msra.mxu0 0.0
    %2314 = vmatprep.mubr.f32.mxu0 0.0
    %v2315 = vand.u32 %v2013, 4294901760
    %v2316 = vsub.f32 %v2013, %v2315
    %2317 = vmatmul.mubr.f32.gmra.mrb[0].mxu0 %v2316
    %v2318 = vpop.f32.mrb[0].mxu0
    %v2319 = vadd.f32 %v2221, %v2318
    %v2320 = vpop.f32.mrb[0].mxu0
    %2321 = vmatprep.mubr.f32.mxu0 0.0
    %v2322 = vand.u32 %v2016, 4294901760
    %v2323 = vsub.f32 %v2016, %v2322
    %2324 = vmatmul.mubr.f32.gmra.mrb[0].mxu0 %v2323
    %v2325 = vpop.f32.mrb[0].mxu0
    %v2326 = vadd.f32 %v2227, %v2325
    %v2327 = vpop.f32.mrb[0].mxu0
    %2328 = vmatprep.mubr.f32.mxu0 0.0
    %v2329 = vand.u32 %v2019, 4294901760
    %v2330 = vsub.f32 %v2019, %v2329
    %2331 = vmatmul.mubr.f32.gmra.mrb[0].mxu0 %v2330
    %v2332 = vpop.f32.mrb[0].mxu0
    %v2333 = vadd.f32 %v2233, %v2332
    %v2334 = vpop.f32.mrb[0].mxu0
    %2335 = vmatprep.mubr.f32.mxu0 0.0
    %v2336 = vand.u32 %v2022, 4294901760
    %v2337 = vsub.f32 %v2022, %v2336
    %2338 = vmatmul.mubr.f32.gmra.mrb[0].mxu0 %v2337
    %v2339 = vpop.f32.mrb[0].mxu0
    %v2340 = vadd.f32 %v2239, %v2339
    %v2341 = vpop.f32.mrb[0].mxu0
    %2342 = vdwg.mxu0
    %2343 = vmatprep.subr.mxu0 0.0
    %v2344 = vand.u32 %v2003, 4294901760
    %2345 = vmatpush1.msra.mxu0 %v2344
    %2346 = vmatprep.subr.mxu0 0.0
    %v2347 = vand.u32 %v2004, 4294901760
    %2348 = vmatpush1.msra.mxu0 %v2347
    %2349 = vmatprep.subr.mxu0 0.0
    %v2350 = vand.u32 %v2005, 4294901760
    %2351 = vmatpush1.msra.mxu0 %v2350
    %2352 = vmatprep.subr.mxu0 0.0
    %v2353 = vand.u32 %v2006, 4294901760
    %2354 = vmatpush1.msra.mxu0 %v2353
    %2355 = vmatprep.subr.mxu0 0.0
    %2356 = vmatpush1.msra.mxu0 0.0
    %2357 = vmatprep.subr.mxu0 0.0
    %2358 = vmatpush1.msra.mxu0 0.0
    %2359 = vmatprep.subr.mxu0 0.0
    %2360 = vmatpush1.msra.mxu0 0.0
    %2361 = vmatprep.subr.mxu0 0.0
    %2362 = vmatpush1.msra.mxu0 0.0
    %2363 = vmatprep.subr.mxu0 0.0
    %2364 = vmatpush1.msra.mxu0 0.0
    %2365 = vmatprep.subr.mxu0 0.0
    %2366 = vmatpush1.msra.mxu0 0.0
    %2367 = vmatprep.subr.mxu0 0.0
    %2368 = vmatpush1.msra.mxu0 0.0
    %2369 = vmatprep.subr.mxu0 0.0
    %2370 = vmatpush1.msra.mxu0 0.0
    %2371 = vmatprep.subr.mxu0 0.0
    %2372 = vmatpush1.msra.mxu0 0.0
    %2373 = vmatprep.subr.mxu0 0.0
    %2374 = vmatpush1.msra.mxu0 0.0
    %2375 = vmatprep.subr.mxu0 0.0
    %2376 = vmatpush1.msra.mxu0 0.0
    %2377 = vmatprep.subr.mxu0 0.0
    %2378 = vmatpush1.msra.mxu0 0.0
    %2379 = vmatprep.subr.mxu0 0.0
    %2380 = vmatpush1.msra.mxu0 0.0
    %2381 = vmatprep.subr.mxu0 0.0
    %2382 = vmatpush1.msra.mxu0 0.0
    %2383 = vmatprep.subr.mxu0 0.0
    %2384 = vmatpush1.msra.mxu0 0.0
    %2385 = vmatprep.subr.mxu0 0.0
    %2386 = vmatpush1.msra.mxu0 0.0
    %2387 = vmatprep.subr.mxu0 0.0
    %2388 = vmatpush1.msra.mxu0 0.0
    %2389 = vmatprep.subr.mxu0 0.0
    %2390 = vmatpush1.msra.mxu0 0.0
    %2391 = vmatprep.subr.mxu0 0.0
    %2392 = vmatpush1.msra.mxu0 0.0
    %2393 = vmatprep.subr.mxu0 0.0
    %2394 = vmatpush1.msra.mxu0 0.0
    %2395 = vmatprep.subr.mxu0 0.0
    %2396 = vmatpush1.msra.mxu0 0.0
    %2397 = vmatprep.subr.mxu0 0.0
    %2398 = vmatpush1.msra.mxu0 0.0
    %2399 = vmatprep.subr.mxu0 0.0
    %2400 = vmatpush1.msra.mxu0 0.0
    %2401 = vmatprep.subr.mxu0 0.0
    %2402 = vmatpush1.msra.mxu0 0.0
    %2403 = vmatprep.subr.mxu0 0.0
    %2404 = vmatpush1.msra.mxu0 0.0
    %2405 = vmatprep.subr.mxu0 0.0
    %2406 = vmatpush1.msra.mxu0 0.0
    %2407 = vmatprep.subr.mxu0 0.0
    %2408 = vmatpush1.msra.mxu0 0.0
    %2409 = vmatprep.subr.mxu0 0.0
    %2410 = vmatpush1.msra.mxu0 0.0
    %2411 = vmatprep.mubr.f32.mxu0 0.0
    %v2412 = vand.u32 %v2013, 4294901760
    %v2413 = vsub.f32 %v2013, %v2412
    %v2414 = vand.u32 %v2413, 4294901760
    %2415 = vmatmul.mubr.f32.gmra.mrb[0].mxu0 %v2414
    %v2416 = vpop.f32.mrb[0].mxu0
    %v2417 = vadd.f32 %v2319, %v2416
    %v2418 = vpop.f32.mrb[0].mxu0
    %2419 = vmatprep.mubr.f32.mxu0 0.0
    %v2420 = vand.u32 %v2016, 4294901760
    %v2421 = vsub.f32 %v2016, %v2420
    %v2422 = vand.u32 %v2421, 4294901760
    %2423 = vmatmul.mubr.f32.gmra.mrb[0].mxu0 %v2422
    %v2424 = vpop.f32.mrb[0].mxu0
    %v2425 = vadd.f32 %v2326, %v2424
    %v2426 = vpop.f32.mrb[0].mxu0
    %2427 = vmatprep.mubr.f32.mxu0 0.0
    %v2428 = vand.u32 %v2019, 4294901760
    %v2429 = vsub.f32 %v2019, %v2428
    %v2430 = vand.u32 %v2429, 4294901760
    %2431 = vmatmul.mubr.f32.gmra.mrb[0].mxu0 %v2430
    %v2432 = vpop.f32.mrb[0].mxu0
    %v2433 = vadd.f32 %v2333, %v2432
    %v2434 = vpop.f32.mrb[0].mxu0
    %2435 = vmatprep.mubr.f32.mxu0 0.0
    %v2436 = vand.u32 %v2022, 4294901760
    %v2437 = vsub.f32 %v2022, %v2436
    %v2438 = vand.u32 %v2437, 4294901760
    %2439 = vmatmul.mubr.f32.gmra.mrb[0].mxu0 %v2438
    %v2440 = vpop.f32.mrb[0].mxu0
    %v2441 = vadd.f32 %v2340, %v2440
    %v2442 = vpop.f32.mrb[0].mxu0
    %2443 = vdwg.mxu0
    %2444 = vmatprep.subr.mxu0 0.0
    %v2445 = vand.u32 %v2003, 4294901760
    %v2446 = vsub.f32 %v2003, %v2445
    %v2447 = vand.u32 %v2446, 4294901760
    %2448 = vmatpush1.msra.mxu0 %v2447
    %2449 = vmatprep.subr.mxu0 0.0
    %v2450 = vand.u32 %v2004, 4294901760
    %v2451 = vsub.f32 %v2004, %v2450
    %v2452 = vand.u32 %v2451, 4294901760
    %2453 = vmatpush1.msra.mxu0 %v2452
    %2454 = vmatprep.subr.mxu0 0.0
    %v2455 = vand.u32 %v2005, 4294901760
    %v2456 = vsub.f32 %v2005, %v2455
    %v2457 = vand.u32 %v2456, 4294901760
    %2458 = vmatpush1.msra.mxu0 %v2457
    %2459 = vmatprep.subr.mxu0 0.0
    %v2460 = vand.u32 %v2006, 4294901760
    %v2461 = vsub.f32 %v2006, %v2460
    %v2462 = vand.u32 %v2461, 4294901760
    %2463 = vmatpush1.msra.mxu0 %v2462
    %2464 = vmatprep.subr.mxu0 0.0
    %2465 = vmatpush1.msra.mxu0 0.0
    %2466 = vmatprep.subr.mxu0 0.0
    %2467 = vmatpush1.msra.mxu0 0.0
    %2468 = vmatprep.subr.mxu0 0.0
    %2469 = vmatpush1.msra.mxu0 0.0
    %2470 = vmatprep.subr.mxu0 0.0
    %2471 = vmatpush1.msra.mxu0 0.0
    %2472 = vmatprep.subr.mxu0 0.0
    %2473 = vmatpush1.msra.mxu0 0.0
    %2474 = vmatprep.subr.mxu0 0.0
    %2475 = vmatpush1.msra.mxu0 0.0
    %2476 = vmatprep.subr.mxu0 0.0
    %2477 = vmatpush1.msra.mxu0 0.0
    %2478 = vmatprep.subr.mxu0 0.0
    %2479 = vmatpush1.msra.mxu0 0.0
    %2480 = vmatprep.subr.mxu0 0.0
    %2481 = vmatpush1.msra.mxu0 0.0
    %2482 = vmatprep.subr.mxu0 0.0
    %2483 = vmatpush1.msra.mxu0 0.0
    %2484 = vmatprep.subr.mxu0 0.0
    %2485 = vmatpush1.msra.mxu0 0.0
    %2486 = vmatprep.subr.mxu0 0.0
    %2487 = vmatpush1.msra.mxu0 0.0
    %2488 = vmatprep.subr.mxu0 0.0
    %2489 = vmatpush1.msra.mxu0 0.0
    %2490 = vmatprep.subr.mxu0 0.0
    %2491 = vmatpush1.msra.mxu0 0.0
    %2492 = vmatprep.subr.mxu0 0.0
    %2493 = vmatpush1.msra.mxu0 0.0
    %2494 = vmatprep.subr.mxu0 0.0
    %2495 = vmatpush1.msra.mxu0 0.0
    %2496 = vmatprep.subr.mxu0 0.0
    %2497 = vmatpush1.msra.mxu0 0.0
    %2498 = vmatprep.subr.mxu0 0.0
    %2499 = vmatpush1.msra.mxu0 0.0
    %2500 = vmatprep.subr.mxu0 0.0
    %2501 = vmatpush1.msra.mxu0 0.0
    %2502 = vmatprep.subr.mxu0 0.0
    %2503 = vmatpush1.msra.mxu0 0.0
    %2504 = vmatprep.subr.mxu0 0.0
    %2505 = vmatpush1.msra.mxu0 0.0
    %2506 = vmatprep.subr.mxu0 0.0
    %2507 = vmatpush1.msra.mxu0 0.0
    %2508 = vmatprep.subr.mxu0 0.0
    %2509 = vmatpush1.msra.mxu0 0.0
    %2510 = vmatprep.subr.mxu0 0.0
    %2511 = vmatpush1.msra.mxu0 0.0
    %2512 = vmatprep.subr.mxu0 0.0
    %2513 = vmatpush1.msra.mxu0 0.0
    %2514 = vmatprep.subr.mxu0 0.0
    %2515 = vmatpush1.msra.mxu0 0.0
    %2516 = vmatprep.subr.mxu0 0.0
    %2517 = vmatpush1.msra.mxu0 0.0
    %2518 = vmatprep.subr.mxu0 0.0
    %2519 = vmatpush1.msra.mxu0 0.0
    %2520 = vmatprep.mubr.f32.mxu0 0.0
    %v2521 = vand.u32 %v2013, 4294901760
    %2522 = vmatmul.mubr.f32.gmra.mrb[0].mxu0 %v2521
    %v2523 = vpop.f32.mrb[0].mxu0
    %v2524 = vadd.f32 %v2417, %v2523
    %v2525 = vpop.f32.mrb[0].mxu0
    %2526 = vmatprep.mubr.f32.mxu0 0.0
    %v2527 = vand.u32 %v2016, 4294901760
    %2528 = vmatmul.mubr.f32.gmra.mrb[0].mxu0 %v2527
    %v2529 = vpop.f32.mrb[0].mxu0
    %v2530 = vadd.f32 %v2425, %v2529
    %v2531 = vpop.f32.mrb[0].mxu0
    %2532 = vmatprep.mubr.f32.mxu0 0.0
    %v2533 = vand.u32 %v2019, 4294901760
    %2534 = vmatmul.mubr.f32.gmra.mrb[0].mxu0 %v2533
    %v2535 = vpop.f32.mrb[0].mxu0
    %v2536 = vadd.f32 %v2433, %v2535
    %v2537 = vpop.f32.mrb[0].mxu0
    %2538 = vmatprep.mubr.f32.mxu0 0.0
    %v2539 = vand.u32 %v2022, 4294901760
    %2540 = vmatmul.mubr.f32.gmra.mrb[0].mxu0 %v2539
    %v2541 = vpop.f32.mrb[0].mxu0
    %v2542 = vadd.f32 %v2441, %v2541
    %v2543 = vpop.f32.mrb[0].mxu0
    %2544 = vdwg.mxu0
    %2545 = vmatprep.subr.mxu0 0.0
    %v2546 = vand.u32 %v2003, 4294901760
    %2547 = vmatpush1.msra.mxu0 %v2546
    %2548 = vmatprep.subr.mxu0 0.0
    %v2549 = vand.u32 %v2004, 4294901760
    %2550 = vmatpush1.msra.mxu0 %v2549
    %2551 = vmatprep.subr.mxu0 0.0
    %v2552 = vand.u32 %v2005, 4294901760
    %2553 = vmatpush1.msra.mxu0 %v2552
    %2554 = vmatprep.subr.mxu0 0.0
    %v2555 = vand.u32 %v2006, 4294901760
    %2556 = vmatpush1.msra.mxu0 %v2555
    %2557 = vmatprep.subr.mxu0 0.0
    %2558 = vmatpush1.msra.mxu0 0.0
    %2559 = vmatprep.subr.mxu0 0.0
    %2560 = vmatpush1.msra.mxu0 0.0
    %2561 = vmatprep.subr.mxu0 0.0
    %2562 = vmatpush1.msra.mxu0 0.0
    %2563 = vmatprep.subr.mxu0 0.0
    %2564 = vmatpush1.msra.mxu0 0.0
    %2565 = vmatprep.subr.mxu0 0.0
    %2566 = vmatpush1.msra.mxu0 0.0
    %2567 = vmatprep.subr.mxu0 0.0
    %2568 = vmatpush1.msra.mxu0 0.0
    %2569 = vmatprep.subr.mxu0 0.0
    %2570 = vmatpush1.msra.mxu0 0.0
    %2571 = vmatprep.subr.mxu0 0.0
    %2572 = vmatpush1.msra.mxu0 0.0
    %2573 = vmatprep.subr.mxu0 0.0
    %2574 = vmatpush1.msra.mxu0 0.0
    %2575 = vmatprep.subr.mxu0 0.0
    %2576 = vmatpush1.msra.mxu0 0.0
    %2577 = vmatprep.subr.mxu0 0.0
    %2578 = vmatpush1.msra.mxu0 0.0
    %2579 = vmatprep.subr.mxu0 0.0
    %2580 = vmatpush1.msra.mxu0 0.0
    %2581 = vmatprep.subr.mxu0 0.0
    %2582 = vmatpush1.msra.mxu0 0.0
    %2583 = vmatprep.subr.mxu0 0.0
    %2584 = vmatpush1.msra.mxu0 0.0
    %2585 = vmatprep.subr.mxu0 0.0
    %2586 = vmatpush1.msra.mxu0 0.0
    %2587 = vmatprep.subr.mxu0 0.0
    %2588 = vmatpush1.msra.mxu0 0.0
    %2589 = vmatprep.subr.mxu0 0.0
    %2590 = vmatpush1.msra.mxu0 0.0
    %2591 = vmatprep.subr.mxu0 0.0
    %2592 = vmatpush1.msra.mxu0 0.0
    %2593 = vmatprep.subr.mxu0 0.0
    %2594 = vmatpush1.msra.mxu0 0.0
    %2595 = vmatprep.subr.mxu0 0.0
    %2596 = vmatpush1.msra.mxu0 0.0
    %2597 = vmatprep.subr.mxu0 0.0
    %2598 = vmatpush1.msra.mxu0 0.0
    %2599 = vmatprep.subr.mxu0 0.0
    %2600 = vmatpush1.msra.mxu0 0.0
    %2601 = vmatprep.subr.mxu0 0.0
    %2602 = vmatpush1.msra.mxu0 0.0
    %2603 = vmatprep.subr.mxu0 0.0
    %2604 = vmatpush1.msra.mxu0 0.0
    %2605 = vmatprep.subr.mxu0 0.0
    %2606 = vmatpush1.msra.mxu0 0.0
    %2607 = vmatprep.subr.mxu0 0.0
    %2608 = vmatpush1.msra.mxu0 0.0
    %2609 = vmatprep.subr.mxu0 0.0
    %2610 = vmatpush1.msra.mxu0 0.0
    %2611 = vmatprep.subr.mxu0 0.0
    %2612 = vmatpush1.msra.mxu0 0.0
    %2613 = vmatprep.mubr.f32.mxu0 0.0
    %v2614 = vand.u32 %v2013, 4294901760
    %2615 = vmatmul.mubr.f32.gmra.mrb[0].mxu0 %v2614
    %v2616 = vpop.f32.mrb[0].mxu0
    %v2617 = vadd.f32 %v2524, %v2616
    %v2618 = vpop.f32.mrb[0].mxu0
    %2619 = vmatprep.mubr.f32.mxu0 0.0
    %v2620 = vand.u32 %v2016, 4294901760
    %2621 = vmatmul.mubr.f32.gmra.mrb[0].mxu0 %v2620
    %v2622 = vpop.f32.mrb[0].mxu0
    %v2623 = vadd.f32 %v2530, %v2622
    %v2624 = vpop.f32.mrb[0].mxu0
    %2625 = vmatprep.mubr.f32.mxu0 0.0
    %v2626 = vand.u32 %v2019, 4294901760
    %2627 = vmatmul.mubr.f32.gmra.mrb[0].mxu0 %v2626
    %v2628 = vpop.f32.mrb[0].mxu0
    %v2629 = vadd.f32 %v2536, %v2628
    %v2630 = vpop.f32.mrb[0].mxu0
    %2631 = vmatprep.mubr.f32.mxu0 0.0
    %v2632 = vand.u32 %v2022, 4294901760
    %2633 = vmatmul.mubr.f32.gmra.mrb[0].mxu0 %v2632
    %v2634 = vpop.f32.mrb[0].mxu0
    %v2635 = vadd.f32 %v2542, %v2634
    %v2636 = vpop.f32.mrb[0].mxu0
    %2637 = vdwg.mxu0
    %v2638 = vadd.f32 %v1986, %v2617
    %v2639 = vadd.f32 %v1987, %v2623
    %v2640 = vadd.f32 %v1988, %v2629
    %v2641 = vadd.f32 %v1989, %v2635
    %v2642 = vld [vmem:[#allocation2 + $0x4] sm:$0x1]
    %v2643 = vlaneseq
    %v2644 = vshrl.u32 %v2643, 7
    %v2645 = vsub.s32 0, %v2644
    %v2646 = vrot.slane %v2642, %v2645
    %vm2647 = vcmp.eq.s32.totalorder %v2646, %v38
    %vm2648 = vcmp.eq.s32.totalorder %v2646, %v39
    %vm2649 = vcmp.eq.s32.totalorder %v2646, %v40
    %vm2650 = vcmp.eq.s32.totalorder %v2646, %v41
    %v2651 = vsel %vm2647, 1, 0
    %v2652 = vsel %vm2648, 1, 0
    %v2653 = vsel %vm2649, 1, 0
    %v2654 = vsel %vm2650, 1, 0
    %v2655 = vcvt.s32.f32 %v2651
    %v2656 = vcvt.s32.f32 %v2652
    %v2657 = vcvt.s32.f32 %v2653
    %v2658 = vcvt.s32.f32 %v2654
    %s2659 = scalar_lea.vmem [#allocation4], 128
    %v2660 = vld [vmem:[%s2659] sm:$0xff]
    %v2661 = vld [vmem:[%s2659 + $0x8] sm:$0xff]
    %v2662 = vld [vmem:[%s2659 + $0x10] sm:$0xff]
    %v2663 = vld [vmem:[%s2659 + $0x18] sm:$0xff]
    %v2665 = vsel %vm85, %v2660, 0
    %v2668 = vsel %vm85, %v2661, 0
    %v2671 = vsel %vm85, %v2662, 0
    %v2674 = vsel %vm85, %v2663, 0
    %2676 = vmatprep.subr.mxu0 0.0
    %v2677 = vand.u32 %v2655, 4294901760
    %2678 = vmatpush1.msra.mxu0 %v2677
    %2679 = vmatprep.subr.mxu0 0.0
    %v2680 = vand.u32 %v2656, 4294901760
    %2681 = vmatpush1.msra.mxu0 %v2680
    %2682 = vmatprep.subr.mxu0 0.0
    %v2683 = vand.u32 %v2657, 4294901760
    %2684 = vmatpush1.msra.mxu0 %v2683
    %2685 = vmatprep.subr.mxu0 0.0
    %v2686 = vand.u32 %v2658, 4294901760
    %2687 = vmatpush1.msra.mxu0 %v2686
    %2688 = vmatprep.subr.mxu0 0.0
    %2689 = vmatpush1.msra.mxu0 0.0
    %2690 = vmatprep.subr.mxu0 0.0
    %2691 = vmatpush1.msra.mxu0 0.0
    %2692 = vmatprep.subr.mxu0 0.0
    %2693 = vmatpush1.msra.mxu0 0.0
    %2694 = vmatprep.subr.mxu0 0.0
    %2695 = vmatpush1.msra.mxu0 0.0
    %2696 = vmatprep.subr.mxu0 0.0
    %2697 = vmatpush1.msra.mxu0 0.0
    %2698 = vmatprep.subr.mxu0 0.0
    %2699 = vmatpush1.msra.mxu0 0.0
    %2700 = vmatprep.subr.mxu0 0.0
    %2701 = vmatpush1.msra.mxu0 0.0
    %2702 = vmatprep.subr.mxu0 0.0
    %2703 = vmatpush1.msra.mxu0 0.0
    %2704 = vmatprep.subr.mxu0 0.0
    %2705 = vmatpush1.msra.mxu0 0.0
    %2706 = vmatprep.subr.mxu0 0.0
    %2707 = vmatpush1.msra.mxu0 0.0
    %2708 = vmatprep.subr.mxu0 0.0
    %2709 = vmatpush1.msra.mxu0 0.0
    %2710 = vmatprep.subr.mxu0 0.0
    %2711 = vmatpush1.msra.mxu0 0.0
    %2712 = vmatprep.subr.mxu0 0.0
    %2713 = vmatpush1.msra.mxu0 0.0
    %2714 = vmatprep.subr.mxu0 0.0
    %2715 = vmatpush1.msra.mxu0 0.0
    %2716 = vmatprep.subr.mxu0 0.0
    %2717 = vmatpush1.msra.mxu0 0.0
    %2718 = vmatprep.subr.mxu0 0.0
    %2719 = vmatpush1.msra.mxu0 0.0
    %2720 = vmatprep.subr.mxu0 0.0
    %2721 = vmatpush1.msra.mxu0 0.0
    %2722 = vmatprep.subr.mxu0 0.0
    %2723 = vmatpush1.msra.mxu0 0.0
    %2724 = vmatprep.subr.mxu0 0.0
    %2725 = vmatpush1.msra.mxu0 0.0
    %2726 = vmatprep.subr.mxu0 0.0
    %2727 = vmatpush1.msra.mxu0 0.0
    %2728 = vmatprep.subr.mxu0 0.0
    %2729 = vmatpush1.msra.mxu0 0.0
    %2730 = vmatprep.subr.mxu0 0.0
    %2731 = vmatpush1.msra.mxu0 0.0
    %2732 = vmatprep.subr.mxu0 0.0
    %2733 = vmatpush1.msra.mxu0 0.0
    %2734 = vmatprep.subr.mxu0 0.0
    %2735 = vmatpush1.msra.mxu0 0.0
    %2736 = vmatprep.subr.mxu0 0.0
    %2737 = vmatpush1.msra.mxu0 0.0
    %2738 = vmatprep.subr.mxu0 0.0
    %2739 = vmatpush1.msra.mxu0 0.0
    %2740 = vmatprep.subr.mxu0 0.0
    %2741 = vmatpush1.msra.mxu0 0.0
    %2742 = vmatprep.subr.mxu0 0.0
    %2743 = vmatpush1.msra.mxu0 0.0
    %2744 = vmatprep.mubr.f32.mxu0 0.0
    %v2745 = vand.u32 %v2665, 4294901760
    %v2746 = vsub.f32 %v2665, %v2745
    %v2747 = vand.u32 %v2746, 4294901760
    %v2748 = vsub.f32 %v2746, %v2747
    %v2749 = vand.u32 %v2748, 4294901760
    %2750 = vmatmul.mubr.f32.gmra.mrb[0].mxu0 %v2749
    %v2751 = vpop.f32.mrb[0].mxu0
    %v2752 = vadd.f32 0.0, %v2751
    %v2753 = vpop.f32.mrb[0].mxu0
    %2754 = vmatprep.mubr.f32.mxu0 0.0
    %v2755 = vand.u32 %v2668, 4294901760
    %v2756 = vsub.f32 %v2668, %v2755
    %v2757 = vand.u32 %v2756, 4294901760
    %v2758 = vsub.f32 %v2756, %v2757
    %v2759 = vand.u32 %v2758, 4294901760
    %2760 = vmatmul.mubr.f32.gmra.mrb[0].mxu0 %v2759
    %v2761 = vpop.f32.mrb[0].mxu0
    %v2762 = vadd.f32 0.0, %v2761
    %v2763 = vpop.f32.mrb[0].mxu0
    %2764 = vmatprep.mubr.f32.mxu0 0.0
    %v2765 = vand.u32 %v2671, 4294901760
    %v2766 = vsub.f32 %v2671, %v2765
    %v2767 = vand.u32 %v2766, 4294901760
    %v2768 = vsub.f32 %v2766, %v2767
    %v2769 = vand.u32 %v2768, 4294901760
    %2770 = vmatmul.mubr.f32.gmra.mrb[0].mxu0 %v2769
    %v2771 = vpop.f32.mrb[0].mxu0
    %v2772 = vadd.f32 0.0, %v2771
    %v2773 = vpop.f32.mrb[0].mxu0
    %2774 = vmatprep.mubr.f32.mxu0 0.0
    %v2775 = vand.u32 %v2674, 4294901760
    %v2776 = vsub.f32 %v2674, %v2775
    %v2777 = vand.u32 %v2776, 4294901760
    %v2778 = vsub.f32 %v2776, %v2777
    %v2779 = vand.u32 %v2778, 4294901760
    %2780 = vmatmul.mubr.f32.gmra.mrb[0].mxu0 %v2779
    %v2781 = vpop.f32.mrb[0].mxu0
    %v2782 = vadd.f32 0.0, %v2781
    %v2783 = vpop.f32.mrb[0].mxu0
    %2784 = vdwg.mxu0
    %2785 = vmatprep.subr.mxu0 0.0
    %v2786 = vand.u32 %v2655, 4294901760
    %v2787 = vsub.f32 %v2655, %v2786
    %v2788 = vand.u32 %v2787, 4294901760
    %v2789 = vsub.f32 %v2787, %v2788
    %v2790 = vand.u32 %v2789, 4294901760
    %2791 = vmatpush1.msra.mxu0 %v2790
    %2792 = vmatprep.subr.mxu0 0.0
    %v2793 = vand.u32 %v2656, 4294901760
    %v2794 = vsub.f32 %v2656, %v2793
    %v2795 = vand.u32 %v2794, 4294901760
    %v2796 = vsub.f32 %v2794, %v2795
    %v2797 = vand.u32 %v2796, 4294901760
    %2798 = vmatpush1.msra.mxu0 %v2797
    %2799 = vmatprep.subr.mxu0 0.0
    %v2800 = vand.u32 %v2657, 4294901760
    %v2801 = vsub.f32 %v2657, %v2800
    %v2802 = vand.u32 %v2801, 4294901760
    %v2803 = vsub.f32 %v2801, %v2802
    %v2804 = vand.u32 %v2803, 4294901760
    %2805 = vmatpush1.msra.mxu0 %v2804
    %2806 = vmatprep.subr.mxu0 0.0
    %v2807 = vand.u32 %v2658, 4294901760
    %v2808 = vsub.f32 %v2658, %v2807
    %v2809 = vand.u32 %v2808, 4294901760
    %v2810 = vsub.f32 %v2808, %v2809
    %v2811 = vand.u32 %v2810, 4294901760
    %2812 = vmatpush1.msra.mxu0 %v2811
    %2813 = vmatprep.subr.mxu0 0.0
    %2814 = vmatpush1.msra.mxu0 0.0
    %2815 = vmatprep.subr.mxu0 0.0
    %2816 = vmatpush1.msra.mxu0 0.0
    %2817 = vmatprep.subr.mxu0 0.0
    %2818 = vmatpush1.msra.mxu0 0.0
    %2819 = vmatprep.subr.mxu0 0.0
    %2820 = vmatpush1.msra.mxu0 0.0
    %2821 = vmatprep.subr.mxu0 0.0
    %2822 = vmatpush1.msra.mxu0 0.0
    %2823 = vmatprep.subr.mxu0 0.0
    %2824 = vmatpush1.msra.mxu0 0.0
    %2825 = vmatprep.subr.mxu0 0.0
    %2826 = vmatpush1.msra.mxu0 0.0
    %2827 = vmatprep.subr.mxu0 0.0
    %2828 = vmatpush1.msra.mxu0 0.0
    %2829 = vmatprep.subr.mxu0 0.0
    %2830 = vmatpush1.msra.mxu0 0.0
    %2831 = vmatprep.subr.mxu0 0.0
    %2832 = vmatpush1.msra.mxu0 0.0
    %2833 = vmatprep.subr.mxu0 0.0
    %2834 = vmatpush1.msra.mxu0 0.0
    %2835 = vmatprep.subr.mxu0 0.0
    %2836 = vmatpush1.msra.mxu0 0.0
    %2837 = vmatprep.subr.mxu0 0.0
    %2838 = vmatpush1.msra.mxu0 0.0
    %2839 = vmatprep.subr.mxu0 0.0
    %2840 = vmatpush1.msra.mxu0 0.0
    %2841 = vmatprep.subr.mxu0 0.0
    %2842 = vmatpush1.msra.mxu0 0.0
    %2843 = vmatprep.subr.mxu0 0.0
    %2844 = vmatpush1.msra.mxu0 0.0
    %2845 = vmatprep.subr.mxu0 0.0
    %2846 = vmatpush1.msra.mxu0 0.0
    %2847 = vmatprep.subr.mxu0 0.0
    %2848 = vmatpush1.msra.mxu0 0.0
    %2849 = vmatprep.subr.mxu0 0.0
    %2850 = vmatpush1.msra.mxu0 0.0
    %2851 = vmatprep.subr.mxu0 0.0
    %2852 = vmatpush1.msra.mxu0 0.0
    %2853 = vmatprep.subr.mxu0 0.0
    %2854 = vmatpush1.msra.mxu0 0.0
    %2855 = vmatprep.subr.mxu0 0.0
    %2856 = vmatpush1.msra.mxu0 0.0
    %2857 = vmatprep.subr.mxu0 0.0
    %2858 = vmatpush1.msra.mxu0 0.0
    %2859 = vmatprep.subr.mxu0 0.0
    %2860 = vmatpush1.msra.mxu0 0.0
    %2861 = vmatprep.subr.mxu0 0.0
    %2862 = vmatpush1.msra.mxu0 0.0
    %2863 = vmatprep.subr.mxu0 0.0
    %2864 = vmatpush1.msra.mxu0 0.0
    %2865 = vmatprep.subr.mxu0 0.0
    %2866 = vmatpush1.msra.mxu0 0.0
    %2867 = vmatprep.subr.mxu0 0.0
    %2868 = vmatpush1.msra.mxu0 0.0
    %2869 = vmatprep.mubr.f32.mxu0 0.0
    %v2870 = vand.u32 %v2665, 4294901760
    %2871 = vmatmul.mubr.f32.gmra.mrb[0].mxu0 %v2870
    %v2872 = vpop.f32.mrb[0].mxu0
    %v2873 = vadd.f32 %v2752, %v2872
    %v2874 = vpop.f32.mrb[0].mxu0
    %2875 = vmatprep.mubr.f32.mxu0 0.0
    %v2876 = vand.u32 %v2668, 4294901760
    %2877 = vmatmul.mubr.f32.gmra.mrb[0].mxu0 %v2876
    %v2878 = vpop.f32.mrb[0].mxu0
    %v2879 = vadd.f32 %v2762, %v2878
    %v2880 = vpop.f32.mrb[0].mxu0
    %2881 = vmatprep.mubr.f32.mxu0 0.0
    %v2882 = vand.u32 %v2671, 4294901760
    %2883 = vmatmul.mubr.f32.gmra.mrb[0].mxu0 %v2882
    %v2884 = vpop.f32.mrb[0].mxu0
    %v2885 = vadd.f32 %v2772, %v2884
    %v2886 = vpop.f32.mrb[0].mxu0
    %2887 = vmatprep.mubr.f32.mxu0 0.0
    %v2888 = vand.u32 %v2674, 4294901760
    %2889 = vmatmul.mubr.f32.gmra.mrb[0].mxu0 %v2888
    %v2890 = vpop.f32.mrb[0].mxu0
    %v2891 = vadd.f32 %v2782, %v2890
    %v2892 = vpop.f32.mrb[0].mxu0
    %2893 = vdwg.mxu0
    %2894 = vmatprep.subr.mxu0 0.0
    %v2895 = vand.u32 %v2655, 4294901760
    %v2896 = vsub.f32 %v2655, %v2895
    %2897 = vmatpush1.msra.mxu0 %v2896
    %2898 = vmatprep.subr.mxu0 0.0
    %v2899 = vand.u32 %v2656, 4294901760
    %v2900 = vsub.f32 %v2656, %v2899
    %2901 = vmatpush1.msra.mxu0 %v2900
    %2902 = vmatprep.subr.mxu0 0.0
    %v2903 = vand.u32 %v2657, 4294901760
    %v2904 = vsub.f32 %v2657, %v2903
    %2905 = vmatpush1.msra.mxu0 %v2904
    %2906 = vmatprep.subr.mxu0 0.0
    %v2907 = vand.u32 %v2658, 4294901760
    %v2908 = vsub.f32 %v2658, %v2907
    %2909 = vmatpush1.msra.mxu0 %v2908
    %2910 = vmatprep.subr.mxu0 0.0
    %2911 = vmatpush1.msra.mxu0 0.0
    %2912 = vmatprep.subr.mxu0 0.0
    %2913 = vmatpush1.msra.mxu0 0.0
    %2914 = vmatprep.subr.mxu0 0.0
    %2915 = vmatpush1.msra.mxu0 0.0
    %2916 = vmatprep.subr.mxu0 0.0
    %2917 = vmatpush1.msra.mxu0 0.0
    %2918 = vmatprep.subr.mxu0 0.0
    %2919 = vmatpush1.msra.mxu0 0.0
    %2920 = vmatprep.subr.mxu0 0.0
    %2921 = vmatpush1.msra.mxu0 0.0
    %2922 = vmatprep.subr.mxu0 0.0
    %2923 = vmatpush1.msra.mxu0 0.0
    %2924 = vmatprep.subr.mxu0 0.0
    %2925 = vmatpush1.msra.mxu0 0.0
    %2926 = vmatprep.subr.mxu0 0.0
    %2927 = vmatpush1.msra.mxu0 0.0
    %2928 = vmatprep.subr.mxu0 0.0
    %2929 = vmatpush1.msra.mxu0 0.0
    %2930 = vmatprep.subr.mxu0 0.0
    %2931 = vmatpush1.msra.mxu0 0.0
    %2932 = vmatprep.subr.mxu0 0.0
    %2933 = vmatpush1.msra.mxu0 0.0
    %2934 = vmatprep.subr.mxu0 0.0
    %2935 = vmatpush1.msra.mxu0 0.0
    %2936 = vmatprep.subr.mxu0 0.0
    %2937 = vmatpush1.msra.mxu0 0.0
    %2938 = vmatprep.subr.mxu0 0.0
    %2939 = vmatpush1.msra.mxu0 0.0
    %2940 = vmatprep.subr.mxu0 0.0
    %2941 = vmatpush1.msra.mxu0 0.0
    %2942 = vmatprep.subr.mxu0 0.0
    %2943 = vmatpush1.msra.mxu0 0.0
    %2944 = vmatprep.subr.mxu0 0.0
    %2945 = vmatpush1.msra.mxu0 0.0
    %2946 = vmatprep.subr.mxu0 0.0
    %2947 = vmatpush1.msra.mxu0 0.0
    %2948 = vmatprep.subr.mxu0 0.0
    %2949 = vmatpush1.msra.mxu0 0.0
    %2950 = vmatprep.subr.mxu0 0.0
    %2951 = vmatpush1.msra.mxu0 0.0
    %2952 = vmatprep.subr.mxu0 0.0
    %2953 = vmatpush1.msra.mxu0 0.0
    %2954 = vmatprep.subr.mxu0 0.0
    %2955 = vmatpush1.msra.mxu0 0.0
    %2956 = vmatprep.subr.mxu0 0.0
    %2957 = vmatpush1.msra.mxu0 0.0
    %2958 = vmatprep.subr.mxu0 0.0
    %2959 = vmatpush1.msra.mxu0 0.0
    %2960 = vmatprep.subr.mxu0 0.0
    %2961 = vmatpush1.msra.mxu0 0.0
    %2962 = vmatprep.subr.mxu0 0.0
    %2963 = vmatpush1.msra.mxu0 0.0
    %2964 = vmatprep.subr.mxu0 0.0
    %2965 = vmatpush1.msra.mxu0 0.0
    %2966 = vmatprep.mubr.f32.mxu0 0.0
    %v2967 = vand.u32 %v2665, 4294901760
    %v2968 = vsub.f32 %v2665, %v2967
    %2969 = vmatmul.mubr.f32.gmra.mrb[0].mxu0 %v2968
    %v2970 = vpop.f32.mrb[0].mxu0
    %v2971 = vadd.f32 %v2873, %v2970
    %v2972 = vpop.f32.mrb[0].mxu0
    %2973 = vmatprep.mubr.f32.mxu0 0.0
    %v2974 = vand.u32 %v2668, 4294901760
    %v2975 = vsub.f32 %v2668, %v2974
    %2976 = vmatmul.mubr.f32.gmra.mrb[0].mxu0 %v2975
    %v2977 = vpop.f32.mrb[0].mxu0
    %v2978 = vadd.f32 %v2879, %v2977
    %v2979 = vpop.f32.mrb[0].mxu0
    %2980 = vmatprep.mubr.f32.mxu0 0.0
    %v2981 = vand.u32 %v2671, 4294901760
    %v2982 = vsub.f32 %v2671, %v2981
    %2983 = vmatmul.mubr.f32.gmra.mrb[0].mxu0 %v2982
    %v2984 = vpop.f32.mrb[0].mxu0
    %v2985 = vadd.f32 %v2885, %v2984
    %v2986 = vpop.f32.mrb[0].mxu0
    %2987 = vmatprep.mubr.f32.mxu0 0.0
    %v2988 = vand.u32 %v2674, 4294901760
    %v2989 = vsub.f32 %v2674, %v2988
    %2990 = vmatmul.mubr.f32.gmra.mrb[0].mxu0 %v2989
    %v2991 = vpop.f32.mrb[0].mxu0
    %v2992 = vadd.f32 %v2891, %v2991
    %v2993 = vpop.f32.mrb[0].mxu0
    %2994 = vdwg.mxu0
    %2995 = vmatprep.subr.mxu0 0.0
    %v2996 = vand.u32 %v2655, 4294901760
    %2997 = vmatpush1.msra.mxu0 %v2996
    %2998 = vmatprep.subr.mxu0 0.0
    %v2999 = vand.u32 %v2656, 4294901760
    %3000 = vmatpush1.msra.mxu0 %v2999
    %3001 = vmatprep.subr.mxu0 0.0
    %v3002 = vand.u32 %v2657, 4294901760
    %3003 = vmatpush1.msra.mxu0 %v3002
    %3004 = vmatprep.subr.mxu0 0.0
    %v3005 = vand.u32 %v2658, 4294901760
    %3006 = vmatpush1.msra.mxu0 %v3005
    %3007 = vmatprep.subr.mxu0 0.0
    %3008 = vmatpush1.msra.mxu0 0.0
    %3009 = vmatprep.subr.mxu0 0.0
    %3010 = vmatpush1.msra.mxu0 0.0
    %3011 = vmatprep.subr.mxu0 0.0
    %3012 = vmatpush1.msra.mxu0 0.0
    %3013 = vmatprep.subr.mxu0 0.0
    %3014 = vmatpush1.msra.mxu0 0.0
    %3015 = vmatprep.subr.mxu0 0.0
    %3016 = vmatpush1.msra.mxu0 0.0
    %3017 = vmatprep.subr.mxu0 0.0
    %3018 = vmatpush1.msra.mxu0 0.0
    %3019 = vmatprep.subr.mxu0 0.0
    %3020 = vmatpush1.msra.mxu0 0.0
    %3021 = vmatprep.subr.mxu0 0.0
    %3022 = vmatpush1.msra.mxu0 0.0
    %3023 = vmatprep.subr.mxu0 0.0
    %3024 = vmatpush1.msra.mxu0 0.0
    %3025 = vmatprep.subr.mxu0 0.0
    %3026 = vmatpush1.msra.mxu0 0.0
    %3027 = vmatprep.subr.mxu0 0.0
    %3028 = vmatpush1.msra.mxu0 0.0
    %3029 = vmatprep.subr.mxu0 0.0
    %3030 = vmatpush1.msra.mxu0 0.0
    %3031 = vmatprep.subr.mxu0 0.0
    %3032 = vmatpush1.msra.mxu0 0.0
    %3033 = vmatprep.subr.mxu0 0.0
    %3034 = vmatpush1.msra.mxu0 0.0
    %3035 = vmatprep.subr.mxu0 0.0
    %3036 = vmatpush1.msra.mxu0 0.0
    %3037 = vmatprep.subr.mxu0 0.0
    %3038 = vmatpush1.msra.mxu0 0.0
    %3039 = vmatprep.subr.mxu0 0.0
    %3040 = vmatpush1.msra.mxu0 0.0
    %3041 = vmatprep.subr.mxu0 0.0
    %3042 = vmatpush1.msra.mxu0 0.0
    %3043 = vmatprep.subr.mxu0 0.0
    %3044 = vmatpush1.msra.mxu0 0.0
    %3045 = vmatprep.subr.mxu0 0.0
    %3046 = vmatpush1.msra.mxu0 0.0
    %3047 = vmatprep.subr.mxu0 0.0
    %3048 = vmatpush1.msra.mxu0 0.0
    %3049 = vmatprep.subr.mxu0 0.0
    %3050 = vmatpush1.msra.mxu0 0.0
    %3051 = vmatprep.subr.mxu0 0.0
    %3052 = vmatpush1.msra.mxu0 0.0
    %3053 = vmatprep.subr.mxu0 0.0
    %3054 = vmatpush1.msra.mxu0 0.0
    %3055 = vmatprep.subr.mxu0 0.0
    %3056 = vmatpush1.msra.mxu0 0.0
    %3057 = vmatprep.subr.mxu0 0.0
    %3058 = vmatpush1.msra.mxu0 0.0
    %3059 = vmatprep.subr.mxu0 0.0
    %3060 = vmatpush1.msra.mxu0 0.0
    %3061 = vmatprep.subr.mxu0 0.0
    %3062 = vmatpush1.msra.mxu0 0.0
    %3063 = vmatprep.mubr.f32.mxu0 0.0
    %v3064 = vand.u32 %v2665, 4294901760
    %v3065 = vsub.f32 %v2665, %v3064
    %v3066 = vand.u32 %v3065, 4294901760
    %3067 = vmatmul.mubr.f32.gmra.mrb[0].mxu0 %v3066
    %v3068 = vpop.f32.mrb[0].mxu0
    %v3069 = vadd.f32 %v2971, %v3068
    %v3070 = vpop.f32.mrb[0].mxu0
    %3071 = vmatprep.mubr.f32.mxu0 0.0
    %v3072 = vand.u32 %v2668, 4294901760
    %v3073 = vsub.f32 %v2668, %v3072
    %v3074 = vand.u32 %v3073, 4294901760
    %3075 = vmatmul.mubr.f32.gmra.mrb[0].mxu0 %v3074
    %v3076 = vpop.f32.mrb[0].mxu0
    %v3077 = vadd.f32 %v2978, %v3076
    %v3078 = vpop.f32.mrb[0].mxu0
    %3079 = vmatprep.mubr.f32.mxu0 0.0
    %v3080 = vand.u32 %v2671, 4294901760
    %v3081 = vsub.f32 %v2671, %v3080
    %v3082 = vand.u32 %v3081, 4294901760
    %3083 = vmatmul.mubr.f32.gmra.mrb[0].mxu0 %v3082
    %v3084 = vpop.f32.mrb[0].mxu0
    %v3085 = vadd.f32 %v2985, %v3084
    %v3086 = vpop.f32.mrb[0].mxu0
    %3087 = vmatprep.mubr.f32.mxu0 0.0
    %v3088 = vand.u32 %v2674, 4294901760
    %v3089 = vsub.f32 %v2674, %v3088
    %v3090 = vand.u32 %v3089, 4294901760
    %3091 = vmatmul.mubr.f32.gmra.mrb[0].mxu0 %v3090
    %v3092 = vpop.f32.mrb[0].mxu0
    %v3093 = vadd.f32 %v2992, %v3092
    %v3094 = vpop.f32.mrb[0].mxu0
    %3095 = vdwg.mxu0
    %3096 = vmatprep.subr.mxu0 0.0
    %v3097 = vand.u32 %v2655, 4294901760
    %v3098 = vsub.f32 %v2655, %v3097
    %v3099 = vand.u32 %v3098, 4294901760
    %3100 = vmatpush1.msra.mxu0 %v3099
    %3101 = vmatprep.subr.mxu0 0.0
    %v3102 = vand.u32 %v2656, 4294901760
    %v3103 = vsub.f32 %v2656, %v3102
    %v3104 = vand.u32 %v3103, 4294901760
    %3105 = vmatpush1.msra.mxu0 %v3104
    %3106 = vmatprep.subr.mxu0 0.0
    %v3107 = vand.u32 %v2657, 4294901760
    %v3108 = vsub.f32 %v2657, %v3107
    %v3109 = vand.u32 %v3108, 4294901760
    %3110 = vmatpush1.msra.mxu0 %v3109
    %3111 = vmatprep.subr.mxu0 0.0
    %v3112 = vand.u32 %v2658, 4294901760
    %v3113 = vsub.f32 %v2658, %v3112
    %v3114 = vand.u32 %v3113, 4294901760
    %3115 = vmatpush1.msra.mxu0 %v3114
    %3116 = vmatprep.subr.mxu0 0.0
    %3117 = vmatpush1.msra.mxu0 0.0
    %3118 = vmatprep.subr.mxu0 0.0
    %3119 = vmatpush1.msra.mxu0 0.0
    %3120 = vmatprep.subr.mxu0 0.0
    %3121 = vmatpush1.msra.mxu0 0.0
    %3122 = vmatprep.subr.mxu0 0.0
    %3123 = vmatpush1.msra.mxu0 0.0
    %3124 = vmatprep.subr.mxu0 0.0
    %3125 = vmatpush1.msra.mxu0 0.0
    %3126 = vmatprep.subr.mxu0 0.0
    %3127 = vmatpush1.msra.mxu0 0.0
    %3128 = vmatprep.subr.mxu0 0.0
    %3129 = vmatpush1.msra.mxu0 0.0
    %3130 = vmatprep.subr.mxu0 0.0
    %3131 = vmatpush1.msra.mxu0 0.0
    %3132 = vmatprep.subr.mxu0 0.0
    %3133 = vmatpush1.msra.mxu0 0.0
    %3134 = vmatprep.subr.mxu0 0.0
    %3135 = vmatpush1.msra.mxu0 0.0
    %3136 = vmatprep.subr.mxu0 0.0
    %3137 = vmatpush1.msra.mxu0 0.0
    %3138 = vmatprep.subr.mxu0 0.0
    %3139 = vmatpush1.msra.mxu0 0.0
    %3140 = vmatprep.subr.mxu0 0.0
    %3141 = vmatpush1.msra.mxu0 0.0
    %3142 = vmatprep.subr.mxu0 0.0
    %3143 = vmatpush1.msra.mxu0 0.0
    %3144 = vmatprep.subr.mxu0 0.0
    %3145 = vmatpush1.msra.mxu0 0.0
    %3146 = vmatprep.subr.mxu0 0.0
    %3147 = vmatpush1.msra.mxu0 0.0
    %3148 = vmatprep.subr.mxu0 0.0
    %3149 = vmatpush1.msra.mxu0 0.0
    %3150 = vmatprep.subr.mxu0 0.0
    %3151 = vmatpush1.msra.mxu0 0.0
    %3152 = vmatprep.subr.mxu0 0.0
    %3153 = vmatpush1.msra.mxu0 0.0
    %3154 = vmatprep.subr.mxu0 0.0
    %3155 = vmatpush1.msra.mxu0 0.0
    %3156 = vmatprep.subr.mxu0 0.0
    %3157 = vmatpush1.msra.mxu0 0.0
    %3158 = vmatprep.subr.mxu0 0.0
    %3159 = vmatpush1.msra.mxu0 0.0
    %3160 = vmatprep.subr.mxu0 0.0
    %3161 = vmatpush1.msra.mxu0 0.0
    %3162 = vmatprep.subr.mxu0 0.0
    %3163 = vmatpush1.msra.mxu0 0.0
    %3164 = vmatprep.subr.mxu0 0.0
    %3165 = vmatpush1.msra.mxu0 0.0
    %3166 = vmatprep.subr.mxu0 0.0
    %3167 = vmatpush1.msra.mxu0 0.0
    %3168 = vmatprep.subr.mxu0 0.0
    %3169 = vmatpush1.msra.mxu0 0.0
    %3170 = vmatprep.subr.mxu0 0.0
    %3171 = vmatpush1.msra.mxu0 0.0
    %3172 = vmatprep.mubr.f32.mxu0 0.0
    %v3173 = vand.u32 %v2665, 4294901760
    %3174 = vmatmul.mubr.f32.gmra.mrb[0].mxu0 %v3173
    %v3175 = vpop.f32.mrb[0].mxu0
    %v3176 = vadd.f32 %v3069, %v3175
    %v3177 = vpop.f32.mrb[0].mxu0
    %3178 = vmatprep.mubr.f32.mxu0 0.0
    %v3179 = vand.u32 %v2668, 4294901760
    %3180 = vmatmul.mubr.f32.gmra.mrb[0].mxu0 %v3179
    %v3181 = vpop.f32.mrb[0].mxu0
    %v3182 = vadd.f32 %v3077, %v3181
    %v3183 = vpop.f32.mrb[0].mxu0
    %3184 = vmatprep.mubr.f32.mxu0 0.0
    %v3185 = vand.u32 %v2671, 4294901760
    %3186 = vmatmul.mubr.f32.gmra.mrb[0].mxu0 %v3185
    %v3187 = vpop.f32.mrb[0].mxu0
    %v3188 = vadd.f32 %v3085, %v3187
    %v3189 = vpop.f32.mrb[0].mxu0
    %3190 = vmatprep.mubr.f32.mxu0 0.0
    %v3191 = vand.u32 %v2674, 4294901760
    %3192 = vmatmul.mubr.f32.gmra.mrb[0].mxu0 %v3191
    %v3193 = vpop.f32.mrb[0].mxu0
    %v3194 = vadd.f32 %v3093, %v3193
    %v3195 = vpop.f32.mrb[0].mxu0
    %3196 = vdwg.mxu0
    %3197 = vmatprep.subr.mxu0 0.0
    %v3198 = vand.u32 %v2655, 4294901760
    %3199 = vmatpush1.msra.mxu0 %v3198
    %3200 = vmatprep.subr.mxu0 0.0
    %v3201 = vand.u32 %v2656, 4294901760
    %3202 = vmatpush1.msra.mxu0 %v3201
    %3203 = vmatprep.subr.mxu0 0.0
    %v3204 = vand.u32 %v2657, 4294901760
    %3205 = vmatpush1.msra.mxu0 %v3204
    %3206 = vmatprep.subr.mxu0 0.0
    %v3207 = vand.u32 %v2658, 4294901760
    %3208 = vmatpush1.msra.mxu0 %v3207
    %3209 = vmatprep.subr.mxu0 0.0
    %3210 = vmatpush1.msra.mxu0 0.0
    %3211 = vmatprep.subr.mxu0 0.0
    %3212 = vmatpush1.msra.mxu0 0.0
    %3213 = vmatprep.subr.mxu0 0.0
    %3214 = vmatpush1.msra.mxu0 0.0
    %3215 = vmatprep.subr.mxu0 0.0
    %3216 = vmatpush1.msra.mxu0 0.0
    %3217 = vmatprep.subr.mxu0 0.0
    %3218 = vmatpush1.msra.mxu0 0.0
    %3219 = vmatprep.subr.mxu0 0.0
    %3220 = vmatpush1.msra.mxu0 0.0
    %3221 = vmatprep.subr.mxu0 0.0
    %3222 = vmatpush1.msra.mxu0 0.0
    %3223 = vmatprep.subr.mxu0 0.0
    %3224 = vmatpush1.msra.mxu0 0.0
    %3225 = vmatprep.subr.mxu0 0.0
    %3226 = vmatpush1.msra.mxu0 0.0
    %3227 = vmatprep.subr.mxu0 0.0
    %3228 = vmatpush1.msra.mxu0 0.0
    %3229 = vmatprep.subr.mxu0 0.0
    %3230 = vmatpush1.msra.mxu0 0.0
    %3231 = vmatprep.subr.mxu0 0.0
    %3232 = vmatpush1.msra.mxu0 0.0
    %3233 = vmatprep.subr.mxu0 0.0
    %3234 = vmatpush1.msra.mxu0 0.0
    %3235 = vmatprep.subr.mxu0 0.0
    %3236 = vmatpush1.msra.mxu0 0.0
    %3237 = vmatprep.subr.mxu0 0.0
    %3238 = vmatpush1.msra.mxu0 0.0
    %3239 = vmatprep.subr.mxu0 0.0
    %3240 = vmatpush1.msra.mxu0 0.0
    %3241 = vmatprep.subr.mxu0 0.0
    %3242 = vmatpush1.msra.mxu0 0.0
    %3243 = vmatprep.subr.mxu0 0.0
    %3244 = vmatpush1.msra.mxu0 0.0
    %3245 = vmatprep.subr.mxu0 0.0
    %3246 = vmatpush1.msra.mxu0 0.0
    %3247 = vmatprep.subr.mxu0 0.0
    %3248 = vmatpush1.msra.mxu0 0.0
    %3249 = vmatprep.subr.mxu0 0.0
    %3250 = vmatpush1.msra.mxu0 0.0
    %3251 = vmatprep.subr.mxu0 0.0
    %3252 = vmatpush1.msra.mxu0 0.0
    %3253 = vmatprep.subr.mxu0 0.0
    %3254 = vmatpush1.msra.mxu0 0.0
    %3255 = vmatprep.subr.mxu0 0.0
    %3256 = vmatpush1.msra.mxu0 0.0
    %3257 = vmatprep.subr.mxu0 0.0
    %3258 = vmatpush1.msra.mxu0 0.0
    %3259 = vmatprep.subr.mxu0 0.0
    %3260 = vmatpush1.msra.mxu0 0.0
    %3261 = vmatprep.subr.mxu0 0.0
    %3262 = vmatpush1.msra.mxu0 0.0
    %3263 = vmatprep.subr.mxu0 0.0
    %3264 = vmatpush1.msra.mxu0 0.0
    %3265 = vmatprep.mubr.f32.mxu0 0.0
    %v3266 = vand.u32 %v2665, 4294901760
    %3267 = vmatmul.mubr.f32.gmra.mrb[0].mxu0 %v3266
    %v3268 = vpop.f32.mrb[0].mxu0
    %v3269 = vadd.f32 %v3176, %v3268
    %v3270 = vpop.f32.mrb[0].mxu0
    %3271 = vmatprep.mubr.f32.mxu0 0.0
    %v3272 = vand.u32 %v2668, 4294901760
    %3273 = vmatmul.mubr.f32.gmra.mrb[0].mxu0 %v3272
    %v3274 = vpop.f32.mrb[0].mxu0
    %v3275 = vadd.f32 %v3182, %v3274
    %v3276 = vpop.f32.mrb[0].mxu0
    %3277 = vmatprep.mubr.f32.mxu0 0.0
    %v3278 = vand.u32 %v2671, 4294901760
    %3279 = vmatmul.mubr.f32.gmra.mrb[0].mxu0 %v3278
    %v3280 = vpop.f32.mrb[0].mxu0
    %v3281 = vadd.f32 %v3188, %v3280
    %v3282 = vpop.f32.mrb[0].mxu0
    %3283 = vmatprep.mubr.f32.mxu0 0.0
    %v3284 = vand.u32 %v2674, 4294901760
    %3285 = vmatmul.mubr.f32.gmra.mrb[0].mxu0 %v3284
    %v3286 = vpop.f32.mrb[0].mxu0
    %v3287 = vadd.f32 %v3194, %v3286
    %v3288 = vpop.f32.mrb[0].mxu0
    %3289 = vdwg.mxu0
    %v3290 = vadd.f32 %v2638, %v3269
    %v3291 = vadd.f32 %v2639, %v3275
    %v3292 = vadd.f32 %v2640, %v3281
    %v3293 = vadd.f32 %v2641, %v3287
    %v3294 = vld [vmem:[#allocation2 + $0x5] sm:$0x1]
    %v3295 = vlaneseq
    %v3296 = vshrl.u32 %v3295, 7
    %v3297 = vsub.s32 0, %v3296
    %v3298 = vrot.slane %v3294, %v3297
    %vm3299 = vcmp.eq.s32.totalorder %v3298, %v38
    %vm3300 = vcmp.eq.s32.totalorder %v3298, %v39
    %vm3301 = vcmp.eq.s32.totalorder %v3298, %v40
    %vm3302 = vcmp.eq.s32.totalorder %v3298, %v41
    %v3303 = vsel %vm3299, 1, 0
    %v3304 = vsel %vm3300, 1, 0
    %v3305 = vsel %vm3301, 1, 0
    %v3306 = vsel %vm3302, 1, 0
    %v3307 = vcvt.s32.f32 %v3303
    %v3308 = vcvt.s32.f32 %v3304
    %v3309 = vcvt.s32.f32 %v3305
    %v3310 = vcvt.s32.f32 %v3306
    %s3311 = scalar_lea.vmem [#allocation4], 160
    %v3312 = vld [vmem:[%s3311] sm:$0xff]
    %v3313 = vld [vmem:[%s3311 + $0x8] sm:$0xff]
    %v3314 = vld [vmem:[%s3311 + $0x10] sm:$0xff]
    %v3315 = vld [vmem:[%s3311 + $0x18] sm:$0xff]
    %v3317 = vsel %vm85, %v3312, 0
    %v3320 = vsel %vm85, %v3313, 0
    %v3323 = vsel %vm85, %v3314, 0
    %v3326 = vsel %vm85, %v3315, 0
    %3328 = vmatprep.subr.mxu0 0.0
    %v3329 = vand.u32 %v3307, 4294901760
    %3330 = vmatpush1.msra.mxu0 %v3329
    %3331 = vmatprep.subr.mxu0 0.0
    %v3332 = vand.u32 %v3308, 4294901760
    %3333 = vmatpush1.msra.mxu0 %v3332
    %3334 = vmatprep.subr.mxu0 0.0
    %v3335 = vand.u32 %v3309, 4294901760
    %3336 = vmatpush1.msra.mxu0 %v3335
    %3337 = vmatprep.subr.mxu0 0.0
    %v3338 = vand.u32 %v3310, 4294901760
    %3339 = vmatpush1.msra.mxu0 %v3338
    %3340 = vmatprep.subr.mxu0 0.0
    %3341 = vmatpush1.msra.mxu0 0.0
    %3342 = vmatprep.subr.mxu0 0.0
    %3343 = vmatpush1.msra.mxu0 0.0
    %3344 = vmatprep.subr.mxu0 0.0
    %3345 = vmatpush1.msra.mxu0 0.0
    %3346 = vmatprep.subr.mxu0 0.0
    %3347 = vmatpush1.msra.mxu0 0.0
    %3348 = vmatprep.subr.mxu0 0.0
    %3349 = vmatpush1.msra.mxu0 0.0
    %3350 = vmatprep.subr.mxu0 0.0
    %3351 = vmatpush1.msra.mxu0 0.0
    %3352 = vmatprep.subr.mxu0 0.0
    %3353 = vmatpush1.msra.mxu0 0.0
    %3354 = vmatprep.subr.mxu0 0.0
    %3355 = vmatpush1.msra.mxu0 0.0
    %3356 = vmatprep.subr.mxu0 0.0
    %3357 = vmatpush1.msra.mxu0 0.0
    %3358 = vmatprep.subr.mxu0 0.0
    %3359 = vmatpush1.msra.mxu0 0.0
    %3360 = vmatprep.subr.mxu0 0.0
    %3361 = vmatpush1.msra.mxu0 0.0
    %3362 = vmatprep.subr.mxu0 0.0
    %3363 = vmatpush1.msra.mxu0 0.0
    %3364 = vmatprep.subr.mxu0 0.0
    %3365 = vmatpush1.msra.mxu0 0.0
    %3366 = vmatprep.subr.mxu0 0.0
    %3367 = vmatpush1.msra.mxu0 0.0
    %3368 = vmatprep.subr.mxu0 0.0
    %3369 = vmatpush1.msra.mxu0 0.0
    %3370 = vmatprep.subr.mxu0 0.0
    %3371 = vmatpush1.msra.mxu0 0.0
    %3372 = vmatprep.subr.mxu0 0.0
    %3373 = vmatpush1.msra.mxu0 0.0
    %3374 = vmatprep.subr.mxu0 0.0
    %3375 = vmatpush1.msra.mxu0 0.0
    %3376 = vmatprep.subr.mxu0 0.0
    %3377 = vmatpush1.msra.mxu0 0.0
    %3378 = vmatprep.subr.mxu0 0.0
    %3379 = vmatpush1.msra.mxu0 0.0
    %3380 = vmatprep.subr.mxu0 0.0
    %3381 = vmatpush1.msra.mxu0 0.0
    %3382 = vmatprep.subr.mxu0 0.0
    %3383 = vmatpush1.msra.mxu0 0.0
    %3384 = vmatprep.subr.mxu0 0.0
    %3385 = vmatpush1.msra.mxu0 0.0
    %3386 = vmatprep.subr.mxu0 0.0
    %3387 = vmatpush1.msra.mxu0 0.0
    %3388 = vmatprep.subr.mxu0 0.0
    %3389 = vmatpush1.msra.mxu0 0.0
    %3390 = vmatprep.subr.mxu0 0.0
    %3391 = vmatpush1.msra.mxu0 0.0
    %3392 = vmatprep.subr.mxu0 0.0
    %3393 = vmatpush1.msra.mxu0 0.0
    %3394 = vmatprep.subr.mxu0 0.0
    %3395 = vmatpush1.msra.mxu0 0.0
    %3396 = vmatprep.mubr.f32.mxu0 0.0
    %v3397 = vand.u32 %v3317, 4294901760
    %v3398 = vsub.f32 %v3317, %v3397
    %v3399 = vand.u32 %v3398, 4294901760
    %v3400 = vsub.f32 %v3398, %v3399
    %v3401 = vand.u32 %v3400, 4294901760
    %3402 = vmatmul.mubr.f32.gmra.mrb[0].mxu0 %v3401
    %v3403 = vpop.f32.mrb[0].mxu0
    %v3404 = vadd.f32 0.0, %v3403
    %v3405 = vpop.f32.mrb[0].mxu0
    %3406 = vmatprep.mubr.f32.mxu0 0.0
    %v3407 = vand.u32 %v3320, 4294901760
    %v3408 = vsub.f32 %v3320, %v3407
    %v3409 = vand.u32 %v3408, 4294901760
    %v3410 = vsub.f32 %v3408, %v3409
    %v3411 = vand.u32 %v3410, 4294901760
    %3412 = vmatmul.mubr.f32.gmra.mrb[0].mxu0 %v3411
    %v3413 = vpop.f32.mrb[0].mxu0
    %v3414 = vadd.f32 0.0, %v3413
    %v3415 = vpop.f32.mrb[0].mxu0
    %3416 = vmatprep.mubr.f32.mxu0 0.0
    %v3417 = vand.u32 %v3323, 4294901760
    %v3418 = vsub.f32 %v3323, %v3417
    %v3419 = vand.u32 %v3418, 4294901760
    %v3420 = vsub.f32 %v3418, %v3419
    %v3421 = vand.u32 %v3420, 4294901760
    %3422 = vmatmul.mubr.f32.gmra.mrb[0].mxu0 %v3421
    %v3423 = vpop.f32.mrb[0].mxu0
    %v3424 = vadd.f32 0.0, %v3423
    %v3425 = vpop.f32.mrb[0].mxu0
    %3426 = vmatprep.mubr.f32.mxu0 0.0
    %v3427 = vand.u32 %v3326, 4294901760
    %v3428 = vsub.f32 %v3326, %v3427
    %v3429 = vand.u32 %v3428, 4294901760
    %v3430 = vsub.f32 %v3428, %v3429
    %v3431 = vand.u32 %v3430, 4294901760
    %3432 = vmatmul.mubr.f32.gmra.mrb[0].mxu0 %v3431
    %v3433 = vpop.f32.mrb[0].mxu0
    %v3434 = vadd.f32 0.0, %v3433
    %v3435 = vpop.f32.mrb[0].mxu0
    %3436 = vdwg.mxu0
    %3437 = vmatprep.subr.mxu0 0.0
    %v3438 = vand.u32 %v3307, 4294901760
    %v3439 = vsub.f32 %v3307, %v3438
    %v3440 = vand.u32 %v3439, 4294901760
    %v3441 = vsub.f32 %v3439, %v3440
    %v3442 = vand.u32 %v3441, 4294901760
    %3443 = vmatpush1.msra.mxu0 %v3442
    %3444 = vmatprep.subr.mxu0 0.0
    %v3445 = vand.u32 %v3308, 4294901760
    %v3446 = vsub.f32 %v3308, %v3445
    %v3447 = vand.u32 %v3446, 4294901760
    %v3448 = vsub.f32 %v3446, %v3447
    %v3449 = vand.u32 %v3448, 4294901760
    %3450 = vmatpush1.msra.mxu0 %v3449
    %3451 = vmatprep.subr.mxu0 0.0
    %v3452 = vand.u32 %v3309, 4294901760
    %v3453 = vsub.f32 %v3309, %v3452
    %v3454 = vand.u32 %v3453, 4294901760
    %v3455 = vsub.f32 %v3453, %v3454
    %v3456 = vand.u32 %v3455, 4294901760
    %3457 = vmatpush1.msra.mxu0 %v3456
    %3458 = vmatprep.subr.mxu0 0.0
    %v3459 = vand.u32 %v3310, 4294901760
    %v3460 = vsub.f32 %v3310, %v3459
    %v3461 = vand.u32 %v3460, 4294901760
    %v3462 = vsub.f32 %v3460, %v3461
    %v3463 = vand.u32 %v3462, 4294901760
    %3464 = vmatpush1.msra.mxu0 %v3463
    %3465 = vmatprep.subr.mxu0 0.0
    %3466 = vmatpush1.msra.mxu0 0.0
    %3467 = vmatprep.subr.mxu0 0.0
    %3468 = vmatpush1.msra.mxu0 0.0
    %3469 = vmatprep.subr.mxu0 0.0
    %3470 = vmatpush1.msra.mxu0 0.0
    %3471 = vmatprep.subr.mxu0 0.0
    %3472 = vmatpush1.msra.mxu0 0.0
    %3473 = vmatprep.subr.mxu0 0.0
    %3474 = vmatpush1.msra.mxu0 0.0
    %3475 = vmatprep.subr.mxu0 0.0
    %3476 = vmatpush1.msra.mxu0 0.0
    %3477 = vmatprep.subr.mxu0 0.0
    %3478 = vmatpush1.msra.mxu0 0.0
    %3479 = vmatprep.subr.mxu0 0.0
    %3480 = vmatpush1.msra.mxu0 0.0
    %3481 = vmatprep.subr.mxu0 0.0
    %3482 = vmatpush1.msra.mxu0 0.0
    %3483 = vmatprep.subr.mxu0 0.0
    %3484 = vmatpush1.msra.mxu0 0.0
    %3485 = vmatprep.subr.mxu0 0.0
    %3486 = vmatpush1.msra.mxu0 0.0
    %3487 = vmatprep.subr.mxu0 0.0
    %3488 = vmatpush1.msra.mxu0 0.0
    %3489 = vmatprep.subr.mxu0 0.0
    %3490 = vmatpush1.msra.mxu0 0.0
    %3491 = vmatprep.subr.mxu0 0.0
    %3492 = vmatpush1.msra.mxu0 0.0
    %3493 = vmatprep.subr.mxu0 0.0
    %3494 = vmatpush1.msra.mxu0 0.0
    %3495 = vmatprep.subr.mxu0 0.0
    %3496 = vmatpush1.msra.mxu0 0.0
    %3497 = vmatprep.subr.mxu0 0.0
    %3498 = vmatpush1.msra.mxu0 0.0
    %3499 = vmatprep.subr.mxu0 0.0
    %3500 = vmatpush1.msra.mxu0 0.0
    %3501 = vmatprep.subr.mxu0 0.0
    %3502 = vmatpush1.msra.mxu0 0.0
    %3503 = vmatprep.subr.mxu0 0.0
    %3504 = vmatpush1.msra.mxu0 0.0
    %3505 = vmatprep.subr.mxu0 0.0
    %3506 = vmatpush1.msra.mxu0 0.0
    %3507 = vmatprep.subr.mxu0 0.0
    %3508 = vmatpush1.msra.mxu0 0.0
    %3509 = vmatprep.subr.mxu0 0.0
    %3510 = vmatpush1.msra.mxu0 0.0
    %3511 = vmatprep.subr.mxu0 0.0
    %3512 = vmatpush1.msra.mxu0 0.0
    %3513 = vmatprep.subr.mxu0 0.0
    %3514 = vmatpush1.msra.mxu0 0.0
    %3515 = vmatprep.subr.mxu0 0.0
    %3516 = vmatpush1.msra.mxu0 0.0
    %3517 = vmatprep.subr.mxu0 0.0
    %3518 = vmatpush1.msra.mxu0 0.0
    %3519 = vmatprep.subr.mxu0 0.0
    %3520 = vmatpush1.msra.mxu0 0.0
    %3521 = vmatprep.mubr.f32.mxu0 0.0
    %v3522 = vand.u32 %v3317, 4294901760
    %3523 = vmatmul.mubr.f32.gmra.mrb[0].mxu0 %v3522
    %v3524 = vpop.f32.mrb[0].mxu0
    %v3525 = vadd.f32 %v3404, %v3524
    %v3526 = vpop.f32.mrb[0].mxu0
    %3527 = vmatprep.mubr.f32.mxu0 0.0
    %v3528 = vand.u32 %v3320, 4294901760
    %3529 = vmatmul.mubr.f32.gmra.mrb[0].mxu0 %v3528
    %v3530 = vpop.f32.mrb[0].mxu0
    %v3531 = vadd.f32 %v3414, %v3530
    %v3532 = vpop.f32.mrb[0].mxu0
    %3533 = vmatprep.mubr.f32.mxu0 0.0
    %v3534 = vand.u32 %v3323, 4294901760
    %3535 = vmatmul.mubr.f32.gmra.mrb[0].mxu0 %v3534
    %v3536 = vpop.f32.mrb[0].mxu0
    %v3537 = vadd.f32 %v3424, %v3536
    %v3538 = vpop.f32.mrb[0].mxu0
    %3539 = vmatprep.mubr.f32.mxu0 0.0
    %v3540 = vand.u32 %v3326, 4294901760
    %3541 = vmatmul.mubr.f32.gmra.mrb[0].mxu0 %v3540
    %v3542 = vpop.f32.mrb[0].mxu0
    %v3543 = vadd.f32 %v3434, %v3542
    %v3544 = vpop.f32.mrb[0].mxu0
    %3545 = vdwg.mxu0
    %3546 = vmatprep.subr.mxu0 0.0
    %v3547 = vand.u32 %v3307, 4294901760
    %v3548 = vsub.f32 %v3307, %v3547
    %3549 = vmatpush1.msra.mxu0 %v3548
    %3550 = vmatprep.subr.mxu0 0.0
    %v3551 = vand.u32 %v3308, 4294901760
    %v3552 = vsub.f32 %v3308, %v3551
    %3553 = vmatpush1.msra.mxu0 %v3552
    %3554 = vmatprep.subr.mxu0 0.0
    %v3555 = vand.u32 %v3309, 4294901760
    %v3556 = vsub.f32 %v3309, %v3555
    %3557 = vmatpush1.msra.mxu0 %v3556
    %3558 = vmatprep.subr.mxu0 0.0
    %v3559 = vand.u32 %v3310, 4294901760
    %v3560 = vsub.f32 %v3310, %v3559
    %3561 = vmatpush1.msra.mxu0 %v3560
    %3562 = vmatprep.subr.mxu0 0.0
    %3563 = vmatpush1.msra.mxu0 0.0
    %3564 = vmatprep.subr.mxu0 0.0
    %3565 = vmatpush1.msra.mxu0 0.0
    %3566 = vmatprep.subr.mxu0 0.0
    %3567 = vmatpush1.msra.mxu0 0.0
    %3568 = vmatprep.subr.mxu0 0.0
    %3569 = vmatpush1.msra.mxu0 0.0
    %3570 = vmatprep.subr.mxu0 0.0
    %3571 = vmatpush1.msra.mxu0 0.0
    %3572 = vmatprep.subr.mxu0 0.0
    %3573 = vmatpush1.msra.mxu0 0.0
    %3574 = vmatprep.subr.mxu0 0.0
    %3575 = vmatpush1.msra.mxu0 0.0
    %3576 = vmatprep.subr.mxu0 0.0
    %3577 = vmatpush1.msra.mxu0 0.0
    %3578 = vmatprep.subr.mxu0 0.0
    %3579 = vmatpush1.msra.mxu0 0.0
    %3580 = vmatprep.subr.mxu0 0.0
    %3581 = vmatpush1.msra.mxu0 0.0
    %3582 = vmatprep.subr.mxu0 0.0
    %3583 = vmatpush1.msra.mxu0 0.0
    %3584 = vmatprep.subr.mxu0 0.0
    %3585 = vmatpush1.msra.mxu0 0.0
    %3586 = vmatprep.subr.mxu0 0.0
    %3587 = vmatpush1.msra.mxu0 0.0
    %3588 = vmatprep.subr.mxu0 0.0
    %3589 = vmatpush1.msra.mxu0 0.0
    %3590 = vmatprep.subr.mxu0 0.0
    %3591 = vmatpush1.msra.mxu0 0.0
    %3592 = vmatprep.subr.mxu0 0.0
    %3593 = vmatpush1.msra.mxu0 0.0
    %3594 = vmatprep.subr.mxu0 0.0
    %3595 = vmatpush1.msra.mxu0 0.0
    %3596 = vmatprep.subr.mxu0 0.0
    %3597 = vmatpush1.msra.mxu0 0.0
    %3598 = vmatprep.subr.mxu0 0.0
    %3599 = vmatpush1.msra.mxu0 0.0
    %3600 = vmatprep.subr.mxu0 0.0
    %3601 = vmatpush1.msra.mxu0 0.0
    %3602 = vmatprep.subr.mxu0 0.0
    %3603 = vmatpush1.msra.mxu0 0.0
    %3604 = vmatprep.subr.mxu0 0.0
    %3605 = vmatpush1.msra.mxu0 0.0
    %3606 = vmatprep.subr.mxu0 0.0
    %3607 = vmatpush1.msra.mxu0 0.0
    %3608 = vmatprep.subr.mxu0 0.0
    %3609 = vmatpush1.msra.mxu0 0.0
    %3610 = vmatprep.subr.mxu0 0.0
    %3611 = vmatpush1.msra.mxu0 0.0
    %3612 = vmatprep.subr.mxu0 0.0
    %3613 = vmatpush1.msra.mxu0 0.0
    %3614 = vmatprep.subr.mxu0 0.0
    %3615 = vmatpush1.msra.mxu0 0.0
    %3616 = vmatprep.subr.mxu0 0.0
    %3617 = vmatpush1.msra.mxu0 0.0
    %3618 = vmatprep.mubr.f32.mxu0 0.0
    %v3619 = vand.u32 %v3317, 4294901760
    %v3620 = vsub.f32 %v3317, %v3619
    %3621 = vmatmul.mubr.f32.gmra.mrb[0].mxu0 %v3620
    %v3622 = vpop.f32.mrb[0].mxu0
    %v3623 = vadd.f32 %v3525, %v3622
    %v3624 = vpop.f32.mrb[0].mxu0
    %3625 = vmatprep.mubr.f32.mxu0 0.0
    %v3626 = vand.u32 %v3320, 4294901760
    %v3627 = vsub.f32 %v3320, %v3626
    %3628 = vmatmul.mubr.f32.gmra.mrb[0].mxu0 %v3627
    %v3629 = vpop.f32.mrb[0].mxu0
    %v3630 = vadd.f32 %v3531, %v3629
    %v3631 = vpop.f32.mrb[0].mxu0
    %3632 = vmatprep.mubr.f32.mxu0 0.0
    %v3633 = vand.u32 %v3323, 4294901760
    %v3634 = vsub.f32 %v3323, %v3633
    %3635 = vmatmul.mubr.f32.gmra.mrb[0].mxu0 %v3634
    %v3636 = vpop.f32.mrb[0].mxu0
    %v3637 = vadd.f32 %v3537, %v3636
    %v3638 = vpop.f32.mrb[0].mxu0
    %3639 = vmatprep.mubr.f32.mxu0 0.0
    %v3640 = vand.u32 %v3326, 4294901760
    %v3641 = vsub.f32 %v3326, %v3640
    %3642 = vmatmul.mubr.f32.gmra.mrb[0].mxu0 %v3641
    %v3643 = vpop.f32.mrb[0].mxu0
    %v3644 = vadd.f32 %v3543, %v3643
    %v3645 = vpop.f32.mrb[0].mxu0
    %3646 = vdwg.mxu0
    %3647 = vmatprep.subr.mxu0 0.0
    %v3648 = vand.u32 %v3307, 4294901760
    %3649 = vmatpush1.msra.mxu0 %v3648
    %3650 = vmatprep.subr.mxu0 0.0
    %v3651 = vand.u32 %v3308, 4294901760
    %3652 = vmatpush1.msra.mxu0 %v3651
    %3653 = vmatprep.subr.mxu0 0.0
    %v3654 = vand.u32 %v3309, 4294901760
    %3655 = vmatpush1.msra.mxu0 %v3654
    %3656 = vmatprep.subr.mxu0 0.0
    %v3657 = vand.u32 %v3310, 4294901760
    %3658 = vmatpush1.msra.mxu0 %v3657
    %3659 = vmatprep.subr.mxu0 0.0
    %3660 = vmatpush1.msra.mxu0 0.0
    %3661 = vmatprep.subr.mxu0 0.0
    %3662 = vmatpush1.msra.mxu0 0.0
    %3663 = vmatprep.subr.mxu0 0.0
    %3664 = vmatpush1.msra.mxu0 0.0
    %3665 = vmatprep.subr.mxu0 0.0
    %3666 = vmatpush1.msra.mxu0 0.0
    %3667 = vmatprep.subr.mxu0 0.0
    %3668 = vmatpush1.msra.mxu0 0.0
    %3669 = vmatprep.subr.mxu0 0.0
    %3670 = vmatpush1.msra.mxu0 0.0
    %3671 = vmatprep.subr.mxu0 0.0
    %3672 = vmatpush1.msra.mxu0 0.0
    %3673 = vmatprep.subr.mxu0 0.0
    %3674 = vmatpush1.msra.mxu0 0.0
    %3675 = vmatprep.subr.mxu0 0.0
    %3676 = vmatpush1.msra.mxu0 0.0
    %3677 = vmatprep.subr.mxu0 0.0
    %3678 = vmatpush1.msra.mxu0 0.0
    %3679 = vmatprep.subr.mxu0 0.0
    %3680 = vmatpush1.msra.mxu0 0.0
    %3681 = vmatprep.subr.mxu0 0.0
    %3682 = vmatpush1.msra.mxu0 0.0
    %3683 = vmatprep.subr.mxu0 0.0
    %3684 = vmatpush1.msra.mxu0 0.0
    %3685 = vmatprep.subr.mxu0 0.0
    %3686 = vmatpush1.msra.mxu0 0.0
    %3687 = vmatprep.subr.mxu0 0.0
    %3688 = vmatpush1.msra.mxu0 0.0
    %3689 = vmatprep.subr.mxu0 0.0
    %3690 = vmatpush1.msra.mxu0 0.0
    %3691 = vmatprep.subr.mxu0 0.0
    %3692 = vmatpush1.msra.mxu0 0.0
    %3693 = vmatprep.subr.mxu0 0.0
    %3694 = vmatpush1.msra.mxu0 0.0
    %3695 = vmatprep.subr.mxu0 0.0
    %3696 = vmatpush1.msra.mxu0 0.0
    %3697 = vmatprep.subr.mxu0 0.0
    %3698 = vmatpush1.msra.mxu0 0.0
    %3699 = vmatprep.subr.mxu0 0.0
    %3700 = vmatpush1.msra.mxu0 0.0
    %3701 = vmatprep.subr.mxu0 0.0
    %3702 = vmatpush1.msra.mxu0 0.0
    %3703 = vmatprep.subr.mxu0 0.0
    %3704 = vmatpush1.msra.mxu0 0.0
    %3705 = vmatprep.subr.mxu0 0.0
    %3706 = vmatpush1.msra.mxu0 0.0
    %3707 = vmatprep.subr.mxu0 0.0
    %3708 = vmatpush1.msra.mxu0 0.0
    %3709 = vmatprep.subr.mxu0 0.0
    %3710 = vmatpush1.msra.mxu0 0.0
    %3711 = vmatprep.subr.mxu0 0.0
    %3712 = vmatpush1.msra.mxu0 0.0
    %3713 = vmatprep.subr.mxu0 0.0
    %3714 = vmatpush1.msra.mxu0 0.0
    %3715 = vmatprep.mubr.f32.mxu0 0.0
    %v3716 = vand.u32 %v3317, 4294901760
    %v3717 = vsub.f32 %v3317, %v3716
    %v3718 = vand.u32 %v3717, 4294901760
    %3719 = vmatmul.mubr.f32.gmra.mrb[0].mxu0 %v3718
    %v3720 = vpop.f32.mrb[0].mxu0
    %v3721 = vadd.f32 %v3623, %v3720
    %v3722 = vpop.f32.mrb[0].mxu0
    %3723 = vmatprep.mubr.f32.mxu0 0.0
    %v3724 = vand.u32 %v3320, 4294901760
    %v3725 = vsub.f32 %v3320, %v3724
    %v3726 = vand.u32 %v3725, 4294901760
    %3727 = vmatmul.mubr.f32.gmra.mrb[0].mxu0 %v3726
    %v3728 = vpop.f32.mrb[0].mxu0
    %v3729 = vadd.f32 %v3630, %v3728
    %v3730 = vpop.f32.mrb[0].mxu0
    %3731 = vmatprep.mubr.f32.mxu0 0.0
    %v3732 = vand.u32 %v3323, 4294901760
    %v3733 = vsub.f32 %v3323, %v3732
    %v3734 = vand.u32 %v3733, 4294901760
    %3735 = vmatmul.mubr.f32.gmra.mrb[0].mxu0 %v3734
    %v3736 = vpop.f32.mrb[0].mxu0
    %v3737 = vadd.f32 %v3637, %v3736
    %v3738 = vpop.f32.mrb[0].mxu0
    %3739 = vmatprep.mubr.f32.mxu0 0.0
    %v3740 = vand.u32 %v3326, 4294901760
    %v3741 = vsub.f32 %v3326, %v3740
    %v3742 = vand.u32 %v3741, 4294901760
    %3743 = vmatmul.mubr.f32.gmra.mrb[0].mxu0 %v3742
    %v3744 = vpop.f32.mrb[0].mxu0
    %v3745 = vadd.f32 %v3644, %v3744
    %v3746 = vpop.f32.mrb[0].mxu0
    %3747 = vdwg.mxu0
    %3748 = vmatprep.subr.mxu0 0.0
    %v3749 = vand.u32 %v3307, 4294901760
    %v3750 = vsub.f32 %v3307, %v3749
    %v3751 = vand.u32 %v3750, 4294901760
    %3752 = vmatpush1.msra.mxu0 %v3751
    %3753 = vmatprep.subr.mxu0 0.0
    %v3754 = vand.u32 %v3308, 4294901760
    %v3755 = vsub.f32 %v3308, %v3754
    %v3756 = vand.u32 %v3755, 4294901760
    %3757 = vmatpush1.msra.mxu0 %v3756
    %3758 = vmatprep.subr.mxu0 0.0
    %v3759 = vand.u32 %v3309, 4294901760
    %v3760 = vsub.f32 %v3309, %v3759
    %v3761 = vand.u32 %v3760, 4294901760
    %3762 = vmatpush1.msra.mxu0 %v3761
    %3763 = vmatprep.subr.mxu0 0.0
    %v3764 = vand.u32 %v3310, 4294901760
    %v3765 = vsub.f32 %v3310, %v3764
    %v3766 = vand.u32 %v3765, 4294901760
    %3767 = vmatpush1.msra.mxu0 %v3766
    %3768 = vmatprep.subr.mxu0 0.0
    %3769 = vmatpush1.msra.mxu0 0.0
    %3770 = vmatprep.subr.mxu0 0.0
    %3771 = vmatpush1.msra.mxu0 0.0
    %3772 = vmatprep.subr.mxu0 0.0
    %3773 = vmatpush1.msra.mxu0 0.0
    %3774 = vmatprep.subr.mxu0 0.0
    %3775 = vmatpush1.msra.mxu0 0.0
    %3776 = vmatprep.subr.mxu0 0.0
    %3777 = vmatpush1.msra.mxu0 0.0
    %3778 = vmatprep.subr.mxu0 0.0
    %3779 = vmatpush1.msra.mxu0 0.0
    %3780 = vmatprep.subr.mxu0 0.0
    %3781 = vmatpush1.msra.mxu0 0.0
    %3782 = vmatprep.subr.mxu0 0.0
    %3783 = vmatpush1.msra.mxu0 0.0
    %3784 = vmatprep.subr.mxu0 0.0
    %3785 = vmatpush1.msra.mxu0 0.0
    %3786 = vmatprep.subr.mxu0 0.0
    %3787 = vmatpush1.msra.mxu0 0.0
    %3788 = vmatprep.subr.mxu0 0.0
    %3789 = vmatpush1.msra.mxu0 0.0
    %3790 = vmatprep.subr.mxu0 0.0
    %3791 = vmatpush1.msra.mxu0 0.0
    %3792 = vmatprep.subr.mxu0 0.0
    %3793 = vmatpush1.msra.mxu0 0.0
    %3794 = vmatprep.subr.mxu0 0.0
    %3795 = vmatpush1.msra.mxu0 0.0
    %3796 = vmatprep.subr.mxu0 0.0
    %3797 = vmatpush1.msra.mxu0 0.0
    %3798 = vmatprep.subr.mxu0 0.0
    %3799 = vmatpush1.msra.mxu0 0.0
    %3800 = vmatprep.subr.mxu0 0.0
    %3801 = vmatpush1.msra.mxu0 0.0
    %3802 = vmatprep.subr.mxu0 0.0
    %3803 = vmatpush1.msra.mxu0 0.0
    %3804 = vmatprep.subr.mxu0 0.0
    %3805 = vmatpush1.msra.mxu0 0.0
    %3806 = vmatprep.subr.mxu0 0.0
    %3807 = vmatpush1.msra.mxu0 0.0
    %3808 = vmatprep.subr.mxu0 0.0
    %3809 = vmatpush1.msra.mxu0 0.0
    %3810 = vmatprep.subr.mxu0 0.0
    %3811 = vmatpush1.msra.mxu0 0.0
    %3812 = vmatprep.subr.mxu0 0.0
    %3813 = vmatpush1.msra.mxu0 0.0
    %3814 = vmatprep.subr.mxu0 0.0
    %3815 = vmatpush1.msra.mxu0 0.0
    %3816 = vmatprep.subr.mxu0 0.0
    %3817 = vmatpush1.msra.mxu0 0.0
    %3818 = vmatprep.subr.mxu0 0.0
    %3819 = vmatpush1.msra.mxu0 0.0
    %3820 = vmatprep.subr.mxu0 0.0
    %3821 = vmatpush1.msra.mxu0 0.0
    %3822 = vmatprep.subr.mxu0 0.0
    %3823 = vmatpush1.msra.mxu0 0.0
    %3824 = vmatprep.mubr.f32.mxu0 0.0
    %v3825 = vand.u32 %v3317, 4294901760
    %3826 = vmatmul.mubr.f32.gmra.mrb[0].mxu0 %v3825
    %v3827 = vpop.f32.mrb[0].mxu0
    %v3828 = vadd.f32 %v3721, %v3827
    %v3829 = vpop.f32.mrb[0].mxu0
    %3830 = vmatprep.mubr.f32.mxu0 0.0
    %v3831 = vand.u32 %v3320, 4294901760
    %3832 = vmatmul.mubr.f32.gmra.mrb[0].mxu0 %v3831
    %v3833 = vpop.f32.mrb[0].mxu0
    %v3834 = vadd.f32 %v3729, %v3833
    %v3835 = vpop.f32.mrb[0].mxu0
    %3836 = vmatprep.mubr.f32.mxu0 0.0
    %v3837 = vand.u32 %v3323, 4294901760
    %3838 = vmatmul.mubr.f32.gmra.mrb[0].mxu0 %v3837
    %v3839 = vpop.f32.mrb[0].mxu0
    %v3840 = vadd.f32 %v3737, %v3839
    %v3841 = vpop.f32.mrb[0].mxu0
    %3842 = vmatprep.mubr.f32.mxu0 0.0
    %v3843 = vand.u32 %v3326, 4294901760
    %3844 = vmatmul.mubr.f32.gmra.mrb[0].mxu0 %v3843
    %v3845 = vpop.f32.mrb[0].mxu0
    %v3846 = vadd.f32 %v3745, %v3845
    %v3847 = vpop.f32.mrb[0].mxu0
    %3848 = vdwg.mxu0
    %3849 = vmatprep.subr.mxu0 0.0
    %v3850 = vand.u32 %v3307, 4294901760
    %3851 = vmatpush1.msra.mxu0 %v3850
    %3852 = vmatprep.subr.mxu0 0.0
    %v3853 = vand.u32 %v3308, 4294901760
    %3854 = vmatpush1.msra.mxu0 %v3853
    %3855 = vmatprep.subr.mxu0 0.0
    %v3856 = vand.u32 %v3309, 4294901760
    %3857 = vmatpush1.msra.mxu0 %v3856
    %3858 = vmatprep.subr.mxu0 0.0
    %v3859 = vand.u32 %v3310, 4294901760
    %3860 = vmatpush1.msra.mxu0 %v3859
    %3861 = vmatprep.subr.mxu0 0.0
    %3862 = vmatpush1.msra.mxu0 0.0
    %3863 = vmatprep.subr.mxu0 0.0
    %3864 = vmatpush1.msra.mxu0 0.0
    %3865 = vmatprep.subr.mxu0 0.0
    %3866 = vmatpush1.msra.mxu0 0.0
    %3867 = vmatprep.subr.mxu0 0.0
    %3868 = vmatpush1.msra.mxu0 0.0
    %3869 = vmatprep.subr.mxu0 0.0
    %3870 = vmatpush1.msra.mxu0 0.0
    %3871 = vmatprep.subr.mxu0 0.0
    %3872 = vmatpush1.msra.mxu0 0.0
    %3873 = vmatprep.subr.mxu0 0.0
    %3874 = vmatpush1.msra.mxu0 0.0
    %3875 = vmatprep.subr.mxu0 0.0
    %3876 = vmatpush1.msra.mxu0 0.0
    %3877 = vmatprep.subr.mxu0 0.0
    %3878 = vmatpush1.msra.mxu0 0.0
    %3879 = vmatprep.subr.mxu0 0.0
    %3880 = vmatpush1.msra.mxu0 0.0
    %3881 = vmatprep.subr.mxu0 0.0
    %3882 = vmatpush1.msra.mxu0 0.0
    %3883 = vmatprep.subr.mxu0 0.0
    %3884 = vmatpush1.msra.mxu0 0.0
    %3885 = vmatprep.subr.mxu0 0.0
    %3886 = vmatpush1.msra.mxu0 0.0
    %3887 = vmatprep.subr.mxu0 0.0
    %3888 = vmatpush1.msra.mxu0 0.0
    %3889 = vmatprep.subr.mxu0 0.0
    %3890 = vmatpush1.msra.mxu0 0.0
    %3891 = vmatprep.subr.mxu0 0.0
    %3892 = vmatpush1.msra.mxu0 0.0
    %3893 = vmatprep.subr.mxu0 0.0
    %3894 = vmatpush1.msra.mxu0 0.0
    %3895 = vmatprep.subr.mxu0 0.0
    %3896 = vmatpush1.msra.mxu0 0.0
    %3897 = vmatprep.subr.mxu0 0.0
    %3898 = vmatpush1.msra.mxu0 0.0
    %3899 = vmatprep.subr.mxu0 0.0
    %3900 = vmatpush1.msra.mxu0 0.0
    %3901 = vmatprep.subr.mxu0 0.0
    %3902 = vmatpush1.msra.mxu0 0.0
    %3903 = vmatprep.subr.mxu0 0.0
    %3904 = vmatpush1.msra.mxu0 0.0
    %3905 = vmatprep.subr.mxu0 0.0
    %3906 = vmatpush1.msra.mxu0 0.0
    %3907 = vmatprep.subr.mxu0 0.0
    %3908 = vmatpush1.msra.mxu0 0.0
    %3909 = vmatprep.subr.mxu0 0.0
    %3910 = vmatpush1.msra.mxu0 0.0
    %3911 = vmatprep.subr.mxu0 0.0
    %3912 = vmatpush1.msra.mxu0 0.0
    %3913 = vmatprep.subr.mxu0 0.0
    %3914 = vmatpush1.msra.mxu0 0.0
    %3915 = vmatprep.subr.mxu0 0.0
    %3916 = vmatpush1.msra.mxu0 0.0
    %3917 = vmatprep.mubr.f32.mxu0 0.0
    %v3918 = vand.u32 %v3317, 4294901760
    %3919 = vmatmul.mubr.f32.gmra.mrb[0].mxu0 %v3918
    %v3920 = vpop.f32.mrb[0].mxu0
    %v3921 = vadd.f32 %v3828, %v3920
    %v3922 = vpop.f32.mrb[0].mxu0
    %3923 = vmatprep.mubr.f32.mxu0 0.0
    %v3924 = vand.u32 %v3320, 4294901760
    %3925 = vmatmul.mubr.f32.gmra.mrb[0].mxu0 %v3924
    %v3926 = vpop.f32.mrb[0].mxu0
    %v3927 = vadd.f32 %v3834, %v3926
    %v3928 = vpop.f32.mrb[0].mxu0
    %3929 = vmatprep.mubr.f32.mxu0 0.0
    %v3930 = vand.u32 %v3323, 4294901760
    %3931 = vmatmul.mubr.f32.gmra.mrb[0].mxu0 %v3930
    %v3932 = vpop.f32.mrb[0].mxu0
    %v3933 = vadd.f32 %v3840, %v3932
    %v3934 = vpop.f32.mrb[0].mxu0
    %3935 = vmatprep.mubr.f32.mxu0 0.0
    %v3936 = vand.u32 %v3326, 4294901760
    %3937 = vmatmul.mubr.f32.gmra.mrb[0].mxu0 %v3936
    %v3938 = vpop.f32.mrb[0].mxu0
    %v3939 = vadd.f32 %v3846, %v3938
    %v3940 = vpop.f32.mrb[0].mxu0
    %3941 = vdwg.mxu0
    %v3942 = vadd.f32 %v3290, %v3921
    %v3943 = vadd.f32 %v3291, %v3927
    %v3944 = vadd.f32 %v3292, %v3933
    %v3945 = vadd.f32 %v3293, %v3939
    %v3946 = vld [vmem:[#allocation2 + $0x6] sm:$0x1]
    %v3947 = vlaneseq
    %v3948 = vshrl.u32 %v3947, 7
    %v3949 = vsub.s32 0, %v3948
    %v3950 = vrot.slane %v3946, %v3949
    %vm3951 = vcmp.eq.s32.totalorder %v3950, %v38
    %vm3952 = vcmp.eq.s32.totalorder %v3950, %v39
    %vm3953 = vcmp.eq.s32.totalorder %v3950, %v40
    %vm3954 = vcmp.eq.s32.totalorder %v3950, %v41
    %v3955 = vsel %vm3951, 1, 0
    %v3956 = vsel %vm3952, 1, 0
    %v3957 = vsel %vm3953, 1, 0
    %v3958 = vsel %vm3954, 1, 0
    %v3959 = vcvt.s32.f32 %v3955
    %v3960 = vcvt.s32.f32 %v3956
    %v3961 = vcvt.s32.f32 %v3957
    %v3962 = vcvt.s32.f32 %v3958
    %s3963 = scalar_lea.vmem [#allocation4], 192
    %v3964 = vld [vmem:[%s3963] sm:$0xff]
    %v3965 = vld [vmem:[%s3963 + $0x8] sm:$0xff]
    %v3966 = vld [vmem:[%s3963 + $0x10] sm:$0xff]
    %v3967 = vld [vmem:[%s3963 + $0x18] sm:$0xff]
    %v3969 = vsel %vm85, %v3964, 0
    %v3972 = vsel %vm85, %v3965, 0
    %v3975 = vsel %vm85, %v3966, 0
    %v3978 = vsel %vm85, %v3967, 0
    %3980 = vmatprep.subr.mxu0 0.0
    %v3981 = vand.u32 %v3959, 4294901760
    %3982 = vmatpush1.msra.mxu0 %v3981
    %3983 = vmatprep.subr.mxu0 0.0
    %v3984 = vand.u32 %v3960, 4294901760
    %3985 = vmatpush1.msra.mxu0 %v3984
    %3986 = vmatprep.subr.mxu0 0.0
    %v3987 = vand.u32 %v3961, 4294901760
    %3988 = vmatpush1.msra.mxu0 %v3987
    %3989 = vmatprep.subr.mxu0 0.0
    %v3990 = vand.u32 %v3962, 4294901760
    %3991 = vmatpush1.msra.mxu0 %v3990
    %3992 = vmatprep.subr.mxu0 0.0
    %3993 = vmatpush1.msra.mxu0 0.0
    %3994 = vmatprep.subr.mxu0 0.0
    %3995 = vmatpush1.msra.mxu0 0.0
    %3996 = vmatprep.subr.mxu0 0.0
    %3997 = vmatpush1.msra.mxu0 0.0
    %3998 = vmatprep.subr.mxu0 0.0
    %3999 = vmatpush1.msra.mxu0 0.0
    %4000 = vmatprep.subr.mxu0 0.0
    %4001 = vmatpush1.msra.mxu0 0.0
    %4002 = vmatprep.subr.mxu0 0.0
    %4003 = vmatpush1.msra.mxu0 0.0
    %4004 = vmatprep.subr.mxu0 0.0
    %4005 = vmatpush1.msra.mxu0 0.0
    %4006 = vmatprep.subr.mxu0 0.0
    %4007 = vmatpush1.msra.mxu0 0.0
    %4008 = vmatprep.subr.mxu0 0.0
    %4009 = vmatpush1.msra.mxu0 0.0
    %4010 = vmatprep.subr.mxu0 0.0
    %4011 = vmatpush1.msra.mxu0 0.0
    %4012 = vmatprep.subr.mxu0 0.0
    %4013 = vmatpush1.msra.mxu0 0.0
    %4014 = vmatprep.subr.mxu0 0.0
    %4015 = vmatpush1.msra.mxu0 0.0
    %4016 = vmatprep.subr.mxu0 0.0
    %4017 = vmatpush1.msra.mxu0 0.0
    %4018 = vmatprep.subr.mxu0 0.0
    %4019 = vmatpush1.msra.mxu0 0.0
    %4020 = vmatprep.subr.mxu0 0.0
    %4021 = vmatpush1.msra.mxu0 0.0
    %4022 = vmatprep.subr.mxu0 0.0
    %4023 = vmatpush1.msra.mxu0 0.0
    %4024 = vmatprep.subr.mxu0 0.0
    %4025 = vmatpush1.msra.mxu0 0.0
    %4026 = vmatprep.subr.mxu0 0.0
    %4027 = vmatpush1.msra.mxu0 0.0
    %4028 = vmatprep.subr.mxu0 0.0
    %4029 = vmatpush1.msra.mxu0 0.0
    %4030 = vmatprep.subr.mxu0 0.0
    %4031 = vmatpush1.msra.mxu0 0.0
    %4032 = vmatprep.subr.mxu0 0.0
    %4033 = vmatpush1.msra.mxu0 0.0
    %4034 = vmatprep.subr.mxu0 0.0
    %4035 = vmatpush1.msra.mxu0 0.0
    %4036 = vmatprep.subr.mxu0 0.0
    %4037 = vmatpush1.msra.mxu0 0.0
    %4038 = vmatprep.subr.mxu0 0.0
    %4039 = vmatpush1.msra.mxu0 0.0
    %4040 = vmatprep.subr.mxu0 0.0
    %4041 = vmatpush1.msra.mxu0 0.0
    %4042 = vmatprep.subr.mxu0 0.0
    %4043 = vmatpush1.msra.mxu0 0.0
    %4044 = vmatprep.subr.mxu0 0.0
    %4045 = vmatpush1.msra.mxu0 0.0
    %4046 = vmatprep.subr.mxu0 0.0
    %4047 = vmatpush1.msra.mxu0 0.0
    %4048 = vmatprep.mubr.f32.mxu0 0.0
    %v4049 = vand.u32 %v3969, 4294901760
    %v4050 = vsub.f32 %v3969, %v4049
    %v4051 = vand.u32 %v4050, 4294901760
    %v4052 = vsub.f32 %v4050, %v4051
    %v4053 = vand.u32 %v4052, 4294901760
    %4054 = vmatmul.mubr.f32.gmra.mrb[0].mxu0 %v4053
    %v4055 = vpop.f32.mrb[0].mxu0
    %v4056 = vadd.f32 0.0, %v4055
    %v4057 = vpop.f32.mrb[0].mxu0
    %4058 = vmatprep.mubr.f32.mxu0 0.0
    %v4059 = vand.u32 %v3972, 4294901760
    %v4060 = vsub.f32 %v3972, %v4059
    %v4061 = vand.u32 %v4060, 4294901760
    %v4062 = vsub.f32 %v4060, %v4061
    %v4063 = vand.u32 %v4062, 4294901760
    %4064 = vmatmul.mubr.f32.gmra.mrb[0].mxu0 %v4063
    %v4065 = vpop.f32.mrb[0].mxu0
    %v4066 = vadd.f32 0.0, %v4065
    %v4067 = vpop.f32.mrb[0].mxu0
    %4068 = vmatprep.mubr.f32.mxu0 0.0
    %v4069 = vand.u32 %v3975, 4294901760
    %v4070 = vsub.f32 %v3975, %v4069
    %v4071 = vand.u32 %v4070, 4294901760
    %v4072 = vsub.f32 %v4070, %v4071
    %v4073 = vand.u32 %v4072, 4294901760
    %4074 = vmatmul.mubr.f32.gmra.mrb[0].mxu0 %v4073
    %v4075 = vpop.f32.mrb[0].mxu0
    %v4076 = vadd.f32 0.0, %v4075
    %v4077 = vpop.f32.mrb[0].mxu0
    %4078 = vmatprep.mubr.f32.mxu0 0.0
    %v4079 = vand.u32 %v3978, 4294901760
    %v4080 = vsub.f32 %v3978, %v4079
    %v4081 = vand.u32 %v4080, 4294901760
    %v4082 = vsub.f32 %v4080, %v4081
    %v4083 = vand.u32 %v4082, 4294901760
    %4084 = vmatmul.mubr.f32.gmra.mrb[0].mxu0 %v4083
    %v4085 = vpop.f32.mrb[0].mxu0
    %v4086 = vadd.f32 0.0, %v4085
    %v4087 = vpop.f32.mrb[0].mxu0
    %4088 = vdwg.mxu0
    %4089 = vmatprep.subr.mxu0 0.0
    %v4090 = vand.u32 %v3959, 4294901760
    %v4091 = vsub.f32 %v3959, %v4090
    %v4092 = vand.u32 %v4091, 4294901760
    %v4093 = vsub.f32 %v4091, %v4092
    %v4094 = vand.u32 %v4093, 4294901760
    %4095 = vmatpush1.msra.mxu0 %v4094
    %4096 = vmatprep.subr.mxu0 0.0
    %v4097 = vand.u32 %v3960, 4294901760
    %v4098 = vsub.f32 %v3960, %v4097
    %v4099 = vand.u32 %v4098, 4294901760
    %v4100 = vsub.f32 %v4098, %v4099
    %v4101 = vand.u32 %v4100, 4294901760
    %4102 = vmatpush1.msra.mxu0 %v4101
    %4103 = vmatprep.subr.mxu0 0.0
    %v4104 = vand.u32 %v3961, 4294901760
    %v4105 = vsub.f32 %v3961, %v4104
    %v4106 = vand.u32 %v4105, 4294901760
    %v4107 = vsub.f32 %v4105, %v4106
    %v4108 = vand.u32 %v4107, 4294901760
    %4109 = vmatpush1.msra.mxu0 %v4108
    %4110 = vmatprep.subr.mxu0 0.0
    %v4111 = vand.u32 %v3962, 4294901760
    %v4112 = vsub.f32 %v3962, %v4111
    %v4113 = vand.u32 %v4112, 4294901760
    %v4114 = vsub.f32 %v4112, %v4113
    %v4115 = vand.u32 %v4114, 4294901760
    %4116 = vmatpush1.msra.mxu0 %v4115
    %4117 = vmatprep.subr.mxu0 0.0
    %4118 = vmatpush1.msra.mxu0 0.0
    %4119 = vmatprep.subr.mxu0 0.0
    %4120 = vmatpush1.msra.mxu0 0.0
    %4121 = vmatprep.subr.mxu0 0.0
    %4122 = vmatpush1.msra.mxu0 0.0
    %4123 = vmatprep.subr.mxu0 0.0
    %4124 = vmatpush1.msra.mxu0 0.0
    %4125 = vmatprep.subr.mxu0 0.0
    %4126 = vmatpush1.msra.mxu0 0.0
    %4127 = vmatprep.subr.mxu0 0.0
    %4128 = vmatpush1.msra.mxu0 0.0
    %4129 = vmatprep.subr.mxu0 0.0
    %4130 = vmatpush1.msra.mxu0 0.0
    %4131 = vmatprep.subr.mxu0 0.0
    %4132 = vmatpush1.msra.mxu0 0.0
    %4133 = vmatprep.subr.mxu0 0.0
    %4134 = vmatpush1.msra.mxu0 0.0
    %4135 = vmatprep.subr.mxu0 0.0
    %4136 = vmatpush1.msra.mxu0 0.0
    %4137 = vmatprep.subr.mxu0 0.0
    %4138 = vmatpush1.msra.mxu0 0.0
    %4139 = vmatprep.subr.mxu0 0.0
    %4140 = vmatpush1.msra.mxu0 0.0
    %4141 = vmatprep.subr.mxu0 0.0
    %4142 = vmatpush1.msra.mxu0 0.0
    %4143 = vmatprep.subr.mxu0 0.0
    %4144 = vmatpush1.msra.mxu0 0.0
    %4145 = vmatprep.subr.mxu0 0.0
    %4146 = vmatpush1.msra.mxu0 0.0
    %4147 = vmatprep.subr.mxu0 0.0
    %4148 = vmatpush1.msra.mxu0 0.0
    %4149 = vmatprep.subr.mxu0 0.0
    %4150 = vmatpush1.msra.mxu0 0.0
    %4151 = vmatprep.subr.mxu0 0.0
    %4152 = vmatpush1.msra.mxu0 0.0
    %4153 = vmatprep.subr.mxu0 0.0
    %4154 = vmatpush1.msra.mxu0 0.0
    %4155 = vmatprep.subr.mxu0 0.0
    %4156 = vmatpush1.msra.mxu0 0.0
    %4157 = vmatprep.subr.mxu0 0.0
    %4158 = vmatpush1.msra.mxu0 0.0
    %4159 = vmatprep.subr.mxu0 0.0
    %4160 = vmatpush1.msra.mxu0 0.0
    %4161 = vmatprep.subr.mxu0 0.0
    %4162 = vmatpush1.msra.mxu0 0.0
    %4163 = vmatprep.subr.mxu0 0.0
    %4164 = vmatpush1.msra.mxu0 0.0
    %4165 = vmatprep.subr.mxu0 0.0
    %4166 = vmatpush1.msra.mxu0 0.0
    %4167 = vmatprep.subr.mxu0 0.0
    %4168 = vmatpush1.msra.mxu0 0.0
    %4169 = vmatprep.subr.mxu0 0.0
    %4170 = vmatpush1.msra.mxu0 0.0
    %4171 = vmatprep.subr.mxu0 0.0
    %4172 = vmatpush1.msra.mxu0 0.0
    %4173 = vmatprep.mubr.f32.mxu0 0.0
    %v4174 = vand.u32 %v3969, 4294901760
    %4175 = vmatmul.mubr.f32.gmra.mrb[0].mxu0 %v4174
    %v4176 = vpop.f32.mrb[0].mxu0
    %v4177 = vadd.f32 %v4056, %v4176
    %v4178 = vpop.f32.mrb[0].mxu0
    %4179 = vmatprep.mubr.f32.mxu0 0.0
    %v4180 = vand.u32 %v3972, 4294901760
    %4181 = vmatmul.mubr.f32.gmra.mrb[0].mxu0 %v4180
    %v4182 = vpop.f32.mrb[0].mxu0
    %v4183 = vadd.f32 %v4066, %v4182
    %v4184 = vpop.f32.mrb[0].mxu0
    %4185 = vmatprep.mubr.f32.mxu0 0.0
    %v4186 = vand.u32 %v3975, 4294901760
    %4187 = vmatmul.mubr.f32.gmra.mrb[0].mxu0 %v4186
    %v4188 = vpop.f32.mrb[0].mxu0
    %v4189 = vadd.f32 %v4076, %v4188
    %v4190 = vpop.f32.mrb[0].mxu0
    %4191 = vmatprep.mubr.f32.mxu0 0.0
    %v4192 = vand.u32 %v3978, 4294901760
    %4193 = vmatmul.mubr.f32.gmra.mrb[0].mxu0 %v4192
    %v4194 = vpop.f32.mrb[0].mxu0
    %v4195 = vadd.f32 %v4086, %v4194
    %v4196 = vpop.f32.mrb[0].mxu0
    %4197 = vdwg.mxu0
    %4198 = vmatprep.subr.mxu0 0.0
    %v4199 = vand.u32 %v3959, 4294901760
    %v4200 = vsub.f32 %v3959, %v4199
    %4201 = vmatpush1.msra.mxu0 %v4200
    %4202 = vmatprep.subr.mxu0 0.0
    %v4203 = vand.u32 %v3960, 4294901760
    %v4204 = vsub.f32 %v3960, %v4203
    %4205 = vmatpush1.msra.mxu0 %v4204
    %4206 = vmatprep.subr.mxu0 0.0
    %v4207 = vand.u32 %v3961, 4294901760
    %v4208 = vsub.f32 %v3961, %v4207
    %4209 = vmatpush1.msra.mxu0 %v4208
    %4210 = vmatprep.subr.mxu0 0.0
    %v4211 = vand.u32 %v3962, 4294901760
    %v4212 = vsub.f32 %v3962, %v4211
    %4213 = vmatpush1.msra.mxu0 %v4212
    %4214 = vmatprep.subr.mxu0 0.0
    %4215 = vmatpush1.msra.mxu0 0.0
    %4216 = vmatprep.subr.mxu0 0.0
    %4217 = vmatpush1.msra.mxu0 0.0
    %4218 = vmatprep.subr.mxu0 0.0
    %4219 = vmatpush1.msra.mxu0 0.0
    %4220 = vmatprep.subr.mxu0 0.0
    %4221 = vmatpush1.msra.mxu0 0.0
    %4222 = vmatprep.subr.mxu0 0.0
    %4223 = vmatpush1.msra.mxu0 0.0
    %4224 = vmatprep.subr.mxu0 0.0
    %4225 = vmatpush1.msra.mxu0 0.0
    %4226 = vmatprep.subr.mxu0 0.0
    %4227 = vmatpush1.msra.mxu0 0.0
    %4228 = vmatprep.subr.mxu0 0.0
    %4229 = vmatpush1.msra.mxu0 0.0
    %4230 = vmatprep.subr.mxu0 0.0
    %4231 = vmatpush1.msra.mxu0 0.0
    %4232 = vmatprep.subr.mxu0 0.0
    %4233 = vmatpush1.msra.mxu0 0.0
    %4234 = vmatprep.subr.mxu0 0.0
    %4235 = vmatpush1.msra.mxu0 0.0
    %4236 = vmatprep.subr.mxu0 0.0
    %4237 = vmatpush1.msra.mxu0 0.0
    %4238 = vmatprep.subr.mxu0 0.0
    %4239 = vmatpush1.msra.mxu0 0.0
    %4240 = vmatprep.subr.mxu0 0.0
    %4241 = vmatpush1.msra.mxu0 0.0
    %4242 = vmatprep.subr.mxu0 0.0
    %4243 = vmatpush1.msra.mxu0 0.0
    %4244 = vmatprep.subr.mxu0 0.0
    %4245 = vmatpush1.msra.mxu0 0.0
    %4246 = vmatprep.subr.mxu0 0.0
    %4247 = vmatpush1.msra.mxu0 0.0
    %4248 = vmatprep.subr.mxu0 0.0
    %4249 = vmatpush1.msra.mxu0 0.0
    %4250 = vmatprep.subr.mxu0 0.0
    %4251 = vmatpush1.msra.mxu0 0.0
    %4252 = vmatprep.subr.mxu0 0.0
    %4253 = vmatpush1.msra.mxu0 0.0
    %4254 = vmatprep.subr.mxu0 0.0
    %4255 = vmatpush1.msra.mxu0 0.0
    %4256 = vmatprep.subr.mxu0 0.0
    %4257 = vmatpush1.msra.mxu0 0.0
    %4258 = vmatprep.subr.mxu0 0.0
    %4259 = vmatpush1.msra.mxu0 0.0
    %4260 = vmatprep.subr.mxu0 0.0
    %4261 = vmatpush1.msra.mxu0 0.0
    %4262 = vmatprep.subr.mxu0 0.0
    %4263 = vmatpush1.msra.mxu0 0.0
    %4264 = vmatprep.subr.mxu0 0.0
    %4265 = vmatpush1.msra.mxu0 0.0
    %4266 = vmatprep.subr.mxu0 0.0
    %4267 = vmatpush1.msra.mxu0 0.0
    %4268 = vmatprep.subr.mxu0 0.0
    %4269 = vmatpush1.msra.mxu0 0.0
    %4270 = vmatprep.mubr.f32.mxu0 0.0
    %v4271 = vand.u32 %v3969, 4294901760
    %v4272 = vsub.f32 %v3969, %v4271
    %4273 = vmatmul.mubr.f32.gmra.mrb[0].mxu0 %v4272
    %v4274 = vpop.f32.mrb[0].mxu0
    %v4275 = vadd.f32 %v4177, %v4274
    %v4276 = vpop.f32.mrb[0].mxu0
    %4277 = vmatprep.mubr.f32.mxu0 0.0
    %v4278 = vand.u32 %v3972, 4294901760
    %v4279 = vsub.f32 %v3972, %v4278
    %4280 = vmatmul.mubr.f32.gmra.mrb[0].mxu0 %v4279
    %v4281 = vpop.f32.mrb[0].mxu0
    %v4282 = vadd.f32 %v4183, %v4281
    %v4283 = vpop.f32.mrb[0].mxu0
    %4284 = vmatprep.mubr.f32.mxu0 0.0
    %v4285 = vand.u32 %v3975, 4294901760
    %v4286 = vsub.f32 %v3975, %v4285
    %4287 = vmatmul.mubr.f32.gmra.mrb[0].mxu0 %v4286
    %v4288 = vpop.f32.mrb[0].mxu0
    %v4289 = vadd.f32 %v4189, %v4288
    %v4290 = vpop.f32.mrb[0].mxu0
    %4291 = vmatprep.mubr.f32.mxu0 0.0
    %v4292 = vand.u32 %v3978, 4294901760
    %v4293 = vsub.f32 %v3978, %v4292
    %4294 = vmatmul.mubr.f32.gmra.mrb[0].mxu0 %v4293
    %v4295 = vpop.f32.mrb[0].mxu0
    %v4296 = vadd.f32 %v4195, %v4295
    %v4297 = vpop.f32.mrb[0].mxu0
    %4298 = vdwg.mxu0
    %4299 = vmatprep.subr.mxu0 0.0
    %v4300 = vand.u32 %v3959, 4294901760
    %4301 = vmatpush1.msra.mxu0 %v4300
    %4302 = vmatprep.subr.mxu0 0.0
    %v4303 = vand.u32 %v3960, 4294901760
    %4304 = vmatpush1.msra.mxu0 %v4303
    %4305 = vmatprep.subr.mxu0 0.0
    %v4306 = vand.u32 %v3961, 4294901760
    %4307 = vmatpush1.msra.mxu0 %v4306
    %4308 = vmatprep.subr.mxu0 0.0
    %v4309 = vand.u32 %v3962, 4294901760
    %4310 = vmatpush1.msra.mxu0 %v4309
    %4311 = vmatprep.subr.mxu0 0.0
    %4312 = vmatpush1.msra.mxu0 0.0
    %4313 = vmatprep.subr.mxu0 0.0
    %4314 = vmatpush1.msra.mxu0 0.0
    %4315 = vmatprep.subr.mxu0 0.0
    %4316 = vmatpush1.msra.mxu0 0.0
    %4317 = vmatprep.subr.mxu0 0.0
    %4318 = vmatpush1.msra.mxu0 0.0
    %4319 = vmatprep.subr.mxu0 0.0
    %4320 = vmatpush1.msra.mxu0 0.0
    %4321 = vmatprep.subr.mxu0 0.0
    %4322 = vmatpush1.msra.mxu0 0.0
    %4323 = vmatprep.subr.mxu0 0.0
    %4324 = vmatpush1.msra.mxu0 0.0
    %4325 = vmatprep.subr.mxu0 0.0
    %4326 = vmatpush1.msra.mxu0 0.0
    %4327 = vmatprep.subr.mxu0 0.0
    %4328 = vmatpush1.msra.mxu0 0.0
    %4329 = vmatprep.subr.mxu0 0.0
    %4330 = vmatpush1.msra.mxu0 0.0
    %4331 = vmatprep.subr.mxu0 0.0
    %4332 = vmatpush1.msra.mxu0 0.0
    %4333 = vmatprep.subr.mxu0 0.0
    %4334 = vmatpush1.msra.mxu0 0.0
    %4335 = vmatprep.subr.mxu0 0.0
    %4336 = vmatpush1.msra.mxu0 0.0
    %4337 = vmatprep.subr.mxu0 0.0
    %4338 = vmatpush1.msra.mxu0 0.0
    %4339 = vmatprep.subr.mxu0 0.0
    %4340 = vmatpush1.msra.mxu0 0.0
    %4341 = vmatprep.subr.mxu0 0.0
    %4342 = vmatpush1.msra.mxu0 0.0
    %4343 = vmatprep.subr.mxu0 0.0
    %4344 = vmatpush1.msra.mxu0 0.0
    %4345 = vmatprep.subr.mxu0 0.0
    %4346 = vmatpush1.msra.mxu0 0.0
    %4347 = vmatprep.subr.mxu0 0.0
    %4348 = vmatpush1.msra.mxu0 0.0
    %4349 = vmatprep.subr.mxu0 0.0
    %4350 = vmatpush1.msra.mxu0 0.0
    %4351 = vmatprep.subr.mxu0 0.0
    %4352 = vmatpush1.msra.mxu0 0.0
    %4353 = vmatprep.subr.mxu0 0.0
    %4354 = vmatpush1.msra.mxu0 0.0
    %4355 = vmatprep.subr.mxu0 0.0
    %4356 = vmatpush1.msra.mxu0 0.0
    %4357 = vmatprep.subr.mxu0 0.0
    %4358 = vmatpush1.msra.mxu0 0.0
    %4359 = vmatprep.subr.mxu0 0.0
    %4360 = vmatpush1.msra.mxu0 0.0
    %4361 = vmatprep.subr.mxu0 0.0
    %4362 = vmatpush1.msra.mxu0 0.0
    %4363 = vmatprep.subr.mxu0 0.0
    %4364 = vmatpush1.msra.mxu0 0.0
    %4365 = vmatprep.subr.mxu0 0.0
    %4366 = vmatpush1.msra.mxu0 0.0
    %4367 = vmatprep.mubr.f32.mxu0 0.0
    %v4368 = vand.u32 %v3969, 4294901760
    %v4369 = vsub.f32 %v3969, %v4368
    %v4370 = vand.u32 %v4369, 4294901760
    %4371 = vmatmul.mubr.f32.gmra.mrb[0].mxu0 %v4370
    %v4372 = vpop.f32.mrb[0].mxu0
    %v4373 = vadd.f32 %v4275, %v4372
    %v4374 = vpop.f32.mrb[0].mxu0
    %4375 = vmatprep.mubr.f32.mxu0 0.0
    %v4376 = vand.u32 %v3972, 4294901760
    %v4377 = vsub.f32 %v3972, %v4376
    %v4378 = vand.u32 %v4377, 4294901760
    %4379 = vmatmul.mubr.f32.gmra.mrb[0].mxu0 %v4378
    %v4380 = vpop.f32.mrb[0].mxu0
    %v4381 = vadd.f32 %v4282, %v4380
    %v4382 = vpop.f32.mrb[0].mxu0
    %4383 = vmatprep.mubr.f32.mxu0 0.0
    %v4384 = vand.u32 %v3975, 4294901760
    %v4385 = vsub.f32 %v3975, %v4384
    %v4386 = vand.u32 %v4385, 4294901760
    %4387 = vmatmul.mubr.f32.gmra.mrb[0].mxu0 %v4386
    %v4388 = vpop.f32.mrb[0].mxu0
    %v4389 = vadd.f32 %v4289, %v4388
    %v4390 = vpop.f32.mrb[0].mxu0
    %4391 = vmatprep.mubr.f32.mxu0 0.0
    %v4392 = vand.u32 %v3978, 4294901760
    %v4393 = vsub.f32 %v3978, %v4392
    %v4394 = vand.u32 %v4393, 4294901760
    %4395 = vmatmul.mubr.f32.gmra.mrb[0].mxu0 %v4394
    %v4396 = vpop.f32.mrb[0].mxu0
    %v4397 = vadd.f32 %v4296, %v4396
    %v4398 = vpop.f32.mrb[0].mxu0
    %4399 = vdwg.mxu0
    %4400 = vmatprep.subr.mxu0 0.0
    %v4401 = vand.u32 %v3959, 4294901760
    %v4402 = vsub.f32 %v3959, %v4401
    %v4403 = vand.u32 %v4402, 4294901760
    %4404 = vmatpush1.msra.mxu0 %v4403
    %4405 = vmatprep.subr.mxu0 0.0
    %v4406 = vand.u32 %v3960, 4294901760
    %v4407 = vsub.f32 %v3960, %v4406
    %v4408 = vand.u32 %v4407, 4294901760
    %4409 = vmatpush1.msra.mxu0 %v4408
    %4410 = vmatprep.subr.mxu0 0.0
    %v4411 = vand.u32 %v3961, 4294901760
    %v4412 = vsub.f32 %v3961, %v4411
    %v4413 = vand.u32 %v4412, 4294901760
    %4414 = vmatpush1.msra.mxu0 %v4413
    %4415 = vmatprep.subr.mxu0 0.0
    %v4416 = vand.u32 %v3962, 4294901760
    %v4417 = vsub.f32 %v3962, %v4416
    %v4418 = vand.u32 %v4417, 4294901760
    %4419 = vmatpush1.msra.mxu0 %v4418
    %4420 = vmatprep.subr.mxu0 0.0
    %4421 = vmatpush1.msra.mxu0 0.0
    %4422 = vmatprep.subr.mxu0 0.0
    %4423 = vmatpush1.msra.mxu0 0.0
    %4424 = vmatprep.subr.mxu0 0.0
    %4425 = vmatpush1.msra.mxu0 0.0
    %4426 = vmatprep.subr.mxu0 0.0
    %4427 = vmatpush1.msra.mxu0 0.0
    %4428 = vmatprep.subr.mxu0 0.0
    %4429 = vmatpush1.msra.mxu0 0.0
    %4430 = vmatprep.subr.mxu0 0.0
    %4431 = vmatpush1.msra.mxu0 0.0
    %4432 = vmatprep.subr.mxu0 0.0
    %4433 = vmatpush1.msra.mxu0 0.0
    %4434 = vmatprep.subr.mxu0 0.0
    %4435 = vmatpush1.msra.mxu0 0.0
    %4436 = vmatprep.subr.mxu0 0.0
    %4437 = vmatpush1.msra.mxu0 0.0
    %4438 = vmatprep.subr.mxu0 0.0
    %4439 = vmatpush1.msra.mxu0 0.0
    %4440 = vmatprep.subr.mxu0 0.0
    %4441 = vmatpush1.msra.mxu0 0.0
    %4442 = vmatprep.subr.mxu0 0.0
    %4443 = vmatpush1.msra.mxu0 0.0
    %4444 = vmatprep.subr.mxu0 0.0
    %4445 = vmatpush1.msra.mxu0 0.0
    %4446 = vmatprep.subr.mxu0 0.0
    %4447 = vmatpush1.msra.mxu0 0.0
    %4448 = vmatprep.subr.mxu0 0.0
    %4449 = vmatpush1.msra.mxu0 0.0
    %4450 = vmatprep.subr.mxu0 0.0
    %4451 = vmatpush1.msra.mxu0 0.0
    %4452 = vmatprep.subr.mxu0 0.0
    %4453 = vmatpush1.msra.mxu0 0.0
    %4454 = vmatprep.subr.mxu0 0.0
    %4455 = vmatpush1.msra.mxu0 0.0
    %4456 = vmatprep.subr.mxu0 0.0
    %4457 = vmatpush1.msra.mxu0 0.0
    %4458 = vmatprep.subr.mxu0 0.0
    %4459 = vmatpush1.msra.mxu0 0.0
    %4460 = vmatprep.subr.mxu0 0.0
    %4461 = vmatpush1.msra.mxu0 0.0
    %4462 = vmatprep.subr.mxu0 0.0
    %4463 = vmatpush1.msra.mxu0 0.0
    %4464 = vmatprep.subr.mxu0 0.0
    %4465 = vmatpush1.msra.mxu0 0.0
    %4466 = vmatprep.subr.mxu0 0.0
    %4467 = vmatpush1.msra.mxu0 0.0
    %4468 = vmatprep.subr.mxu0 0.0
    %4469 = vmatpush1.msra.mxu0 0.0
    %4470 = vmatprep.subr.mxu0 0.0
    %4471 = vmatpush1.msra.mxu0 0.0
    %4472 = vmatprep.subr.mxu0 0.0
    %4473 = vmatpush1.msra.mxu0 0.0
    %4474 = vmatprep.subr.mxu0 0.0
    %4475 = vmatpush1.msra.mxu0 0.0
    %4476 = vmatprep.mubr.f32.mxu0 0.0
    %v4477 = vand.u32 %v3969, 4294901760
    %4478 = vmatmul.mubr.f32.gmra.mrb[0].mxu0 %v4477
    %v4479 = vpop.f32.mrb[0].mxu0
    %v4480 = vadd.f32 %v4373, %v4479
    %v4481 = vpop.f32.mrb[0].mxu0
    %4482 = vmatprep.mubr.f32.mxu0 0.0
    %v4483 = vand.u32 %v3972, 4294901760
    %4484 = vmatmul.mubr.f32.gmra.mrb[0].mxu0 %v4483
    %v4485 = vpop.f32.mrb[0].mxu0
    %v4486 = vadd.f32 %v4381, %v4485
    %v4487 = vpop.f32.mrb[0].mxu0
    %4488 = vmatprep.mubr.f32.mxu0 0.0
    %v4489 = vand.u32 %v3975, 4294901760
    %4490 = vmatmul.mubr.f32.gmra.mrb[0].mxu0 %v4489
    %v4491 = vpop.f32.mrb[0].mxu0
    %v4492 = vadd.f32 %v4389, %v4491
    %v4493 = vpop.f32.mrb[0].mxu0
    %4494 = vmatprep.mubr.f32.mxu0 0.0
    %v4495 = vand.u32 %v3978, 4294901760
    %4496 = vmatmul.mubr.f32.gmra.mrb[0].mxu0 %v4495
    %v4497 = vpop.f32.mrb[0].mxu0
    %v4498 = vadd.f32 %v4397, %v4497
    %v4499 = vpop.f32.mrb[0].mxu0
    %4500 = vdwg.mxu0
    %4501 = vmatprep.subr.mxu0 0.0
    %v4502 = vand.u32 %v3959, 4294901760
    %4503 = vmatpush1.msra.mxu0 %v4502
    %4504 = vmatprep.subr.mxu0 0.0
    %v4505 = vand.u32 %v3960, 4294901760
    %4506 = vmatpush1.msra.mxu0 %v4505
    %4507 = vmatprep.subr.mxu0 0.0
    %v4508 = vand.u32 %v3961, 4294901760
    %4509 = vmatpush1.msra.mxu0 %v4508
    %4510 = vmatprep.subr.mxu0 0.0
    %v4511 = vand.u32 %v3962, 4294901760
    %4512 = vmatpush1.msra.mxu0 %v4511
    %4513 = vmatprep.subr.mxu0 0.0
    %4514 = vmatpush1.msra.mxu0 0.0
    %4515 = vmatprep.subr.mxu0 0.0
    %4516 = vmatpush1.msra.mxu0 0.0
    %4517 = vmatprep.subr.mxu0 0.0
    %4518 = vmatpush1.msra.mxu0 0.0
    %4519 = vmatprep.subr.mxu0 0.0
    %4520 = vmatpush1.msra.mxu0 0.0
    %4521 = vmatprep.subr.mxu0 0.0
    %4522 = vmatpush1.msra.mxu0 0.0
    %4523 = vmatprep.subr.mxu0 0.0
    %4524 = vmatpush1.msra.mxu0 0.0
    %4525 = vmatprep.subr.mxu0 0.0
    %4526 = vmatpush1.msra.mxu0 0.0
    %4527 = vmatprep.subr.mxu0 0.0
    %4528 = vmatpush1.msra.mxu0 0.0
    %4529 = vmatprep.subr.mxu0 0.0
    %4530 = vmatpush1.msra.mxu0 0.0
    %4531 = vmatprep.subr.mxu0 0.0
    %4532 = vmatpush1.msra.mxu0 0.0
    %4533 = vmatprep.subr.mxu0 0.0
    %4534 = vmatpush1.msra.mxu0 0.0
    %4535 = vmatprep.subr.mxu0 0.0
    %4536 = vmatpush1.msra.mxu0 0.0
    %4537 = vmatprep.subr.mxu0 0.0
    %4538 = vmatpush1.msra.mxu0 0.0
    %4539 = vmatprep.subr.mxu0 0.0
    %4540 = vmatpush1.msra.mxu0 0.0
    %4541 = vmatprep.subr.mxu0 0.0
    %4542 = vmatpush1.msra.mxu0 0.0
    %4543 = vmatprep.subr.mxu0 0.0
    %4544 = vmatpush1.msra.mxu0 0.0
    %4545 = vmatprep.subr.mxu0 0.0
    %4546 = vmatpush1.msra.mxu0 0.0
    %4547 = vmatprep.subr.mxu0 0.0
    %4548 = vmatpush1.msra.mxu0 0.0
    %4549 = vmatprep.subr.mxu0 0.0
    %4550 = vmatpush1.msra.mxu0 0.0
    %4551 = vmatprep.subr.mxu0 0.0
    %4552 = vmatpush1.msra.mxu0 0.0
    %4553 = vmatprep.subr.mxu0 0.0
    %4554 = vmatpush1.msra.mxu0 0.0
    %4555 = vmatprep.subr.mxu0 0.0
    %4556 = vmatpush1.msra.mxu0 0.0
    %4557 = vmatprep.subr.mxu0 0.0
    %4558 = vmatpush1.msra.mxu0 0.0
    %4559 = vmatprep.subr.mxu0 0.0
    %4560 = vmatpush1.msra.mxu0 0.0
    %4561 = vmatprep.subr.mxu0 0.0
    %4562 = vmatpush1.msra.mxu0 0.0
    %4563 = vmatprep.subr.mxu0 0.0
    %4564 = vmatpush1.msra.mxu0 0.0
    %4565 = vmatprep.subr.mxu0 0.0
    %4566 = vmatpush1.msra.mxu0 0.0
    %4567 = vmatprep.subr.mxu0 0.0
    %4568 = vmatpush1.msra.mxu0 0.0
    %4569 = vmatprep.mubr.f32.mxu0 0.0
    %v4570 = vand.u32 %v3969, 4294901760
    %4571 = vmatmul.mubr.f32.gmra.mrb[0].mxu0 %v4570
    %v4572 = vpop.f32.mrb[0].mxu0
    %v4573 = vadd.f32 %v4480, %v4572
    %v4574 = vpop.f32.mrb[0].mxu0
    %4575 = vmatprep.mubr.f32.mxu0 0.0
    %v4576 = vand.u32 %v3972, 4294901760
    %4577 = vmatmul.mubr.f32.gmra.mrb[0].mxu0 %v4576
    %v4578 = vpop.f32.mrb[0].mxu0
    %v4579 = vadd.f32 %v4486, %v4578
    %v4580 = vpop.f32.mrb[0].mxu0
    %4581 = vmatprep.mubr.f32.mxu0 0.0
    %v4582 = vand.u32 %v3975, 4294901760
    %4583 = vmatmul.mubr.f32.gmra.mrb[0].mxu0 %v4582
    %v4584 = vpop.f32.mrb[0].mxu0
    %v4585 = vadd.f32 %v4492, %v4584
    %v4586 = vpop.f32.mrb[0].mxu0
    %4587 = vmatprep.mubr.f32.mxu0 0.0
    %v4588 = vand.u32 %v3978, 4294901760
    %4589 = vmatmul.mubr.f32.gmra.mrb[0].mxu0 %v4588
    %v4590 = vpop.f32.mrb[0].mxu0
    %v4591 = vadd.f32 %v4498, %v4590
    %v4592 = vpop.f32.mrb[0].mxu0
    %4593 = vdwg.mxu0
    %v4594 = vadd.f32 %v3942, %v4573
    %v4595 = vadd.f32 %v3943, %v4579
    %v4596 = vadd.f32 %v3944, %v4585
    %v4597 = vadd.f32 %v3945, %v4591
    %v4598 = vld [vmem:[#allocation2 + $0x7] sm:$0x1]
    %v4599 = vlaneseq
    %v4600 = vshrl.u32 %v4599, 7
    %v4601 = vsub.s32 0, %v4600
    %v4602 = vrot.slane %v4598, %v4601
    %vm4603 = vcmp.eq.s32.totalorder %v4602, %v38
    %vm4604 = vcmp.eq.s32.totalorder %v4602, %v39
    %vm4605 = vcmp.eq.s32.totalorder %v4602, %v40
    %vm4606 = vcmp.eq.s32.totalorder %v4602, %v41
    %v4607 = vsel %vm4603, 1, 0
    %v4608 = vsel %vm4604, 1, 0
    %v4609 = vsel %vm4605, 1, 0
    %v4610 = vsel %vm4606, 1, 0
    %v4611 = vcvt.s32.f32 %v4607
    %v4612 = vcvt.s32.f32 %v4608
    %v4613 = vcvt.s32.f32 %v4609
    %v4614 = vcvt.s32.f32 %v4610
    %s4615 = scalar_lea.vmem [#allocation4], 224
    %v4616 = vld [vmem:[%s4615] sm:$0xff]
    %v4617 = vld [vmem:[%s4615 + $0x8] sm:$0xff]
    %v4618 = vld [vmem:[%s4615 + $0x10] sm:$0xff]
    %v4619 = vld [vmem:[%s4615 + $0x18] sm:$0xff]
    %v4621 = vsel %vm85, %v4616, 0
    %v4624 = vsel %vm85, %v4617, 0
    %v4627 = vsel %vm85, %v4618, 0
    %v4630 = vsel %vm85, %v4619, 0
    %4632 = vmatprep.subr.mxu0 0.0
    %v4633 = vand.u32 %v4611, 4294901760
    %4634 = vmatpush1.msra.mxu0 %v4633
    %4635 = vmatprep.subr.mxu0 0.0
    %v4636 = vand.u32 %v4612, 4294901760
    %4637 = vmatpush1.msra.mxu0 %v4636
    %4638 = vmatprep.subr.mxu0 0.0
    %v4639 = vand.u32 %v4613, 4294901760
    %4640 = vmatpush1.msra.mxu0 %v4639
    %4641 = vmatprep.subr.mxu0 0.0
    %v4642 = vand.u32 %v4614, 4294901760
    %4643 = vmatpush1.msra.mxu0 %v4642
    %4644 = vmatprep.subr.mxu0 0.0
    %4645 = vmatpush1.msra.mxu0 0.0
    %4646 = vmatprep.subr.mxu0 0.0
    %4647 = vmatpush1.msra.mxu0 0.0
    %4648 = vmatprep.subr.mxu0 0.0
    %4649 = vmatpush1.msra.mxu0 0.0
    %4650 = vmatprep.subr.mxu0 0.0
    %4651 = vmatpush1.msra.mxu0 0.0
    %4652 = vmatprep.subr.mxu0 0.0
    %4653 = vmatpush1.msra.mxu0 0.0
    %4654 = vmatprep.subr.mxu0 0.0
    %4655 = vmatpush1.msra.mxu0 0.0
    %4656 = vmatprep.subr.mxu0 0.0
    %4657 = vmatpush1.msra.mxu0 0.0
    %4658 = vmatprep.subr.mxu0 0.0
    %4659 = vmatpush1.msra.mxu0 0.0
    %4660 = vmatprep.subr.mxu0 0.0
    %4661 = vmatpush1.msra.mxu0 0.0
    %4662 = vmatprep.subr.mxu0 0.0
    %4663 = vmatpush1.msra.mxu0 0.0
    %4664 = vmatprep.subr.mxu0 0.0
    %4665 = vmatpush1.msra.mxu0 0.0
    %4666 = vmatprep.subr.mxu0 0.0
    %4667 = vmatpush1.msra.mxu0 0.0
    %4668 = vmatprep.subr.mxu0 0.0
    %4669 = vmatpush1.msra.mxu0 0.0
    %4670 = vmatprep.subr.mxu0 0.0
    %4671 = vmatpush1.msra.mxu0 0.0
    %4672 = vmatprep.subr.mxu0 0.0
    %4673 = vmatpush1.msra.mxu0 0.0
    %4674 = vmatprep.subr.mxu0 0.0
    %4675 = vmatpush1.msra.mxu0 0.0
    %4676 = vmatprep.subr.mxu0 0.0
    %4677 = vmatpush1.msra.mxu0 0.0
    %4678 = vmatprep.subr.mxu0 0.0
    %4679 = vmatpush1.msra.mxu0 0.0
    %4680 = vmatprep.subr.mxu0 0.0
    %4681 = vmatpush1.msra.mxu0 0.0
    %4682 = vmatprep.subr.mxu0 0.0
    %4683 = vmatpush1.msra.mxu0 0.0
    %4684 = vmatprep.subr.mxu0 0.0
    %4685 = vmatpush1.msra.mxu0 0.0
    %4686 = vmatprep.subr.mxu0 0.0
    %4687 = vmatpush1.msra.mxu0 0.0
    %4688 = vmatprep.subr.mxu0 0.0
    %4689 = vmatpush1.msra.mxu0 0.0
    %4690 = vmatprep.subr.mxu0 0.0
    %4691 = vmatpush1.msra.mxu0 0.0
    %4692 = vmatprep.subr.mxu0 0.0
    %4693 = vmatpush1.msra.mxu0 0.0
    %4694 = vmatprep.subr.mxu0 0.0
    %4695 = vmatpush1.msra.mxu0 0.0
    %4696 = vmatprep.subr.mxu0 0.0
    %4697 = vmatpush1.msra.mxu0 0.0
    %4698 = vmatprep.subr.mxu0 0.0
    %4699 = vmatpush1.msra.mxu0 0.0
    %4700 = vmatprep.mubr.f32.mxu0 0.0
    %v4701 = vand.u32 %v4621, 4294901760
    %v4702 = vsub.f32 %v4621, %v4701
    %v4703 = vand.u32 %v4702, 4294901760
    %v4704 = vsub.f32 %v4702, %v4703
    %v4705 = vand.u32 %v4704, 4294901760
    %4706 = vmatmul.mubr.f32.gmra.mrb[0].mxu0 %v4705
    %v4707 = vpop.f32.mrb[0].mxu0
    %v4708 = vadd.f32 0.0, %v4707
    %v4709 = vpop.f32.mrb[0].mxu0
    %4710 = vmatprep.mubr.f32.mxu0 0.0
    %v4711 = vand.u32 %v4624, 4294901760
    %v4712 = vsub.f32 %v4624, %v4711
    %v4713 = vand.u32 %v4712, 4294901760
    %v4714 = vsub.f32 %v4712, %v4713
    %v4715 = vand.u32 %v4714, 4294901760
    %4716 = vmatmul.mubr.f32.gmra.mrb[0].mxu0 %v4715
    %v4717 = vpop.f32.mrb[0].mxu0
    %v4718 = vadd.f32 0.0, %v4717
    %v4719 = vpop.f32.mrb[0].mxu0
    %4720 = vmatprep.mubr.f32.mxu0 0.0
    %v4721 = vand.u32 %v4627, 4294901760
    %v4722 = vsub.f32 %v4627, %v4721
    %v4723 = vand.u32 %v4722, 4294901760
    %v4724 = vsub.f32 %v4722, %v4723
    %v4725 = vand.u32 %v4724, 4294901760
    %4726 = vmatmul.mubr.f32.gmra.mrb[0].mxu0 %v4725
    %v4727 = vpop.f32.mrb[0].mxu0
    %v4728 = vadd.f32 0.0, %v4727
    %v4729 = vpop.f32.mrb[0].mxu0
    %4730 = vmatprep.mubr.f32.mxu0 0.0
    %v4731 = vand.u32 %v4630, 4294901760
    %v4732 = vsub.f32 %v4630, %v4731
    %v4733 = vand.u32 %v4732, 4294901760
    %v4734 = vsub.f32 %v4732, %v4733
    %v4735 = vand.u32 %v4734, 4294901760
    %4736 = vmatmul.mubr.f32.gmra.mrb[0].mxu0 %v4735
    %v4737 = vpop.f32.mrb[0].mxu0
    %v4738 = vadd.f32 0.0, %v4737
    %v4739 = vpop.f32.mrb[0].mxu0
    %4740 = vdwg.mxu0
    %4741 = vmatprep.subr.mxu0 0.0
    %v4742 = vand.u32 %v4611, 4294901760
    %v4743 = vsub.f32 %v4611, %v4742
    %v4744 = vand.u32 %v4743, 4294901760
    %v4745 = vsub.f32 %v4743, %v4744
    %v4746 = vand.u32 %v4745, 4294901760
    %4747 = vmatpush1.msra.mxu0 %v4746
    %4748 = vmatprep.subr.mxu0 0.0
    %v4749 = vand.u32 %v4612, 4294901760
    %v4750 = vsub.f32 %v4612, %v4749
    %v4751 = vand.u32 %v4750, 4294901760
    %v4752 = vsub.f32 %v4750, %v4751
    %v4753 = vand.u32 %v4752, 4294901760
    %4754 = vmatpush1.msra.mxu0 %v4753
    %4755 = vmatprep.subr.mxu0 0.0
    %v4756 = vand.u32 %v4613, 4294901760
    %v4757 = vsub.f32 %v4613, %v4756
    %v4758 = vand.u32 %v4757, 4294901760
    %v4759 = vsub.f32 %v4757, %v4758
    %v4760 = vand.u32 %v4759, 4294901760
    %4761 = vmatpush1.msra.mxu0 %v4760
    %4762 = vmatprep.subr.mxu0 0.0
    %v4763 = vand.u32 %v4614, 4294901760
    %v4764 = vsub.f32 %v4614, %v4763
    %v4765 = vand.u32 %v4764, 4294901760
    %v4766 = vsub.f32 %v4764, %v4765
    %v4767 = vand.u32 %v4766, 4294901760
    %4768 = vmatpush1.msra.mxu0 %v4767
    %4769 = vmatprep.subr.mxu0 0.0
    %4770 = vmatpush1.msra.mxu0 0.0
    %4771 = vmatprep.subr.mxu0 0.0
    %4772 = vmatpush1.msra.mxu0 0.0
    %4773 = vmatprep.subr.mxu0 0.0
    %4774 = vmatpush1.msra.mxu0 0.0
    %4775 = vmatprep.subr.mxu0 0.0
    %4776 = vmatpush1.msra.mxu0 0.0
    %4777 = vmatprep.subr.mxu0 0.0
    %4778 = vmatpush1.msra.mxu0 0.0
    %4779 = vmatprep.subr.mxu0 0.0
    %4780 = vmatpush1.msra.mxu0 0.0
    %4781 = vmatprep.subr.mxu0 0.0
    %4782 = vmatpush1.msra.mxu0 0.0
    %4783 = vmatprep.subr.mxu0 0.0
    %4784 = vmatpush1.msra.mxu0 0.0
    %4785 = vmatprep.subr.mxu0 0.0
    %4786 = vmatpush1.msra.mxu0 0.0
    %4787 = vmatprep.subr.mxu0 0.0
    %4788 = vmatpush1.msra.mxu0 0.0
    %4789 = vmatprep.subr.mxu0 0.0
    %4790 = vmatpush1.msra.mxu0 0.0
    %4791 = vmatprep.subr.mxu0 0.0
    %4792 = vmatpush1.msra.mxu0 0.0
    %4793 = vmatprep.subr.mxu0 0.0
    %4794 = vmatpush1.msra.mxu0 0.0
    %4795 = vmatprep.subr.mxu0 0.0
    %4796 = vmatpush1.msra.mxu0 0.0
    %4797 = vmatprep.subr.mxu0 0.0
    %4798 = vmatpush1.msra.mxu0 0.0
    %4799 = vmatprep.subr.mxu0 0.0
    %4800 = vmatpush1.msra.mxu0 0.0
    %4801 = vmatprep.subr.mxu0 0.0
    %4802 = vmatpush1.msra.mxu0 0.0
    %4803 = vmatprep.subr.mxu0 0.0
    %4804 = vmatpush1.msra.mxu0 0.0
    %4805 = vmatprep.subr.mxu0 0.0
    %4806 = vmatpush1.msra.mxu0 0.0
    %4807 = vmatprep.subr.mxu0 0.0
    %4808 = vmatpush1.msra.mxu0 0.0
    %4809 = vmatprep.subr.mxu0 0.0
    %4810 = vmatpush1.msra.mxu0 0.0
    %4811 = vmatprep.subr.mxu0 0.0
    %4812 = vmatpush1.msra.mxu0 0.0
    %4813 = vmatprep.subr.mxu0 0.0
    %4814 = vmatpush1.msra.mxu0 0.0
    %4815 = vmatprep.subr.mxu0 0.0
    %4816 = vmatpush1.msra.mxu0 0.0
    %4817 = vmatprep.subr.mxu0 0.0
    %4818 = vmatpush1.msra.mxu0 0.0
    %4819 = vmatprep.subr.mxu0 0.0
    %4820 = vmatpush1.msra.mxu0 0.0
    %4821 = vmatprep.subr.mxu0 0.0
    %4822 = vmatpush1.msra.mxu0 0.0
    %4823 = vmatprep.subr.mxu0 0.0
    %4824 = vmatpush1.msra.mxu0 0.0
    %4825 = vmatprep.mubr.f32.mxu0 0.0
    %v4826 = vand.u32 %v4621, 4294901760
    %4827 = vmatmul.mubr.f32.gmra.mrb[0].mxu0 %v4826
    %v4828 = vpop.f32.mrb[0].mxu0
    %v4829 = vadd.f32 %v4708, %v4828
    %v4830 = vpop.f32.mrb[0].mxu0
    %4831 = vmatprep.mubr.f32.mxu0 0.0
    %v4832 = vand.u32 %v4624, 4294901760
    %4833 = vmatmul.mubr.f32.gmra.mrb[0].mxu0 %v4832
    %v4834 = vpop.f32.mrb[0].mxu0
    %v4835 = vadd.f32 %v4718, %v4834
    %v4836 = vpop.f32.mrb[0].mxu0
    %4837 = vmatprep.mubr.f32.mxu0 0.0
    %v4838 = vand.u32 %v4627, 4294901760
    %4839 = vmatmul.mubr.f32.gmra.mrb[0].mxu0 %v4838
    %v4840 = vpop.f32.mrb[0].mxu0
    %v4841 = vadd.f32 %v4728, %v4840
    %v4842 = vpop.f32.mrb[0].mxu0
    %4843 = vmatprep.mubr.f32.mxu0 0.0
    %v4844 = vand.u32 %v4630, 4294901760
    %4845 = vmatmul.mubr.f32.gmra.mrb[0].mxu0 %v4844
    %v4846 = vpop.f32.mrb[0].mxu0
    %v4847 = vadd.f32 %v4738, %v4846
    %v4848 = vpop.f32.mrb[0].mxu0
    %4849 = vdwg.mxu0
    %4850 = vmatprep.subr.mxu0 0.0
    %v4851 = vand.u32 %v4611, 4294901760
    %v4852 = vsub.f32 %v4611, %v4851
    %4853 = vmatpush1.msra.mxu0 %v4852
    %4854 = vmatprep.subr.mxu0 0.0
    %v4855 = vand.u32 %v4612, 4294901760
    %v4856 = vsub.f32 %v4612, %v4855
    %4857 = vmatpush1.msra.mxu0 %v4856
    %4858 = vmatprep.subr.mxu0 0.0
    %v4859 = vand.u32 %v4613, 4294901760
    %v4860 = vsub.f32 %v4613, %v4859
    %4861 = vmatpush1.msra.mxu0 %v4860
    %4862 = vmatprep.subr.mxu0 0.0
    %v4863 = vand.u32 %v4614, 4294901760
    %v4864 = vsub.f32 %v4614, %v4863
    %4865 = vmatpush1.msra.mxu0 %v4864
    %4866 = vmatprep.subr.mxu0 0.0
    %4867 = vmatpush1.msra.mxu0 0.0
    %4868 = vmatprep.subr.mxu0 0.0
    %4869 = vmatpush1.msra.mxu0 0.0
    %4870 = vmatprep.subr.mxu0 0.0
    %4871 = vmatpush1.msra.mxu0 0.0
    %4872 = vmatprep.subr.mxu0 0.0
    %4873 = vmatpush1.msra.mxu0 0.0
    %4874 = vmatprep.subr.mxu0 0.0
    %4875 = vmatpush1.msra.mxu0 0.0
    %4876 = vmatprep.subr.mxu0 0.0
    %4877 = vmatpush1.msra.mxu0 0.0
    %4878 = vmatprep.subr.mxu0 0.0
    %4879 = vmatpush1.msra.mxu0 0.0
    %4880 = vmatprep.subr.mxu0 0.0
    %4881 = vmatpush1.msra.mxu0 0.0
    %4882 = vmatprep.subr.mxu0 0.0
    %4883 = vmatpush1.msra.mxu0 0.0
    %4884 = vmatprep.subr.mxu0 0.0
    %4885 = vmatpush1.msra.mxu0 0.0
    %4886 = vmatprep.subr.mxu0 0.0
    %4887 = vmatpush1.msra.mxu0 0.0
    %4888 = vmatprep.subr.mxu0 0.0
    %4889 = vmatpush1.msra.mxu0 0.0
    %4890 = vmatprep.subr.mxu0 0.0
    %4891 = vmatpush1.msra.mxu0 0.0
    %4892 = vmatprep.subr.mxu0 0.0
    %4893 = vmatpush1.msra.mxu0 0.0
    %4894 = vmatprep.subr.mxu0 0.0
    %4895 = vmatpush1.msra.mxu0 0.0
    %4896 = vmatprep.subr.mxu0 0.0
    %4897 = vmatpush1.msra.mxu0 0.0
    %4898 = vmatprep.subr.mxu0 0.0
    %4899 = vmatpush1.msra.mxu0 0.0
    %4900 = vmatprep.subr.mxu0 0.0
    %4901 = vmatpush1.msra.mxu0 0.0
    %4902 = vmatprep.subr.mxu0 0.0
    %4903 = vmatpush1.msra.mxu0 0.0
    %4904 = vmatprep.subr.mxu0 0.0
    %4905 = vmatpush1.msra.mxu0 0.0
    %4906 = vmatprep.subr.mxu0 0.0
    %4907 = vmatpush1.msra.mxu0 0.0
    %4908 = vmatprep.subr.mxu0 0.0
    %4909 = vmatpush1.msra.mxu0 0.0
    %4910 = vmatprep.subr.mxu0 0.0
    %4911 = vmatpush1.msra.mxu0 0.0
    %4912 = vmatprep.subr.mxu0 0.0
    %4913 = vmatpush1.msra.mxu0 0.0
    %4914 = vmatprep.subr.mxu0 0.0
    %4915 = vmatpush1.msra.mxu0 0.0
    %4916 = vmatprep.subr.mxu0 0.0
    %4917 = vmatpush1.msra.mxu0 0.0
    %4918 = vmatprep.subr.mxu0 0.0
    %4919 = vmatpush1.msra.mxu0 0.0
    %4920 = vmatprep.subr.mxu0 0.0
    %4921 = vmatpush1.msra.mxu0 0.0
    %4922 = vmatprep.mubr.f32.mxu0 0.0
    %v4923 = vand.u32 %v4621, 4294901760
    %v4924 = vsub.f32 %v4621, %v4923
    %4925 = vmatmul.mubr.f32.gmra.mrb[0].mxu0 %v4924
    %v4926 = vpop.f32.mrb[0].mxu0
    %v4927 = vadd.f32 %v4829, %v4926
    %v4928 = vpop.f32.mrb[0].mxu0
    %4929 = vmatprep.mubr.f32.mxu0 0.0
    %v4930 = vand.u32 %v4624, 4294901760
    %v4931 = vsub.f32 %v4624, %v4930
    %4932 = vmatmul.mubr.f32.gmra.mrb[0].mxu0 %v4931
    %v4933 = vpop.f32.mrb[0].mxu0
    %v4934 = vadd.f32 %v4835, %v4933
    %v4935 = vpop.f32.mrb[0].mxu0
    %4936 = vmatprep.mubr.f32.mxu0 0.0
    %v4937 = vand.u32 %v4627, 4294901760
    %v4938 = vsub.f32 %v4627, %v4937
    %4939 = vmatmul.mubr.f32.gmra.mrb[0].mxu0 %v4938
    %v4940 = vpop.f32.mrb[0].mxu0
    %v4941 = vadd.f32 %v4841, %v4940
    %v4942 = vpop.f32.mrb[0].mxu0
    %4943 = vmatprep.mubr.f32.mxu0 0.0
    %v4944 = vand.u32 %v4630, 4294901760
    %v4945 = vsub.f32 %v4630, %v4944
    %4946 = vmatmul.mubr.f32.gmra.mrb[0].mxu0 %v4945
    %v4947 = vpop.f32.mrb[0].mxu0
    %v4948 = vadd.f32 %v4847, %v4947
    %v4949 = vpop.f32.mrb[0].mxu0
    %4950 = vdwg.mxu0
    %4951 = vmatprep.subr.mxu0 0.0
    %v4952 = vand.u32 %v4611, 4294901760
    %4953 = vmatpush1.msra.mxu0 %v4952
    %4954 = vmatprep.subr.mxu0 0.0
    %v4955 = vand.u32 %v4612, 4294901760
    %4956 = vmatpush1.msra.mxu0 %v4955
    %4957 = vmatprep.subr.mxu0 0.0
    %v4958 = vand.u32 %v4613, 4294901760
    %4959 = vmatpush1.msra.mxu0 %v4958
    %4960 = vmatprep.subr.mxu0 0.0
    %v4961 = vand.u32 %v4614, 4294901760
    %4962 = vmatpush1.msra.mxu0 %v4961
    %4963 = vmatprep.subr.mxu0 0.0
    %4964 = vmatpush1.msra.mxu0 0.0
    %4965 = vmatprep.subr.mxu0 0.0
    %4966 = vmatpush1.msra.mxu0 0.0
    %4967 = vmatprep.subr.mxu0 0.0
    %4968 = vmatpush1.msra.mxu0 0.0
    %4969 = vmatprep.subr.mxu0 0.0
    %4970 = vmatpush1.msra.mxu0 0.0
    %4971 = vmatprep.subr.mxu0 0.0
    %4972 = vmatpush1.msra.mxu0 0.0
    %4973 = vmatprep.subr.mxu0 0.0
    %4974 = vmatpush1.msra.mxu0 0.0
    %4975 = vmatprep.subr.mxu0 0.0
    %4976 = vmatpush1.msra.mxu0 0.0
    %4977 = vmatprep.subr.mxu0 0.0
    %4978 = vmatpush1.msra.mxu0 0.0
    %4979 = vmatprep.subr.mxu0 0.0
    %4980 = vmatpush1.msra.mxu0 0.0
    %4981 = vmatprep.subr.mxu0 0.0
    %4982 = vmatpush1.msra.mxu0 0.0
    %4983 = vmatprep.subr.mxu0 0.0
    %4984 = vmatpush1.msra.mxu0 0.0
    %4985 = vmatprep.subr.mxu0 0.0
    %4986 = vmatpush1.msra.mxu0 0.0
    %4987 = vmatprep.subr.mxu0 0.0
    %4988 = vmatpush1.msra.mxu0 0.0
    %4989 = vmatprep.subr.mxu0 0.0
    %4990 = vmatpush1.msra.mxu0 0.0
    %4991 = vmatprep.subr.mxu0 0.0
    %4992 = vmatpush1.msra.mxu0 0.0
    %4993 = vmatprep.subr.mxu0 0.0
    %4994 = vmatpush1.msra.mxu0 0.0
    %4995 = vmatprep.subr.mxu0 0.0
    %4996 = vmatpush1.msra.mxu0 0.0
    %4997 = vmatprep.subr.mxu0 0.0
    %4998 = vmatpush1.msra.mxu0 0.0
    %4999 = vmatprep.subr.mxu0 0.0
    %5000 = vmatpush1.msra.mxu0 0.0
    %5001 = vmatprep.subr.mxu0 0.0
    %5002 = vmatpush1.msra.mxu0 0.0
    %5003 = vmatprep.subr.mxu0 0.0
    %5004 = vmatpush1.msra.mxu0 0.0
    %5005 = vmatprep.subr.mxu0 0.0
    %5006 = vmatpush1.msra.mxu0 0.0
    %5007 = vmatprep.subr.mxu0 0.0
    %5008 = vmatpush1.msra.mxu0 0.0
    %5009 = vmatprep.subr.mxu0 0.0
    %5010 = vmatpush1.msra.mxu0 0.0
    %5011 = vmatprep.subr.mxu0 0.0
    %5012 = vmatpush1.msra.mxu0 0.0
    %5013 = vmatprep.subr.mxu0 0.0
    %5014 = vmatpush1.msra.mxu0 0.0
    %5015 = vmatprep.subr.mxu0 0.0
    %5016 = vmatpush1.msra.mxu0 0.0
    %5017 = vmatprep.subr.mxu0 0.0
    %5018 = vmatpush1.msra.mxu0 0.0
    %5019 = vmatprep.mubr.f32.mxu0 0.0
    %v5020 = vand.u32 %v4621, 4294901760
    %v5021 = vsub.f32 %v4621, %v5020
    %v5022 = vand.u32 %v5021, 4294901760
    %5023 = vmatmul.mubr.f32.gmra.mrb[0].mxu0 %v5022
    %v5024 = vpop.f32.mrb[0].mxu0
    %v5025 = vadd.f32 %v4927, %v5024
    %v5026 = vpop.f32.mrb[0].mxu0
    %5027 = vmatprep.mubr.f32.mxu0 0.0
    %v5028 = vand.u32 %v4624, 4294901760
    %v5029 = vsub.f32 %v4624, %v5028
    %v5030 = vand.u32 %v5029, 4294901760
    %5031 = vmatmul.mubr.f32.gmra.mrb[0].mxu0 %v5030
    %v5032 = vpop.f32.mrb[0].mxu0
    %v5033 = vadd.f32 %v4934, %v5032
    %v5034 = vpop.f32.mrb[0].mxu0
    %5035 = vmatprep.mubr.f32.mxu0 0.0
    %v5036 = vand.u32 %v4627, 4294901760
    %v5037 = vsub.f32 %v4627, %v5036
    %v5038 = vand.u32 %v5037, 4294901760
    %5039 = vmatmul.mubr.f32.gmra.mrb[0].mxu0 %v5038
    %v5040 = vpop.f32.mrb[0].mxu0
    %v5041 = vadd.f32 %v4941, %v5040
    %v5042 = vpop.f32.mrb[0].mxu0
    %5043 = vmatprep.mubr.f32.mxu0 0.0
    %v5044 = vand.u32 %v4630, 4294901760
    %v5045 = vsub.f32 %v4630, %v5044
    %v5046 = vand.u32 %v5045, 4294901760
    %5047 = vmatmul.mubr.f32.gmra.mrb[0].mxu0 %v5046
    %v5048 = vpop.f32.mrb[0].mxu0
    %v5049 = vadd.f32 %v4948, %v5048
    %v5050 = vpop.f32.mrb[0].mxu0
    %5051 = vdwg.mxu0
    %5052 = vmatprep.subr.mxu0 0.0
    %v5053 = vand.u32 %v4611, 4294901760
    %v5054 = vsub.f32 %v4611, %v5053
    %v5055 = vand.u32 %v5054, 4294901760
    %5056 = vmatpush1.msra.mxu0 %v5055
    %5057 = vmatprep.subr.mxu0 0.0
    %v5058 = vand.u32 %v4612, 4294901760
    %v5059 = vsub.f32 %v4612, %v5058
    %v5060 = vand.u32 %v5059, 4294901760
    %5061 = vmatpush1.msra.mxu0 %v5060
    %5062 = vmatprep.subr.mxu0 0.0
    %v5063 = vand.u32 %v4613, 4294901760
    %v5064 = vsub.f32 %v4613, %v5063
    %v5065 = vand.u32 %v5064, 4294901760
    %5066 = vmatpush1.msra.mxu0 %v5065
    %5067 = vmatprep.subr.mxu0 0.0
    %v5068 = vand.u32 %v4614, 4294901760
    %v5069 = vsub.f32 %v4614, %v5068
    %v5070 = vand.u32 %v5069, 4294901760
    %5071 = vmatpush1.msra.mxu0 %v5070
    %5072 = vmatprep.subr.mxu0 0.0
    %5073 = vmatpush1.msra.mxu0 0.0
    %5074 = vmatprep.subr.mxu0 0.0
    %5075 = vmatpush1.msra.mxu0 0.0
    %5076 = vmatprep.subr.mxu0 0.0
    %5077 = vmatpush1.msra.mxu0 0.0
    %5078 = vmatprep.subr.mxu0 0.0
    %5079 = vmatpush1.msra.mxu0 0.0
    %5080 = vmatprep.subr.mxu0 0.0
    %5081 = vmatpush1.msra.mxu0 0.0
    %5082 = vmatprep.subr.mxu0 0.0
    %5083 = vmatpush1.msra.mxu0 0.0
    %5084 = vmatprep.subr.mxu0 0.0
    %5085 = vmatpush1.msra.mxu0 0.0
    %5086 = vmatprep.subr.mxu0 0.0
    %5087 = vmatpush1.msra.mxu0 0.0
    %5088 = vmatprep.subr.mxu0 0.0
    %5089 = vmatpush1.msra.mxu0 0.0
    %5090 = vmatprep.subr.mxu0 0.0
    %5091 = vmatpush1.msra.mxu0 0.0
    %5092 = vmatprep.subr.mxu0 0.0
    %5093 = vmatpush1.msra.mxu0 0.0
    %5094 = vmatprep.subr.mxu0 0.0
    %5095 = vmatpush1.msra.mxu0 0.0
    %5096 = vmatprep.subr.mxu0 0.0
    %5097 = vmatpush1.msra.mxu0 0.0
    %5098 = vmatprep.subr.mxu0 0.0
    %5099 = vmatpush1.msra.mxu0 0.0
    %5100 = vmatprep.subr.mxu0 0.0
    %5101 = vmatpush1.msra.mxu0 0.0
    %5102 = vmatprep.subr.mxu0 0.0
    %5103 = vmatpush1.msra.mxu0 0.0
    %5104 = vmatprep.subr.mxu0 0.0
    %5105 = vmatpush1.msra.mxu0 0.0
    %5106 = vmatprep.subr.mxu0 0.0
    %5107 = vmatpush1.msra.mxu0 0.0
    %5108 = vmatprep.subr.mxu0 0.0
    %5109 = vmatpush1.msra.mxu0 0.0
    %5110 = vmatprep.subr.mxu0 0.0
    %5111 = vmatpush1.msra.mxu0 0.0
    %5112 = vmatprep.subr.mxu0 0.0
    %5113 = vmatpush1.msra.mxu0 0.0
    %5114 = vmatprep.subr.mxu0 0.0
    %5115 = vmatpush1.msra.mxu0 0.0
    %5116 = vmatprep.subr.mxu0 0.0
    %5117 = vmatpush1.msra.mxu0 0.0
    %5118 = vmatprep.subr.mxu0 0.0
    %5119 = vmatpush1.msra.mxu0 0.0
    %5120 = vmatprep.subr.mxu0 0.0
    %5121 = vmatpush1.msra.mxu0 0.0
    %5122 = vmatprep.subr.mxu0 0.0
    %5123 = vmatpush1.msra.mxu0 0.0
    %5124 = vmatprep.subr.mxu0 0.0
    %5125 = vmatpush1.msra.mxu0 0.0
    %5126 = vmatprep.subr.mxu0 0.0
    %5127 = vmatpush1.msra.mxu0 0.0
    %5128 = vmatprep.mubr.f32.mxu0 0.0
    %v5129 = vand.u32 %v4621, 4294901760
    %5130 = vmatmul.mubr.f32.gmra.mrb[0].mxu0 %v5129
    %v5131 = vpop.f32.mrb[0].mxu0
    %v5132 = vadd.f32 %v5025, %v5131
    %v5133 = vpop.f32.mrb[0].mxu0
    %5134 = vmatprep.mubr.f32.mxu0 0.0
    %v5135 = vand.u32 %v4624, 4294901760
    %5136 = vmatmul.mubr.f32.gmra.mrb[0].mxu0 %v5135
    %v5137 = vpop.f32.mrb[0].mxu0
    %v5138 = vadd.f32 %v5033, %v5137
    %v5139 = vpop.f32.mrb[0].mxu0
    %5140 = vmatprep.mubr.f32.mxu0 0.0
    %v5141 = vand.u32 %v4627, 4294901760
    %5142 = vmatmul.mubr.f32.gmra.mrb[0].mxu0 %v5141
    %v5143 = vpop.f32.mrb[0].mxu0
    %v5144 = vadd.f32 %v5041, %v5143
    %v5145 = vpop.f32.mrb[0].mxu0
    %5146 = vmatprep.mubr.f32.mxu0 0.0
    %v5147 = vand.u32 %v4630, 4294901760
    %5148 = vmatmul.mubr.f32.gmra.mrb[0].mxu0 %v5147
    %v5149 = vpop.f32.mrb[0].mxu0
    %v5150 = vadd.f32 %v5049, %v5149
    %v5151 = vpop.f32.mrb[0].mxu0
    %5152 = vdwg.mxu0
    %5153 = vmatprep.subr.mxu0 0.0
    %v5154 = vand.u32 %v4611, 4294901760
    %5155 = vmatpush1.msra.mxu0 %v5154
    %5156 = vmatprep.subr.mxu0 0.0
    %v5157 = vand.u32 %v4612, 4294901760
    %5158 = vmatpush1.msra.mxu0 %v5157
    %5159 = vmatprep.subr.mxu0 0.0
    %v5160 = vand.u32 %v4613, 4294901760
    %5161 = vmatpush1.msra.mxu0 %v5160
    %5162 = vmatprep.subr.mxu0 0.0
    %v5163 = vand.u32 %v4614, 4294901760
    %5164 = vmatpush1.msra.mxu0 %v5163
    %5165 = vmatprep.subr.mxu0 0.0
    %5166 = vmatpush1.msra.mxu0 0.0
    %5167 = vmatprep.subr.mxu0 0.0
    %5168 = vmatpush1.msra.mxu0 0.0
    %5169 = vmatprep.subr.mxu0 0.0
    %5170 = vmatpush1.msra.mxu0 0.0
    %5171 = vmatprep.subr.mxu0 0.0
    %5172 = vmatpush1.msra.mxu0 0.0
    %5173 = vmatprep.subr.mxu0 0.0
    %5174 = vmatpush1.msra.mxu0 0.0
    %5175 = vmatprep.subr.mxu0 0.0
    %5176 = vmatpush1.msra.mxu0 0.0
    %5177 = vmatprep.subr.mxu0 0.0
    %5178 = vmatpush1.msra.mxu0 0.0
    %5179 = vmatprep.subr.mxu0 0.0
    %5180 = vmatpush1.msra.mxu0 0.0
    %5181 = vmatprep.subr.mxu0 0.0
    %5182 = vmatpush1.msra.mxu0 0.0
    %5183 = vmatprep.subr.mxu0 0.0
    %5184 = vmatpush1.msra.mxu0 0.0
    %5185 = vmatprep.subr.mxu0 0.0
    %5186 = vmatpush1.msra.mxu0 0.0
    %5187 = vmatprep.subr.mxu0 0.0
    %5188 = vmatpush1.msra.mxu0 0.0
    %5189 = vmatprep.subr.mxu0 0.0
    %5190 = vmatpush1.msra.mxu0 0.0
    %5191 = vmatprep.subr.mxu0 0.0
    %5192 = vmatpush1.msra.mxu0 0.0
    %5193 = vmatprep.subr.mxu0 0.0
    %5194 = vmatpush1.msra.mxu0 0.0
    %5195 = vmatprep.subr.mxu0 0.0
    %5196 = vmatpush1.msra.mxu0 0.0
    %5197 = vmatprep.subr.mxu0 0.0
    %5198 = vmatpush1.msra.mxu0 0.0
    %5199 = vmatprep.subr.mxu0 0.0
    %5200 = vmatpush1.msra.mxu0 0.0
    %5201 = vmatprep.subr.mxu0 0.0
    %5202 = vmatpush1.msra.mxu0 0.0
    %5203 = vmatprep.subr.mxu0 0.0
    %5204 = vmatpush1.msra.mxu0 0.0
    %5205 = vmatprep.subr.mxu0 0.0
    %5206 = vmatpush1.msra.mxu0 0.0
    %5207 = vmatprep.subr.mxu0 0.0
    %5208 = vmatpush1.msra.mxu0 0.0
    %5209 = vmatprep.subr.mxu0 0.0
    %5210 = vmatpush1.msra.mxu0 0.0
    %5211 = vmatprep.subr.mxu0 0.0
    %5212 = vmatpush1.msra.mxu0 0.0
    %5213 = vmatprep.subr.mxu0 0.0
    %5214 = vmatpush1.msra.mxu0 0.0
    %5215 = vmatprep.subr.mxu0 0.0
    %5216 = vmatpush1.msra.mxu0 0.0
    %5217 = vmatprep.subr.mxu0 0.0
    %5218 = vmatpush1.msra.mxu0 0.0
    %5219 = vmatprep.subr.mxu0 0.0
    %5220 = vmatpush1.msra.mxu0 0.0
    %5221 = vmatprep.mubr.f32.mxu0 0.0
    %v5222 = vand.u32 %v4621, 4294901760
    %5223 = vmatmul.mubr.f32.gmra.mrb[0].mxu0 %v5222
    %v5224 = vpop.f32.mrb[0].mxu0
    %v5225 = vadd.f32 %v5132, %v5224
    %v5226 = vpop.f32.mrb[0].mxu0
    %5227 = vmatprep.mubr.f32.mxu0 0.0
    %v5228 = vand.u32 %v4624, 4294901760
    %5229 = vmatmul.mubr.f32.gmra.mrb[0].mxu0 %v5228
    %v5230 = vpop.f32.mrb[0].mxu0
    %v5231 = vadd.f32 %v5138, %v5230
    %v5232 = vpop.f32.mrb[0].mxu0
    %5233 = vmatprep.mubr.f32.mxu0 0.0
    %v5234 = vand.u32 %v4627, 4294901760
    %5235 = vmatmul.mubr.f32.gmra.mrb[0].mxu0 %v5234
    %v5236 = vpop.f32.mrb[0].mxu0
    %v5237 = vadd.f32 %v5144, %v5236
    %v5238 = vpop.f32.mrb[0].mxu0
    %5239 = vmatprep.mubr.f32.mxu0 0.0
    %v5240 = vand.u32 %v4630, 4294901760
    %5241 = vmatmul.mubr.f32.gmra.mrb[0].mxu0 %v5240
    %v5242 = vpop.f32.mrb[0].mxu0
    %v5243 = vadd.f32 %v5150, %v5242
    %v5244 = vpop.f32.mrb[0].mxu0
    %5245 = vdwg.mxu0
    %v5246 = vadd.f32 %v4594, %v5225
    %v5247 = vadd.f32 %v4595, %v5231
    %v5248 = vadd.f32 %v4596, %v5237
    %v5249 = vadd.f32 %v4597, %v5243
    %vm5250 = vcmask 130048
    %5251 = vst.msk [vmem:[%s2] sm:$0xff] %vm5250, %v5246
    %5252 = vst.msk [vmem:[%s2 + $0x8] sm:$0xff] %vm5250, %v5247
    %5253 = vst.msk [vmem:[%s2 + $0x10] sm:$0xff] %vm5250, %v5248
    %5254 = vst.msk [vmem:[%s2 + $0x18] sm:$0xff] %vm5250, %v5249
    // Predicated region
    $region18: #{tpu_custom_call.1} parent=1 // pred_check
      _
    $region19: #{tpu_custom_call.1} parent=1 // pred_check_branch
      %5256 = sbr.rel (0) target = $region21
    $region20: #{tpu_custom_call.1} parent=1 // pred_region
      _
    $region21: #{tpu_custom_call.1} parent=1 // pred_fallthru
      _
    // Predicated region
    $region22: #{tpu_custom_call.1} parent=1 // pred_check
      _
    $region23: #{tpu_custom_call.1} parent=1 // pred_check_branch
      %5258 = sbr.rel (0) target = $region25
    $region24: #{tpu_custom_call.1} parent=1 // pred_region
      _
    $region25: #{tpu_custom_call.1} parent=1 // pred_fallthru
      _
    %5259 = vsyncpa [#allocation3], 1
    %5260 = vsyncpa [#allocation5], 1

// kernel: tpu_custom_call.1
$region0: #{tpu_custom_call.1}
  #allocation0 [shape = 'u32[]', space=smem, size = 0x4, offset = 0x4, fixed_abs, tag = 'smem constant byte address 0x4 - core index']
  #allocation1 [shape = 'u32[144,128]{1,0:T(1,128)}', space=vmem, size = 0x12000, scoped, tag = 'internal scratch']
  %s0 = inlined_call_operand.hbm [shape: s32[8,16], index: 0, kind: input, shape index: {}]
  %s1 = inlined_call_operand.hbm [shape: f32[8,32,32], index: 1, kind: input, shape index: {}]
  %s2 = inlined_call_operand.vmem [shape: f32[32,16], index: 2, kind: output, shape index: {}]
  %s3 = sld [smem:[#allocation0]]
  $region26: #{tpu_custom_call.1} parent=0
    _
  %s5 = ssub.s32 1, %s3
  %s6 = scalar_select 0, %s5, %s3
  $region1: #{tpu_custom_call.1} parent=0
    #allocation2 [shape = 'u8[4096]{0}', space=vmem, size = 0x1000, scoped, tag = 'input window, operand 0, single buffered']
    #allocation3 [shape = 's32[1]{0}', space=sflag, size = 0x4, scoped, tag = 'scoped memory for tpu_custom_call.1']
    #allocation4 [shape = 'u8[131072]{0}', space=vmem, size = 0x20000, scoped, tag = 'input window, operand 1, single buffered']
    #allocation5 [shape = 's32[1]{0}', space=sflag, size = 0x4, scoped, tag = 'scoped memory for tpu_custom_call.1']
    %7 = vsyncpa [#allocation3], 0
    %8 = vsyncpa [#allocation5], 0
    // Predicated region
    $region2: #{tpu_custom_call.1} parent=1 // pred_check
      _
    $region3: #{tpu_custom_call.1} parent=1 // pred_check_branch
      %10 = sbr.rel (0) target = $region5
    $region4: #{tpu_custom_call.1} parent=1 // pred_region
      %s12 = ssub.s32 128, 128
      %13 = vsyncadd [#allocation3], %s12
      %s15 = sshll.u32 [#allocation2], 4
      %s16 = int_to_ptr.vmem [resolvable:$true] %s15
      %18 = dma.hbm_to_vmem [thread:$0]  %s0, 128, %s16, [#allocation3]
    $region5: #{tpu_custom_call.1} parent=1 // pred_fallthru
      _
    // Predicated region
    $region6: #{tpu_custom_call.1} parent=1 // pred_check
      _
    $region7: #{tpu_custom_call.1} parent=1 // pred_check_branch
      %20 = sbr.rel (0) target = $region9
    $region8: #{tpu_custom_call.1} parent=1 // pred_region
      %s22 = ssub.s32 4096, 4096
      %23 = vsyncadd [#allocation5], %s22
      %s24 = sshll.u32 [#allocation4], 4
      %s25 = int_to_ptr.vmem [resolvable:$true] %s24
      %30 = dma.hbm_to_vmem [thread:$0]  %s1, 4096, %s25, [#allocation5], 128, 128, 8
    $region9: #{tpu_custom_call.1} parent=1 // pred_fallthru
      _
    // Predicated region
    $region10: #{tpu_custom_call.1} parent=1 // pred_check
      _
    $region11: #{tpu_custom_call.1} parent=1 // pred_check_branch
      %32 = sbr.rel (0) target = $region13
    $region12: #{tpu_custom_call.1} parent=1 // pred_region
      %33 = dma.done [#allocation3], 128
    $region13: #{tpu_custom_call.1} parent=1 // pred_fallthru
      _
    // Predicated region
    $region14: #{tpu_custom_call.1} parent=1 // pred_check
      _
    $region15: #{tpu_custom_call.1} parent=1 // pred_check_branch
      %35 = sbr.rel (0) target = $region17
    $region16: #{tpu_custom_call.1} parent=1 // pred_region
      %36 = dma.done [#allocation5], 4096
    $region17: #{tpu_custom_call.1} parent=1 // pred_fallthru
      _
    %v37 = vlaneseq
    %v38 = vshrl.u32 %v37, 7
    %v39 = vadd.s32 %v38, 8
    %v40 = vadd.s32 %v38, 16
    %v41 = vadd.s32 %v38, 24
    %v42 = vld [vmem:[#allocation2] sm:$0x1]
    %v43 = vlaneseq
    %v44 = vshrl.u32 %v43, 7
    %v45 = vsub.s32 0, %v44
    %v46 = vrot.slane %v42, %v45
    %vm47 = vcmp.eq.s32.totalorder %v46, %v38
    %vm48 = vcmp.eq.s32.totalorder %v46, %v39
    %vm49 = vcmp.eq.s32.totalorder %v46, %v40
    %vm50 = vcmp.eq.s32.totalorder %v46, %v41
    %v51 = vsel %vm47, 1, 0
    %v52 = vsel %vm48, 1, 0
    %v53 = vsel %vm49, 1, 0
    %v54 = vsel %vm50, 1, 0
    %v55 = vcvt.s32.f32 %v51
    %v56 = vcvt.s32.f32 %v52
    %v57 = vcvt.s32.f32 %v53
    %v58 = vcvt.s32.f32 %v54
    %v59 = vld [vmem:[#allocation4] sm:$0xff]
    %v60 = vld [vmem:[#allocation4 + $0x8] sm:$0xff]
    %v61 = vld [vmem:[#allocation4 + $0x10] sm:$0xff]
    %v62 = vld [vmem:[#allocation4 + $0x18] sm:$0xff]
    %v63 = vld [vmem:[#allocation2 + $0x1] sm:$0x1]
    %v64 = vlaneseq
    %v65 = vshrl.u32 %v64, 7
    %v66 = vsub.s32 0, %v65
    %v67 = vrot.slane %v63, %v66
    %vm68 = vcmp.eq.s32.totalorder %v67, %v38
    %vm69 = vcmp.eq.s32.totalorder %v67, %v39
    %vm70 = vcmp.eq.s32.totalorder %v67, %v40
    %vm71 = vcmp.eq.s32.totalorder %v67, %v41
    %v72 = vsel %vm68, 1, 0
    %v73 = vsel %vm69, 1, 0
    %v74 = vsel %vm70, 1, 0
    %v75 = vsel %vm71, 1, 0
    %v76 = vcvt.s32.f32 %v72
    %v77 = vcvt.s32.f32 %v73
    %v78 = vcvt.s32.f32 %v74
    %v79 = vcvt.s32.f32 %v75
    %s80 = scalar_lea.vmem [#allocation4], 32
    %v81 = vld [vmem:[%s80] sm:$0xff]
    %v82 = vld [vmem:[%s80 + $0x8] sm:$0xff]
    %v83 = vld [vmem:[%s80 + $0x10] sm:$0xff]
    %v84 = vld [vmem:[%s80 + $0x18] sm:$0xff]
    %vm85 = vcmask 261120
    %v87 = vsel %vm85, %v81, 0
    %v90 = vsel %vm85, %v82, 0
    %v93 = vsel %vm85, %v83, 0
    %v96 = vsel %vm85, %v84, 0
    %98 = vmatprep.subr.mxu0 0.0
    %v99 = vand.u32 %v76, 4294901760
    %100 = vmatpush1.msra.mxu0 %v99
    %101 = vmatprep.subr.mxu0 0.0
    %v102 = vand.u32 %v77, 4294901760
    %103 = vmatpush1.msra.mxu0 %v102
    %104 = vmatprep.subr.mxu0 0.0
    %v105 = vand.u32 %v78, 4294901760
    %106 = vmatpush1.msra.mxu0 %v105
    %107 = vmatprep.subr.mxu0 0.0
    %v108 = vand.u32 %v79, 4294901760
    %109 = vmatpush1.msra.mxu0 %v108
    %110 = vmatprep.subr.mxu0 0.0
    %111 = vmatpush1.msra.mxu0 0.0
    %112 = vmatprep.subr.mxu0 0.0
    %113 = vmatpush1.msra.mxu0 0.0
    %114 = vmatprep.subr.mxu0 0.0
    %115 = vmatpush1.msra.mxu0 0.0
    %116 = vmatprep.subr.mxu0 0.0
    %117 = vmatpush1.msra.mxu0 0.0
    %118 = vmatprep.subr.mxu0 0.0
    %119 = vmatpush1.msra.mxu0 0.0
    %120 = vmatprep.subr.mxu0 0.0
    %121 = vmatpush1.msra.mxu0 0.0
    %122 = vmatprep.subr.mxu0 0.0
    %123 = vmatpush1.msra.mxu0 0.0
    %124 = vmatprep.subr.mxu0 0.0
    %125 = vmatpush1.msra.mxu0 0.0
    %126 = vmatprep.subr.mxu0 0.0
    %127 = vmatpush1.msra.mxu0 0.0
    %128 = vmatprep.subr.mxu0 0.0
    %129 = vmatpush1.msra.mxu0 0.0
    %130 = vmatprep.subr.mxu0 0.0
    %131 = vmatpush1.msra.mxu0 0.0
    %132 = vmatprep.subr.mxu0 0.0
    %133 = vmatpush1.msra.mxu0 0.0
    %134 = vmatprep.subr.mxu0 0.0
    %135 = vmatpush1.msra.mxu0 0.0
    %136 = vmatprep.subr.mxu0 0.0
    %137 = vmatpush1.msra.mxu0 0.0
    %138 = vmatprep.subr.mxu0 0.0
    %139 = vmatpush1.msra.mxu0 0.0
    %140 = vmatprep.subr.mxu0 0.0
    %141 = vmatpush1.msra.mxu0 0.0
    %142 = vmatprep.subr.mxu0 0.0
    %143 = vmatpush1.msra.mxu0 0.0
    %144 = vmatprep.subr.mxu0 0.0
    %145 = vmatpush1.msra.mxu0 0.0
    %146 = vmatprep.subr.mxu0 0.0
    %147 = vmatpush1.msra.mxu0 0.0
    %148 = vmatprep.subr.mxu0 0.0
    %149 = vmatpush1.msra.mxu0 0.0
    %150 = vmatprep.subr.mxu0 0.0
    %151 = vmatpush1.msra.mxu0 0.0
    %152 = vmatprep.subr.mxu0 0.0
    %153 = vmatpush1.msra.mxu0 0.0
    %154 = vmatprep.subr.mxu0 0.0
    %155 = vmatpush1.msra.mxu0 0.0
    %156 = vmatprep.subr.mxu0 0.0
    %157 = vmatpush1.msra.mxu0 0.0
    %158 = vmatprep.subr.mxu0 0.0
    %159 = vmatpush1.msra.mxu0 0.0
    %160 = vmatprep.subr.mxu0 0.0
    %161 = vmatpush1.msra.mxu0 0.0
    %162 = vmatprep.subr.mxu0 0.0
    %163 = vmatpush1.msra.mxu0 0.0
    %164 = vmatprep.subr.mxu0 0.0
    %165 = vmatpush1.msra.mxu0 0.0
    %166 = vmatprep.mubr.f32.mxu0 0.0
    %v167 = vand.u32 %v87, 4294901760
    %v168 = vsub.f32 %v87, %v167
    %v169 = vand.u32 %v168, 4294901760
    %v170 = vsub.f32 %v168, %v169
    %v171 = vand.u32 %v170, 4294901760
    %172 = vmatmul.mubr.f32.gmra.mrb[0].mxu0 %v171
    %v173 = vpop.f32.mrb[0].mxu0
    %v174 = vadd.f32 0.0, %v173
    %v175 = vpop.f32.mrb[0].mxu0
    %176 = vmatprep.mubr.f32.mxu0 0.0
    %v177 = vand.u32 %v90, 4294901760
    %v178 = vsub.f32 %v90, %v177
    %v179 = vand.u32 %v178, 4294901760
    %v180 = vsub.f32 %v178, %v179
    %v181 = vand.u32 %v180, 4294901760
    %182 = vmatmul.mubr.f32.gmra.mrb[0].mxu0 %v181
    %v183 = vpop.f32.mrb[0].mxu0
    %v184 = vadd.f32 0.0, %v183
    %v185 = vpop.f32.mrb[0].mxu0
    %186 = vmatprep.mubr.f32.mxu0 0.0
    %v187 = vand.u32 %v93, 4294901760
    %v188 = vsub.f32 %v93, %v187
    %v189 = vand.u32 %v188, 4294901760
    %v190 = vsub.f32 %v188, %v189
    %v191 = vand.u32 %v190, 4294901760
    %192 = vmatmul.mubr.f32.gmra.mrb[0].mxu0 %v191
    %v193 = vpop.f32.mrb[0].mxu0
    %v194 = vadd.f32 0.0, %v193
    %v195 = vpop.f32.mrb[0].mxu0
    %196 = vmatprep.mubr.f32.mxu0 0.0
    %v197 = vand.u32 %v96, 4294901760
    %v198 = vsub.f32 %v96, %v197
    %v199 = vand.u32 %v198, 4294901760
    %v200 = vsub.f32 %v198, %v199
    %v201 = vand.u32 %v200, 4294901760
    %202 = vmatmul.mubr.f32.gmra.mrb[0].mxu0 %v201
    %v203 = vpop.f32.mrb[0].mxu0
    %v204 = vadd.f32 0.0, %v203
    %v205 = vpop.f32.mrb[0].mxu0
    %206 = vdwg.mxu0
    %207 = vmatprep.subr.mxu0 0.0
    %v208 = vand.u32 %v76, 4294901760
    %v209 = vsub.f32 %v76, %v208
    %v210 = vand.u32 %v209, 4294901760
    %v211 = vsub.f32 %v209, %v210
    %v212 = vand.u32 %v211, 4294901760
    %213 = vmatpush1.msra.mxu0 %v212
    %214 = vmatprep.subr.mxu0 0.0
    %v215 = vand.u32 %v77, 4294901760
    %v216 = vsub.f32 %v77, %v215
    %v217 = vand.u32 %v216, 4294901760
    %v218 = vsub.f32 %v216, %v217
    %v219 = vand.u32 %v218, 4294901760
    %220 = vmatpush1.msra.mxu0 %v219
    %221 = vmatprep.subr.mxu0 0.0
    %v222 = vand.u32 %v78, 4294901760
    %v223 = vsub.f32 %v78, %v222
    %v224 = vand.u32 %v223, 4294901760
    %v225 = vsub.f32 %v223, %v224
    %v226 = vand.u32 %v225, 4294901760
    %227 = vmatpush1.msra.mxu0 %v226
    %228 = vmatprep.subr.mxu0 0.0
    %v229 = vand.u32 %v79, 4294901760
    %v230 = vsub.f32 %v79, %v229
    %v231 = vand.u32 %v230, 4294901760
    %v232 = vsub.f32 %v230, %v231
    %v233 = vand.u32 %v232, 4294901760
    %234 = vmatpush1.msra.mxu0 %v233
    %235 = vmatprep.subr.mxu0 0.0
    %236 = vmatpush1.msra.mxu0 0.0
    %237 = vmatprep.subr.mxu0 0.0
    %238 = vmatpush1.msra.mxu0 0.0
    %239 = vmatprep.subr.mxu0 0.0
    %240 = vmatpush1.msra.mxu0 0.0
    %241 = vmatprep.subr.mxu0 0.0
    %242 = vmatpush1.msra.mxu0 0.0
    %243 = vmatprep.subr.mxu0 0.0
    %244 = vmatpush1.msra.mxu0 0.0
    %245 = vmatprep.subr.mxu0 0.0
    %246 = vmatpush1.msra.mxu0 0.0
    %247 = vmatprep.subr.mxu0 0.0
    %248 = vmatpush1.msra.mxu0 0.0
    %249 = vmatprep.subr.mxu0 0.0
    %250 = vmatpush1.msra.mxu0 0.0
    %251 = vmatprep.subr.mxu0 0.0
    %252 = vmatpush1.msra.mxu0 0.0
    %253 = vmatprep.subr.mxu0 0.0
    %254 = vmatpush1.msra.mxu0 0.0
    %255 = vmatprep.subr.mxu0 0.0
    %256 = vmatpush1.msra.mxu0 0.0
    %257 = vmatprep.subr.mxu0 0.0
    %258 = vmatpush1.msra.mxu0 0.0
    %259 = vmatprep.subr.mxu0 0.0
    %260 = vmatpush1.msra.mxu0 0.0
    %261 = vmatprep.subr.mxu0 0.0
    %262 = vmatpush1.msra.mxu0 0.0
    %263 = vmatprep.subr.mxu0 0.0
    %264 = vmatpush1.msra.mxu0 0.0
    %265 = vmatprep.subr.mxu0 0.0
    %266 = vmatpush1.msra.mxu0 0.0
    %267 = vmatprep.subr.mxu0 0.0
    %268 = vmatpush1.msra.mxu0 0.0
    %269 = vmatprep.subr.mxu0 0.0
    %270 = vmatpush1.msra.mxu0 0.0
    %271 = vmatprep.subr.mxu0 0.0
    %272 = vmatpush1.msra.mxu0 0.0
    %273 = vmatprep.subr.mxu0 0.0
    %274 = vmatpush1.msra.mxu0 0.0
    %275 = vmatprep.subr.mxu0 0.0
    %276 = vmatpush1.msra.mxu0 0.0
    %277 = vmatprep.subr.mxu0 0.0
    %278 = vmatpush1.msra.mxu0 0.0
    %279 = vmatprep.subr.mxu0 0.0
    %280 = vmatpush1.msra.mxu0 0.0
    %281 = vmatprep.subr.mxu0 0.0
    %282 = vmatpush1.msra.mxu0 0.0
    %283 = vmatprep.subr.mxu0 0.0
    %284 = vmatpush1.msra.mxu0 0.0
    %285 = vmatprep.subr.mxu0 0.0
    %286 = vmatpush1.msra.mxu0 0.0
    %287 = vmatprep.subr.mxu0 0.0
    %288 = vmatpush1.msra.mxu0 0.0
    %289 = vmatprep.subr.mxu0 0.0
    %290 = vmatpush1.msra.mxu0 0.0
    %291 = vmatprep.mubr.f32.mxu0 0.0
    %v292 = vand.u32 %v87, 4294901760
    %293 = vmatmul.mubr.f32.gmra.mrb[0].mxu0 %v292
    %v294 = vpop.f32.mrb[0].mxu0
    %v295 = vadd.f32 %v174, %v294
    %v296 = vpop.f32.mrb[0].mxu0
    %297 = vmatprep.mubr.f32.mxu0 0.0
    %v298 = vand.u32 %v90, 4294901760
    %299 = vmatmul.mubr.f32.gmra.mrb[0].mxu0 %v298
    %v300 = vpop.f32.mrb[0].mxu0
    %v301 = vadd.f32 %v184, %v300
    %v302 = vpop.f32.mrb[0].mxu0
    %303 = vmatprep.mubr.f32.mxu0 0.0
    %v304 = vand.u32 %v93, 4294901760
    %305 = vmatmul.mubr.f32.gmra.mrb[0].mxu0 %v304
    %v306 = vpop.f32.mrb[0].mxu0
    %v307 = vadd.f32 %v194, %v306
    %v308 = vpop.f32.mrb[0].mxu0
    %309 = vmatprep.mubr.f32.mxu0 0.0
    %v310 = vand.u32 %v96, 4294901760
    %311 = vmatmul.mubr.f32.gmra.mrb[0].mxu0 %v310
    %v312 = vpop.f32.mrb[0].mxu0
    %v313 = vadd.f32 %v204, %v312
    %v314 = vpop.f32.mrb[0].mxu0
    %315 = vdwg.mxu0
    %316 = vmatprep.subr.mxu0 0.0
    %v317 = vand.u32 %v76, 4294901760
    %v318 = vsub.f32 %v76, %v317
    %319 = vmatpush1.msra.mxu0 %v318
    %320 = vmatprep.subr.mxu0 0.0
    %v321 = vand.u32 %v77, 4294901760
    %v322 = vsub.f32 %v77, %v321
    %323 = vmatpush1.msra.mxu0 %v322
    %324 = vmatprep.subr.mxu0 0.0
    %v325 = vand.u32 %v78, 4294901760
    %v326 = vsub.f32 %v78, %v325
    %327 = vmatpush1.msra.mxu0 %v326
    %328 = vmatprep.subr.mxu0 0.0
    %v329 = vand.u32 %v79, 4294901760
    %v330 = vsub.f32 %v79, %v329
    %331 = vmatpush1.msra.mxu0 %v330
    %332 = vmatprep.subr.mxu0 0.0
    %333 = vmatpush1.msra.mxu0 0.0
    %334 = vmatprep.subr.mxu0 0.0
    %335 = vmatpush1.msra.mxu0 0.0
    %336 = vmatprep.subr.mxu0 0.0
    %337 = vmatpush1.msra.mxu0 0.0
    %338 = vmatprep.subr.mxu0 0.0
    %339 = vmatpush1.msra.mxu0 0.0
    %340 = vmatprep.subr.mxu0 0.0
    %341 = vmatpush1.msra.mxu0 0.0
    %342 = vmatprep.subr.mxu0 0.0
    %343 = vmatpush1.msra.mxu0 0.0
    %344 = vmatprep.subr.mxu0 0.0
    %345 = vmatpush1.msra.mxu0 0.0
    %346 = vmatprep.subr.mxu0 0.0
    %347 = vmatpush1.msra.mxu0 0.0
    %348 = vmatprep.subr.mxu0 0.0
    %349 = vmatpush1.msra.mxu0 0.0
    %350 = vmatprep.subr.mxu0 0.0
    %351 = vmatpush1.msra.mxu0 0.0
    %352 = vmatprep.subr.mxu0 0.0
    %353 = vmatpush1.msra.mxu0 0.0
    %354 = vmatprep.subr.mxu0 0.0
    %355 = vmatpush1.msra.mxu0 0.0
    %356 = vmatprep.subr.mxu0 0.0
    %357 = vmatpush1.msra.mxu0 0.0
    %358 = vmatprep.subr.mxu0 0.0
    %359 = vmatpush1.msra.mxu0 0.0
    %360 = vmatprep.subr.mxu0 0.0
    %361 = vmatpush1.msra.mxu0 0.0
    %362 = vmatprep.subr.mxu0 0.0
    %363 = vmatpush1.msra.mxu0 0.0
    %364 = vmatprep.subr.mxu0 0.0
    %365 = vmatpush1.msra.mxu0 0.0
    %366 = vmatprep.subr.mxu0 0.0
    %367 = vmatpush1.msra.mxu0 0.0
    %368 = vmatprep.subr.mxu0 0.0
    %369 = vmatpush1.msra.mxu0 0.0
    %370 = vmatprep.subr.mxu0 0.0
    %371 = vmatpush1.msra.mxu0 0.0
    %372 = vmatprep.subr.mxu0 0.0
    %373 = vmatpush1.msra.mxu0 0.0
    %374 = vmatprep.subr.mxu0 0.0
    %375 = vmatpush1.msra.mxu0 0.0
    %376 = vmatprep.subr.mxu0 0.0
    %377 = vmatpush1.msra.mxu0 0.0
    %378 = vmatprep.subr.mxu0 0.0
    %379 = vmatpush1.msra.mxu0 0.0
    %380 = vmatprep.subr.mxu0 0.0
    %381 = vmatpush1.msra.mxu0 0.0
    %382 = vmatprep.subr.mxu0 0.0
    %383 = vmatpush1.msra.mxu0 0.0
    %384 = vmatprep.subr.mxu0 0.0
    %385 = vmatpush1.msra.mxu0 0.0
    %386 = vmatprep.subr.mxu0 0.0
    %387 = vmatpush1.msra.mxu0 0.0
    %388 = vmatprep.mubr.f32.mxu0 0.0
    %v389 = vand.u32 %v87, 4294901760
    %v390 = vsub.f32 %v87, %v389
    %391 = vmatmul.mubr.f32.gmra.mrb[0].mxu0 %v390
    %v392 = vpop.f32.mrb[0].mxu0
    %v393 = vadd.f32 %v295, %v392
    %v394 = vpop.f32.mrb[0].mxu0
    %395 = vmatprep.mubr.f32.mxu0 0.0
    %v396 = vand.u32 %v90, 4294901760
    %v397 = vsub.f32 %v90, %v396
    %398 = vmatmul.mubr.f32.gmra.mrb[0].mxu0 %v397
    %v399 = vpop.f32.mrb[0].mxu0
    %v400 = vadd.f32 %v301, %v399
    %v401 = vpop.f32.mrb[0].mxu0
    %402 = vmatprep.mubr.f32.mxu0 0.0
    %v403 = vand.u32 %v93, 4294901760
    %v404 = vsub.f32 %v93, %v403
    %405 = vmatmul.mubr.f32.gmra.mrb[0].mxu0 %v404
    %v406 = vpop.f32.mrb[0].mxu0
    %v407 = vadd.f32 %v307, %v406
    %v408 = vpop.f32.mrb[0].mxu0
    %409 = vmatprep.mubr.f32.mxu0 0.0
    %v410 = vand.u32 %v96, 4294901760
    %v411 = vsub.f32 %v96, %v410
    %412 = vmatmul.mubr.f32.gmra.mrb[0].mxu0 %v411
    %v413 = vpop.f32.mrb[0].mxu0
    %v414 = vadd.f32 %v313, %v413
    %v415 = vpop.f32.mrb[0].mxu0
    %416 = vdwg.mxu0
    %417 = vmatprep.subr.mxu0 0.0
    %v418 = vand.u32 %v76, 4294901760
    %419 = vmatpush1.msra.mxu0 %v418
    %420 = vmatprep.subr.mxu0 0.0
    %v421 = vand.u32 %v77, 4294901760
    %422 = vmatpush1.msra.mxu0 %v421
    %423 = vmatprep.subr.mxu0 0.0
    %v424 = vand.u32 %v78, 4294901760
    %425 = vmatpush1.msra.mxu0 %v424
    %426 = vmatprep.subr.mxu0 0.0
    %v427 = vand.u32 %v79, 4294901760
    %428 = vmatpush1.msra.mxu0 %v427
    %429 = vmatprep.subr.mxu0 0.0
    %430 = vmatpush1.msra.mxu0 0.0
    %431 = vmatprep.subr.mxu0 0.0
    %432 = vmatpush1.msra.mxu0 0.0
    %433 = vmatprep.subr.mxu0 0.0
    %434 = vmatpush1.msra.mxu0 0.0
    %435 = vmatprep.subr.mxu0 0.0
    %436 = vmatpush1.msra.mxu0 0.0
    %437 = vmatprep.subr.mxu0 0.0
    %438 = vmatpush1.msra.mxu0 0.0
    %439 = vmatprep.subr.mxu0 0.0
    %440 = vmatpush1.msra.mxu0 0.0
    %441 = vmatprep.subr.mxu0 0.0
    %442 = vmatpush1.msra.mxu0 0.0
    %443 = vmatprep.subr.mxu0 0.0
    %444 = vmatpush1.msra.mxu0 0.0
    %445 = vmatprep.subr.mxu0 0.0
    %446 = vmatpush1.msra.mxu0 0.0
    %447 = vmatprep.subr.mxu0 0.0
    %448 = vmatpush1.msra.mxu0 0.0
    %449 = vmatprep.subr.mxu0 0.0
    %450 = vmatpush1.msra.mxu0 0.0
    %451 = vmatprep.subr.mxu0 0.0
    %452 = vmatpush1.msra.mxu0 0.0
    %453 = vmatprep.subr.mxu0 0.0
    %454 = vmatpush1.msra.mxu0 0.0
    %455 = vmatprep.subr.mxu0 0.0
    %456 = vmatpush1.msra.mxu0 0.0
    %457 = vmatprep.subr.mxu0 0.0
    %458 = vmatpush1.msra.mxu0 0.0
    %459 = vmatprep.subr.mxu0 0.0
    %460 = vmatpush1.msra.mxu0 0.0
    %461 = vmatprep.subr.mxu0 0.0
    %462 = vmatpush1.msra.mxu0 0.0
    %463 = vmatprep.subr.mxu0 0.0
    %464 = vmatpush1.msra.mxu0 0.0
    %465 = vmatprep.subr.mxu0 0.0
    %466 = vmatpush1.msra.mxu0 0.0
    %467 = vmatprep.subr.mxu0 0.0
    %468 = vmatpush1.msra.mxu0 0.0
    %469 = vmatprep.subr.mxu0 0.0
    %470 = vmatpush1.msra.mxu0 0.0
    %471 = vmatprep.subr.mxu0 0.0
    %472 = vmatpush1.msra.mxu0 0.0
    %473 = vmatprep.subr.mxu0 0.0
    %474 = vmatpush1.msra.mxu0 0.0
    %475 = vmatprep.subr.mxu0 0.0
    %476 = vmatpush1.msra.mxu0 0.0
    %477 = vmatprep.subr.mxu0 0.0
    %478 = vmatpush1.msra.mxu0 0.0
    %479 = vmatprep.subr.mxu0 0.0
    %480 = vmatpush1.msra.mxu0 0.0
    %481 = vmatprep.subr.mxu0 0.0
    %482 = vmatpush1.msra.mxu0 0.0
    %483 = vmatprep.subr.mxu0 0.0
    %484 = vmatpush1.msra.mxu0 0.0
    %485 = vmatprep.mubr.f32.mxu0 0.0
    %v486 = vand.u32 %v87, 4294901760
    %v487 = vsub.f32 %v87, %v486
    %v488 = vand.u32 %v487, 4294901760
    %489 = vmatmul.mubr.f32.gmra.mrb[0].mxu0 %v488
    %v490 = vpop.f32.mrb[0].mxu0
    %v491 = vadd.f32 %v393, %v490
    %v492 = vpop.f32.mrb[0].mxu0
    %493 = vmatprep.mubr.f32.mxu0 0.0
    %v494 = vand.u32 %v90, 4294901760
    %v495 = vsub.f32 %v90, %v494
    %v496 = vand.u32 %v495, 4294901760
    %497 = vmatmul.mubr.f32.gmra.mrb[0].mxu0 %v496
    %v498 = vpop.f32.mrb[0].mxu0
    %v499 = vadd.f32 %v400, %v498
    %v500 = vpop.f32.mrb[0].mxu0
    %501 = vmatprep.mubr.f32.mxu0 0.0
    %v502 = vand.u32 %v93, 4294901760
    %v503 = vsub.f32 %v93, %v502
    %v504 = vand.u32 %v503, 4294901760
    %505 = vmatmul.mubr.f32.gmra.mrb[0].mxu0 %v504
    %v506 = vpop.f32.mrb[0].mxu0
    %v507 = vadd.f32 %v407, %v506
    %v508 = vpop.f32.mrb[0].mxu0
    %509 = vmatprep.mubr.f32.mxu0 0.0
    %v510 = vand.u32 %v96, 4294901760
    %v511 = vsub.f32 %v96, %v510
    %v512 = vand.u32 %v511, 4294901760
    %513 = vmatmul.mubr.f32.gmra.mrb[0].mxu0 %v512
    %v514 = vpop.f32.mrb[0].mxu0
    %v515 = vadd.f32 %v414, %v514
    %v516 = vpop.f32.mrb[0].mxu0
    %517 = vdwg.mxu0
    %518 = vmatprep.subr.mxu0 0.0
    %v519 = vand.u32 %v76, 4294901760
    %v520 = vsub.f32 %v76, %v519
    %v521 = vand.u32 %v520, 4294901760
    %522 = vmatpush1.msra.mxu0 %v521
    %523 = vmatprep.subr.mxu0 0.0
    %v524 = vand.u32 %v77, 4294901760
    %v525 = vsub.f32 %v77, %v524
    %v526 = vand.u32 %v525, 4294901760
    %527 = vmatpush1.msra.mxu0 %v526
    %528 = vmatprep.subr.mxu0 0.0
    %v529 = vand.u32 %v78, 4294901760
    %v530 = vsub.f32 %v78, %v529
    %v531 = vand.u32 %v530, 4294901760
    %532 = vmatpush1.msra.mxu0 %v531
    %533 = vmatprep.subr.mxu0 0.0
    %v534 = vand.u32 %v79, 4294901760
    %v535 = vsub.f32 %v79, %v534
    %v536 = vand.u32 %v535, 4294901760
    %537 = vmatpush1.msra.mxu0 %v536
    %538 = vmatprep.subr.mxu0 0.0
    %539 = vmatpush1.msra.mxu0 0.0
    %540 = vmatprep.subr.mxu0 0.0
    %541 = vmatpush1.msra.mxu0 0.0
    %542 = vmatprep.subr.mxu0 0.0
    %543 = vmatpush1.msra.mxu0 0.0
    %544 = vmatprep.subr.mxu0 0.0
    %545 = vmatpush1.msra.mxu0 0.0
    %546 = vmatprep.subr.mxu0 0.0
    %547 = vmatpush1.msra.mxu0 0.0
    %548 = vmatprep.subr.mxu0 0.0
    %549 = vmatpush1.msra.mxu0 0.0
    %550 = vmatprep.subr.mxu0 0.0
    %551 = vmatpush1.msra.mxu0 0.0
    %552 = vmatprep.subr.mxu0 0.0
    %553 = vmatpush1.msra.mxu0 0.0
    %554 = vmatprep.subr.mxu0 0.0
    %555 = vmatpush1.msra.mxu0 0.0
    %556 = vmatprep.subr.mxu0 0.0
    %557 = vmatpush1.msra.mxu0 0.0
    %558 = vmatprep.subr.mxu0 0.0
    %559 = vmatpush1.msra.mxu0 0.0
    %560 = vmatprep.subr.mxu0 0.0
    %561 = vmatpush1.msra.mxu0 0.0
    %562 = vmatprep.subr.mxu0 0.0
    %563 = vmatpush1.msra.mxu0 0.0
    %564 = vmatprep.subr.mxu0 0.0
    %565 = vmatpush1.msra.mxu0 0.0
    %566 = vmatprep.subr.mxu0 0.0
    %567 = vmatpush1.msra.mxu0 0.0
    %568 = vmatprep.subr.mxu0 0.0
    %569 = vmatpush1.msra.mxu0 0.0
    %570 = vmatprep.subr.mxu0 0.0
    %571 = vmatpush1.msra.mxu0 0.0
    %572 = vmatprep.subr.mxu0 0.0
    %573 = vmatpush1.msra.mxu0 0.0
    %574 = vmatprep.subr.mxu0 0.0
    %575 = vmatpush1.msra.mxu0 0.0
    %576 = vmatprep.subr.mxu0 0.0
    %577 = vmatpush1.msra.mxu0 0.0
    %578 = vmatprep.subr.mxu0 0.0
    %579 = vmatpush1.msra.mxu0 0.0
    %580 = vmatprep.subr.mxu0 0.0
    %581 = vmatpush1.msra.mxu0 0.0
    %582 = vmatprep.subr.mxu0 0.0
    %583 = vmatpush1.msra.mxu0 0.0
    %584 = vmatprep.subr.mxu0 0.0
    %585 = vmatpush1.msra.mxu0 0.0
    %586 = vmatprep.subr.mxu0 0.0
    %587 = vmatpush1.msra.mxu0 0.0
    %588 = vmatprep.subr.mxu0 0.0
    %589 = vmatpush1.msra.mxu0 0.0
    %590 = vmatprep.subr.mxu0 0.0
    %591 = vmatpush1.msra.mxu0 0.0
    %592 = vmatprep.subr.mxu0 0.0
    %593 = vmatpush1.msra.mxu0 0.0
    %594 = vmatprep.mubr.f32.mxu0 0.0
    %v595 = vand.u32 %v87, 4294901760
    %596 = vmatmul.mubr.f32.gmra.mrb[0].mxu0 %v595
    %v597 = vpop.f32.mrb[0].mxu0
    %v598 = vadd.f32 %v491, %v597
    %v599 = vpop.f32.mrb[0].mxu0
    %600 = vmatprep.mubr.f32.mxu0 0.0
    %v601 = vand.u32 %v90, 4294901760
    %602 = vmatmul.mubr.f32.gmra.mrb[0].mxu0 %v601
    %v603 = vpop.f32.mrb[0].mxu0
    %v604 = vadd.f32 %v499, %v603
    %v605 = vpop.f32.mrb[0].mxu0
    %606 = vmatprep.mubr.f32.mxu0 0.0
    %v607 = vand.u32 %v93, 4294901760
    %608 = vmatmul.mubr.f32.gmra.mrb[0].mxu0 %v607
    %v609 = vpop.f32.mrb[0].mxu0
    %v610 = vadd.f32 %v507, %v609
    %v611 = vpop.f32.mrb[0].mxu0
    %612 = vmatprep.mubr.f32.mxu0 0.0
    %v613 = vand.u32 %v96, 4294901760
    %614 = vmatmul.mubr.f32.gmra.mrb[0].mxu0 %v613
    %v615 = vpop.f32.mrb[0].mxu0
    %v616 = vadd.f32 %v515, %v615
    %v617 = vpop.f32.mrb[0].mxu0
    %618 = vdwg.mxu0
    %619 = vmatprep.subr.mxu0 0.0
    %v620 = vand.u32 %v76, 4294901760
    %621 = vmatpush1.msra.mxu0 %v620
    %622 = vmatprep.subr.mxu0 0.0
    %v623 = vand.u32 %v77, 4294901760
    %624 = vmatpush1.msra.mxu0 %v623
    %625 = vmatprep.subr.mxu0 0.0
    %v626 = vand.u32 %v78, 4294901760
    %627 = vmatpush1.msra.mxu0 %v626
    %628 = vmatprep.subr.mxu0 0.0
    %v629 = vand.u32 %v79, 4294901760
    %630 = vmatpush1.msra.mxu0 %v629
    %631 = vmatprep.subr.mxu0 0.0
    %632 = vmatpush1.msra.mxu0 0.0
    %633 = vmatprep.subr.mxu0 0.0
    %634 = vmatpush1.msra.mxu0 0.0
    %635 = vmatprep.subr.mxu0 0.0
    %636 = vmatpush1.msra.mxu0 0.0
    %637 = vmatprep.subr.mxu0 0.0
    %638 = vmatpush1.msra.mxu0 0.0
    %639 = vmatprep.subr.mxu0 0.0
    %640 = vmatpush1.msra.mxu0 0.0
    %641 = vmatprep.subr.mxu0 0.0
    %642 = vmatpush1.msra.mxu0 0.0
    %643 = vmatprep.subr.mxu0 0.0
    %644 = vmatpush1.msra.mxu0 0.0
    %645 = vmatprep.subr.mxu0 0.0
    %646 = vmatpush1.msra.mxu0 0.0
    %647 = vmatprep.subr.mxu0 0.0
    %648 = vmatpush1.msra.mxu0 0.0
    %649 = vmatprep.subr.mxu0 0.0
    %650 = vmatpush1.msra.mxu0 0.0
    %651 = vmatprep.subr.mxu0 0.0
    %652 = vmatpush1.msra.mxu0 0.0
    %653 = vmatprep.subr.mxu0 0.0
    %654 = vmatpush1.msra.mxu0 0.0
    %655 = vmatprep.subr.mxu0 0.0
    %656 = vmatpush1.msra.mxu0 0.0
    %657 = vmatprep.subr.mxu0 0.0
    %658 = vmatpush1.msra.mxu0 0.0
    %659 = vmatprep.subr.mxu0 0.0
    %660 = vmatpush1.msra.mxu0 0.0
    %661 = vmatprep.subr.mxu0 0.0
    %662 = vmatpush1.msra.mxu0 0.0
    %663 = vmatprep.subr.mxu0 0.0
    %664 = vmatpush1.msra.mxu0 0.0
    %665 = vmatprep.subr.mxu0 0.0
    %666 = vmatpush1.msra.mxu0 0.0
    %667 = vmatprep.subr.mxu0 0.0
    %668 = vmatpush1.msra.mxu0 0.0
    %669 = vmatprep.subr.mxu0 0.0
    %670 = vmatpush1.msra.mxu0 0.0
    %671 = vmatprep.subr.mxu0 0.0
    %672 = vmatpush1.msra.mxu0 0.0
    %673 = vmatprep.subr.mxu0 0.0
    %674 = vmatpush1.msra.mxu0 0.0
    %675 = vmatprep.subr.mxu0 0.0
    %676 = vmatpush1.msra.mxu0 0.0
    %677 = vmatprep.subr.mxu0 0.0
    %678 = vmatpush1.msra.mxu0 0.0
    %679 = vmatprep.subr.mxu0 0.0
    %680 = vmatpush1.msra.mxu0 0.0
    %681 = vmatprep.subr.mxu0 0.0
    %682 = vmatpush1.msra.mxu0 0.0
    %683 = vmatprep.subr.mxu0 0.0
    %684 = vmatpush1.msra.mxu0 0.0
    %685 = vmatprep.subr.mxu0 0.0
    %686 = vmatpush1.msra.mxu0 0.0
    %687 = vmatprep.mubr.f32.mxu0 0.0
    %v688 = vand.u32 %v87, 4294901760
    %689 = vmatmul.mubr.f32.gmra.mrb[0].mxu0 %v688
    %v690 = vpop.f32.mrb[0].mxu0
    %v691 = vadd.f32 %v598, %v690
    %v692 = vpop.f32.mrb[0].mxu0
    %693 = vmatprep.mubr.f32.mxu0 0.0
    %v694 = vand.u32 %v90, 4294901760
    %695 = vmatmul.mubr.f32.gmra.mrb[0].mxu0 %v694
    %v696 = vpop.f32.mrb[0].mxu0
    %v697 = vadd.f32 %v604, %v696
    %v698 = vpop.f32.mrb[0].mxu0
    %699 = vmatprep.mubr.f32.mxu0 0.0
    %v700 = vand.u32 %v93, 4294901760
    %701 = vmatmul.mubr.f32.gmra.mrb[0].mxu0 %v700
    %v702 = vpop.f32.mrb[0].mxu0
    %v703 = vadd.f32 %v610, %v702
    %v704 = vpop.f32.mrb[0].mxu0
    %705 = vmatprep.mubr.f32.mxu0 0.0
    %v706 = vand.u32 %v96, 4294901760
    %707 = vmatmul.mubr.f32.gmra.mrb[0].mxu0 %v706
    %v708 = vpop.f32.mrb[0].mxu0
    %v709 = vadd.f32 %v616, %v708
    %v710 = vpop.f32.mrb[0].mxu0
    %711 = vdwg.mxu0
    %v713 = vsel %vm85, %v59, 0
    %v716 = vsel %vm85, %v60, 0
    %v719 = vsel %vm85, %v61, 0
    %v722 = vsel %vm85, %v62, 0
    %724 = vmatprep.subr.mxu0 0.0
    %v725 = vand.u32 %v55, 4294901760
    %726 = vmatpush1.msra.mxu0 %v725
    %727 = vmatprep.subr.mxu0 0.0
    %v728 = vand.u32 %v56, 4294901760
    %729 = vmatpush1.msra.mxu0 %v728
    %730 = vmatprep.subr.mxu0 0.0
    %v731 = vand.u32 %v57, 4294901760
    %732 = vmatpush1.msra.mxu0 %v731
    %733 = vmatprep.subr.mxu0 0.0
    %v734 = vand.u32 %v58, 4294901760
    %735 = vmatpush1.msra.mxu0 %v734
    %736 = vmatprep.subr.mxu0 0.0
    %737 = vmatpush1.msra.mxu0 0.0
    %738 = vmatprep.subr.mxu0 0.0
    %739 = vmatpush1.msra.mxu0 0.0
    %740 = vmatprep.subr.mxu0 0.0
    %741 = vmatpush1.msra.mxu0 0.0
    %742 = vmatprep.subr.mxu0 0.0
    %743 = vmatpush1.msra.mxu0 0.0
    %744 = vmatprep.subr.mxu0 0.0
    %745 = vmatpush1.msra.mxu0 0.0
    %746 = vmatprep.subr.mxu0 0.0
    %747 = vmatpush1.msra.mxu0 0.0
    %748 = vmatprep.subr.mxu0 0.0
    %749 = vmatpush1.msra.mxu0 0.0
    %750 = vmatprep.subr.mxu0 0.0
    %751 = vmatpush1.msra.mxu0 0.0
    %752 = vmatprep.subr.mxu0 0.0
    %753 = vmatpush1.msra.mxu0 0.0
    %754 = vmatprep.subr.mxu0 0.0
    %755 = vmatpush1.msra.mxu0 0.0
    %756 = vmatprep.subr.mxu0 0.0
    %757 = vmatpush1.msra.mxu0 0.0
    %758 = vmatprep.subr.mxu0 0.0
    %759 = vmatpush1.msra.mxu0 0.0
    %760 = vmatprep.subr.mxu0 0.0
    %761 = vmatpush1.msra.mxu0 0.0
    %762 = vmatprep.subr.mxu0 0.0
    %763 = vmatpush1.msra.mxu0 0.0
    %764 = vmatprep.subr.mxu0 0.0
    %765 = vmatpush1.msra.mxu0 0.0
    %766 = vmatprep.subr.mxu0 0.0
    %767 = vmatpush1.msra.mxu0 0.0
    %768 = vmatprep.subr.mxu0 0.0
    %769 = vmatpush1.msra.mxu0 0.0
    %770 = vmatprep.subr.mxu0 0.0
    %771 = vmatpush1.msra.mxu0 0.0
    %772 = vmatprep.subr.mxu0 0.0
    %773 = vmatpush1.msra.mxu0 0.0
    %774 = vmatprep.subr.mxu0 0.0
    %775 = vmatpush1.msra.mxu0 0.0
    %776 = vmatprep.subr.mxu0 0.0
    %777 = vmatpush1.msra.mxu0 0.0
    %778 = vmatprep.subr.mxu0 0.0
    %779 = vmatpush1.msra.mxu0 0.0
    %780 = vmatprep.subr.mxu0 0.0
    %781 = vmatpush1.msra.mxu0 0.0
    %782 = vmatprep.subr.mxu0 0.0
    %783 = vmatpush1.msra.mxu0 0.0
    %784 = vmatprep.subr.mxu0 0.0
    %785 = vmatpush1.msra.mxu0 0.0
    %786 = vmatprep.subr.mxu0 0.0
    %787 = vmatpush1.msra.mxu0 0.0
    %788 = vmatprep.subr.mxu0 0.0
    %789 = vmatpush1.msra.mxu0 0.0
    %790 = vmatprep.subr.mxu0 0.0
    %791 = vmatpush1.msra.mxu0 0.0
    %792 = vmatprep.mubr.f32.mxu0 0.0
    %v793 = vand.u32 %v713, 4294901760
    %v794 = vsub.f32 %v713, %v793
    %v795 = vand.u32 %v794, 4294901760
    %v796 = vsub.f32 %v794, %v795
    %v797 = vand.u32 %v796, 4294901760
    %798 = vmatmul.mubr.f32.gmra.mrb[0].mxu0 %v797
    %v799 = vpop.f32.mrb[0].mxu0
    %v800 = vadd.f32 %v691, %v799
    %v801 = vpop.f32.mrb[0].mxu0
    %802 = vmatprep.mubr.f32.mxu0 0.0
    %v803 = vand.u32 %v716, 4294901760
    %v804 = vsub.f32 %v716, %v803
    %v805 = vand.u32 %v804, 4294901760
    %v806 = vsub.f32 %v804, %v805
    %v807 = vand.u32 %v806, 4294901760
    %808 = vmatmul.mubr.f32.gmra.mrb[0].mxu0 %v807
    %v809 = vpop.f32.mrb[0].mxu0
    %v810 = vadd.f32 %v697, %v809
    %v811 = vpop.f32.mrb[0].mxu0
    %812 = vmatprep.mubr.f32.mxu0 0.0
    %v813 = vand.u32 %v719, 4294901760
    %v814 = vsub.f32 %v719, %v813
    %v815 = vand.u32 %v814, 4294901760
    %v816 = vsub.f32 %v814, %v815
    %v817 = vand.u32 %v816, 4294901760
    %818 = vmatmul.mubr.f32.gmra.mrb[0].mxu0 %v817
    %v819 = vpop.f32.mrb[0].mxu0
    %v820 = vadd.f32 %v703, %v819
    %v821 = vpop.f32.mrb[0].mxu0
    %822 = vmatprep.mubr.f32.mxu0 0.0
    %v823 = vand.u32 %v722, 4294901760
    %v824 = vsub.f32 %v722, %v823
    %v825 = vand.u32 %v824, 4294901760
    %v826 = vsub.f32 %v824, %v825
    %v827 = vand.u32 %v826, 4294901760
    %828 = vmatmul.mubr.f32.gmra.mrb[0].mxu0 %v827
    %v829 = vpop.f32.mrb[0].mxu0
    %v830 = vadd.f32 %v709, %v829
    %v831 = vpop.f32.mrb[0].mxu0
    %832 = vdwg.mxu0
    %833 = vmatprep.subr.mxu0 0.0
    %v834 = vand.u32 %v55, 4294901760
    %v835 = vsub.f32 %v55, %v834
    %v836 = vand.u32 %v835, 4294901760
    %v837 = vsub.f32 %v835, %v836
    %v838 = vand.u32 %v837, 4294901760
    %839 = vmatpush1.msra.mxu0 %v838
    %840 = vmatprep.subr.mxu0 0.0
    %v841 = vand.u32 %v56, 4294901760
    %v842 = vsub.f32 %v56, %v841
    %v843 = vand.u32 %v842, 4294901760
    %v844 = vsub.f32 %v842, %v843
    %v845 = vand.u32 %v844, 4294901760
    %846 = vmatpush1.msra.mxu0 %v845
    %847 = vmatprep.subr.mxu0 0.0
    %v848 = vand.u32 %v57, 4294901760
    %v849 = vsub.f32 %v57, %v848
    %v850 = vand.u32 %v849, 4294901760
    %v851 = vsub.f32 %v849, %v850
    %v852 = vand.u32 %v851, 4294901760
    %853 = vmatpush1.msra.mxu0 %v852
    %854 = vmatprep.subr.mxu0 0.0
    %v855 = vand.u32 %v58, 4294901760
    %v856 = vsub.f32 %v58, %v855
    %v857 = vand.u32 %v856, 4294901760
    %v858 = vsub.f32 %v856, %v857
    %v859 = vand.u32 %v858, 4294901760
    %860 = vmatpush1.msra.mxu0 %v859
    %861 = vmatprep.subr.mxu0 0.0
    %862 = vmatpush1.msra.mxu0 0.0
    %863 = vmatprep.subr.mxu0 0.0
    %864 = vmatpush1.msra.mxu0 0.0
    %865 = vmatprep.subr.mxu0 0.0
    %866 = vmatpush1.msra.mxu0 0.0
    %867 = vmatprep.subr.mxu0 0.0
    %868 = vmatpush1.msra.mxu0 0.0
    %869 = vmatprep.subr.mxu0 0.0
    %870 = vmatpush1.msra.mxu0 0.0
    %871 = vmatprep.subr.mxu0 0.0
    %872 = vmatpush1.msra.mxu0 0.0
    %873 = vmatprep.subr.mxu0 0.0
    %874 = vmatpush1.msra.mxu0 0.0
    %875 = vmatprep.subr.mxu0 0.0
    %876 = vmatpush1.msra.mxu0 0.0
    %877 = vmatprep.subr.mxu0 0.0
    %878 = vmatpush1.msra.mxu0 0.0
    %879 = vmatprep.subr.mxu0 0.0
    %880 = vmatpush1.msra.mxu0 0.0
    %881 = vmatprep.subr.mxu0 0.0
    %882 = vmatpush1.msra.mxu0 0.0
    %883 = vmatprep.subr.mxu0 0.0
    %884 = vmatpush1.msra.mxu0 0.0
    %885 = vmatprep.subr.mxu0 0.0
    %886 = vmatpush1.msra.mxu0 0.0
    %887 = vmatprep.subr.mxu0 0.0
    %888 = vmatpush1.msra.mxu0 0.0
    %889 = vmatprep.subr.mxu0 0.0
    %890 = vmatpush1.msra.mxu0 0.0
    %891 = vmatprep.subr.mxu0 0.0
    %892 = vmatpush1.msra.mxu0 0.0
    %893 = vmatprep.subr.mxu0 0.0
    %894 = vmatpush1.msra.mxu0 0.0
    %895 = vmatprep.subr.mxu0 0.0
    %896 = vmatpush1.msra.mxu0 0.0
    %897 = vmatprep.subr.mxu0 0.0
    %898 = vmatpush1.msra.mxu0 0.0
    %899 = vmatprep.subr.mxu0 0.0
    %900 = vmatpush1.msra.mxu0 0.0
    %901 = vmatprep.subr.mxu0 0.0
    %902 = vmatpush1.msra.mxu0 0.0
    %903 = vmatprep.subr.mxu0 0.0
    %904 = vmatpush1.msra.mxu0 0.0
    %905 = vmatprep.subr.mxu0 0.0
    %906 = vmatpush1.msra.mxu0 0.0
    %907 = vmatprep.subr.mxu0 0.0
    %908 = vmatpush1.msra.mxu0 0.0
    %909 = vmatprep.subr.mxu0 0.0
    %910 = vmatpush1.msra.mxu0 0.0
    %911 = vmatprep.subr.mxu0 0.0
    %912 = vmatpush1.msra.mxu0 0.0
    %913 = vmatprep.subr.mxu0 0.0
    %914 = vmatpush1.msra.mxu0 0.0
    %915 = vmatprep.subr.mxu0 0.0
    %916 = vmatpush1.msra.mxu0 0.0
    %917 = vmatprep.mubr.f32.mxu0 0.0
    %v918 = vand.u32 %v713, 4294901760
    %919 = vmatmul.mubr.f32.gmra.mrb[0].mxu0 %v918
    %v920 = vpop.f32.mrb[0].mxu0
    %v921 = vadd.f32 %v800, %v920
    %v922 = vpop.f32.mrb[0].mxu0
    %923 = vmatprep.mubr.f32.mxu0 0.0
    %v924 = vand.u32 %v716, 4294901760
    %925 = vmatmul.mubr.f32.gmra.mrb[0].mxu0 %v924
    %v926 = vpop.f32.mrb[0].mxu0
    %v927 = vadd.f32 %v810, %v926
    %v928 = vpop.f32.mrb[0].mxu0
    %929 = vmatprep.mubr.f32.mxu0 0.0
    %v930 = vand.u32 %v719, 4294901760
    %931 = vmatmul.mubr.f32.gmra.mrb[0].mxu0 %v930
    %v932 = vpop.f32.mrb[0].mxu0
    %v933 = vadd.f32 %v820, %v932
    %v934 = vpop.f32.mrb[0].mxu0
    %935 = vmatprep.mubr.f32.mxu0 0.0
    %v936 = vand.u32 %v722, 4294901760
    %937 = vmatmul.mubr.f32.gmra.mrb[0].mxu0 %v936
    %v938 = vpop.f32.mrb[0].mxu0
    %v939 = vadd.f32 %v830, %v938
    %v940 = vpop.f32.mrb[0].mxu0
    %941 = vdwg.mxu0
    %942 = vmatprep.subr.mxu0 0.0
    %v943 = vand.u32 %v55, 4294901760
    %v944 = vsub.f32 %v55, %v943
    %945 = vmatpush1.msra.mxu0 %v944
    %946 = vmatprep.subr.mxu0 0.0
    %v947 = vand.u32 %v56, 4294901760
    %v948 = vsub.f32 %v56, %v947
    %949 = vmatpush1.msra.mxu0 %v948
    %950 = vmatprep.subr.mxu0 0.0
    %v951 = vand.u32 %v57, 4294901760
    %v952 = vsub.f32 %v57, %v951
    %953 = vmatpush1.msra.mxu0 %v952
    %954 = vmatprep.subr.mxu0 0.0
    %v955 = vand.u32 %v58, 4294901760
    %v956 = vsub.f32 %v58, %v955
    %957 = vmatpush1.msra.mxu0 %v956
    %958 = vmatprep.subr.mxu0 0.0
    %959 = vmatpush1.msra.mxu0 0.0
    %960 = vmatprep.subr.mxu0 0.0
    %961 = vmatpush1.msra.mxu0 0.0
    %962 = vmatprep.subr.mxu0 0.0
    %963 = vmatpush1.msra.mxu0 0.0
    %964 = vmatprep.subr.mxu0 0.0
    %965 = vmatpush1.msra.mxu0 0.0
    %966 = vmatprep.subr.mxu0 0.0
    %967 = vmatpush1.msra.mxu0 0.0
    %968 = vmatprep.subr.mxu0 0.0
    %969 = vmatpush1.msra.mxu0 0.0
    %970 = vmatprep.subr.mxu0 0.0
    %971 = vmatpush1.msra.mxu0 0.0
    %972 = vmatprep.subr.mxu0 0.0
    %973 = vmatpush1.msra.mxu0 0.0
    %974 = vmatprep.subr.mxu0 0.0
    %975 = vmatpush1.msra.mxu0 0.0
    %976 = vmatprep.subr.mxu0 0.0
    %977 = vmatpush1.msra.mxu0 0.0
    %978 = vmatprep.subr.mxu0 0.0
    %979 = vmatpush1.msra.mxu0 0.0
    %980 = vmatprep.subr.mxu0 0.0
    %981 = vmatpush1.msra.mxu0 0.0
    %982 = vmatprep.subr.mxu0 0.0
    %983 = vmatpush1.msra.mxu0 0.0
    %984 = vmatprep.subr.mxu0 0.0
    %985 = vmatpush1.msra.mxu0 0.0
    %986 = vmatprep.subr.mxu0 0.0
    %987 = vmatpush1.msra.mxu0 0.0
    %988 = vmatprep.subr.mxu0 0.0
    %989 = vmatpush1.msra.mxu0 0.0
    %990 = vmatprep.subr.mxu0 0.0
    %991 = vmatpush1.msra.mxu0 0.0
    %992 = vmatprep.subr.mxu0 0.0
    %993 = vmatpush1.msra.mxu0 0.0
    %994 = vmatprep.subr.mxu0 0.0
    %995 = vmatpush1.msra.mxu0 0.0
    %996 = vmatprep.subr.mxu0 0.0
    %997 = vmatpush1.msra.mxu0 0.0
    %998 = vmatprep.subr.mxu0 0.0
    %999 = vmatpush1.msra.mxu0 0.0
    %1000 = vmatprep.subr.mxu0 0.0
    %1001 = vmatpush1.msra.mxu0 0.0
    %1002 = vmatprep.subr.mxu0 0.0
    %1003 = vmatpush1.msra.mxu0 0.0
    %1004 = vmatprep.subr.mxu0 0.0
    %1005 = vmatpush1.msra.mxu0 0.0
    %1006 = vmatprep.subr.mxu0 0.0
    %1007 = vmatpush1.msra.mxu0 0.0
    %1008 = vmatprep.subr.mxu0 0.0
    %1009 = vmatpush1.msra.mxu0 0.0
    %1010 = vmatprep.subr.mxu0 0.0
    %1011 = vmatpush1.msra.mxu0 0.0
    %1012 = vmatprep.subr.mxu0 0.0
    %1013 = vmatpush1.msra.mxu0 0.0
    %1014 = vmatprep.mubr.f32.mxu0 0.0
    %v1015 = vand.u32 %v713, 4294901760
    %v1016 = vsub.f32 %v713, %v1015
    %1017 = vmatmul.mubr.f32.gmra.mrb[0].mxu0 %v1016
    %v1018 = vpop.f32.mrb[0].mxu0
    %v1019 = vadd.f32 %v921, %v1018
    %v1020 = vpop.f32.mrb[0].mxu0
    %1021 = vmatprep.mubr.f32.mxu0 0.0
    %v1022 = vand.u32 %v716, 4294901760
    %v1023 = vsub.f32 %v716, %v1022
    %1024 = vmatmul.mubr.f32.gmra.mrb[0].mxu0 %v1023
    %v1025 = vpop.f32.mrb[0].mxu0
    %v1026 = vadd.f32 %v927, %v1025
    %v1027 = vpop.f32.mrb[0].mxu0
    %1028 = vmatprep.mubr.f32.mxu0 0.0
    %v1029 = vand.u32 %v719, 4294901760
    %v1030 = vsub.f32 %v719, %v1029
    %1031 = vmatmul.mubr.f32.gmra.mrb[0].mxu0 %v1030
    %v1032 = vpop.f32.mrb[0].mxu0
    %v1033 = vadd.f32 %v933, %v1032
    %v1034 = vpop.f32.mrb[0].mxu0
    %1035 = vmatprep.mubr.f32.mxu0 0.0
    %v1036 = vand.u32 %v722, 4294901760
    %v1037 = vsub.f32 %v722, %v1036
    %1038 = vmatmul.mubr.f32.gmra.mrb[0].mxu0 %v1037
    %v1039 = vpop.f32.mrb[0].mxu0
    %v1040 = vadd.f32 %v939, %v1039
    %v1041 = vpop.f32.mrb[0].mxu0
    %1042 = vdwg.mxu0
    %1043 = vmatprep.subr.mxu0 0.0
    %v1044 = vand.u32 %v55, 4294901760
    %1045 = vmatpush1.msra.mxu0 %v1044
    %1046 = vmatprep.subr.mxu0 0.0
    %v1047 = vand.u32 %v56, 4294901760
    %1048 = vmatpush1.msra.mxu0 %v1047
    %1049 = vmatprep.subr.mxu0 0.0
    %v1050 = vand.u32 %v57, 4294901760
    %1051 = vmatpush1.msra.mxu0 %v1050
    %1052 = vmatprep.subr.mxu0 0.0
    %v1053 = vand.u32 %v58, 4294901760
    %1054 = vmatpush1.msra.mxu0 %v1053
    %1055 = vmatprep.subr.mxu0 0.0
    %1056 = vmatpush1.msra.mxu0 0.0
    %1057 = vmatprep.subr.mxu0 0.0
    %1058 = vmatpush1.msra.mxu0 0.0
    %1059 = vmatprep.subr.mxu0 0.0
    %1060 = vmatpush1.msra.mxu0 0.0
    %1061 = vmatprep.subr.mxu0 0.0
    %1062 = vmatpush1.msra.mxu0 0.0
    %1063 = vmatprep.subr.mxu0 0.0
    %1064 = vmatpush1.msra.mxu0 0.0
    %1065 = vmatprep.subr.mxu0 0.0
    %1066 = vmatpush1.msra.mxu0 0.0
    %1067 = vmatprep.subr.mxu0 0.0
    %1068 = vmatpush1.msra.mxu0 0.0
    %1069 = vmatprep.subr.mxu0 0.0
    %1070 = vmatpush1.msra.mxu0 0.0
    %1071 = vmatprep.subr.mxu0 0.0
    %1072 = vmatpush1.msra.mxu0 0.0
    %1073 = vmatprep.subr.mxu0 0.0
    %1074 = vmatpush1.msra.mxu0 0.0
    %1075 = vmatprep.subr.mxu0 0.0
    %1076 = vmatpush1.msra.mxu0 0.0
    %1077 = vmatprep.subr.mxu0 0.0
    %1078 = vmatpush1.msra.mxu0 0.0
    %1079 = vmatprep.subr.mxu0 0.0
    %1080 = vmatpush1.msra.mxu0 0.0
    %1081 = vmatprep.subr.mxu0 0.0
    %1082 = vmatpush1.msra.mxu0 0.0
    %1083 = vmatprep.subr.mxu0 0.0
    %1084 = vmatpush1.msra.mxu0 0.0
    %1085 = vmatprep.subr.mxu0 0.0
    %1086 = vmatpush1.msra.mxu0 0.0
    %1087 = vmatprep.subr.mxu0 0.0
    %1088 = vmatpush1.msra.mxu0 0.0
    %1089 = vmatprep.subr.mxu0 0.0
    %1090 = vmatpush1.msra.mxu0 0.0
    %1091 = vmatprep.subr.mxu0 0.0
    %1092 = vmatpush1.msra.mxu0 0.0
    %1093 = vmatprep.subr.mxu0 0.0
    %1094 = vmatpush1.msra.mxu0 0.0
    %1095 = vmatprep.subr.mxu0 0.0
    %1096 = vmatpush1.msra.mxu0 0.0
    %1097 = vmatprep.subr.mxu0 0.0
    %1098 = vmatpush1.msra.mxu0 0.0
    %1099 = vmatprep.subr.mxu0 0.0
    %1100 = vmatpush1.msra.mxu0 0.0
    %1101 = vmatprep.subr.mxu0 0.0
    %1102 = vmatpush1.msra.mxu0 0.0
    %1103 = vmatprep.subr.mxu0 0.0
    %1104 = vmatpush1.msra.mxu0 0.0
    %1105 = vmatprep.subr.mxu0 0.0
    %1106 = vmatpush1.msra.mxu0 0.0
    %1107 = vmatprep.subr.mxu0 0.0
    %1108 = vmatpush1.msra.mxu0 0.0
    %1109 = vmatprep.subr.mxu0 0.0
    %1110 = vmatpush1.msra.mxu0 0.0
    %1111 = vmatprep.mubr.f32.mxu0 0.0
    %v1112 = vand.u32 %v713, 4294901760
    %v1113 = vsub.f32 %v713, %v1112
    %v1114 = vand.u32 %v1113, 4294901760
    %1115 = vmatmul.mubr.f32.gmra.mrb[0].mxu0 %v1114
    %v1116 = vpop.f32.mrb[0].mxu0
    %v1117 = vadd.f32 %v1019, %v1116
    %v1118 = vpop.f32.mrb[0].mxu0
    %1119 = vmatprep.mubr.f32.mxu0 0.0
    %v1120 = vand.u32 %v716, 4294901760
    %v1121 = vsub.f32 %v716, %v1120
    %v1122 = vand.u32 %v1121, 4294901760
    %1123 = vmatmul.mubr.f32.gmra.mrb[0].mxu0 %v1122
    %v1124 = vpop.f32.mrb[0].mxu0
    %v1125 = vadd.f32 %v1026, %v1124
    %v1126 = vpop.f32.mrb[0].mxu0
    %1127 = vmatprep.mubr.f32.mxu0 0.0
    %v1128 = vand.u32 %v719, 4294901760
    %v1129 = vsub.f32 %v719, %v1128
    %v1130 = vand.u32 %v1129, 4294901760
    %1131 = vmatmul.mubr.f32.gmra.mrb[0].mxu0 %v1130
    %v1132 = vpop.f32.mrb[0].mxu0
    %v1133 = vadd.f32 %v1033, %v1132
    %v1134 = vpop.f32.mrb[0].mxu0
    %1135 = vmatprep.mubr.f32.mxu0 0.0
    %v1136 = vand.u32 %v722, 4294901760
    %v1137 = vsub.f32 %v722, %v1136
    %v1138 = vand.u32 %v1137, 4294901760
    %1139 = vmatmul.mubr.f32.gmra.mrb[0].mxu0 %v1138
    %v1140 = vpop.f32.mrb[0].mxu0
    %v1141 = vadd.f32 %v1040, %v1140
    %v1142 = vpop.f32.mrb[0].mxu0
    %1143 = vdwg.mxu0
    %1144 = vmatprep.subr.mxu0 0.0
    %v1145 = vand.u32 %v55, 4294901760
    %v1146 = vsub.f32 %v55, %v1145
    %v1147 = vand.u32 %v1146, 4294901760
    %1148 = vmatpush1.msra.mxu0 %v1147
    %1149 = vmatprep.subr.mxu0 0.0
    %v1150 = vand.u32 %v56, 4294901760
    %v1151 = vsub.f32 %v56, %v1150
    %v1152 = vand.u32 %v1151, 4294901760
    %1153 = vmatpush1.msra.mxu0 %v1152
    %1154 = vmatprep.subr.mxu0 0.0
    %v1155 = vand.u32 %v57, 4294901760
    %v1156 = vsub.f32 %v57, %v1155
    %v1157 = vand.u32 %v1156, 4294901760
    %1158 = vmatpush1.msra.mxu0 %v1157
    %1159 = vmatprep.subr.mxu0 0.0
    %v1160 = vand.u32 %v58, 4294901760
    %v1161 = vsub.f32 %v58, %v1160
    %v1162 = vand.u32 %v1161, 4294901760
    %1163 = vmatpush1.msra.mxu0 %v1162
    %1164 = vmatprep.subr.mxu0 0.0
    %1165 = vmatpush1.msra.mxu0 0.0
    %1166 = vmatprep.subr.mxu0 0.0
    %1167 = vmatpush1.msra.mxu0 0.0
    %1168 = vmatprep.subr.mxu0 0.0
    %1169 = vmatpush1.msra.mxu0 0.0
    %1170 = vmatprep.subr.mxu0 0.0
    %1171 = vmatpush1.msra.mxu0 0.0
    %1172 = vmatprep.subr.mxu0 0.0
    %1173 = vmatpush1.msra.mxu0 0.0
    %1174 = vmatprep.subr.mxu0 0.0
    %1175 = vmatpush1.msra.mxu0 0.0
    %1176 = vmatprep.subr.mxu0 0.0
    %1177 = vmatpush1.msra.mxu0 0.0
    %1178 = vmatprep.subr.mxu0 0.0
    %1179 = vmatpush1.msra.mxu0 0.0
    %1180 = vmatprep.subr.mxu0 0.0
    %1181 = vmatpush1.msra.mxu0 0.0
    %1182 = vmatprep.subr.mxu0 0.0
    %1183 = vmatpush1.msra.mxu0 0.0
    %1184 = vmatprep.subr.mxu0 0.0
    %1185 = vmatpush1.msra.mxu0 0.0
    %1186 = vmatprep.subr.mxu0 0.0
    %1187 = vmatpush1.msra.mxu0 0.0
    %1188 = vmatprep.subr.mxu0 0.0
    %1189 = vmatpush1.msra.mxu0 0.0
    %1190 = vmatprep.subr.mxu0 0.0
    %1191 = vmatpush1.msra.mxu0 0.0
    %1192 = vmatprep.subr.mxu0 0.0
    %1193 = vmatpush1.msra.mxu0 0.0
    %1194 = vmatprep.subr.mxu0 0.0
    %1195 = vmatpush1.msra.mxu0 0.0
    %1196 = vmatprep.subr.mxu0 0.0
    %1197 = vmatpush1.msra.mxu0 0.0
    %1198 = vmatprep.subr.mxu0 0.0
    %1199 = vmatpush1.msra.mxu0 0.0
    %1200 = vmatprep.subr.mxu0 0.0
    %1201 = vmatpush1.msra.mxu0 0.0
    %1202 = vmatprep.subr.mxu0 0.0
    %1203 = vmatpush1.msra.mxu0 0.0
    %1204 = vmatprep.subr.mxu0 0.0
    %1205 = vmatpush1.msra.mxu0 0.0
    %1206 = vmatprep.subr.mxu0 0.0
    %1207 = vmatpush1.msra.mxu0 0.0
    %1208 = vmatprep.subr.mxu0 0.0
    %1209 = vmatpush1.msra.mxu0 0.0
    %1210 = vmatprep.subr.mxu0 0.0
    %1211 = vmatpush1.msra.mxu0 0.0
    %1212 = vmatprep.subr.mxu0 0.0
    %1213 = vmatpush1.msra.mxu0 0.0
    %1214 = vmatprep.subr.mxu0 0.0
    %1215 = vmatpush1.msra.mxu0 0.0
    %1216 = vmatprep.subr.mxu0 0.0
    %1217 = vmatpush1.msra.mxu0 0.0
    %1218 = vmatprep.subr.mxu0 0.0
    %1219 = vmatpush1.msra.mxu0 0.0
    %1220 = vmatprep.mubr.f32.mxu0 0.0
    %v1221 = vand.u32 %v713, 4294901760
    %1222 = vmatmul.mubr.f32.gmra.mrb[0].mxu0 %v1221
    %v1223 = vpop.f32.mrb[0].mxu0
    %v1224 = vadd.f32 %v1117, %v1223
    %v1225 = vpop.f32.mrb[0].mxu0
    %1226 = vmatprep.mubr.f32.mxu0 0.0
    %v1227 = vand.u32 %v716, 4294901760
    %1228 = vmatmul.mubr.f32.gmra.mrb[0].mxu0 %v1227
    %v1229 = vpop.f32.mrb[0].mxu0
    %v1230 = vadd.f32 %v1125, %v1229
    %v1231 = vpop.f32.mrb[0].mxu0
    %1232 = vmatprep.mubr.f32.mxu0 0.0
    %v1233 = vand.u32 %v719, 4294901760
    %1234 = vmatmul.mubr.f32.gmra.mrb[0].mxu0 %v1233
    %v1235 = vpop.f32.mrb[0].mxu0
    %v1236 = vadd.f32 %v1133, %v1235
    %v1237 = vpop.f32.mrb[0].mxu0
    %1238 = vmatprep.mubr.f32.mxu0 0.0
    %v1239 = vand.u32 %v722, 4294901760
    %1240 = vmatmul.mubr.f32.gmra.mrb[0].mxu0 %v1239
    %v1241 = vpop.f32.mrb[0].mxu0
    %v1242 = vadd.f32 %v1141, %v1241
    %v1243 = vpop.f32.mrb[0].mxu0
    %1244 = vdwg.mxu0
    %1245 = vmatprep.subr.mxu0 0.0
    %v1246 = vand.u32 %v55, 4294901760
    %1247 = vmatpush1.msra.mxu0 %v1246
    %1248 = vmatprep.subr.mxu0 0.0
    %v1249 = vand.u32 %v56, 4294901760
    %1250 = vmatpush1.msra.mxu0 %v1249
    %1251 = vmatprep.subr.mxu0 0.0
    %v1252 = vand.u32 %v57, 4294901760
    %1253 = vmatpush1.msra.mxu0 %v1252
    %1254 = vmatprep.subr.mxu0 0.0
    %v1255 = vand.u32 %v58, 4294901760
    %1256 = vmatpush1.msra.mxu0 %v1255
    %1257 = vmatprep.subr.mxu0 0.0
    %1258 = vmatpush1.msra.mxu0 0.0
    %1259 = vmatprep.subr.mxu0 0.0
    %1260 = vmatpush1.msra.mxu0 0.0
    %1261 = vmatprep.subr.mxu0 0.0
    %1262 = vmatpush1.msra.mxu0 0.0
    %1263 = vmatprep.subr.mxu0 0.0
    %1264 = vmatpush1.msra.mxu0 0.0
    %1265 = vmatprep.subr.mxu0 0.0
    %1266 = vmatpush1.msra.mxu0 0.0
    %1267 = vmatprep.subr.mxu0 0.0
    %1268 = vmatpush1.msra.mxu0 0.0
    %1269 = vmatprep.subr.mxu0 0.0
    %1270 = vmatpush1.msra.mxu0 0.0
    %1271 = vmatprep.subr.mxu0 0.0
    %1272 = vmatpush1.msra.mxu0 0.0
    %1273 = vmatprep.subr.mxu0 0.0
    %1274 = vmatpush1.msra.mxu0 0.0
    %1275 = vmatprep.subr.mxu0 0.0
    %1276 = vmatpush1.msra.mxu0 0.0
    %1277 = vmatprep.subr.mxu0 0.0
    %1278 = vmatpush1.msra.mxu0 0.0
    %1279 = vmatprep.subr.mxu0 0.0
    %1280 = vmatpush1.msra.mxu0 0.0
    %1281 = vmatprep.subr.mxu0 0.0
    %1282 = vmatpush1.msra.mxu0 0.0
    %1283 = vmatprep.subr.mxu0 0.0
    %1284 = vmatpush1.msra.mxu0 0.0
    %1285 = vmatprep.subr.mxu0 0.0
    %1286 = vmatpush1.msra.mxu0 0.0
    %1287 = vmatprep.subr.mxu0 0.0
    %1288 = vmatpush1.msra.mxu0 0.0
    %1289 = vmatprep.subr.mxu0 0.0
    %1290 = vmatpush1.msra.mxu0 0.0
    %1291 = vmatprep.subr.mxu0 0.0
    %1292 = vmatpush1.msra.mxu0 0.0
    %1293 = vmatprep.subr.mxu0 0.0
    %1294 = vmatpush1.msra.mxu0 0.0
    %1295 = vmatprep.subr.mxu0 0.0
    %1296 = vmatpush1.msra.mxu0 0.0
    %1297 = vmatprep.subr.mxu0 0.0
    %1298 = vmatpush1.msra.mxu0 0.0
    %1299 = vmatprep.subr.mxu0 0.0
    %1300 = vmatpush1.msra.mxu0 0.0
    %1301 = vmatprep.subr.mxu0 0.0
    %1302 = vmatpush1.msra.mxu0 0.0
    %1303 = vmatprep.subr.mxu0 0.0
    %1304 = vmatpush1.msra.mxu0 0.0
    %1305 = vmatprep.subr.mxu0 0.0
    %1306 = vmatpush1.msra.mxu0 0.0
    %1307 = vmatprep.subr.mxu0 0.0
    %1308 = vmatpush1.msra.mxu0 0.0
    %1309 = vmatprep.subr.mxu0 0.0
    %1310 = vmatpush1.msra.mxu0 0.0
    %1311 = vmatprep.subr.mxu0 0.0
    %1312 = vmatpush1.msra.mxu0 0.0
    %1313 = vmatprep.mubr.f32.mxu0 0.0
    %v1314 = vand.u32 %v713, 4294901760
    %1315 = vmatmul.mubr.f32.gmra.mrb[0].mxu0 %v1314
    %v1316 = vpop.f32.mrb[0].mxu0
    %v1317 = vadd.f32 %v1224, %v1316
    %v1318 = vpop.f32.mrb[0].mxu0
    %1319 = vmatprep.mubr.f32.mxu0 0.0
    %v1320 = vand.u32 %v716, 4294901760
    %1321 = vmatmul.mubr.f32.gmra.mrb[0].mxu0 %v1320
    %v1322 = vpop.f32.mrb[0].mxu0
    %v1323 = vadd.f32 %v1230, %v1322
    %v1324 = vpop.f32.mrb[0].mxu0
    %1325 = vmatprep.mubr.f32.mxu0 0.0
    %v1326 = vand.u32 %v719, 4294901760
    %1327 = vmatmul.mubr.f32.gmra.mrb[0].mxu0 %v1326
    %v1328 = vpop.f32.mrb[0].mxu0
    %v1329 = vadd.f32 %v1236, %v1328
    %v1330 = vpop.f32.mrb[0].mxu0
    %1331 = vmatprep.mubr.f32.mxu0 0.0
    %v1332 = vand.u32 %v722, 4294901760
    %1333 = vmatmul.mubr.f32.gmra.mrb[0].mxu0 %v1332
    %v1334 = vpop.f32.mrb[0].mxu0
    %v1335 = vadd.f32 %v1242, %v1334
    %v1336 = vpop.f32.mrb[0].mxu0
    %1337 = vdwg.mxu0
    %v1338 = vld [vmem:[#allocation2 + $0x2] sm:$0x1]
    %v1339 = vlaneseq
    %v1340 = vshrl.u32 %v1339, 7
    %v1341 = vsub.s32 0, %v1340
    %v1342 = vrot.slane %v1338, %v1341
    %vm1343 = vcmp.eq.s32.totalorder %v1342, %v38
    %vm1344 = vcmp.eq.s32.totalorder %v1342, %v39
    %vm1345 = vcmp.eq.s32.totalorder %v1342, %v40
    %vm1346 = vcmp.eq.s32.totalorder %v1342, %v41
    %v1347 = vsel %vm1343, 1, 0
    %v1348 = vsel %vm1344, 1, 0
    %v1349 = vsel %vm1345, 1, 0
    %v1350 = vsel %vm1346, 1, 0
    %v1351 = vcvt.s32.f32 %v1347
    %v1352 = vcvt.s32.f32 %v1348
    %v1353 = vcvt.s32.f32 %v1349
    %v1354 = vcvt.s32.f32 %v1350
    %s1355 = scalar_lea.vmem [#allocation4], 64
    %v1356 = vld [vmem:[%s1355] sm:$0xff]
    %v1357 = vld [vmem:[%s1355 + $0x8] sm:$0xff]
    %v1358 = vld [vmem:[%s1355 + $0x10] sm:$0xff]
    %v1359 = vld [vmem:[%s1355 + $0x18] sm:$0xff]
    %v1361 = vsel %vm85, %v1356, 0
    %v1364 = vsel %vm85, %v1357, 0
    %v1367 = vsel %vm85, %v1358, 0
    %v1370 = vsel %vm85, %v1359, 0
    %1372 = vmatprep.subr.mxu0 0.0
    %v1373 = vand.u32 %v1351, 4294901760
    %1374 = vmatpush1.msra.mxu0 %v1373
    %1375 = vmatprep.subr.mxu0 0.0
    %v1376 = vand.u32 %v1352, 4294901760
    %1377 = vmatpush1.msra.mxu0 %v1376
    %1378 = vmatprep.subr.mxu0 0.0
    %v1379 = vand.u32 %v1353, 4294901760
    %1380 = vmatpush1.msra.mxu0 %v1379
    %1381 = vmatprep.subr.mxu0 0.0
    %v1382 = vand.u32 %v1354, 4294901760
    %1383 = vmatpush1.msra.mxu0 %v1382
    %1384 = vmatprep.subr.mxu0 0.0
    %1385 = vmatpush1.msra.mxu0 0.0
    %1386 = vmatprep.subr.mxu0 0.0
    %1387 = vmatpush1.msra.mxu0 0.0
    %1388 = vmatprep.subr.mxu0 0.0
    %1389 = vmatpush1.msra.mxu0 0.0
    %1390 = vmatprep.subr.mxu0 0.0
    %1391 = vmatpush1.msra.mxu0 0.0
    %1392 = vmatprep.subr.mxu0 0.0
    %1393 = vmatpush1.msra.mxu0 0.0
    %1394 = vmatprep.subr.mxu0 0.0
    %1395 = vmatpush1.msra.mxu0 0.0
    %1396 = vmatprep.subr.mxu0 0.0
    %1397 = vmatpush1.msra.mxu0 0.0
    %1398 = vmatprep.subr.mxu0 0.0
    %1399 = vmatpush1.msra.mxu0 0.0
    %1400 = vmatprep.subr.mxu0 0.0
    %1401 = vmatpush1.msra.mxu0 0.0
    %1402 = vmatprep.subr.mxu0 0.0
    %1403 = vmatpush1.msra.mxu0 0.0
    %1404 = vmatprep.subr.mxu0 0.0
    %1405 = vmatpush1.msra.mxu0 0.0
    %1406 = vmatprep.subr.mxu0 0.0
    %1407 = vmatpush1.msra.mxu0 0.0
    %1408 = vmatprep.subr.mxu0 0.0
    %1409 = vmatpush1.msra.mxu0 0.0
    %1410 = vmatprep.subr.mxu0 0.0
    %1411 = vmatpush1.msra.mxu0 0.0
    %1412 = vmatprep.subr.mxu0 0.0
    %1413 = vmatpush1.msra.mxu0 0.0
    %1414 = vmatprep.subr.mxu0 0.0
    %1415 = vmatpush1.msra.mxu0 0.0
    %1416 = vmatprep.subr.mxu0 0.0
    %1417 = vmatpush1.msra.mxu0 0.0
    %1418 = vmatprep.subr.mxu0 0.0
    %1419 = vmatpush1.msra.mxu0 0.0
    %1420 = vmatprep.subr.mxu0 0.0
    %1421 = vmatpush1.msra.mxu0 0.0
    %1422 = vmatprep.subr.mxu0 0.0
    %1423 = vmatpush1.msra.mxu0 0.0
    %1424 = vmatprep.subr.mxu0 0.0
    %1425 = vmatpush1.msra.mxu0 0.0
    %1426 = vmatprep.subr.mxu0 0.0
    %1427 = vmatpush1.msra.mxu0 0.0
    %1428 = vmatprep.subr.mxu0 0.0
    %1429 = vmatpush1.msra.mxu0 0.0
    %1430 = vmatprep.subr.mxu0 0.0
    %1431 = vmatpush1.msra.mxu0 0.0
    %1432 = vmatprep.subr.mxu0 0.0
    %1433 = vmatpush1.msra.mxu0 0.0
    %1434 = vmatprep.subr.mxu0 0.0
    %1435 = vmatpush1.msra.mxu0 0.0
    %1436 = vmatprep.subr.mxu0 0.0
    %1437 = vmatpush1.msra.mxu0 0.0
    %1438 = vmatprep.subr.mxu0 0.0
    %1439 = vmatpush1.msra.mxu0 0.0
    %1440 = vmatprep.mubr.f32.mxu0 0.0
    %v1441 = vand.u32 %v1361, 4294901760
    %v1442 = vsub.f32 %v1361, %v1441
    %v1443 = vand.u32 %v1442, 4294901760
    %v1444 = vsub.f32 %v1442, %v1443
    %v1445 = vand.u32 %v1444, 4294901760
    %1446 = vmatmul.mubr.f32.gmra.mrb[0].mxu0 %v1445
    %v1447 = vpop.f32.mrb[0].mxu0
    %v1448 = vadd.f32 0.0, %v1447
    %v1449 = vpop.f32.mrb[0].mxu0
    %1450 = vmatprep.mubr.f32.mxu0 0.0
    %v1451 = vand.u32 %v1364, 4294901760
    %v1452 = vsub.f32 %v1364, %v1451
    %v1453 = vand.u32 %v1452, 4294901760
    %v1454 = vsub.f32 %v1452, %v1453
    %v1455 = vand.u32 %v1454, 4294901760
    %1456 = vmatmul.mubr.f32.gmra.mrb[0].mxu0 %v1455
    %v1457 = vpop.f32.mrb[0].mxu0
    %v1458 = vadd.f32 0.0, %v1457
    %v1459 = vpop.f32.mrb[0].mxu0
    %1460 = vmatprep.mubr.f32.mxu0 0.0
    %v1461 = vand.u32 %v1367, 4294901760
    %v1462 = vsub.f32 %v1367, %v1461
    %v1463 = vand.u32 %v1462, 4294901760
    %v1464 = vsub.f32 %v1462, %v1463
    %v1465 = vand.u32 %v1464, 4294901760
    %1466 = vmatmul.mubr.f32.gmra.mrb[0].mxu0 %v1465
    %v1467 = vpop.f32.mrb[0].mxu0
    %v1468 = vadd.f32 0.0, %v1467
    %v1469 = vpop.f32.mrb[0].mxu0
    %1470 = vmatprep.mubr.f32.mxu0 0.0
    %v1471 = vand.u32 %v1370, 4294901760
    %v1472 = vsub.f32 %v1370, %v1471
    %v1473 = vand.u32 %v1472, 4294901760
    %v1474 = vsub.f32 %v1472, %v1473
    %v1475 = vand.u32 %v1474, 4294901760
    %1476 = vmatmul.mubr.f32.gmra.mrb[0].mxu0 %v1475
    %v1477 = vpop.f32.mrb[0].mxu0
    %v1478 = vadd.f32 0.0, %v1477
    %v1479 = vpop.f32.mrb[0].mxu0
    %1480 = vdwg.mxu0
    %1481 = vmatprep.subr.mxu0 0.0
    %v1482 = vand.u32 %v1351, 4294901760
    %v1483 = vsub.f32 %v1351, %v1482
    %v1484 = vand.u32 %v1483, 4294901760
    %v1485 = vsub.f32 %v1483, %v1484
    %v1486 = vand.u32 %v1485, 4294901760
    %1487 = vmatpush1.msra.mxu0 %v1486
    %1488 = vmatprep.subr.mxu0 0.0
    %v1489 = vand.u32 %v1352, 4294901760
    %v1490 = vsub.f32 %v1352, %v1489
    %v1491 = vand.u32 %v1490, 4294901760
    %v1492 = vsub.f32 %v1490, %v1491
    %v1493 = vand.u32 %v1492, 4294901760
    %1494 = vmatpush1.msra.mxu0 %v1493
    %1495 = vmatprep.subr.mxu0 0.0
    %v1496 = vand.u32 %v1353, 4294901760
    %v1497 = vsub.f32 %v1353, %v1496
    %v1498 = vand.u32 %v1497, 4294901760
    %v1499 = vsub.f32 %v1497, %v1498
    %v1500 = vand.u32 %v1499, 4294901760
    %1501 = vmatpush1.msra.mxu0 %v1500
    %1502 = vmatprep.subr.mxu0 0.0
    %v1503 = vand.u32 %v1354, 4294901760
    %v1504 = vsub.f32 %v1354, %v1503
    %v1505 = vand.u32 %v1504, 4294901760
    %v1506 = vsub.f32 %v1504, %v1505
    %v1507 = vand.u32 %v1506, 4294901760
    %1508 = vmatpush1.msra.mxu0 %v1507
    %1509 = vmatprep.subr.mxu0 0.0
    %1510 = vmatpush1.msra.mxu0 0.0
    %1511 = vmatprep.subr.mxu0 0.0
    %1512 = vmatpush1.msra.mxu0 0.0
    %1513 = vmatprep.subr.mxu0 0.0
    %1514 = vmatpush1.msra.mxu0 0.0
    %1515 = vmatprep.subr.mxu0 0.0
    %1516 = vmatpush1.msra.mxu0 0.0
    %1517 = vmatprep.subr.mxu0 0.0
    %1518 = vmatpush1.msra.mxu0 0.0
    %1519 = vmatprep.subr.mxu0 0.0
    %1520 = vmatpush1.msra.mxu0 0.0
    %1521 = vmatprep.subr.mxu0 0.0
    %1522 = vmatpush1.msra.mxu0 0.0
    %1523 = vmatprep.subr.mxu0 0.0
    %1524 = vmatpush1.msra.mxu0 0.0
    %1525 = vmatprep.subr.mxu0 0.0
    %1526 = vmatpush1.msra.mxu0 0.0
    %1527 = vmatprep.subr.mxu0 0.0
    %1528 = vmatpush1.msra.mxu0 0.0
    %1529 = vmatprep.subr.mxu0 0.0
    %1530 = vmatpush1.msra.mxu0 0.0
    %1531 = vmatprep.subr.mxu0 0.0
    %1532 = vmatpush1.msra.mxu0 0.0
    %1533 = vmatprep.subr.mxu0 0.0
    %1534 = vmatpush1.msra.mxu0 0.0
    %1535 = vmatprep.subr.mxu0 0.0
    %1536 = vmatpush1.msra.mxu0 0.0
    %1537 = vmatprep.subr.mxu0 0.0
    %1538 = vmatpush1.msra.mxu0 0.0
    %1539 = vmatprep.subr.mxu0 0.0
    %1540 = vmatpush1.msra.mxu0 0.0
    %1541 = vmatprep.subr.mxu0 0.0
    %1542 = vmatpush1.msra.mxu0 0.0
    %1543 = vmatprep.subr.mxu0 0.0
    %1544 = vmatpush1.msra.mxu0 0.0
    %1545 = vmatprep.subr.mxu0 0.0
    %1546 = vmatpush1.msra.mxu0 0.0
    %1547 = vmatprep.subr.mxu0 0.0
    %1548 = vmatpush1.msra.mxu0 0.0
    %1549 = vmatprep.subr.mxu0 0.0
    %1550 = vmatpush1.msra.mxu0 0.0
    %1551 = vmatprep.subr.mxu0 0.0
    %1552 = vmatpush1.msra.mxu0 0.0
    %1553 = vmatprep.subr.mxu0 0.0
    %1554 = vmatpush1.msra.mxu0 0.0
    %1555 = vmatprep.subr.mxu0 0.0
    %1556 = vmatpush1.msra.mxu0 0.0
    %1557 = vmatprep.subr.mxu0 0.0
    %1558 = vmatpush1.msra.mxu0 0.0
    %1559 = vmatprep.subr.mxu0 0.0
    %1560 = vmatpush1.msra.mxu0 0.0
    %1561 = vmatprep.subr.mxu0 0.0
    %1562 = vmatpush1.msra.mxu0 0.0
    %1563 = vmatprep.subr.mxu0 0.0
    %1564 = vmatpush1.msra.mxu0 0.0
    %1565 = vmatprep.mubr.f32.mxu0 0.0
    %v1566 = vand.u32 %v1361, 4294901760
    %1567 = vmatmul.mubr.f32.gmra.mrb[0].mxu0 %v1566
    %v1568 = vpop.f32.mrb[0].mxu0
    %v1569 = vadd.f32 %v1448, %v1568
    %v1570 = vpop.f32.mrb[0].mxu0
    %1571 = vmatprep.mubr.f32.mxu0 0.0
    %v1572 = vand.u32 %v1364, 4294901760
    %1573 = vmatmul.mubr.f32.gmra.mrb[0].mxu0 %v1572
    %v1574 = vpop.f32.mrb[0].mxu0
    %v1575 = vadd.f32 %v1458, %v1574
    %v1576 = vpop.f32.mrb[0].mxu0
    %1577 = vmatprep.mubr.f32.mxu0 0.0
    %v1578 = vand.u32 %v1367, 4294901760
    %1579 = vmatmul.mubr.f32.gmra.mrb[0].mxu0 %v1578
    %v1580 = vpop.f32.mrb[0].mxu0
    %v1581 = vadd.f32 %v1468, %v1580
    %v1582 = vpop.f32.mrb[0].mxu0
    %1583 = vmatprep.mubr.f32.mxu0 0.0
    %v1584 = vand.u32 %v1370, 4294901760
    %1585 = vmatmul.mubr.f32.gmra.mrb[0].mxu0 %v1584
    %v1586 = vpop.f32.mrb[0].mxu0
    %v1587 = vadd.f32 %v1478, %v1586
    %v1588 = vpop.f32.mrb[0].mxu0
    %1589 = vdwg.mxu0
    %1590 = vmatprep.subr.mxu0 0.0
    %v1591 = vand.u32 %v1351, 4294901760
    %v1592 = vsub.f32 %v1351, %v1591
    %1593 = vmatpush1.msra.mxu0 %v1592
    %1594 = vmatprep.subr.mxu0 0.0
    %v1595 = vand.u32 %v1352, 4294901760
    %v1596 = vsub.f32 %v1352, %v1595
    %1597 = vmatpush1.msra.mxu0 %v1596
    %1598 = vmatprep.subr.mxu0 0.0
    %v1599 = vand.u32 %v1353, 4294901760
    %v1600 = vsub.f32 %v1353, %v1599
    %1601 = vmatpush1.msra.mxu0 %v1600
    %1602 = vmatprep.subr.mxu0 0.0
    %v1603 = vand.u32 %v1354, 4294901760
    %v1604 = vsub.f32 %v1354, %v1603
    %1605 = vmatpush1.msra.mxu0 %v1604
    %1606 = vmatprep.subr.mxu0 0.0
    %1607 = vmatpush1.msra.mxu0 0.0
    %1608 = vmatprep.subr.mxu0 0.0
    %1609 = vmatpush1.msra.mxu0 0.0
    %1610 = vmatprep.subr.mxu0 0.0
    %1611 = vmatpush1.msra.mxu0 0.0
    %1612 = vmatprep.subr.mxu0 0.0
    %1613 = vmatpush1.msra.mxu0 0.0
    %1614 = vmatprep.subr.mxu0 0.0
    %1615 = vmatpush1.msra.mxu0 0.0
    %1616 = vmatprep.subr.mxu0 0.0
    %1617 = vmatpush1.msra.mxu0 0.0
    %1618 = vmatprep.subr.mxu0 0.0
    %1619 = vmatpush1.msra.mxu0 0.0
    %1620 = vmatprep.subr.mxu0 0.0
    %1621 = vmatpush1.msra.mxu0 0.0
    %1622 = vmatprep.subr.mxu0 0.0
    %1623 = vmatpush1.msra.mxu0 0.0
    %1624 = vmatprep.subr.mxu0 0.0
    %1625 = vmatpush1.msra.mxu0 0.0
    %1626 = vmatprep.subr.mxu0 0.0
    %1627 = vmatpush1.msra.mxu0 0.0
    %1628 = vmatprep.subr.mxu0 0.0
    %1629 = vmatpush1.msra.mxu0 0.0
    %1630 = vmatprep.subr.mxu0 0.0
    %1631 = vmatpush1.msra.mxu0 0.0
    %1632 = vmatprep.subr.mxu0 0.0
    %1633 = vmatpush1.msra.mxu0 0.0
    %1634 = vmatprep.subr.mxu0 0.0
    %1635 = vmatpush1.msra.mxu0 0.0
    %1636 = vmatprep.subr.mxu0 0.0
    %1637 = vmatpush1.msra.mxu0 0.0
    %1638 = vmatprep.subr.mxu0 0.0
    %1639 = vmatpush1.msra.mxu0 0.0
    %1640 = vmatprep.subr.mxu0 0.0
    %1641 = vmatpush1.msra.mxu0 0.0
    %1642 = vmatprep.subr.mxu0 0.0
    %1643 = vmatpush1.msra.mxu0 0.0
    %1644 = vmatprep.subr.mxu0 0.0
    %1645 = vmatpush1.msra.mxu0 0.0
    %1646 = vmatprep.subr.mxu0 0.0
    %1647 = vmatpush1.msra.mxu0 0.0
    %1648 = vmatprep.subr.mxu0 0.0
    %1649 = vmatpush1.msra.mxu0 0.0
    %1650 = vmatprep.subr.mxu0 0.0
    %1651 = vmatpush1.msra.mxu0 0.0
    %1652 = vmatprep.subr.mxu0 0.0
    %1653 = vmatpush1.msra.mxu0 0.0
    %1654 = vmatprep.subr.mxu0 0.0
    %1655 = vmatpush1.msra.mxu0 0.0
    %1656 = vmatprep.subr.mxu0 0.0
    %1657 = vmatpush1.msra.mxu0 0.0
    %1658 = vmatprep.subr.mxu0 0.0
    %1659 = vmatpush1.msra.mxu0 0.0
    %1660 = vmatprep.subr.mxu0 0.0
    %1661 = vmatpush1.msra.mxu0 0.0
    %1662 = vmatprep.mubr.f32.mxu0 0.0
    %v1663 = vand.u32 %v1361, 4294901760
    %v1664 = vsub.f32 %v1361, %v1663
    %1665 = vmatmul.mubr.f32.gmra.mrb[0].mxu0 %v1664
    %v1666 = vpop.f32.mrb[0].mxu0
    %v1667 = vadd.f32 %v1569, %v1666
    %v1668 = vpop.f32.mrb[0].mxu0
    %1669 = vmatprep.mubr.f32.mxu0 0.0
    %v1670 = vand.u32 %v1364, 4294901760
    %v1671 = vsub.f32 %v1364, %v1670
    %1672 = vmatmul.mubr.f32.gmra.mrb[0].mxu0 %v1671
    %v1673 = vpop.f32.mrb[0].mxu0
    %v1674 = vadd.f32 %v1575, %v1673
    %v1675 = vpop.f32.mrb[0].mxu0
    %1676 = vmatprep.mubr.f32.mxu0 0.0
    %v1677 = vand.u32 %v1367, 4294901760
    %v1678 = vsub.f32 %v1367, %v1677
    %1679 = vmatmul.mubr.f32.gmra.mrb[0].mxu0 %v1678
    %v1680 = vpop.f32.mrb[0].mxu0
    %v1681 = vadd.f32 %v1581, %v1680
    %v1682 = vpop.f32.mrb[0].mxu0
    %1683 = vmatprep.mubr.f32.mxu0 0.0
    %v1684 = vand.u32 %v1370, 4294901760
    %v1685 = vsub.f32 %v1370, %v1684
    %1686 = vmatmul.mubr.f32.gmra.mrb[0].mxu0 %v1685
    %v1687 = vpop.f32.mrb[0].mxu0
    %v1688 = vadd.f32 %v1587, %v1687
    %v1689 = vpop.f32.mrb[0].mxu0
    %1690 = vdwg.mxu0
    %1691 = vmatprep.subr.mxu0 0.0
    %v1692 = vand.u32 %v1351, 4294901760
    %1693 = vmatpush1.msra.mxu0 %v1692
    %1694 = vmatprep.subr.mxu0 0.0
    %v1695 = vand.u32 %v1352, 4294901760
    %1696 = vmatpush1.msra.mxu0 %v1695
    %1697 = vmatprep.subr.mxu0 0.0
    %v1698 = vand.u32 %v1353, 4294901760
    %1699 = vmatpush1.msra.mxu0 %v1698
    %1700 = vmatprep.subr.mxu0 0.0
    %v1701 = vand.u32 %v1354, 4294901760
    %1702 = vmatpush1.msra.mxu0 %v1701
    %1703 = vmatprep.subr.mxu0 0.0
    %1704 = vmatpush1.msra.mxu0 0.0
    %1705 = vmatprep.subr.mxu0 0.0
    %1706 = vmatpush1.msra.mxu0 0.0
    %1707 = vmatprep.subr.mxu0 0.0
    %1708 = vmatpush1.msra.mxu0 0.0
    %1709 = vmatprep.subr.mxu0 0.0
    %1710 = vmatpush1.msra.mxu0 0.0
    %1711 = vmatprep.subr.mxu0 0.0
    %1712 = vmatpush1.msra.mxu0 0.0
    %1713 = vmatprep.subr.mxu0 0.0
    %1714 = vmatpush1.msra.mxu0 0.0
    %1715 = vmatprep.subr.mxu0 0.0
    %1716 = vmatpush1.msra.mxu0 0.0
    %1717 = vmatprep.subr.mxu0 0.0
    %1718 = vmatpush1.msra.mxu0 0.0
    %1719 = vmatprep.subr.mxu0 0.0
    %1720 = vmatpush1.msra.mxu0 0.0
    %1721 = vmatprep.subr.mxu0 0.0
    %1722 = vmatpush1.msra.mxu0 0.0
    %1723 = vmatprep.subr.mxu0 0.0
    %1724 = vmatpush1.msra.mxu0 0.0
    %1725 = vmatprep.subr.mxu0 0.0
    %1726 = vmatpush1.msra.mxu0 0.0
    %1727 = vmatprep.subr.mxu0 0.0
    %1728 = vmatpush1.msra.mxu0 0.0
    %1729 = vmatprep.subr.mxu0 0.0
    %1730 = vmatpush1.msra.mxu0 0.0
    %1731 = vmatprep.subr.mxu0 0.0
    %1732 = vmatpush1.msra.mxu0 0.0
    %1733 = vmatprep.subr.mxu0 0.0
    %1734 = vmatpush1.msra.mxu0 0.0
    %1735 = vmatprep.subr.mxu0 0.0
    %1736 = vmatpush1.msra.mxu0 0.0
    %1737 = vmatprep.subr.mxu0 0.0
    %1738 = vmatpush1.msra.mxu0 0.0
    %1739 = vmatprep.subr.mxu0 0.0
    %1740 = vmatpush1.msra.mxu0 0.0
    %1741 = vmatprep.subr.mxu0 0.0
    %1742 = vmatpush1.msra.mxu0 0.0
    %1743 = vmatprep.subr.mxu0 0.0
    %1744 = vmatpush1.msra.mxu0 0.0
    %1745 = vmatprep.subr.mxu0 0.0
    %1746 = vmatpush1.msra.mxu0 0.0
    %1747 = vmatprep.subr.mxu0 0.0
    %1748 = vmatpush1.msra.mxu0 0.0
    %1749 = vmatprep.subr.mxu0 0.0
    %1750 = vmatpush1.msra.mxu0 0.0
    %1751 = vmatprep.subr.mxu0 0.0
    %1752 = vmatpush1.msra.mxu0 0.0
    %1753 = vmatprep.subr.mxu0 0.0
    %1754 = vmatpush1.msra.mxu0 0.0
    %1755 = vmatprep.subr.mxu0 0.0
    %1756 = vmatpush1.msra.mxu0 0.0
    %1757 = vmatprep.subr.mxu0 0.0
    %1758 = vmatpush1.msra.mxu0 0.0
    %1759 = vmatprep.mubr.f32.mxu0 0.0
    %v1760 = vand.u32 %v1361, 4294901760
    %v1761 = vsub.f32 %v1361, %v1760
    %v1762 = vand.u32 %v1761, 4294901760
    %1763 = vmatmul.mubr.f32.gmra.mrb[0].mxu0 %v1762
    %v1764 = vpop.f32.mrb[0].mxu0
    %v1765 = vadd.f32 %v1667, %v1764
    %v1766 = vpop.f32.mrb[0].mxu0
    %1767 = vmatprep.mubr.f32.mxu0 0.0
    %v1768 = vand.u32 %v1364, 4294901760
    %v1769 = vsub.f32 %v1364, %v1768
    %v1770 = vand.u32 %v1769, 4294901760
    %1771 = vmatmul.mubr.f32.gmra.mrb[0].mxu0 %v1770
    %v1772 = vpop.f32.mrb[0].mxu0
    %v1773 = vadd.f32 %v1674, %v1772
    %v1774 = vpop.f32.mrb[0].mxu0
    %1775 = vmatprep.mubr.f32.mxu0 0.0
    %v1776 = vand.u32 %v1367, 4294901760
    %v1777 = vsub.f32 %v1367, %v1776
    %v1778 = vand.u32 %v1777, 4294901760
    %1779 = vmatmul.mubr.f32.gmra.mrb[0].mxu0 %v1778
    %v1780 = vpop.f32.mrb[0].mxu0
    %v1781 = vadd.f32 %v1681, %v1780
    %v1782 = vpop.f32.mrb[0].mxu0
    %1783 = vmatprep.mubr.f32.mxu0 0.0
    %v1784 = vand.u32 %v1370, 4294901760
    %v1785 = vsub.f32 %v1370, %v1784
    %v1786 = vand.u32 %v1785, 4294901760
    %1787 = vmatmul.mubr.f32.gmra.mrb[0].mxu0 %v1786
    %v1788 = vpop.f32.mrb[0].mxu0
    %v1789 = vadd.f32 %v1688, %v1788
    %v1790 = vpop.f32.mrb[0].mxu0
    %1791 = vdwg.mxu0
    %1792 = vmatprep.subr.mxu0 0.0
    %v1793 = vand.u32 %v1351, 4294901760
    %v1794 = vsub.f32 %v1351, %v1793
    %v1795 = vand.u32 %v1794, 4294901760
    %1796 = vmatpush1.msra.mxu0 %v1795
    %1797 = vmatprep.subr.mxu0 0.0
    %v1798 = vand.u32 %v1352, 4294901760
    %v1799 = vsub.f32 %v1352, %v1798
    %v1800 = vand.u32 %v1799, 4294901760
    %1801 = vmatpush1.msra.mxu0 %v1800
    %1802 = vmatprep.subr.mxu0 0.0
    %v1803 = vand.u32 %v1353, 4294901760
    %v1804 = vsub.f32 %v1353, %v1803
    %v1805 = vand.u32 %v1804, 4294901760
    %1806 = vmatpush1.msra.mxu0 %v1805
    %1807 = vmatprep.subr.mxu0 0.0
    %v1808 = vand.u32 %v1354, 4294901760
    %v1809 = vsub.f32 %v1354, %v1808
    %v1810 = vand.u32 %v1809, 4294901760
    %1811 = vmatpush1.msra.mxu0 %v1810
    %1812 = vmatprep.subr.mxu0 0.0
    %1813 = vmatpush1.msra.mxu0 0.0
    %1814 = vmatprep.subr.mxu0 0.0
    %1815 = vmatpush1.msra.mxu0 0.0
    %1816 = vmatprep.subr.mxu0 0.0
    %1817 = vmatpush1.msra.mxu0 0.0
    %1818 = vmatprep.subr.mxu0 0.0
    %1819 = vmatpush1.msra.mxu0 0.0
    %1820 = vmatprep.subr.mxu0 0.0
    %1821 = vmatpush1.msra.mxu0 0.0
    %1822 = vmatprep.subr.mxu0 0.0
    %1823 = vmatpush1.msra.mxu0 0.0
    %1824 = vmatprep.subr.mxu0 0.0
    %1825 = vmatpush1.msra.mxu0 0.0
    %1826 = vmatprep.subr.mxu0 0.0
    %1827 = vmatpush1.msra.mxu0 0.0
    %1828 = vmatprep.subr.mxu0 0.0
    %1829 = vmatpush1.msra.mxu0 0.0
    %1830 = vmatprep.subr.mxu0 0.0
    %1831 = vmatpush1.msra.mxu0 0.0
    %1832 = vmatprep.subr.mxu0 0.0
    %1833 = vmatpush1.msra.mxu0 0.0
    %1834 = vmatprep.subr.mxu0 0.0
    %1835 = vmatpush1.msra.mxu0 0.0
    %1836 = vmatprep.subr.mxu0 0.0
    %1837 = vmatpush1.msra.mxu0 0.0
    %1838 = vmatprep.subr.mxu0 0.0
    %1839 = vmatpush1.msra.mxu0 0.0
    %1840 = vmatprep.subr.mxu0 0.0
    %1841 = vmatpush1.msra.mxu0 0.0
    %1842 = vmatprep.subr.mxu0 0.0
    %1843 = vmatpush1.msra.mxu0 0.0
    %1844 = vmatprep.subr.mxu0 0.0
    %1845 = vmatpush1.msra.mxu0 0.0
    %1846 = vmatprep.subr.mxu0 0.0
    %1847 = vmatpush1.msra.mxu0 0.0
    %1848 = vmatprep.subr.mxu0 0.0
    %1849 = vmatpush1.msra.mxu0 0.0
    %1850 = vmatprep.subr.mxu0 0.0
    %1851 = vmatpush1.msra.mxu0 0.0
    %1852 = vmatprep.subr.mxu0 0.0
    %1853 = vmatpush1.msra.mxu0 0.0
    %1854 = vmatprep.subr.mxu0 0.0
    %1855 = vmatpush1.msra.mxu0 0.0
    %1856 = vmatprep.subr.mxu0 0.0
    %1857 = vmatpush1.msra.mxu0 0.0
    %1858 = vmatprep.subr.mxu0 0.0
    %1859 = vmatpush1.msra.mxu0 0.0
    %1860 = vmatprep.subr.mxu0 0.0
    %1861 = vmatpush1.msra.mxu0 0.0
    %1862 = vmatprep.subr.mxu0 0.0
    %1863 = vmatpush1.msra.mxu0 0.0
    %1864 = vmatprep.subr.mxu0 0.0
    %1865 = vmatpush1.msra.mxu0 0.0
    %1866 = vmatprep.subr.mxu0 0.0
    %1867 = vmatpush1.msra.mxu0 0.0
    %1868 = vmatprep.mubr.f32.mxu0 0.0
    %v1869 = vand.u32 %v1361, 4294901760
    %1870 = vmatmul.mubr.f32.gmra.mrb[0].mxu0 %v1869
    %v1871 = vpop.f32.mrb[0].mxu0
    %v1872 = vadd.f32 %v1765, %v1871
    %v1873 = vpop.f32.mrb[0].mxu0
    %1874 = vmatprep.mubr.f32.mxu0 0.0
    %v1875 = vand.u32 %v1364, 4294901760
    %1876 = vmatmul.mubr.f32.gmra.mrb[0].mxu0 %v1875
    %v1877 = vpop.f32.mrb[0].mxu0
    %v1878 = vadd.f32 %v1773, %v1877
    %v1879 = vpop.f32.mrb[0].mxu0
    %1880 = vmatprep.mubr.f32.mxu0 0.0
    %v1881 = vand.u32 %v1367, 4294901760
    %1882 = vmatmul.mubr.f32.gmra.mrb[0].mxu0 %v1881
    %v1883 = vpop.f32.mrb[0].mxu0
    %v1884 = vadd.f32 %v1781, %v1883
    %v1885 = vpop.f32.mrb[0].mxu0
    %1886 = vmatprep.mubr.f32.mxu0 0.0
    %v1887 = vand.u32 %v1370, 4294901760
    %1888 = vmatmul.mubr.f32.gmra.mrb[0].mxu0 %v1887
    %v1889 = vpop.f32.mrb[0].mxu0
    %v1890 = vadd.f32 %v1789, %v1889
    %v1891 = vpop.f32.mrb[0].mxu0
    %1892 = vdwg.mxu0
    %1893 = vmatprep.subr.mxu0 0.0
    %v1894 = vand.u32 %v1351, 4294901760
    %1895 = vmatpush1.msra.mxu0 %v1894
    %1896 = vmatprep.subr.mxu0 0.0
    %v1897 = vand.u32 %v1352, 4294901760
    %1898 = vmatpush1.msra.mxu0 %v1897
    %1899 = vmatprep.subr.mxu0 0.0
    %v1900 = vand.u32 %v1353, 4294901760
    %1901 = vmatpush1.msra.mxu0 %v1900
    %1902 = vmatprep.subr.mxu0 0.0
    %v1903 = vand.u32 %v1354, 4294901760
    %1904 = vmatpush1.msra.mxu0 %v1903
    %1905 = vmatprep.subr.mxu0 0.0
    %1906 = vmatpush1.msra.mxu0 0.0
    %1907 = vmatprep.subr.mxu0 0.0
    %1908 = vmatpush1.msra.mxu0 0.0
    %1909 = vmatprep.subr.mxu0 0.0
    %1910 = vmatpush1.msra.mxu0 0.0
    %1911 = vmatprep.subr.mxu0 0.0
    %1912 = vmatpush1.msra.mxu0 0.0
    %1913 = vmatprep.subr.mxu0 0.0
    %1914 = vmatpush1.msra.mxu0 0.0
    %1915 = vmatprep.subr.mxu0 0.0
    %1916 = vmatpush1.msra.mxu0 0.0
    %1917 = vmatprep.subr.mxu0 0.0
    %1918 = vmatpush1.msra.mxu0 0.0
    %1919 = vmatprep.subr.mxu0 0.0
    %1920 = vmatpush1.msra.mxu0 0.0
    %1921 = vmatprep.subr.mxu0 0.0
    %1922 = vmatpush1.msra.mxu0 0.0
    %1923 = vmatprep.subr.mxu0 0.0
    %1924 = vmatpush1.msra.mxu0 0.0
    %1925 = vmatprep.subr.mxu0 0.0
    %1926 = vmatpush1.msra.mxu0 0.0
    %1927 = vmatprep.subr.mxu0 0.0
    %1928 = vmatpush1.msra.mxu0 0.0
    %1929 = vmatprep.subr.mxu0 0.0
    %1930 = vmatpush1.msra.mxu0 0.0
    %1931 = vmatprep.subr.mxu0 0.0
    %1932 = vmatpush1.msra.mxu0 0.0
    %1933 = vmatprep.subr.mxu0 0.0
    %1934 = vmatpush1.msra.mxu0 0.0
    %1935 = vmatprep.subr.mxu0 0.0
    %1936 = vmatpush1.msra.mxu0 0.0
    %1937 = vmatprep.subr.mxu0 0.0
    %1938 = vmatpush1.msra.mxu0 0.0
    %1939 = vmatprep.subr.mxu0 0.0
    %1940 = vmatpush1.msra.mxu0 0.0
    %1941 = vmatprep.subr.mxu0 0.0
    %1942 = vmatpush1.msra.mxu0 0.0
    %1943 = vmatprep.subr.mxu0 0.0
    %1944 = vmatpush1.msra.mxu0 0.0
    %1945 = vmatprep.subr.mxu0 0.0
    %1946 = vmatpush1.msra.mxu0 0.0
    %1947 = vmatprep.subr.mxu0 0.0
    %1948 = vmatpush1.msra.mxu0 0.0
    %1949 = vmatprep.subr.mxu0 0.0
    %1950 = vmatpush1.msra.mxu0 0.0
    %1951 = vmatprep.subr.mxu0 0.0
    %1952 = vmatpush1.msra.mxu0 0.0
    %1953 = vmatprep.subr.mxu0 0.0
    %1954 = vmatpush1.msra.mxu0 0.0
    %1955 = vmatprep.subr.mxu0 0.0
    %1956 = vmatpush1.msra.mxu0 0.0
    %1957 = vmatprep.subr.mxu0 0.0
    %1958 = vmatpush1.msra.mxu0 0.0
    %1959 = vmatprep.subr.mxu0 0.0
    %1960 = vmatpush1.msra.mxu0 0.0
    %1961 = vmatprep.mubr.f32.mxu0 0.0
    %v1962 = vand.u32 %v1361, 4294901760
    %1963 = vmatmul.mubr.f32.gmra.mrb[0].mxu0 %v1962
    %v1964 = vpop.f32.mrb[0].mxu0
    %v1965 = vadd.f32 %v1872, %v1964
    %v1966 = vpop.f32.mrb[0].mxu0
    %1967 = vmatprep.mubr.f32.mxu0 0.0
    %v1968 = vand.u32 %v1364, 4294901760
    %1969 = vmatmul.mubr.f32.gmra.mrb[0].mxu0 %v1968
    %v1970 = vpop.f32.mrb[0].mxu0
    %v1971 = vadd.f32 %v1878, %v1970
    %v1972 = vpop.f32.mrb[0].mxu0
    %1973 = vmatprep.mubr.f32.mxu0 0.0
    %v1974 = vand.u32 %v1367, 4294901760
    %1975 = vmatmul.mubr.f32.gmra.mrb[0].mxu0 %v1974
    %v1976 = vpop.f32.mrb[0].mxu0
    %v1977 = vadd.f32 %v1884, %v1976
    %v1978 = vpop.f32.mrb[0].mxu0
    %1979 = vmatprep.mubr.f32.mxu0 0.0
    %v1980 = vand.u32 %v1370, 4294901760
    %1981 = vmatmul.mubr.f32.gmra.mrb[0].mxu0 %v1980
    %v1982 = vpop.f32.mrb[0].mxu0
    %v1983 = vadd.f32 %v1890, %v1982
    %v1984 = vpop.f32.mrb[0].mxu0
    %1985 = vdwg.mxu0
    %v1986 = vadd.f32 %v1317, %v1965
    %v1987 = vadd.f32 %v1323, %v1971
    %v1988 = vadd.f32 %v1329, %v1977
    %v1989 = vadd.f32 %v1335, %v1983
    %v1990 = vld [vmem:[#allocation2 + $0x3] sm:$0x1]
    %v1991 = vlaneseq
    %v1992 = vshrl.u32 %v1991, 7
    %v1993 = vsub.s32 0, %v1992
    %v1994 = vrot.slane %v1990, %v1993
    %vm1995 = vcmp.eq.s32.totalorder %v1994, %v38
    %vm1996 = vcmp.eq.s32.totalorder %v1994, %v39
    %vm1997 = vcmp.eq.s32.totalorder %v1994, %v40
    %vm1998 = vcmp.eq.s32.totalorder %v1994, %v41
    %v1999 = vsel %vm1995, 1, 0
    %v2000 = vsel %vm1996, 1, 0
    %v2001 = vsel %vm1997, 1, 0
    %v2002 = vsel %vm1998, 1, 0
    %v2003 = vcvt.s32.f32 %v1999
    %v2004 = vcvt.s32.f32 %v2000
    %v2005 = vcvt.s32.f32 %v2001
    %v2006 = vcvt.s32.f32 %v2002
    %s2007 = scalar_lea.vmem [#allocation4], 96
    %v2008 = vld [vmem:[%s2007] sm:$0xff]
    %v2009 = vld [vmem:[%s2007 + $0x8] sm:$0xff]
    %v2010 = vld [vmem:[%s2007 + $0x10] sm:$0xff]
    %v2011 = vld [vmem:[%s2007 + $0x18] sm:$0xff]
    %v2013 = vsel %vm85, %v2008, 0
    %v2016 = vsel %vm85, %v2009, 0
    %v2019 = vsel %vm85, %v2010, 0
    %v2022 = vsel %vm85, %v2011, 0
    %2024 = vmatprep.subr.mxu0 0.0
    %v2025 = vand.u32 %v2003, 4294901760
    %2026 = vmatpush1.msra.mxu0 %v2025
    %2027 = vmatprep.subr.mxu0 0.0
    %v2028 = vand.u32 %v2004, 4294901760
    %2029 = vmatpush1.msra.mxu0 %v2028
    %2030 = vmatprep.subr.mxu0 0.0
    %v2031 = vand.u32 %v2005, 4294901760
    %2032 = vmatpush1.msra.mxu0 %v2031
    %2033 = vmatprep.subr.mxu0 0.0
    %v2034 = vand.u32 %v2006, 4294901760
    %2035 = vmatpush1.msra.mxu0 %v2034
    %2036 = vmatprep.subr.mxu0 0.0
    %2037 = vmatpush1.msra.mxu0 0.0
    %2038 = vmatprep.subr.mxu0 0.0
    %2039 = vmatpush1.msra.mxu0 0.0
    %2040 = vmatprep.subr.mxu0 0.0
    %2041 = vmatpush1.msra.mxu0 0.0
    %2042 = vmatprep.subr.mxu0 0.0
    %2043 = vmatpush1.msra.mxu0 0.0
    %2044 = vmatprep.subr.mxu0 0.0
    %2045 = vmatpush1.msra.mxu0 0.0
    %2046 = vmatprep.subr.mxu0 0.0
    %2047 = vmatpush1.msra.mxu0 0.0
    %2048 = vmatprep.subr.mxu0 0.0
    %2049 = vmatpush1.msra.mxu0 0.0
    %2050 = vmatprep.subr.mxu0 0.0
    %2051 = vmatpush1.msra.mxu0 0.0
    %2052 = vmatprep.subr.mxu0 0.0
    %2053 = vmatpush1.msra.mxu0 0.0
    %2054 = vmatprep.subr.mxu0 0.0
    %2055 = vmatpush1.msra.mxu0 0.0
    %2056 = vmatprep.subr.mxu0 0.0
    %2057 = vmatpush1.msra.mxu0 0.0
    %2058 = vmatprep.subr.mxu0 0.0
    %2059 = vmatpush1.msra.mxu0 0.0
    %2060 = vmatprep.subr.mxu0 0.0
    %2061 = vmatpush1.msra.mxu0 0.0
    %2062 = vmatprep.subr.mxu0 0.0
    %2063 = vmatpush1.msra.mxu0 0.0
    %2064 = vmatprep.subr.mxu0 0.0
    %2065 = vmatpush1.msra.mxu0 0.0
    %2066 = vmatprep.subr.mxu0 0.0
    %2067 = vmatpush1.msra.mxu0 0.0
    %2068 = vmatprep.subr.mxu0 0.0
    %2069 = vmatpush1.msra.mxu0 0.0
    %2070 = vmatprep.subr.mxu0 0.0
    %2071 = vmatpush1.msra.mxu0 0.0
    %2072 = vmatprep.subr.mxu0 0.0
    %2073 = vmatpush1.msra.mxu0 0.0
    %2074 = vmatprep.subr.mxu0 0.0
    %2075 = vmatpush1.msra.mxu0 0.0
    %2076 = vmatprep.subr.mxu0 0.0
    %2077 = vmatpush1.msra.mxu0 0.0
    %2078 = vmatprep.subr.mxu0 0.0
    %2079 = vmatpush1.msra.mxu0 0.0
    %2080 = vmatprep.subr.mxu0 0.0
    %2081 = vmatpush1.msra.mxu0 0.0
    %2082 = vmatprep.subr.mxu0 0.0
    %2083 = vmatpush1.msra.mxu0 0.0
    %2084 = vmatprep.subr.mxu0 0.0
    %2085 = vmatpush1.msra.mxu0 0.0
    %2086 = vmatprep.subr.mxu0 0.0
    %2087 = vmatpush1.msra.mxu0 0.0
    %2088 = vmatprep.subr.mxu0 0.0
    %2089 = vmatpush1.msra.mxu0 0.0
    %2090 = vmatprep.subr.mxu0 0.0
    %2091 = vmatpush1.msra.mxu0 0.0
    %2092 = vmatprep.mubr.f32.mxu0 0.0
    %v2093 = vand.u32 %v2013, 4294901760
    %v2094 = vsub.f32 %v2013, %v2093
    %v2095 = vand.u32 %v2094, 4294901760
    %v2096 = vsub.f32 %v2094, %v2095
    %v2097 = vand.u32 %v2096, 4294901760
    %2098 = vmatmul.mubr.f32.gmra.mrb[0].mxu0 %v2097
    %v2099 = vpop.f32.mrb[0].mxu0
    %v2100 = vadd.f32 0.0, %v2099
    %v2101 = vpop.f32.mrb[0].mxu0
    %2102 = vmatprep.mubr.f32.mxu0 0.0
    %v2103 = vand.u32 %v2016, 4294901760
    %v2104 = vsub.f32 %v2016, %v2103
    %v2105 = vand.u32 %v2104, 4294901760
    %v2106 = vsub.f32 %v2104, %v2105
    %v2107 = vand.u32 %v2106, 4294901760
    %2108 = vmatmul.mubr.f32.gmra.mrb[0].mxu0 %v2107
    %v2109 = vpop.f32.mrb[0].mxu0
    %v2110 = vadd.f32 0.0, %v2109
    %v2111 = vpop.f32.mrb[0].mxu0
    %2112 = vmatprep.mubr.f32.mxu0 0.0
    %v2113 = vand.u32 %v2019, 4294901760
    %v2114 = vsub.f32 %v2019, %v2113
    %v2115 = vand.u32 %v2114, 4294901760
    %v2116 = vsub.f32 %v2114, %v2115
    %v2117 = vand.u32 %v2116, 4294901760
    %2118 = vmatmul.mubr.f32.gmra.mrb[0].mxu0 %v2117
    %v2119 = vpop.f32.mrb[0].mxu0
    %v2120 = vadd.f32 0.0, %v2119
    %v2121 = vpop.f32.mrb[0].mxu0
    %2122 = vmatprep.mubr.f32.mxu0 0.0
    %v2123 = vand.u32 %v2022, 4294901760
    %v2124 = vsub.f32 %v2022, %v2123
    %v2125 = vand.u32 %v2124, 4294901760
    %v2126 = vsub.f32 %v2124, %v2125
    %v2127 = vand.u32 %v2126, 4294901760
    %2128 = vmatmul.mubr.f32.gmra.mrb[0].mxu0 %v2127
    %v2129 = vpop.f32.mrb[0].mxu0
    %v2130 = vadd.f32 0.0, %v2129
    %v2131 = vpop.f32.mrb[0].mxu0
    %2132 = vdwg.mxu0
    %2133 = vmatprep.subr.mxu0 0.0
    %v2134 = vand.u32 %v2003, 4294901760
    %v2135 = vsub.f32 %v2003, %v2134
    %v2136 = vand.u32 %v2135, 4294901760
    %v2137 = vsub.f32 %v2135, %v2136
    %v2138 = vand.u32 %v2137, 4294901760
    %2139 = vmatpush1.msra.mxu0 %v2138
    %2140 = vmatprep.subr.mxu0 0.0
    %v2141 = vand.u32 %v2004, 4294901760
    %v2142 = vsub.f32 %v2004, %v2141
    %v2143 = vand.u32 %v2142, 4294901760
    %v2144 = vsub.f32 %v2142, %v2143
    %v2145 = vand.u32 %v2144, 4294901760
    %2146 = vmatpush1.msra.mxu0 %v2145
    %2147 = vmatprep.subr.mxu0 0.0
    %v2148 = vand.u32 %v2005, 4294901760
    %v2149 = vsub.f32 %v2005, %v2148
    %v2150 = vand.u32 %v2149, 4294901760
    %v2151 = vsub.f32 %v2149, %v2150
    %v2152 = vand.u32 %v2151, 4294901760
    %2153 = vmatpush1.msra.mxu0 %v2152
    %2154 = vmatprep.subr.mxu0 0.0
    %v2155 = vand.u32 %v2006, 4294901760
    %v2156 = vsub.f32 %v2006, %v2155
    %v2157 = vand.u32 %v2156, 4294901760
    %v2158 = vsub.f32 %v2156, %v2157
    %v2159 = vand.u32 %v2158, 4294901760
    %2160 = vmatpush1.msra.mxu0 %v2159
    %2161 = vmatprep.subr.mxu0 0.0
    %2162 = vmatpush1.msra.mxu0 0.0
    %2163 = vmatprep.subr.mxu0 0.0
    %2164 = vmatpush1.msra.mxu0 0.0
    %2165 = vmatprep.subr.mxu0 0.0
    %2166 = vmatpush1.msra.mxu0 0.0
    %2167 = vmatprep.subr.mxu0 0.0
    %2168 = vmatpush1.msra.mxu0 0.0
    %2169 = vmatprep.subr.mxu0 0.0
    %2170 = vmatpush1.msra.mxu0 0.0
    %2171 = vmatprep.subr.mxu0 0.0
    %2172 = vmatpush1.msra.mxu0 0.0
    %2173 = vmatprep.subr.mxu0 0.0
    %2174 = vmatpush1.msra.mxu0 0.0
    %2175 = vmatprep.subr.mxu0 0.0
    %2176 = vmatpush1.msra.mxu0 0.0
    %2177 = vmatprep.subr.mxu0 0.0
    %2178 = vmatpush1.msra.mxu0 0.0
    %2179 = vmatprep.subr.mxu0 0.0
    %2180 = vmatpush1.msra.mxu0 0.0
    %2181 = vmatprep.subr.mxu0 0.0
    %2182 = vmatpush1.msra.mxu0 0.0
    %2183 = vmatprep.subr.mxu0 0.0
    %2184 = vmatpush1.msra.mxu0 0.0
    %2185 = vmatprep.subr.mxu0 0.0
    %2186 = vmatpush1.msra.mxu0 0.0
    %2187 = vmatprep.subr.mxu0 0.0
    %2188 = vmatpush1.msra.mxu0 0.0
    %2189 = vmatprep.subr.mxu0 0.0
    %2190 = vmatpush1.msra.mxu0 0.0
    %2191 = vmatprep.subr.mxu0 0.0
    %2192 = vmatpush1.msra.mxu0 0.0
    %2193 = vmatprep.subr.mxu0 0.0
    %2194 = vmatpush1.msra.mxu0 0.0
    %2195 = vmatprep.subr.mxu0 0.0
    %2196 = vmatpush1.msra.mxu0 0.0
    %2197 = vmatprep.subr.mxu0 0.0
    %2198 = vmatpush1.msra.mxu0 0.0
    %2199 = vmatprep.subr.mxu0 0.0
    %2200 = vmatpush1.msra.mxu0 0.0
    %2201 = vmatprep.subr.mxu0 0.0
    %2202 = vmatpush1.msra.mxu0 0.0
    %2203 = vmatprep.subr.mxu0 0.0
    %2204 = vmatpush1.msra.mxu0 0.0
    %2205 = vmatprep.subr.mxu0 0.0
    %2206 = vmatpush1.msra.mxu0 0.0
    %2207 = vmatprep.subr.mxu0 0.0
    %2208 = vmatpush1.msra.mxu0 0.0
    %2209 = vmatprep.subr.mxu0 0.0
    %2210 = vmatpush1.msra.mxu0 0.0
    %2211 = vmatprep.subr.mxu0 0.0
    %2212 = vmatpush1.msra.mxu0 0.0
    %2213 = vmatprep.subr.mxu0 0.0
    %2214 = vmatpush1.msra.mxu0 0.0
    %2215 = vmatprep.subr.mxu0 0.0
    %2216 = vmatpush1.msra.mxu0 0.0
    %2217 = vmatprep.mubr.f32.mxu0 0.0
    %v2218 = vand.u32 %v2013, 4294901760
    %2219 = vmatmul.mubr.f32.gmra.mrb[0].mxu0 %v2218
    %v2220 = vpop.f32.mrb[0].mxu0
    %v2221 = vadd.f32 %v2100, %v2220
    %v2222 = vpop.f32.mrb[0].mxu0
    %2223 = vmatprep.mubr.f32.mxu0 0.0
    %v2224 = vand.u32 %v2016, 4294901760
    %2225 = vmatmul.mubr.f32.gmra.mrb[0].mxu0 %v2224
    %v2226 = vpop.f32.mrb[0].mxu0
    %v2227 = vadd.f32 %v2110, %v2226
    %v2228 = vpop.f32.mrb[0].mxu0
    %2229 = vmatprep.mubr.f32.mxu0 0.0
    %v2230 = vand.u32 %v2019, 4294901760
    %2231 = vmatmul.mubr.f32.gmra.mrb[0].mxu0 %v2230
    %v2232 = vpop.f32.mrb[0].mxu0
    %v2233 = vadd.f32 %v2120, %v2232
    %v2234 = vpop.f32.mrb[0].mxu0
    %2235 = vmatprep.mubr.f32.mxu0 0.0
    %v2236 = vand.u32 %v2022, 4294901760
    %2237 = vmatmul.mubr.f32.gmra.mrb[0].mxu0 %v2236
    %v2238 = vpop.f32.mrb[0].mxu0
    %v2239 = vadd.f32 %v2130, %v2238
    %v2240 = vpop.f32.mrb[0].mxu0
    %2241 = vdwg.mxu0
    %2242 = vmatprep.subr.mxu0 0.0
    %v2243 = vand.u32 %v2003, 4294901760
    %v2244 = vsub.f32 %v2003, %v2243
    %2245 = vmatpush1.msra.mxu0 %v2244
    %2246 = vmatprep.subr.mxu0 0.0
    %v2247 = vand.u32 %v2004, 4294901760
    %v2248 = vsub.f32 %v2004, %v2247
    %2249 = vmatpush1.msra.mxu0 %v2248
    %2250 = vmatprep.subr.mxu0 0.0
    %v2251 = vand.u32 %v2005, 4294901760
    %v2252 = vsub.f32 %v2005, %v2251
    %2253 = vmatpush1.msra.mxu0 %v2252
    %2254 = vmatprep.subr.mxu0 0.0
    %v2255 = vand.u32 %v2006, 4294901760
    %v2256 = vsub.f32 %v2006, %v2255
    %2257 = vmatpush1.msra.mxu0 %v2256
    %2258 = vmatprep.subr.mxu0 0.0
    %2259 = vmatpush1.msra.mxu0 0.0
    %2260 = vmatprep.subr.mxu0 0.0
    %2261 = vmatpush1.msra.mxu0 0.0
    %2262 = vmatprep.subr.mxu0 0.0
    %2263 = vmatpush1.msra.mxu0 0.0
    %2264 = vmatprep.subr.mxu0 0.0
    %2265 = vmatpush1.msra.mxu0 0.0
    %2266 = vmatprep.subr.mxu0 0.0
    %2267 = vmatpush1.msra.mxu0 0.0
    %2268 = vmatprep.subr.mxu0 0.0
    %2269 = vmatpush1.msra.mxu0 0.0
    %2270 = vmatprep.subr.mxu0 0.0
    %2271 = vmatpush1.msra.mxu0 0.0
    %2272 = vmatprep.subr.mxu0 0.0
    %2273 = vmatpush1.msra.mxu0 0.0
    %2274 = vmatprep.subr.mxu0 0.0
    %2275 = vmatpush1.msra.mxu0 0.0
    %2276 = vmatprep.subr.mxu0 0.0
    %2277 = vmatpush1.msra.mxu0 0.0
    %2278 = vmatprep.subr.mxu0 0.0
    %2279 = vmatpush1.msra.mxu0 0.0
    %2280 = vmatprep.subr.mxu0 0.0
    %2281 = vmatpush1.msra.mxu0 0.0
    %2282 = vmatprep.subr.mxu0 0.0
    %2283 = vmatpush1.msra.mxu0 0.0
    %2284 = vmatprep.subr.mxu0 0.0
    %2285 = vmatpush1.msra.mxu0 0.0
    %2286 = vmatprep.subr.mxu0 0.0
    %2287 = vmatpush1.msra.mxu0 0.0
    %2288 = vmatprep.subr.mxu0 0.0
    %2289 = vmatpush1.msra.mxu0 0.0
    %2290 = vmatprep.subr.mxu0 0.0
    %2291 = vmatpush1.msra.mxu0 0.0
    %2292 = vmatprep.subr.mxu0 0.0
    %2293 = vmatpush1.msra.mxu0 0.0
    %2294 = vmatprep.subr.mxu0 0.0
    %2295 = vmatpush1.msra.mxu0 0.0
    %2296 = vmatprep.subr.mxu0 0.0
    %2297 = vmatpush1.msra.mxu0 0.0
    %2298 = vmatprep.subr.mxu0 0.0
    %2299 = vmatpush1.msra.mxu0 0.0
    %2300 = vmatprep.subr.mxu0 0.0
    %2301 = vmatpush1.msra.mxu0 0.0
    %2302 = vmatprep.subr.mxu0 0.0
    %2303 = vmatpush1.msra.mxu0 0.0
    %2304 = vmatprep.subr.mxu0 0.0
    %2305 = vmatpush1.msra.mxu0 0.0
    %2306 = vmatprep.subr.mxu0 0.0
    %2307 = vmatpush1.msra.mxu0 0.0
    %2308 = vmatprep.subr.mxu0 0.0
    %2309 = vmatpush1.msra.mxu0 0.0
    %2310 = vmatprep.subr.mxu0 0.0
    %2311 = vmatpush1.msra.mxu0 0.0
    %2312 = vmatprep.subr.mxu0 0.0
    %2313 = vmatpush1.msra.mxu0 0.0
    %2314 = vmatprep.mubr.f32.mxu0 0.0
    %v2315 = vand.u32 %v2013, 4294901760
    %v2316 = vsub.f32 %v2013, %v2315
    %2317 = vmatmul.mubr.f32.gmra.mrb[0].mxu0 %v2316
    %v2318 = vpop.f32.mrb[0].mxu0
    %v2319 = vadd.f32 %v2221, %v2318
    %v2320 = vpop.f32.mrb[0].mxu0
    %2321 = vmatprep.mubr.f32.mxu0 0.0
    %v2322 = vand.u32 %v2016, 4294901760
    %v2323 = vsub.f32 %v2016, %v2322
    %2324 = vmatmul.mubr.f32.gmra.mrb[0].mxu0 %v2323
    %v2325 = vpop.f32.mrb[0].mxu0
    %v2326 = vadd.f32 %v2227, %v2325
    %v2327 = vpop.f32.mrb[0].mxu0
    %2328 = vmatprep.mubr.f32.mxu0 0.0
    %v2329 = vand.u32 %v2019, 4294901760
    %v2330 = vsub.f32 %v2019, %v2329
    %2331 = vmatmul.mubr.f32.gmra.mrb[0].mxu0 %v2330
    %v2332 = vpop.f32.mrb[0].mxu0
    %v2333 = vadd.f32 %v2233, %v2332
    %v2334 = vpop.f32.mrb[0].mxu0
    %2335 = vmatprep.mubr.f32.mxu0 0.0
    %v2336 = vand.u32 %v2022, 4294901760
    %v2337 = vsub.f32 %v2022, %v2336
    %2338 = vmatmul.mubr.f32.gmra.mrb[0].mxu0 %v2337
    %v2339 = vpop.f32.mrb[0].mxu0
    %v2340 = vadd.f32 %v2239, %v2339
    %v2341 = vpop.f32.mrb[0].mxu0
    %2342 = vdwg.mxu0
    %2343 = vmatprep.subr.mxu0 0.0
    %v2344 = vand.u32 %v2003, 4294901760
    %2345 = vmatpush1.msra.mxu0 %v2344
    %2346 = vmatprep.subr.mxu0 0.0
    %v2347 = vand.u32 %v2004, 4294901760
    %2348 = vmatpush1.msra.mxu0 %v2347
    %2349 = vmatprep.subr.mxu0 0.0
    %v2350 = vand.u32 %v2005, 4294901760
    %2351 = vmatpush1.msra.mxu0 %v2350
    %2352 = vmatprep.subr.mxu0 0.0
    %v2353 = vand.u32 %v2006, 4294901760
    %2354 = vmatpush1.msra.mxu0 %v2353
    %2355 = vmatprep.subr.mxu0 0.0
    %2356 = vmatpush1.msra.mxu0 0.0
    %2357 = vmatprep.subr.mxu0 0.0
    %2358 = vmatpush1.msra.mxu0 0.0
    %2359 = vmatprep.subr.mxu0 0.0
    %2360 = vmatpush1.msra.mxu0 0.0
    %2361 = vmatprep.subr.mxu0 0.0
    %2362 = vmatpush1.msra.mxu0 0.0
    %2363 = vmatprep.subr.mxu0 0.0
    %2364 = vmatpush1.msra.mxu0 0.0
    %2365 = vmatprep.subr.mxu0 0.0
    %2366 = vmatpush1.msra.mxu0 0.0
    %2367 = vmatprep.subr.mxu0 0.0
    %2368 = vmatpush1.msra.mxu0 0.0
    %2369 = vmatprep.subr.mxu0 0.0
    %2370 = vmatpush1.msra.mxu0 0.0
    %2371 = vmatprep.subr.mxu0 0.0
    %2372 = vmatpush1.msra.mxu0 0.0
    %2373 = vmatprep.subr.mxu0 0.0
    %2374 = vmatpush1.msra.mxu0 0.0
    %2375 = vmatprep.subr.mxu0 0.0
    %2376 = vmatpush1.msra.mxu0 0.0
    %2377 = vmatprep.subr.mxu0 0.0
    %2378 = vmatpush1.msra.mxu0 0.0
    %2379 = vmatprep.subr.mxu0 0.0
    %2380 = vmatpush1.msra.mxu0 0.0
    %2381 = vmatprep.subr.mxu0 0.0
    %2382 = vmatpush1.msra.mxu0 0.0
    %2383 = vmatprep.subr.mxu0 0.0
    %2384 = vmatpush1.msra.mxu0 0.0
    %2385 = vmatprep.subr.mxu0 0.0
    %2386 = vmatpush1.msra.mxu0 0.0
    %2387 = vmatprep.subr.mxu0 0.0
    %2388 = vmatpush1.msra.mxu0 0.0
    %2389 = vmatprep.subr.mxu0 0.0
    %2390 = vmatpush1.msra.mxu0 0.0
    %2391 = vmatprep.subr.mxu0 0.0
    %2392 = vmatpush1.msra.mxu0 0.0
    %2393 = vmatprep.subr.mxu0 0.0
    %2394 = vmatpush1.msra.mxu0 0.0
    %2395 = vmatprep.subr.mxu0 0.0
    %2396 = vmatpush1.msra.mxu0 0.0
    %2397 = vmatprep.subr.mxu0 0.0
    %2398 = vmatpush1.msra.mxu0 0.0
    %2399 = vmatprep.subr.mxu0 0.0
    %2400 = vmatpush1.msra.mxu0 0.0
    %2401 = vmatprep.subr.mxu0 0.0
    %2402 = vmatpush1.msra.mxu0 0.0
    %2403 = vmatprep.subr.mxu0 0.0
    %2404 = vmatpush1.msra.mxu0 0.0
    %2405 = vmatprep.subr.mxu0 0.0
    %2406 = vmatpush1.msra.mxu0 0.0
    %2407 = vmatprep.subr.mxu0 0.0
    %2408 = vmatpush1.msra.mxu0 0.0
    %2409 = vmatprep.subr.mxu0 0.0
    %2410 = vmatpush1.msra.mxu0 0.0
    %2411 = vmatprep.mubr.f32.mxu0 0.0
    %v2412 = vand.u32 %v2013, 4294901760
    %v2413 = vsub.f32 %v2013, %v2412
    %v2414 = vand.u32 %v2413, 4294901760
    %2415 = vmatmul.mubr.f32.gmra.mrb[0].mxu0 %v2414
    %v2416 = vpop.f32.mrb[0].mxu0
    %v2417 = vadd.f32 %v2319, %v2416
    %v2418 = vpop.f32.mrb[0].mxu0
    %2419 = vmatprep.mubr.f32.mxu0 0.0
    %v2420 = vand.u32 %v2016, 4294901760
    %v2421 = vsub.f32 %v2016, %v2420
    %v2422 = vand.u32 %v2421, 4294901760
    %2423 = vmatmul.mubr.f32.gmra.mrb[0].mxu0 %v2422
    %v2424 = vpop.f32.mrb[0].mxu0
    %v2425 = vadd.f32 %v2326, %v2424
    %v2426 = vpop.f32.mrb[0].mxu0
    %2427 = vmatprep.mubr.f32.mxu0 0.0
    %v2428 = vand.u32 %v2019, 4294901760
    %v2429 = vsub.f32 %v2019, %v2428
    %v2430 = vand.u32 %v2429, 4294901760
    %2431 = vmatmul.mubr.f32.gmra.mrb[0].mxu0 %v2430
    %v2432 = vpop.f32.mrb[0].mxu0
    %v2433 = vadd.f32 %v2333, %v2432
    %v2434 = vpop.f32.mrb[0].mxu0
    %2435 = vmatprep.mubr.f32.mxu0 0.0
    %v2436 = vand.u32 %v2022, 4294901760
    %v2437 = vsub.f32 %v2022, %v2436
    %v2438 = vand.u32 %v2437, 4294901760
    %2439 = vmatmul.mubr.f32.gmra.mrb[0].mxu0 %v2438
    %v2440 = vpop.f32.mrb[0].mxu0
    %v2441 = vadd.f32 %v2340, %v2440
    %v2442 = vpop.f32.mrb[0].mxu0
    %2443 = vdwg.mxu0
    %2444 = vmatprep.subr.mxu0 0.0
    %v2445 = vand.u32 %v2003, 4294901760
    %v2446 = vsub.f32 %v2003, %v2445
    %v2447 = vand.u32 %v2446, 4294901760
    %2448 = vmatpush1.msra.mxu0 %v2447
    %2449 = vmatprep.subr.mxu0 0.0
    %v2450 = vand.u32 %v2004, 4294901760
    %v2451 = vsub.f32 %v2004, %v2450
    %v2452 = vand.u32 %v2451, 4294901760
    %2453 = vmatpush1.msra.mxu0 %v2452
    %2454 = vmatprep.subr.mxu0 0.0
    %v2455 = vand.u32 %v2005, 4294901760
    %v2456 = vsub.f32 %v2005, %v2455
    %v2457 = vand.u32 %v2456, 4294901760
    %2458 = vmatpush1.msra.mxu0 %v2457
    %2459 = vmatprep.subr.mxu0 0.0
    %v2460 = vand.u32 %v2006, 4294901760
    %v2461 = vsub.f32 %v2006, %v2460
    %v2462 = vand.u32 %v2461, 4294901760
    %2463 = vmatpush1.msra.mxu0 %v2462
    %2464 = vmatprep.subr.mxu0 0.0
    %2465 = vmatpush1.msra.mxu0 0.0
    %2466 = vmatprep.subr.mxu0 0.0
    %2467 = vmatpush1.msra.mxu0 0.0
    %2468 = vmatprep.subr.mxu0 0.0
    %2469 = vmatpush1.msra.mxu0 0.0
    %2470 = vmatprep.subr.mxu0 0.0
    %2471 = vmatpush1.msra.mxu0 0.0
    %2472 = vmatprep.subr.mxu0 0.0
    %2473 = vmatpush1.msra.mxu0 0.0
    %2474 = vmatprep.subr.mxu0 0.0
    %2475 = vmatpush1.msra.mxu0 0.0
    %2476 = vmatprep.subr.mxu0 0.0
    %2477 = vmatpush1.msra.mxu0 0.0
    %2478 = vmatprep.subr.mxu0 0.0
    %2479 = vmatpush1.msra.mxu0 0.0
    %2480 = vmatprep.subr.mxu0 0.0
    %2481 = vmatpush1.msra.mxu0 0.0
    %2482 = vmatprep.subr.mxu0 0.0
    %2483 = vmatpush1.msra.mxu0 0.0
    %2484 = vmatprep.subr.mxu0 0.0
    %2485 = vmatpush1.msra.mxu0 0.0
    %2486 = vmatprep.subr.mxu0 0.0
    %2487 = vmatpush1.msra.mxu0 0.0
    %2488 = vmatprep.subr.mxu0 0.0
    %2489 = vmatpush1.msra.mxu0 0.0
    %2490 = vmatprep.subr.mxu0 0.0
    %2491 = vmatpush1.msra.mxu0 0.0
    %2492 = vmatprep.subr.mxu0 0.0
    %2493 = vmatpush1.msra.mxu0 0.0
    %2494 = vmatprep.subr.mxu0 0.0
    %2495 = vmatpush1.msra.mxu0 0.0
    %2496 = vmatprep.subr.mxu0 0.0
    %2497 = vmatpush1.msra.mxu0 0.0
    %2498 = vmatprep.subr.mxu0 0.0
    %2499 = vmatpush1.msra.mxu0 0.0
    %2500 = vmatprep.subr.mxu0 0.0
    %2501 = vmatpush1.msra.mxu0 0.0
    %2502 = vmatprep.subr.mxu0 0.0
    %2503 = vmatpush1.msra.mxu0 0.0
    %2504 = vmatprep.subr.mxu0 0.0
    %2505 = vmatpush1.msra.mxu0 0.0
    %2506 = vmatprep.subr.mxu0 0.0
    %2507 = vmatpush1.msra.mxu0 0.0
    %2508 = vmatprep.subr.mxu0 0.0
    %2509 = vmatpush1.msra.mxu0 0.0
    %2510 = vmatprep.subr.mxu0 0.0
    %2511 = vmatpush1.msra.mxu0 0.0
    %2512 = vmatprep.subr.mxu0 0.0
    %2513 = vmatpush1.msra.mxu0 0.0
    %2514 = vmatprep.subr.mxu0 0.0
    %2515 = vmatpush1.msra.mxu0 0.0
    %2516 = vmatprep.subr.mxu0 0.0
    %2517 = vmatpush1.msra.mxu0 0.0
    %2518 = vmatprep.subr.mxu0 0.0
    %2519 = vmatpush1.msra.mxu0 0.0
    %2520 = vmatprep.mubr.f32.mxu0 0.0
    %v2521 = vand.u32 %v2013, 4294901760
    %2522 = vmatmul.mubr.f32.gmra.mrb[0].mxu0 %v2521
    %v2523 = vpop.f32.mrb[0].mxu0
    %v2524 = vadd.f32 %v2417, %v2523
    %v2525 = vpop.f32.mrb[0].mxu0
    %2526 = vmatprep.mubr.f32.mxu0 0.0
    %v2527 = vand.u32 %v2016, 4294901760
    %2528 = vmatmul.mubr.f32.gmra.mrb[0].mxu0 %v2527
    %v2529 = vpop.f32.mrb[0].mxu0
    %v2530 = vadd.f32 %v2425, %v2529
    %v2531 = vpop.f32.mrb[0].mxu0
    %2532 = vmatprep.mubr.f32.mxu0 0.0
    %v2533 = vand.u32 %v2019, 4294901760
    %2534 = vmatmul.mubr.f32.gmra.mrb[0].mxu0 %v2533
    %v2535 = vpop.f32.mrb[0].mxu0
    %v2536 = vadd.f32 %v2433, %v2535
    %v2537 = vpop.f32.mrb[0].mxu0
    %2538 = vmatprep.mubr.f32.mxu0 0.0
    %v2539 = vand.u32 %v2022, 4294901760
    %2540 = vmatmul.mubr.f32.gmra.mrb[0].mxu0 %v2539
    %v2541 = vpop.f32.mrb[0].mxu0
    %v2542 = vadd.f32 %v2441, %v2541
    %v2543 = vpop.f32.mrb[0].mxu0
    %2544 = vdwg.mxu0
    %2545 = vmatprep.subr.mxu0 0.0
    %v2546 = vand.u32 %v2003, 4294901760
    %2547 = vmatpush1.msra.mxu0 %v2546
    %2548 = vmatprep.subr.mxu0 0.0
    %v2549 = vand.u32 %v2004, 4294901760
    %2550 = vmatpush1.msra.mxu0 %v2549
    %2551 = vmatprep.subr.mxu0 0.0
    %v2552 = vand.u32 %v2005, 4294901760
    %2553 = vmatpush1.msra.mxu0 %v2552
    %2554 = vmatprep.subr.mxu0 0.0
    %v2555 = vand.u32 %v2006, 4294901760
    %2556 = vmatpush1.msra.mxu0 %v2555
    %2557 = vmatprep.subr.mxu0 0.0
    %2558 = vmatpush1.msra.mxu0 0.0
    %2559 = vmatprep.subr.mxu0 0.0
    %2560 = vmatpush1.msra.mxu0 0.0
    %2561 = vmatprep.subr.mxu0 0.0
    %2562 = vmatpush1.msra.mxu0 0.0
    %2563 = vmatprep.subr.mxu0 0.0
    %2564 = vmatpush1.msra.mxu0 0.0
    %2565 = vmatprep.subr.mxu0 0.0
    %2566 = vmatpush1.msra.mxu0 0.0
    %2567 = vmatprep.subr.mxu0 0.0
    %2568 = vmatpush1.msra.mxu0 0.0
    %2569 = vmatprep.subr.mxu0 0.0
    %2570 = vmatpush1.msra.mxu0 0.0
    %2571 = vmatprep.subr.mxu0 0.0
    %2572 = vmatpush1.msra.mxu0 0.0
    %2573 = vmatprep.subr.mxu0 0.0
    %2574 = vmatpush1.msra.mxu0 0.0
    %2575 = vmatprep.subr.mxu0 0.0
    %2576 = vmatpush1.msra.mxu0 0.0
    %2577 = vmatprep.subr.mxu0 0.0
    %2578 = vmatpush1.msra.mxu0 0.0
    %2579 = vmatprep.subr.mxu0 0.0
    %2580 = vmatpush1.msra.mxu0 0.0
    %2581 = vmatprep.subr.mxu0 0.0
    %2582 = vmatpush1.msra.mxu0 0.0
    %2583 = vmatprep.subr.mxu0 0.0
    %2584 = vmatpush1.msra.mxu0 0.0
    %2585 = vmatprep.subr.mxu0 0.0
    %2586 = vmatpush1.msra.mxu0 0.0
    %2587 = vmatprep.subr.mxu0 0.0
    %2588 = vmatpush1.msra.mxu0 0.0
    %2589 = vmatprep.subr.mxu0 0.0
    %2590 = vmatpush1.msra.mxu0 0.0
    %2591 = vmatprep.subr.mxu0 0.0
    %2592 = vmatpush1.msra.mxu0 0.0
    %2593 = vmatprep.subr.mxu0 0.0
    %2594 = vmatpush1.msra.mxu0 0.0
    %2595 = vmatprep.subr.mxu0 0.0
    %2596 = vmatpush1.msra.mxu0 0.0
    %2597 = vmatprep.subr.mxu0 0.0
    %2598 = vmatpush1.msra.mxu0 0.0
    %2599 = vmatprep.subr.mxu0 0.0
    %2600 = vmatpush1.msra.mxu0 0.0
    %2601 = vmatprep.subr.mxu0 0.0
    %2602 = vmatpush1.msra.mxu0 0.0
    %2603 = vmatprep.subr.mxu0 0.0
    %2604 = vmatpush1.msra.mxu0 0.0
    %2605 = vmatprep.subr.mxu0 0.0
    %2606 = vmatpush1.msra.mxu0 0.0
    %2607 = vmatprep.subr.mxu0 0.0
    %2608 = vmatpush1.msra.mxu0 0.0
    %2609 = vmatprep.subr.mxu0 0.0
    %2610 = vmatpush1.msra.mxu0 0.0
    %2611 = vmatprep.subr.mxu0 0.0
    %2612 = vmatpush1.msra.mxu0 0.0
    %2613 = vmatprep.mubr.f32.mxu0 0.0
    %v2614 = vand.u32 %v2013, 4294901760
    %2615 = vmatmul.mubr.f32.gmra.mrb[0].mxu0 %v2614
    %v2616 = vpop.f32.mrb[0].mxu0
    %v2617 = vadd.f32 %v2524, %v2616
    %v2618 = vpop.f32.mrb[0].mxu0
    %2619 = vmatprep.mubr.f32.mxu0 0.0
    %v2620 = vand.u32 %v2016, 4294901760
    %2621 = vmatmul.mubr.f32.gmra.mrb[0].mxu0 %v2620
    %v2622 = vpop.f32.mrb[0].mxu0
    %v2623 = vadd.f32 %v2530, %v2622
    %v2624 = vpop.f32.mrb[0].mxu0
    %2625 = vmatprep.mubr.f32.mxu0 0.0
    %v2626 = vand.u32 %v2019, 4294901760
    %2627 = vmatmul.mubr.f32.gmra.mrb[0].mxu0 %v2626
    %v2628 = vpop.f32.mrb[0].mxu0
    %v2629 = vadd.f32 %v2536, %v2628
    %v2630 = vpop.f32.mrb[0].mxu0
    %2631 = vmatprep.mubr.f32.mxu0 0.0
    %v2632 = vand.u32 %v2022, 4294901760
    %2633 = vmatmul.mubr.f32.gmra.mrb[0].mxu0 %v2632
    %v2634 = vpop.f32.mrb[0].mxu0
    %v2635 = vadd.f32 %v2542, %v2634
    %v2636 = vpop.f32.mrb[0].mxu0
    %2637 = vdwg.mxu0
    %v2638 = vadd.f32 %v1986, %v2617
    %v2639 = vadd.f32 %v1987, %v2623
    %v2640 = vadd.f32 %v1988, %v2629
    %v2641 = vadd.f32 %v1989, %v2635
    %v2642 = vld [vmem:[#allocation2 + $0x4] sm:$0x1]
    %v2643 = vlaneseq
    %v2644 = vshrl.u32 %v2643, 7
    %v2645 = vsub.s32 0, %v2644
    %v2646 = vrot.slane %v2642, %v2645
    %vm2647 = vcmp.eq.s32.totalorder %v2646, %v38
    %vm2648 = vcmp.eq.s32.totalorder %v2646, %v39
    %vm2649 = vcmp.eq.s32.totalorder %v2646, %v40
    %vm2650 = vcmp.eq.s32.totalorder %v2646, %v41
    %v2651 = vsel %vm2647, 1, 0
    %v2652 = vsel %vm2648, 1, 0
    %v2653 = vsel %vm2649, 1, 0
    %v2654 = vsel %vm2650, 1, 0
    %v2655 = vcvt.s32.f32 %v2651
    %v2656 = vcvt.s32.f32 %v2652
    %v2657 = vcvt.s32.f32 %v2653
    %v2658 = vcvt.s32.f32 %v2654
    %s2659 = scalar_lea.vmem [#allocation4], 128
    %v2660 = vld [vmem:[%s2659] sm:$0xff]
    %v2661 = vld [vmem:[%s2659 + $0x8] sm:$0xff]
    %v2662 = vld [vmem:[%s2659 + $0x10] sm:$0xff]
    %v2663 = vld [vmem:[%s2659 + $0x18] sm:$0xff]
    %v2665 = vsel %vm85, %v2660, 0
    %v2668 = vsel %vm85, %v2661, 0
    %v2671 = vsel %vm85, %v2662, 0
    %v2674 = vsel %vm85, %v2663, 0
    %2676 = vmatprep.subr.mxu0 0.0
    %v2677 = vand.u32 %v2655, 4294901760
    %2678 = vmatpush1.msra.mxu0 %v2677
    %2679 = vmatprep.subr.mxu0 0.0
    %v2680 = vand.u32 %v2656, 4294901760
    %2681 = vmatpush1.msra.mxu0 %v2680
    %2682 = vmatprep.subr.mxu0 0.0
    %v2683 = vand.u32 %v2657, 4294901760
    %2684 = vmatpush1.msra.mxu0 %v2683
    %2685 = vmatprep.subr.mxu0 0.0
    %v2686 = vand.u32 %v2658, 4294901760
    %2687 = vmatpush1.msra.mxu0 %v2686
    %2688 = vmatprep.subr.mxu0 0.0
    %2689 = vmatpush1.msra.mxu0 0.0
    %2690 = vmatprep.subr.mxu0 0.0
    %2691 = vmatpush1.msra.mxu0 0.0
    %2692 = vmatprep.subr.mxu0 0.0
    %2693 = vmatpush1.msra.mxu0 0.0
    %2694 = vmatprep.subr.mxu0 0.0
    %2695 = vmatpush1.msra.mxu0 0.0
    %2696 = vmatprep.subr.mxu0 0.0
    %2697 = vmatpush1.msra.mxu0 0.0
    %2698 = vmatprep.subr.mxu0 0.0
    %2699 = vmatpush1.msra.mxu0 0.0
    %2700 = vmatprep.subr.mxu0 0.0
    %2701 = vmatpush1.msra.mxu0 0.0
    %2702 = vmatprep.subr.mxu0 0.0
    %2703 = vmatpush1.msra.mxu0 0.0
    %2704 = vmatprep.subr.mxu0 0.0
    %2705 = vmatpush1.msra.mxu0 0.0
    %2706 = vmatprep.subr.mxu0 0.0
    %2707 = vmatpush1.msra.mxu0 0.0
    %2708 = vmatprep.subr.mxu0 0.0
    %2709 = vmatpush1.msra.mxu0 0.0
    %2710 = vmatprep.subr.mxu0 0.0
    %2711 = vmatpush1.msra.mxu0 0.0
    %2712 = vmatprep.subr.mxu0 0.0
    %2713 = vmatpush1.msra.mxu0 0.0
    %2714 = vmatprep.subr.mxu0 0.0
    %2715 = vmatpush1.msra.mxu0 0.0
    %2716 = vmatprep.subr.mxu0 0.0
    %2717 = vmatpush1.msra.mxu0 0.0
    %2718 = vmatprep.subr.mxu0 0.0
    %2719 = vmatpush1.msra.mxu0 0.0
    %2720 = vmatprep.subr.mxu0 0.0
    %2721 = vmatpush1.msra.mxu0 0.0
    %2722 = vmatprep.subr.mxu0 0.0
    %2723 = vmatpush1.msra.mxu0 0.0
    %2724 = vmatprep.subr.mxu0 0.0
    %2725 = vmatpush1.msra.mxu0 0.0
    %2726 = vmatprep.subr.mxu0 0.0
    %2727 = vmatpush1.msra.mxu0 0.0
    %2728 = vmatprep.subr.mxu0 0.0
    %2729 = vmatpush1.msra.mxu0 0.0
    %2730 = vmatprep.subr.mxu0 0.0
    %2731 = vmatpush1.msra.mxu0 0.0
    %2732 = vmatprep.subr.mxu0 0.0
    %2733 = vmatpush1.msra.mxu0 0.0
    %2734 = vmatprep.subr.mxu0 0.0
    %2735 = vmatpush1.msra.mxu0 0.0
    %2736 = vmatprep.subr.mxu0 0.0
    %2737 = vmatpush1.msra.mxu0 0.0
    %2738 = vmatprep.subr.mxu0 0.0
    %2739 = vmatpush1.msra.mxu0 0.0
    %2740 = vmatprep.subr.mxu0 0.0
    %2741 = vmatpush1.msra.mxu0 0.0
    %2742 = vmatprep.subr.mxu0 0.0
    %2743 = vmatpush1.msra.mxu0 0.0
    %2744 = vmatprep.mubr.f32.mxu0 0.0
    %v2745 = vand.u32 %v2665, 4294901760
    %v2746 = vsub.f32 %v2665, %v2745
    %v2747 = vand.u32 %v2746, 4294901760
    %v2748 = vsub.f32 %v2746, %v2747
    %v2749 = vand.u32 %v2748, 4294901760
    %2750 = vmatmul.mubr.f32.gmra.mrb[0].mxu0 %v2749
    %v2751 = vpop.f32.mrb[0].mxu0
    %v2752 = vadd.f32 0.0, %v2751
    %v2753 = vpop.f32.mrb[0].mxu0
    %2754 = vmatprep.mubr.f32.mxu0 0.0
    %v2755 = vand.u32 %v2668, 4294901760
    %v2756 = vsub.f32 %v2668, %v2755
    %v2757 = vand.u32 %v2756, 4294901760
    %v2758 = vsub.f32 %v2756, %v2757
    %v2759 = vand.u32 %v2758, 4294901760
    %2760 = vmatmul.mubr.f32.gmra.mrb[0].mxu0 %v2759
    %v2761 = vpop.f32.mrb[0].mxu0
    %v2762 = vadd.f32 0.0, %v2761
    %v2763 = vpop.f32.mrb[0].mxu0
    %2764 = vmatprep.mubr.f32.mxu0 0.0
    %v2765 = vand.u32 %v2671, 4294901760
    %v2766 = vsub.f32 %v2671, %v2765
    %v2767 = vand.u32 %v2766, 4294901760
    %v2768 = vsub.f32 %v2766, %v2767
    %v2769 = vand.u32 %v2768, 4294901760
    %2770 = vmatmul.mubr.f32.gmra.mrb[0].mxu0 %v2769
    %v2771 = vpop.f32.mrb[0].mxu0
    %v2772 = vadd.f32 0.0, %v2771
    %v2773 = vpop.f32.mrb[0].mxu0
    %2774 = vmatprep.mubr.f32.mxu0 0.0
    %v2775 = vand.u32 %v2674, 4294901760
    %v2776 = vsub.f32 %v2674, %v2775
    %v2777 = vand.u32 %v2776, 4294901760
    %v2778 = vsub.f32 %v2776, %v2777
    %v2779 = vand.u32 %v2778, 4294901760
    %2780 = vmatmul.mubr.f32.gmra.mrb[0].mxu0 %v2779
    %v2781 = vpop.f32.mrb[0].mxu0
    %v2782 = vadd.f32 0.0, %v2781
    %v2783 = vpop.f32.mrb[0].mxu0
    %2784 = vdwg.mxu0
    %2785 = vmatprep.subr.mxu0 0.0
    %v2786 = vand.u32 %v2655, 4294901760
    %v2787 = vsub.f32 %v2655, %v2786
    %v2788 = vand.u32 %v2787, 4294901760
    %v2789 = vsub.f32 %v2787, %v2788
    %v2790 = vand.u32 %v2789, 4294901760
    %2791 = vmatpush1.msra.mxu0 %v2790
    %2792 = vmatprep.subr.mxu0 0.0
    %v2793 = vand.u32 %v2656, 4294901760
    %v2794 = vsub.f32 %v2656, %v2793
    %v2795 = vand.u32 %v2794, 4294901760
    %v2796 = vsub.f32 %v2794, %v2795
    %v2797 = vand.u32 %v2796, 4294901760
    %2798 = vmatpush1.msra.mxu0 %v2797
    %2799 = vmatprep.subr.mxu0 0.0
    %v2800 = vand.u32 %v2657, 4294901760
    %v2801 = vsub.f32 %v2657, %v2800
    %v2802 = vand.u32 %v2801, 4294901760
    %v2803 = vsub.f32 %v2801, %v2802
    %v2804 = vand.u32 %v2803, 4294901760
    %2805 = vmatpush1.msra.mxu0 %v2804
    %2806 = vmatprep.subr.mxu0 0.0
    %v2807 = vand.u32 %v2658, 4294901760
    %v2808 = vsub.f32 %v2658, %v2807
    %v2809 = vand.u32 %v2808, 4294901760
    %v2810 = vsub.f32 %v2808, %v2809
    %v2811 = vand.u32 %v2810, 4294901760
    %2812 = vmatpush1.msra.mxu0 %v2811
    %2813 = vmatprep.subr.mxu0 0.0
    %2814 = vmatpush1.msra.mxu0 0.0
    %2815 = vmatprep.subr.mxu0 0.0
    %2816 = vmatpush1.msra.mxu0 0.0
    %2817 = vmatprep.subr.mxu0 0.0
    %2818 = vmatpush1.msra.mxu0 0.0
    %2819 = vmatprep.subr.mxu0 0.0
    %2820 = vmatpush1.msra.mxu0 0.0
    %2821 = vmatprep.subr.mxu0 0.0
    %2822 = vmatpush1.msra.mxu0 0.0
    %2823 = vmatprep.subr.mxu0 0.0
    %2824 = vmatpush1.msra.mxu0 0.0
    %2825 = vmatprep.subr.mxu0 0.0
    %2826 = vmatpush1.msra.mxu0 0.0
    %2827 = vmatprep.subr.mxu0 0.0
    %2828 = vmatpush1.msra.mxu0 0.0
    %2829 = vmatprep.subr.mxu0 0.0
    %2830 = vmatpush1.msra.mxu0 0.0
    %2831 = vmatprep.subr.mxu0 0.0
    %2832 = vmatpush1.msra.mxu0 0.0
    %2833 = vmatprep.subr.mxu0 0.0
    %2834 = vmatpush1.msra.mxu0 0.0
    %2835 = vmatprep.subr.mxu0 0.0
    %2836 = vmatpush1.msra.mxu0 0.0
    %2837 = vmatprep.subr.mxu0 0.0
    %2838 = vmatpush1.msra.mxu0 0.0
    %2839 = vmatprep.subr.mxu0 0.0
    %2840 = vmatpush1.msra.mxu0 0.0
    %2841 = vmatprep.subr.mxu0 0.0
    %2842 = vmatpush1.msra.mxu0 0.0
    %2843 = vmatprep.subr.mxu0 0.0
    %2844 = vmatpush1.msra.mxu0 0.0
    %2845 = vmatprep.subr.mxu0 0.0
    %2846 = vmatpush1.msra.mxu0 0.0
    %2847 = vmatprep.subr.mxu0 0.0
    %2848 = vmatpush1.msra.mxu0 0.0
    %2849 = vmatprep.subr.mxu0 0.0
    %2850 = vmatpush1.msra.mxu0 0.0
    %2851 = vmatprep.subr.mxu0 0.0
    %2852 = vmatpush1.msra.mxu0 0.0
    %2853 = vmatprep.subr.mxu0 0.0
    %2854 = vmatpush1.msra.mxu0 0.0
    %2855 = vmatprep.subr.mxu0 0.0
    %2856 = vmatpush1.msra.mxu0 0.0
    %2857 = vmatprep.subr.mxu0 0.0
    %2858 = vmatpush1.msra.mxu0 0.0
    %2859 = vmatprep.subr.mxu0 0.0
    %2860 = vmatpush1.msra.mxu0 0.0
    %2861 = vmatprep.subr.mxu0 0.0
    %2862 = vmatpush1.msra.mxu0 0.0
    %2863 = vmatprep.subr.mxu0 0.0
    %2864 = vmatpush1.msra.mxu0 0.0
    %2865 = vmatprep.subr.mxu0 0.0
    %2866 = vmatpush1.msra.mxu0 0.0
    %2867 = vmatprep.subr.mxu0 0.0
    %2868 = vmatpush1.msra.mxu0 0.0
    %2869 = vmatprep.mubr.f32.mxu0 0.0
    %v2870 = vand.u32 %v2665, 4294901760
    %2871 = vmatmul.mubr.f32.gmra.mrb[0].mxu0 %v2870
    %v2872 = vpop.f32.mrb[0].mxu0
    %v2873 = vadd.f32 %v2752, %v2872
    %v2874 = vpop.f32.mrb[0].mxu0
    %2875 = vmatprep.mubr.f32.mxu0 0.0
    %v2876 = vand.u32 %v2668, 4294901760
    %2877 = vmatmul.mubr.f32.gmra.mrb[0].mxu0 %v2876
    %v2878 = vpop.f32.mrb[0].mxu0
    %v2879 = vadd.f32 %v2762, %v2878
    %v2880 = vpop.f32.mrb[0].mxu0
    %2881 = vmatprep.mubr.f32.mxu0 0.0
    %v2882 = vand.u32 %v2671, 4294901760
    %2883 = vmatmul.mubr.f32.gmra.mrb[0].mxu0 %v2882
    %v2884 = vpop.f32.mrb[0].mxu0
    %v2885 = vadd.f32 %v2772, %v2884
    %v2886 = vpop.f32.mrb[0].mxu0
    %2887 = vmatprep.mubr.f32.mxu0 0.0
    %v2888 = vand.u32 %v2674, 4294901760
    %2889 = vmatmul.mubr.f32.gmra.mrb[0].mxu0 %v2888
    %v2890 = vpop.f32.mrb[0].mxu0
    %v2891 = vadd.f32 %v2782, %v2890
    %v2892 = vpop.f32.mrb[0].mxu0
    %2893 = vdwg.mxu0
    %2894 = vmatprep.subr.mxu0 0.0
    %v2895 = vand.u32 %v2655, 4294901760
    %v2896 = vsub.f32 %v2655, %v2895
    %2897 = vmatpush1.msra.mxu0 %v2896
    %2898 = vmatprep.subr.mxu0 0.0
    %v2899 = vand.u32 %v2656, 4294901760
    %v2900 = vsub.f32 %v2656, %v2899
    %2901 = vmatpush1.msra.mxu0 %v2900
    %2902 = vmatprep.subr.mxu0 0.0
    %v2903 = vand.u32 %v2657, 4294901760
    %v2904 = vsub.f32 %v2657, %v2903
    %2905 = vmatpush1.msra.mxu0 %v2904
    %2906 = vmatprep.subr.mxu0 0.0
    %v2907 = vand.u32 %v2658, 4294901760
    %v2908 = vsub.f32 %v2658, %v2907
    %2909 = vmatpush1.msra.mxu0 %v2908
    %2910 = vmatprep.subr.mxu0 0.0
    %2911 = vmatpush1.msra.mxu0 0.0
    %2912 = vmatprep.subr.mxu0 0.0
    %2913 = vmatpush1.msra.mxu0 0.0
    %2914 = vmatprep.subr.mxu0 0.0
    %2915 = vmatpush1.msra.mxu0 0.0
    %2916 = vmatprep.subr.mxu0 0.0
    %2917 = vmatpush1.msra.mxu0 0.0
    %2918 = vmatprep.subr.mxu0 0.0
    %2919 = vmatpush1.msra.mxu0 0.0
    %2920 = vmatprep.subr.mxu0 0.0
    %2921 = vmatpush1.msra.mxu0 0.0
    %2922 = vmatprep.subr.mxu0 0.0
    %2923 = vmatpush1.msra.mxu0 0.0
    %2924 = vmatprep.subr.mxu0 0.0
    %2925 = vmatpush1.msra.mxu0 0.0
    %2926 = vmatprep.subr.mxu0 0.0
    %2927 = vmatpush1.msra.mxu0 0.0
    %2928 = vmatprep.subr.mxu0 0.0
    %2929 = vmatpush1.msra.mxu0 0.0
    %2930 = vmatprep.subr.mxu0 0.0
    %2931 = vmatpush1.msra.mxu0 0.0
    %2932 = vmatprep.subr.mxu0 0.0
    %2933 = vmatpush1.msra.mxu0 0.0
    %2934 = vmatprep.subr.mxu0 0.0
    %2935 = vmatpush1.msra.mxu0 0.0
    %2936 = vmatprep.subr.mxu0 0.0
    %2937 = vmatpush1.msra.mxu0 0.0
    %2938 = vmatprep.subr.mxu0 0.0
    %2939 = vmatpush1.msra.mxu0 0.0
    %2940 = vmatprep.subr.mxu0 0.0
    %2941 = vmatpush1.msra.mxu0 0.0
    %2942 = vmatprep.subr.mxu0 0.0
    %2943 = vmatpush1.msra.mxu0 0.0
    %2944 = vmatprep.subr.mxu0 0.0
    %2945 = vmatpush1.msra.mxu0 0.0
    %2946 = vmatprep.subr.mxu0 0.0
    %2947 = vmatpush1.msra.mxu0 0.0
    %2948 = vmatprep.subr.mxu0 0.0
    %2949 = vmatpush1.msra.mxu0 0.0
    %2950 = vmatprep.subr.mxu0 0.0
    %2951 = vmatpush1.msra.mxu0 0.0
    %2952 = vmatprep.subr.mxu0 0.0
    %2953 = vmatpush1.msra.mxu0 0.0
    %2954 = vmatprep.subr.mxu0 0.0
    %2955 = vmatpush1.msra.mxu0 0.0
    %2956 = vmatprep.subr.mxu0 0.0
    %2957 = vmatpush1.msra.mxu0 0.0
    %2958 = vmatprep.subr.mxu0 0.0
    %2959 = vmatpush1.msra.mxu0 0.0
    %2960 = vmatprep.subr.mxu0 0.0
    %2961 = vmatpush1.msra.mxu0 0.0
    %2962 = vmatprep.subr.mxu0 0.0
    %2963 = vmatpush1.msra.mxu0 0.0
    %2964 = vmatprep.subr.mxu0 0.0
    %2965 = vmatpush1.msra.mxu0 0.0
    %2966 = vmatprep.mubr.f32.mxu0 0.0
    %v2967 = vand.u32 %v2665, 4294901760
    %v2968 = vsub.f32 %v2665, %v2967
    %2969 = vmatmul.mubr.f32.gmra.mrb[0].mxu0 %v2968
    %v2970 = vpop.f32.mrb[0].mxu0
    %v2971 = vadd.f32 %v2873, %v2970
    %v2972 = vpop.f32.mrb[0].mxu0
    %2973 = vmatprep.mubr.f32.mxu0 0.0
    %v2974 = vand.u32 %v2668, 4294901760
    %v2975 = vsub.f32 %v2668, %v2974
    %2976 = vmatmul.mubr.f32.gmra.mrb[0].mxu0 %v2975
    %v2977 = vpop.f32.mrb[0].mxu0
    %v2978 = vadd.f32 %v2879, %v2977
    %v2979 = vpop.f32.mrb[0].mxu0
    %2980 = vmatprep.mubr.f32.mxu0 0.0
    %v2981 = vand.u32 %v2671, 4294901760
    %v2982 = vsub.f32 %v2671, %v2981
    %2983 = vmatmul.mubr.f32.gmra.mrb[0].mxu0 %v2982
    %v2984 = vpop.f32.mrb[0].mxu0
    %v2985 = vadd.f32 %v2885, %v2984
    %v2986 = vpop.f32.mrb[0].mxu0
    %2987 = vmatprep.mubr.f32.mxu0 0.0
    %v2988 = vand.u32 %v2674, 4294901760
    %v2989 = vsub.f32 %v2674, %v2988
    %2990 = vmatmul.mubr.f32.gmra.mrb[0].mxu0 %v2989
    %v2991 = vpop.f32.mrb[0].mxu0
    %v2992 = vadd.f32 %v2891, %v2991
    %v2993 = vpop.f32.mrb[0].mxu0
    %2994 = vdwg.mxu0
    %2995 = vmatprep.subr.mxu0 0.0
    %v2996 = vand.u32 %v2655, 4294901760
    %2997 = vmatpush1.msra.mxu0 %v2996
    %2998 = vmatprep.subr.mxu0 0.0
    %v2999 = vand.u32 %v2656, 4294901760
    %3000 = vmatpush1.msra.mxu0 %v2999
    %3001 = vmatprep.subr.mxu0 0.0
    %v3002 = vand.u32 %v2657, 4294901760
    %3003 = vmatpush1.msra.mxu0 %v3002
    %3004 = vmatprep.subr.mxu0 0.0
    %v3005 = vand.u32 %v2658, 4294901760
    %3006 = vmatpush1.msra.mxu0 %v3005
    %3007 = vmatprep.subr.mxu0 0.0
    %3008 = vmatpush1.msra.mxu0 0.0
    %3009 = vmatprep.subr.mxu0 0.0
    %3010 = vmatpush1.msra.mxu0 0.0
    %3011 = vmatprep.subr.mxu0 0.0
    %3012 = vmatpush1.msra.mxu0 0.0
    %3013 = vmatprep.subr.mxu0 0.0
    %3014 = vmatpush1.msra.mxu0 0.0
    %3015 = vmatprep.subr.mxu0 0.0
    %3016 = vmatpush1.msra.mxu0 0.0
    %3017 = vmatprep.subr.mxu0 0.0
    %3018 = vmatpush1.msra.mxu0 0.0
    %3019 = vmatprep.subr.mxu0 0.0
    %3020 = vmatpush1.msra.mxu0 0.0
    %3021 = vmatprep.subr.mxu0 0.0
    %3022 = vmatpush1.msra.mxu0 0.0
    %3023 = vmatprep.subr.mxu0 0.0
    %3024 = vmatpush1.msra.mxu0 0.0
    %3025 = vmatprep.subr.mxu0 0.0
    %3026 = vmatpush1.msra.mxu0 0.0
    %3027 = vmatprep.subr.mxu0 0.0
    %3028 = vmatpush1.msra.mxu0 0.0
    %3029 = vmatprep.subr.mxu0 0.0
    %3030 = vmatpush1.msra.mxu0 0.0
    %3031 = vmatprep.subr.mxu0 0.0
    %3032 = vmatpush1.msra.mxu0 0.0
    %3033 = vmatprep.subr.mxu0 0.0
    %3034 = vmatpush1.msra.mxu0 0.0
    %3035 = vmatprep.subr.mxu0 0.0
    %3036 = vmatpush1.msra.mxu0 0.0
    %3037 = vmatprep.subr.mxu0 0.0
    %3038 = vmatpush1.msra.mxu0 0.0
    %3039 = vmatprep.subr.mxu0 0.0
    %3040 = vmatpush1.msra.mxu0 0.0
    %3041 = vmatprep.subr.mxu0 0.0
    %3042 = vmatpush1.msra.mxu0 0.0
    %3043 = vmatprep.subr.mxu0 0.0
    %3044 = vmatpush1.msra.mxu0 0.0
    %3045 = vmatprep.subr.mxu0 0.0
    %3046 = vmatpush1.msra.mxu0 0.0
    %3047 = vmatprep.subr.mxu0 0.0
    %3048 = vmatpush1.msra.mxu0 0.0
    %3049 = vmatprep.subr.mxu0 0.0
    %3050 = vmatpush1.msra.mxu0 0.0
    %3051 = vmatprep.subr.mxu0 0.0
    %3052 = vmatpush1.msra.mxu0 0.0
    %3053 = vmatprep.subr.mxu0 0.0
    %3054 = vmatpush1.msra.mxu0 0.0
    %3055 = vmatprep.subr.mxu0 0.0
    %3056 = vmatpush1.msra.mxu0 0.0
    %3057 = vmatprep.subr.mxu0 0.0
    %3058 = vmatpush1.msra.mxu0 0.0
    %3059 = vmatprep.subr.mxu0 0.0
    %3060 = vmatpush1.msra.mxu0 0.0
    %3061 = vmatprep.subr.mxu0 0.0
    %3062 = vmatpush1.msra.mxu0 0.0
    %3063 = vmatprep.mubr.f32.mxu0 0.0
    %v3064 = vand.u32 %v2665, 4294901760
    %v3065 = vsub.f32 %v2665, %v3064
    %v3066 = vand.u32 %v3065, 4294901760
    %3067 = vmatmul.mubr.f32.gmra.mrb[0].mxu0 %v3066
    %v3068 = vpop.f32.mrb[0].mxu0
    %v3069 = vadd.f32 %v2971, %v3068
    %v3070 = vpop.f32.mrb[0].mxu0
    %3071 = vmatprep.mubr.f32.mxu0 0.0
    %v3072 = vand.u32 %v2668, 4294901760
    %v3073 = vsub.f32 %v2668, %v3072
    %v3074 = vand.u32 %v3073, 4294901760
    %3075 = vmatmul.mubr.f32.gmra.mrb[0].mxu0 %v3074
    %v3076 = vpop.f32.mrb[0].mxu0
    %v3077 = vadd.f32 %v2978, %v3076
    %v3078 = vpop.f32.mrb[0].mxu0
    %3079 = vmatprep.mubr.f32.mxu0 0.0
    %v3080 = vand.u32 %v2671, 4294901760
    %v3081 = vsub.f32 %v2671, %v3080
    %v3082 = vand.u32 %v3081, 4294901760
    %3083 = vmatmul.mubr.f32.gmra.mrb[0].mxu0 %v3082
    %v3084 = vpop.f32.mrb[0].mxu0
    %v3085 = vadd.f32 %v2985, %v3084
    %v3086 = vpop.f32.mrb[0].mxu0
    %3087 = vmatprep.mubr.f32.mxu0 0.0
    %v3088 = vand.u32 %v2674, 4294901760
    %v3089 = vsub.f32 %v2674, %v3088
    %v3090 = vand.u32 %v3089, 4294901760
    %3091 = vmatmul.mubr.f32.gmra.mrb[0].mxu0 %v3090
    %v3092 = vpop.f32.mrb[0].mxu0
    %v3093 = vadd.f32 %v2992, %v3092
    %v3094 = vpop.f32.mrb[0].mxu0
    %3095 = vdwg.mxu0
    %3096 = vmatprep.subr.mxu0 0.0
    %v3097 = vand.u32 %v2655, 4294901760
    %v3098 = vsub.f32 %v2655, %v3097
    %v3099 = vand.u32 %v3098, 4294901760
    %3100 = vmatpush1.msra.mxu0 %v3099
    %3101 = vmatprep.subr.mxu0 0.0
    %v3102 = vand.u32 %v2656, 4294901760
    %v3103 = vsub.f32 %v2656, %v3102
    %v3104 = vand.u32 %v3103, 4294901760
    %3105 = vmatpush1.msra.mxu0 %v3104
    %3106 = vmatprep.subr.mxu0 0.0
    %v3107 = vand.u32 %v2657, 4294901760
    %v3108 = vsub.f32 %v2657, %v3107
    %v3109 = vand.u32 %v3108, 4294901760
    %3110 = vmatpush1.msra.mxu0 %v3109
    %3111 = vmatprep.subr.mxu0 0.0
    %v3112 = vand.u32 %v2658, 4294901760
    %v3113 = vsub.f32 %v2658, %v3112
    %v3114 = vand.u32 %v3113, 4294901760
    %3115 = vmatpush1.msra.mxu0 %v3114
    %3116 = vmatprep.subr.mxu0 0.0
    %3117 = vmatpush1.msra.mxu0 0.0
    %3118 = vmatprep.subr.mxu0 0.0
    %3119 = vmatpush1.msra.mxu0 0.0
    %3120 = vmatprep.subr.mxu0 0.0
    %3121 = vmatpush1.msra.mxu0 0.0
    %3122 = vmatprep.subr.mxu0 0.0
    %3123 = vmatpush1.msra.mxu0 0.0
    %3124 = vmatprep.subr.mxu0 0.0
    %3125 = vmatpush1.msra.mxu0 0.0
    %3126 = vmatprep.subr.mxu0 0.0
    %3127 = vmatpush1.msra.mxu0 0.0
    %3128 = vmatprep.subr.mxu0 0.0
    %3129 = vmatpush1.msra.mxu0 0.0
    %3130 = vmatprep.subr.mxu0 0.0
    %3131 = vmatpush1.msra.mxu0 0.0
    %3132 = vmatprep.subr.mxu0 0.0
    %3133 = vmatpush1.msra.mxu0 0.0
    %3134 = vmatprep.subr.mxu0 0.0
    %3135 = vmatpush1.msra.mxu0 0.0
    %3136 = vmatprep.subr.mxu0 0.0
    %3137 = vmatpush1.msra.mxu0 0.0
    %3138 = vmatprep.subr.mxu0 0.0
    %3139 = vmatpush1.msra.mxu0 0.0
    %3140 = vmatprep.subr.mxu0 0.0
    %3141 = vmatpush1.msra.mxu0 0.0
    %3142 = vmatprep.subr.mxu0 0.0
    %3143 = vmatpush1.msra.mxu0 0.0
    %3144 = vmatprep.subr.mxu0 0.0
    %3145 = vmatpush1.msra.mxu0 0.0
    %3146 = vmatprep.subr.mxu0 0.0
    %3147 = vmatpush1.msra.mxu0 0.0
    %3148 = vmatprep.subr.mxu0 0.0
    %3149 = vmatpush1.msra.mxu0 0.0
    %3150 = vmatprep.subr.mxu0 0.0
    %3151 = vmatpush1.msra.mxu0 0.0
    %3152 = vmatprep.subr.mxu0 0.0
    %3153 = vmatpush1.msra.mxu0 0.0
    %3154 = vmatprep.subr.mxu0 0.0
    %3155 = vmatpush1.msra.mxu0 0.0
    %3156 = vmatprep.subr.mxu0 0.0
    %3157 = vmatpush1.msra.mxu0 0.0
    %3158 = vmatprep.subr.mxu0 0.0
    %3159 = vmatpush1.msra.mxu0 0.0
    %3160 = vmatprep.subr.mxu0 0.0
    %3161 = vmatpush1.msra.mxu0 0.0
    %3162 = vmatprep.subr.mxu0 0.0
    %3163 = vmatpush1.msra.mxu0 0.0
    %3164 = vmatprep.subr.mxu0 0.0
    %3165 = vmatpush1.msra.mxu0 0.0
    %3166 = vmatprep.subr.mxu0 0.0
    %3167 = vmatpush1.msra.mxu0 0.0
    %3168 = vmatprep.subr.mxu0 0.0
    %3169 = vmatpush1.msra.mxu0 0.0
    %3170 = vmatprep.subr.mxu0 0.0
    %3171 = vmatpush1.msra.mxu0 0.0
    %3172 = vmatprep.mubr.f32.mxu0 0.0
    %v3173 = vand.u32 %v2665, 4294901760
    %3174 = vmatmul.mubr.f32.gmra.mrb[0].mxu0 %v3173
    %v3175 = vpop.f32.mrb[0].mxu0
    %v3176 = vadd.f32 %v3069, %v3175
    %v3177 = vpop.f32.mrb[0].mxu0
    %3178 = vmatprep.mubr.f32.mxu0 0.0
    %v3179 = vand.u32 %v2668, 4294901760
    %3180 = vmatmul.mubr.f32.gmra.mrb[0].mxu0 %v3179
    %v3181 = vpop.f32.mrb[0].mxu0
    %v3182 = vadd.f32 %v3077, %v3181
    %v3183 = vpop.f32.mrb[0].mxu0
    %3184 = vmatprep.mubr.f32.mxu0 0.0
    %v3185 = vand.u32 %v2671, 4294901760
    %3186 = vmatmul.mubr.f32.gmra.mrb[0].mxu0 %v3185
    %v3187 = vpop.f32.mrb[0].mxu0
    %v3188 = vadd.f32 %v3085, %v3187
    %v3189 = vpop.f32.mrb[0].mxu0
    %3190 = vmatprep.mubr.f32.mxu0 0.0
    %v3191 = vand.u32 %v2674, 4294901760
    %3192 = vmatmul.mubr.f32.gmra.mrb[0].mxu0 %v3191
    %v3193 = vpop.f32.mrb[0].mxu0
    %v3194 = vadd.f32 %v3093, %v3193
    %v3195 = vpop.f32.mrb[0].mxu0
    %3196 = vdwg.mxu0
    %3197 = vmatprep.subr.mxu0 0.0
    %v3198 = vand.u32 %v2655, 4294901760
    %3199 = vmatpush1.msra.mxu0 %v3198
    %3200 = vmatprep.subr.mxu0 0.0
    %v3201 = vand.u32 %v2656, 4294901760
    %3202 = vmatpush1.msra.mxu0 %v3201
    %3203 = vmatprep.subr.mxu0 0.0
    %v3204 = vand.u32 %v2657, 4294901760
    %3205 = vmatpush1.msra.mxu0 %v3204
    %3206 = vmatprep.subr.mxu0 0.0
    %v3207 = vand.u32 %v2658, 4294901760
    %3208 = vmatpush1.msra.mxu0 %v3207
    %3209 = vmatprep.subr.mxu0 0.0
    %3210 = vmatpush1.msra.mxu0 0.0
    %3211 = vmatprep.subr.mxu0 0.0
    %3212 = vmatpush1.msra.mxu0 0.0
    %3213 = vmatprep.subr.mxu0 0.0
    %3214 = vmatpush1.msra.mxu0 0.0
    %3215 = vmatprep.subr.mxu0 0.0
    %3216 = vmatpush1.msra.mxu0 0.0
    %3217 = vmatprep.subr.mxu0 0.0
    %3218 = vmatpush1.msra.mxu0 0.0
    %3219 = vmatprep.subr.mxu0 0.0
    %3220 = vmatpush1.msra.mxu0 0.0
    %3221 = vmatprep.subr.mxu0 0.0
    %3222 = vmatpush1.msra.mxu0 0.0
    %3223 = vmatprep.subr.mxu0 0.0
    %3224 = vmatpush1.msra.mxu0 0.0
    %3225 = vmatprep.subr.mxu0 0.0
    %3226 = vmatpush1.msra.mxu0 0.0
    %3227 = vmatprep.subr.mxu0 0.0
    %3228 = vmatpush1.msra.mxu0 0.0
    %3229 = vmatprep.subr.mxu0 0.0
    %3230 = vmatpush1.msra.mxu0 0.0
    %3231 = vmatprep.subr.mxu0 0.0
    %3232 = vmatpush1.msra.mxu0 0.0
    %3233 = vmatprep.subr.mxu0 0.0
    %3234 = vmatpush1.msra.mxu0 0.0
    %3235 = vmatprep.subr.mxu0 0.0
    %3236 = vmatpush1.msra.mxu0 0.0
    %3237 = vmatprep.subr.mxu0 0.0
    %3238 = vmatpush1.msra.mxu0 0.0
    %3239 = vmatprep.subr.mxu0 0.0
    %3240 = vmatpush1.msra.mxu0 0.0
    %3241 = vmatprep.subr.mxu0 0.0
    %3242 = vmatpush1.msra.mxu0 0.0
    %3243 = vmatprep.subr.mxu0 0.0
    %3244 = vmatpush1.msra.mxu0 0.0
    %3245 = vmatprep.subr.mxu0 0.0
    %3246 = vmatpush1.msra.mxu0 0.0
    %3247 = vmatprep.subr.mxu0 0.0
    %3248 = vmatpush1.msra.mxu0 0.0
    %3249 = vmatprep.subr.mxu0 0.0
    %3250 = vmatpush1.msra.mxu0 0.0
    %3251 = vmatprep.subr.mxu0 0.0
    %3252 = vmatpush1.msra.mxu0 0.0
    %3253 = vmatprep.subr.mxu0 0.0
    %3254 = vmatpush1.msra.mxu0 0.0
    %3255 = vmatprep.subr.mxu0 0.0
    %3256 = vmatpush1.msra.mxu0 0.0
    %3257 = vmatprep.subr.mxu0 0.0
    %3258 = vmatpush1.msra.mxu0 0.0
    %3259 = vmatprep.subr.mxu0 0.0
    %3260 = vmatpush1.msra.mxu0 0.0
    %3261 = vmatprep.subr.mxu0 0.0
    %3262 = vmatpush1.msra.mxu0 0.0
    %3263 = vmatprep.subr.mxu0 0.0
    %3264 = vmatpush1.msra.mxu0 0.0
    %3265 = vmatprep.mubr.f32.mxu0 0.0
    %v3266 = vand.u32 %v2665, 4294901760
    %3267 = vmatmul.mubr.f32.gmra.mrb[0].mxu0 %v3266
    %v3268 = vpop.f32.mrb[0].mxu0
    %v3269 = vadd.f32 %v3176, %v3268
    %v3270 = vpop.f32.mrb[0].mxu0
    %3271 = vmatprep.mubr.f32.mxu0 0.0
    %v3272 = vand.u32 %v2668, 4294901760
    %3273 = vmatmul.mubr.f32.gmra.mrb[0].mxu0 %v3272
    %v3274 = vpop.f32.mrb[0].mxu0
    %v3275 = vadd.f32 %v3182, %v3274
    %v3276 = vpop.f32.mrb[0].mxu0
    %3277 = vmatprep.mubr.f32.mxu0 0.0
    %v3278 = vand.u32 %v2671, 4294901760
    %3279 = vmatmul.mubr.f32.gmra.mrb[0].mxu0 %v3278
    %v3280 = vpop.f32.mrb[0].mxu0
    %v3281 = vadd.f32 %v3188, %v3280
    %v3282 = vpop.f32.mrb[0].mxu0
    %3283 = vmatprep.mubr.f32.mxu0 0.0
    %v3284 = vand.u32 %v2674, 4294901760
    %3285 = vmatmul.mubr.f32.gmra.mrb[0].mxu0 %v3284
    %v3286 = vpop.f32.mrb[0].mxu0
    %v3287 = vadd.f32 %v3194, %v3286
    %v3288 = vpop.f32.mrb[0].mxu0
    %3289 = vdwg.mxu0
    %v3290 = vadd.f32 %v2638, %v3269
    %v3291 = vadd.f32 %v2639, %v3275
    %v3292 = vadd.f32 %v2640, %v3281
    %v3293 = vadd.f32 %v2641, %v3287
    %v3294 = vld [vmem:[#allocation2 + $0x5] sm:$0x1]
    %v3295 = vlaneseq
    %v3296 = vshrl.u32 %v3295, 7
    %v3297 = vsub.s32 0, %v3296
    %v3298 = vrot.slane %v3294, %v3297
    %vm3299 = vcmp.eq.s32.totalorder %v3298, %v38
    %vm3300 = vcmp.eq.s32.totalorder %v3298, %v39
    %vm3301 = vcmp.eq.s32.totalorder %v3298, %v40
    %vm3302 = vcmp.eq.s32.totalorder %v3298, %v41
    %v3303 = vsel %vm3299, 1, 0
    %v3304 = vsel %vm3300, 1, 0
    %v3305 = vsel %vm3301, 1, 0
    %v3306 = vsel %vm3302, 1, 0
    %v3307 = vcvt.s32.f32 %v3303
    %v3308 = vcvt.s32.f32 %v3304
    %v3309 = vcvt.s32.f32 %v3305
    %v3310 = vcvt.s32.f32 %v3306
    %s3311 = scalar_lea.vmem [#allocation4], 160
    %v3312 = vld [vmem:[%s3311] sm:$0xff]
    %v3313 = vld [vmem:[%s3311 + $0x8] sm:$0xff]
    %v3314 = vld [vmem:[%s3311 + $0x10] sm:$0xff]
    %v3315 = vld [vmem:[%s3311 + $0x18] sm:$0xff]
    %v3317 = vsel %vm85, %v3312, 0
    %v3320 = vsel %vm85, %v3313, 0
    %v3323 = vsel %vm85, %v3314, 0
    %v3326 = vsel %vm85, %v3315, 0
    %3328 = vmatprep.subr.mxu0 0.0
    %v3329 = vand.u32 %v3307, 4294901760
    %3330 = vmatpush1.msra.mxu0 %v3329
    %3331 = vmatprep.subr.mxu0 0.0
    %v3332 = vand.u32 %v3308, 4294901760
    %3333 = vmatpush1.msra.mxu0 %v3332
    %3334 = vmatprep.subr.mxu0 0.0
    %v3335 = vand.u32 %v3309, 4294901760
    %3336 = vmatpush1.msra.mxu0 %v3335
    %3337 = vmatprep.subr.mxu0 0.0
    %v3338 = vand.u32 %v3310, 4294901760
    %3339 = vmatpush1.msra.mxu0 %v3338
    %3340 = vmatprep.subr.mxu0 0.0
    %3341 = vmatpush1.msra.mxu0 0.0
    %3342 = vmatprep.subr.mxu0 0.0
    %3343 = vmatpush1.msra.mxu0 0.0
    %3344 = vmatprep.subr.mxu0 0.0
    %3345 = vmatpush1.msra.mxu0 0.0
    %3346 = vmatprep.subr.mxu0 0.0
    %3347 = vmatpush1.msra.mxu0 0.0
    %3348 = vmatprep.subr.mxu0 0.0
    %3349 = vmatpush1.msra.mxu0 0.0
    %3350 = vmatprep.subr.mxu0 0.0
    %3351 = vmatpush1.msra.mxu0 0.0
    %3352 = vmatprep.subr.mxu0 0.0
    %3353 = vmatpush1.msra.mxu0 0.0
    %3354 = vmatprep.subr.mxu0 0.0
    %3355 = vmatpush1.msra.mxu0 0.0
    %3356 = vmatprep.subr.mxu0 0.0
    %3357 = vmatpush1.msra.mxu0 0.0
    %3358 = vmatprep.subr.mxu0 0.0
    %3359 = vmatpush1.msra.mxu0 0.0
    %3360 = vmatprep.subr.mxu0 0.0
    %3361 = vmatpush1.msra.mxu0 0.0
    %3362 = vmatprep.subr.mxu0 0.0
    %3363 = vmatpush1.msra.mxu0 0.0
    %3364 = vmatprep.subr.mxu0 0.0
    %3365 = vmatpush1.msra.mxu0 0.0
    %3366 = vmatprep.subr.mxu0 0.0
    %3367 = vmatpush1.msra.mxu0 0.0
    %3368 = vmatprep.subr.mxu0 0.0
    %3369 = vmatpush1.msra.mxu0 0.0
    %3370 = vmatprep.subr.mxu0 0.0
    %3371 = vmatpush1.msra.mxu0 0.0
    %3372 = vmatprep.subr.mxu0 0.0
    %3373 = vmatpush1.msra.mxu0 0.0
    %3374 = vmatprep.subr.mxu0 0.0
    %3375 = vmatpush1.msra.mxu0 0.0
    %3376 = vmatprep.subr.mxu0 0.0
    %3377 = vmatpush1.msra.mxu0 0.0
    %3378 = vmatprep.subr.mxu0 0.0
    %3379 = vmatpush1.msra.mxu0 0.0
    %3380 = vmatprep.subr.mxu0 0.0
    %3381 = vmatpush1.msra.mxu0 0.0
    %3382 = vmatprep.subr.mxu0 0.0
    %3383 = vmatpush1.msra.mxu0 0.0
    %3384 = vmatprep.subr.mxu0 0.0
    %3385 = vmatpush1.msra.mxu0 0.0
    %3386 = vmatprep.subr.mxu0 0.0
    %3387 = vmatpush1.msra.mxu0 0.0
    %3388 = vmatprep.subr.mxu0 0.0
    %3389 = vmatpush1.msra.mxu0 0.0
    %3390 = vmatprep.subr.mxu0 0.0
    %3391 = vmatpush1.msra.mxu0 0.0
    %3392 = vmatprep.subr.mxu0 0.0
    %3393 = vmatpush1.msra.mxu0 0.0
    %3394 = vmatprep.subr.mxu0 0.0
    %3395 = vmatpush1.msra.mxu0 0.0
    %3396 = vmatprep.mubr.f32.mxu0 0.0
    %v3397 = vand.u32 %v3317, 4294901760
    %v3398 = vsub.f32 %v3317, %v3397
    %v3399 = vand.u32 %v3398, 4294901760
    %v3400 = vsub.f32 %v3398, %v3399
    %v3401 = vand.u32 %v3400, 4294901760
    %3402 = vmatmul.mubr.f32.gmra.mrb[0].mxu0 %v3401
    %v3403 = vpop.f32.mrb[0].mxu0
    %v3404 = vadd.f32 0.0, %v3403
    %v3405 = vpop.f32.mrb[0].mxu0
    %3406 = vmatprep.mubr.f32.mxu0 0.0
    %v3407 = vand.u32 %v3320, 4294901760
    %v3408 = vsub.f32 %v3320, %v3407
    %v3409 = vand.u32 %v3408, 4294901760
    %v3410 = vsub.f32 %v3408, %v3409
    %v3411 = vand.u32 %v3410, 4294901760
    %3412 = vmatmul.mubr.f32.gmra.mrb[0].mxu0 %v3411
    %v3413 = vpop.f32.mrb[0].mxu0
    %v3414 = vadd.f32 0.0, %v3413
    %v3415 = vpop.f32.mrb[0].mxu0
    %3416 = vmatprep.mubr.f32.mxu0 0.0
    %v3417 = vand.u32 %v3323, 4294901760
    %v3418 = vsub.f32 %v3323, %v3417
    %v3419 = vand.u32 %v3418, 4294901760
    %v3420 = vsub.f32 %v3418, %v3419
    %v3421 = vand.u32 %v3420, 4294901760
    %3422 = vmatmul.mubr.f32.gmra.mrb[0].mxu0 %v3421
    %v3423 = vpop.f32.mrb[0].mxu0
    %v3424 = vadd.f32 0.0, %v3423
    %v3425 = vpop.f32.mrb[0].mxu0
    %3426 = vmatprep.mubr.f32.mxu0 0.0
    %v3427 = vand.u32 %v3326, 4294901760
    %v3428 = vsub.f32 %v3326, %v3427
    %v3429 = vand.u32 %v3428, 4294901760
    %v3430 = vsub.f32 %v3428, %v3429
    %v3431 = vand.u32 %v3430, 4294901760
    %3432 = vmatmul.mubr.f32.gmra.mrb[0].mxu0 %v3431
    %v3433 = vpop.f32.mrb[0].mxu0
    %v3434 = vadd.f32 0.0, %v3433
    %v3435 = vpop.f32.mrb[0].mxu0
    %3436 = vdwg.mxu0
    %3437 = vmatprep.subr.mxu0 0.0
    %v3438 = vand.u32 %v3307, 4294901760
    %v3439 = vsub.f32 %v3307, %v3438
    %v3440 = vand.u32 %v3439, 4294901760
    %v3441 = vsub.f32 %v3439, %v3440
    %v3442 = vand.u32 %v3441, 4294901760
    %3443 = vmatpush1.msra.mxu0 %v3442
    %3444 = vmatprep.subr.mxu0 0.0
    %v3445 = vand.u32 %v3308, 4294901760
    %v3446 = vsub.f32 %v3308, %v3445
    %v3447 = vand.u32 %v3446, 4294901760
    %v3448 = vsub.f32 %v3446, %v3447
    %v3449 = vand.u32 %v3448, 4294901760
    %3450 = vmatpush1.msra.mxu0 %v3449
    %3451 = vmatprep.subr.mxu0 0.0
    %v3452 = vand.u32 %v3309, 4294901760
    %v3453 = vsub.f32 %v3309, %v3452
    %v3454 = vand.u32 %v3453, 4294901760
    %v3455 = vsub.f32 %v3453, %v3454
    %v3456 = vand.u32 %v3455, 4294901760
    %3457 = vmatpush1.msra.mxu0 %v3456
    %3458 = vmatprep.subr.mxu0 0.0
    %v3459 = vand.u32 %v3310, 4294901760
    %v3460 = vsub.f32 %v3310, %v3459
    %v3461 = vand.u32 %v3460, 4294901760
    %v3462 = vsub.f32 %v3460, %v3461
    %v3463 = vand.u32 %v3462, 4294901760
    %3464 = vmatpush1.msra.mxu0 %v3463
    %3465 = vmatprep.subr.mxu0 0.0
    %3466 = vmatpush1.msra.mxu0 0.0
    %3467 = vmatprep.subr.mxu0 0.0
    %3468 = vmatpush1.msra.mxu0 0.0
    %3469 = vmatprep.subr.mxu0 0.0
    %3470 = vmatpush1.msra.mxu0 0.0
    %3471 = vmatprep.subr.mxu0 0.0
    %3472 = vmatpush1.msra.mxu0 0.0
    %3473 = vmatprep.subr.mxu0 0.0
    %3474 = vmatpush1.msra.mxu0 0.0
    %3475 = vmatprep.subr.mxu0 0.0
    %3476 = vmatpush1.msra.mxu0 0.0
    %3477 = vmatprep.subr.mxu0 0.0
    %3478 = vmatpush1.msra.mxu0 0.0
    %3479 = vmatprep.subr.mxu0 0.0
    %3480 = vmatpush1.msra.mxu0 0.0
    %3481 = vmatprep.subr.mxu0 0.0
    %3482 = vmatpush1.msra.mxu0 0.0
    %3483 = vmatprep.subr.mxu0 0.0
    %3484 = vmatpush1.msra.mxu0 0.0
    %3485 = vmatprep.subr.mxu0 0.0
    %3486 = vmatpush1.msra.mxu0 0.0
    %3487 = vmatprep.subr.mxu0 0.0
    %3488 = vmatpush1.msra.mxu0 0.0
    %3489 = vmatprep.subr.mxu0 0.0
    %3490 = vmatpush1.msra.mxu0 0.0
    %3491 = vmatprep.subr.mxu0 0.0
    %3492 = vmatpush1.msra.mxu0 0.0
    %3493 = vmatprep.subr.mxu0 0.0
    %3494 = vmatpush1.msra.mxu0 0.0
    %3495 = vmatprep.subr.mxu0 0.0
    %3496 = vmatpush1.msra.mxu0 0.0
    %3497 = vmatprep.subr.mxu0 0.0
    %3498 = vmatpush1.msra.mxu0 0.0
    %3499 = vmatprep.subr.mxu0 0.0
    %3500 = vmatpush1.msra.mxu0 0.0
    %3501 = vmatprep.subr.mxu0 0.0
    %3502 = vmatpush1.msra.mxu0 0.0
    %3503 = vmatprep.subr.mxu0 0.0
    %3504 = vmatpush1.msra.mxu0 0.0
    %3505 = vmatprep.subr.mxu0 0.0
    %3506 = vmatpush1.msra.mxu0 0.0
    %3507 = vmatprep.subr.mxu0 0.0
    %3508 = vmatpush1.msra.mxu0 0.0
    %3509 = vmatprep.subr.mxu0 0.0
    %3510 = vmatpush1.msra.mxu0 0.0
    %3511 = vmatprep.subr.mxu0 0.0
    %3512 = vmatpush1.msra.mxu0 0.0
    %3513 = vmatprep.subr.mxu0 0.0
    %3514 = vmatpush1.msra.mxu0 0.0
    %3515 = vmatprep.subr.mxu0 0.0
    %3516 = vmatpush1.msra.mxu0 0.0
    %3517 = vmatprep.subr.mxu0 0.0
    %3518 = vmatpush1.msra.mxu0 0.0
    %3519 = vmatprep.subr.mxu0 0.0
    %3520 = vmatpush1.msra.mxu0 0.0
    %3521 = vmatprep.mubr.f32.mxu0 0.0
    %v3522 = vand.u32 %v3317, 4294901760
    %3523 = vmatmul.mubr.f32.gmra.mrb[0].mxu0 %v3522
    %v3524 = vpop.f32.mrb[0].mxu0
    %v3525 = vadd.f32 %v3404, %v3524
    %v3526 = vpop.f32.mrb[0].mxu0
    %3527 = vmatprep.mubr.f32.mxu0 0.0
    %v3528 = vand.u32 %v3320, 4294901760
    %3529 = vmatmul.mubr.f32.gmra.mrb[0].mxu0 %v3528
    %v3530 = vpop.f32.mrb[0].mxu0
    %v3531 = vadd.f32 %v3414, %v3530
    %v3532 = vpop.f32.mrb[0].mxu0
    %3533 = vmatprep.mubr.f32.mxu0 0.0
    %v3534 = vand.u32 %v3323, 4294901760
    %3535 = vmatmul.mubr.f32.gmra.mrb[0].mxu0 %v3534
    %v3536 = vpop.f32.mrb[0].mxu0
    %v3537 = vadd.f32 %v3424, %v3536
    %v3538 = vpop.f32.mrb[0].mxu0
    %3539 = vmatprep.mubr.f32.mxu0 0.0
    %v3540 = vand.u32 %v3326, 4294901760
    %3541 = vmatmul.mubr.f32.gmra.mrb[0].mxu0 %v3540
    %v3542 = vpop.f32.mrb[0].mxu0
    %v3543 = vadd.f32 %v3434, %v3542
    %v3544 = vpop.f32.mrb[0].mxu0
    %3545 = vdwg.mxu0
    %3546 = vmatprep.subr.mxu0 0.0
    %v3547 = vand.u32 %v3307, 4294901760
    %v3548 = vsub.f32 %v3307, %v3547
    %3549 = vmatpush1.msra.mxu0 %v3548
    %3550 = vmatprep.subr.mxu0 0.0
    %v3551 = vand.u32 %v3308, 4294901760
    %v3552 = vsub.f32 %v3308, %v3551
    %3553 = vmatpush1.msra.mxu0 %v3552
    %3554 = vmatprep.subr.mxu0 0.0
    %v3555 = vand.u32 %v3309, 4294901760
    %v3556 = vsub.f32 %v3309, %v3555
    %3557 = vmatpush1.msra.mxu0 %v3556
    %3558 = vmatprep.subr.mxu0 0.0
    %v3559 = vand.u32 %v3310, 4294901760
    %v3560 = vsub.f32 %v3310, %v3559
    %3561 = vmatpush1.msra.mxu0 %v3560
    %3562 = vmatprep.subr.mxu0 0.0
    %3563 = vmatpush1.msra.mxu0 0.0
    %3564 = vmatprep.subr.mxu0 0.0
    %3565 = vmatpush1.msra.mxu0 0.0
    %3566 = vmatprep.subr.mxu0 0.0
    %3567 = vmatpush1.msra.mxu0 0.0
    %3568 = vmatprep.subr.mxu0 0.0
    %3569 = vmatpush1.msra.mxu0 0.0
    %3570 = vmatprep.subr.mxu0 0.0
    %3571 = vmatpush1.msra.mxu0 0.0
    %3572 = vmatprep.subr.mxu0 0.0
    %3573 = vmatpush1.msra.mxu0 0.0
    %3574 = vmatprep.subr.mxu0 0.0
    %3575 = vmatpush1.msra.mxu0 0.0
    %3576 = vmatprep.subr.mxu0 0.0
    %3577 = vmatpush1.msra.mxu0 0.0
    %3578 = vmatprep.subr.mxu0 0.0
    %3579 = vmatpush1.msra.mxu0 0.0
    %3580 = vmatprep.subr.mxu0 0.0
    %3581 = vmatpush1.msra.mxu0 0.0
    %3582 = vmatprep.subr.mxu0 0.0
    %3583 = vmatpush1.msra.mxu0 0.0
    %3584 = vmatprep.subr.mxu0 0.0
    %3585 = vmatpush1.msra.mxu0 0.0
    %3586 = vmatprep.subr.mxu0 0.0
    %3587 = vmatpush1.msra.mxu0 0.0
    %3588 = vmatprep.subr.mxu0 0.0
    %3589 = vmatpush1.msra.mxu0 0.0
    %3590 = vmatprep.subr.mxu0 0.0
    %3591 = vmatpush1.msra.mxu0 0.0
    %3592 = vmatprep.subr.mxu0 0.0
    %3593 = vmatpush1.msra.mxu0 0.0
    %3594 = vmatprep.subr.mxu0 0.0
    %3595 = vmatpush1.msra.mxu0 0.0
    %3596 = vmatprep.subr.mxu0 0.0
    %3597 = vmatpush1.msra.mxu0 0.0
    %3598 = vmatprep.subr.mxu0 0.0
    %3599 = vmatpush1.msra.mxu0 0.0
    %3600 = vmatprep.subr.mxu0 0.0
    %3601 = vmatpush1.msra.mxu0 0.0
    %3602 = vmatprep.subr.mxu0 0.0
    %3603 = vmatpush1.msra.mxu0 0.0
    %3604 = vmatprep.subr.mxu0 0.0
    %3605 = vmatpush1.msra.mxu0 0.0
    %3606 = vmatprep.subr.mxu0 0.0
    %3607 = vmatpush1.msra.mxu0 0.0
    %3608 = vmatprep.subr.mxu0 0.0
    %3609 = vmatpush1.msra.mxu0 0.0
    %3610 = vmatprep.subr.mxu0 0.0
    %3611 = vmatpush1.msra.mxu0 0.0
    %3612 = vmatprep.subr.mxu0 0.0
    %3613 = vmatpush1.msra.mxu0 0.0
    %3614 = vmatprep.subr.mxu0 0.0
    %3615 = vmatpush1.msra.mxu0 0.0
    %3616 = vmatprep.subr.mxu0 0.0
    %3617 = vmatpush1.msra.mxu0 0.0
    %3618 = vmatprep.mubr.f32.mxu0 0.0
    %v3619 = vand.u32 %v3317, 4294901760
    %v3620 = vsub.f32 %v3317, %v3619
    %3621 = vmatmul.mubr.f32.gmra.mrb[0].mxu0 %v3620
    %v3622 = vpop.f32.mrb[0].mxu0
    %v3623 = vadd.f32 %v3525, %v3622
    %v3624 = vpop.f32.mrb[0].mxu0
    %3625 = vmatprep.mubr.f32.mxu0 0.0
    %v3626 = vand.u32 %v3320, 4294901760
    %v3627 = vsub.f32 %v3320, %v3626
    %3628 = vmatmul.mubr.f32.gmra.mrb[0].mxu0 %v3627
    %v3629 = vpop.f32.mrb[0].mxu0
    %v3630 = vadd.f32 %v3531, %v3629
    %v3631 = vpop.f32.mrb[0].mxu0
    %3632 = vmatprep.mubr.f32.mxu0 0.0
    %v3633 = vand.u32 %v3323, 4294901760
    %v3634 = vsub.f32 %v3323, %v3633
    %3635 = vmatmul.mubr.f32.gmra.mrb[0].mxu0 %v3634
    %v3636 = vpop.f32.mrb[0].mxu0
    %v3637 = vadd.f32 %v3537, %v3636
    %v3638 = vpop.f32.mrb[0].mxu0
    %3639 = vmatprep.mubr.f32.mxu0 0.0
    %v3640 = vand.u32 %v3326, 4294901760
    %v3641 = vsub.f32 %v3326, %v3640
    %3642 = vmatmul.mubr.f32.gmra.mrb[0].mxu0 %v3641
    %v3643 = vpop.f32.mrb[0].mxu0
    %v3644 = vadd.f32 %v3543, %v3643
    %v3645 = vpop.f32.mrb[0].mxu0
    %3646 = vdwg.mxu0
    %3647 = vmatprep.subr.mxu0 0.0
    %v3648 = vand.u32 %v3307, 4294901760
    %3649 = vmatpush1.msra.mxu0 %v3648
    %3650 = vmatprep.subr.mxu0 0.0
    %v3651 = vand.u32 %v3308, 4294901760
    %3652 = vmatpush1.msra.mxu0 %v3651
    %3653 = vmatprep.subr.mxu0 0.0
    %v3654 = vand.u32 %v3309, 4294901760
    %3655 = vmatpush1.msra.mxu0 %v3654
    %3656 = vmatprep.subr.mxu0 0.0
    %v3657 = vand.u32 %v3310, 4294901760
    %3658 = vmatpush1.msra.mxu0 %v3657
    %3659 = vmatprep.subr.mxu0 0.0
    %3660 = vmatpush1.msra.mxu0 0.0
    %3661 = vmatprep.subr.mxu0 0.0
    %3662 = vmatpush1.msra.mxu0 0.0
    %3663 = vmatprep.subr.mxu0 0.0
    %3664 = vmatpush1.msra.mxu0 0.0
    %3665 = vmatprep.subr.mxu0 0.0
    %3666 = vmatpush1.msra.mxu0 0.0
    %3667 = vmatprep.subr.mxu0 0.0
    %3668 = vmatpush1.msra.mxu0 0.0
    %3669 = vmatprep.subr.mxu0 0.0
    %3670 = vmatpush1.msra.mxu0 0.0
    %3671 = vmatprep.subr.mxu0 0.0
    %3672 = vmatpush1.msra.mxu0 0.0
    %3673 = vmatprep.subr.mxu0 0.0
    %3674 = vmatpush1.msra.mxu0 0.0
    %3675 = vmatprep.subr.mxu0 0.0
    %3676 = vmatpush1.msra.mxu0 0.0
    %3677 = vmatprep.subr.mxu0 0.0
    %3678 = vmatpush1.msra.mxu0 0.0
    %3679 = vmatprep.subr.mxu0 0.0
    %3680 = vmatpush1.msra.mxu0 0.0
    %3681 = vmatprep.subr.mxu0 0.0
    %3682 = vmatpush1.msra.mxu0 0.0
    %3683 = vmatprep.subr.mxu0 0.0
    %3684 = vmatpush1.msra.mxu0 0.0
    %3685 = vmatprep.subr.mxu0 0.0
    %3686 = vmatpush1.msra.mxu0 0.0
    %3687 = vmatprep.subr.mxu0 0.0
    %3688 = vmatpush1.msra.mxu0 0.0
    %3689 = vmatprep.subr.mxu0 0.0
    %3690 = vmatpush1.msra.mxu0 0.0
    %3691 = vmatprep.subr.mxu0 0.0
    %3692 = vmatpush1.msra.mxu0 0.0
    %3693 = vmatprep.subr.mxu0 0.0
    %3694 = vmatpush1.msra.mxu0 0.0
    %3695 = vmatprep.subr.mxu0 0.0
    %3696 = vmatpush1.msra.mxu0 0.0
    %3697 = vmatprep.subr.mxu0 0.0
    %3698 = vmatpush1.msra.mxu0 0.0
    %3699 = vmatprep.subr.mxu0 0.0
    %3700 = vmatpush1.msra.mxu0 0.0
    %3701 = vmatprep.subr.mxu0 0.0
    %3702 = vmatpush1.msra.mxu0 0.0
    %3703 = vmatprep.subr.mxu0 0.0
    %3704 = vmatpush1.msra.mxu0 0.0
    %3705 = vmatprep.subr.mxu0 0.0
    %3706 = vmatpush1.msra.mxu0 0.0
    %3707 = vmatprep.subr.mxu0 0.0
    %3708 = vmatpush1.msra.mxu0 0.0
    %3709 = vmatprep.subr.mxu0 0.0
    %3710 = vmatpush1.msra.mxu0 0.0
    %3711 = vmatprep.subr.mxu0 0.0
    %3712 = vmatpush1.msra.mxu0 0.0
    %3713 = vmatprep.subr.mxu0 0.0
    %3714 = vmatpush1.msra.mxu0 0.0
    %3715 = vmatprep.mubr.f32.mxu0 0.0
    %v3716 = vand.u32 %v3317, 4294901760
    %v3717 = vsub.f32 %v3317, %v3716
    %v3718 = vand.u32 %v3717, 4294901760
    %3719 = vmatmul.mubr.f32.gmra.mrb[0].mxu0 %v3718
    %v3720 = vpop.f32.mrb[0].mxu0
    %v3721 = vadd.f32 %v3623, %v3720
    %v3722 = vpop.f32.mrb[0].mxu0
    %3723 = vmatprep.mubr.f32.mxu0 0.0
    %v3724 = vand.u32 %v3320, 4294901760
    %v3725 = vsub.f32 %v3320, %v3724
    %v3726 = vand.u32 %v3725, 4294901760
    %3727 = vmatmul.mubr.f32.gmra.mrb[0].mxu0 %v3726
    %v3728 = vpop.f32.mrb[0].mxu0
    %v3729 = vadd.f32 %v3630, %v3728
    %v3730 = vpop.f32.mrb[0].mxu0
    %3731 = vmatprep.mubr.f32.mxu0 0.0
    %v3732 = vand.u32 %v3323, 4294901760
    %v3733 = vsub.f32 %v3323, %v3732
    %v3734 = vand.u32 %v3733, 4294901760
    %3735 = vmatmul.mubr.f32.gmra.mrb[0].mxu0 %v3734
    %v3736 = vpop.f32.mrb[0].mxu0
    %v3737 = vadd.f32 %v3637, %v3736
    %v3738 = vpop.f32.mrb[0].mxu0
    %3739 = vmatprep.mubr.f32.mxu0 0.0
    %v3740 = vand.u32 %v3326, 4294901760
    %v3741 = vsub.f32 %v3326, %v3740
    %v3742 = vand.u32 %v3741, 4294901760
    %3743 = vmatmul.mubr.f32.gmra.mrb[0].mxu0 %v3742
    %v3744 = vpop.f32.mrb[0].mxu0
    %v3745 = vadd.f32 %v3644, %v3744
    %v3746 = vpop.f32.mrb[0].mxu0
    %3747 = vdwg.mxu0
    %3748 = vmatprep.subr.mxu0 0.0
    %v3749 = vand.u32 %v3307, 4294901760
    %v3750 = vsub.f32 %v3307, %v3749
    %v3751 = vand.u32 %v3750, 4294901760
    %3752 = vmatpush1.msra.mxu0 %v3751
    %3753 = vmatprep.subr.mxu0 0.0
    %v3754 = vand.u32 %v3308, 4294901760
    %v3755 = vsub.f32 %v3308, %v3754
    %v3756 = vand.u32 %v3755, 4294901760
    %3757 = vmatpush1.msra.mxu0 %v3756
    %3758 = vmatprep.subr.mxu0 0.0
    %v3759 = vand.u32 %v3309, 4294901760
    %v3760 = vsub.f32 %v3309, %v3759
    %v3761 = vand.u32 %v3760, 4294901760
    %3762 = vmatpush1.msra.mxu0 %v3761
    %3763 = vmatprep.subr.mxu0 0.0
    %v3764 = vand.u32 %v3310, 4294901760
    %v3765 = vsub.f32 %v3310, %v3764
    %v3766 = vand.u32 %v3765, 4294901760
    %3767 = vmatpush1.msra.mxu0 %v3766
    %3768 = vmatprep.subr.mxu0 0.0
    %3769 = vmatpush1.msra.mxu0 0.0
    %3770 = vmatprep.subr.mxu0 0.0
    %3771 = vmatpush1.msra.mxu0 0.0
    %3772 = vmatprep.subr.mxu0 0.0
    %3773 = vmatpush1.msra.mxu0 0.0
    %3774 = vmatprep.subr.mxu0 0.0
    %3775 = vmatpush1.msra.mxu0 0.0
    %3776 = vmatprep.subr.mxu0 0.0
    %3777 = vmatpush1.msra.mxu0 0.0
    %3778 = vmatprep.subr.mxu0 0.0
    %3779 = vmatpush1.msra.mxu0 0.0
    %3780 = vmatprep.subr.mxu0 0.0
    %3781 = vmatpush1.msra.mxu0 0.0
    %3782 = vmatprep.subr.mxu0 0.0
    %3783 = vmatpush1.msra.mxu0 0.0
    %3784 = vmatprep.subr.mxu0 0.0
    %3785 = vmatpush1.msra.mxu0 0.0
    %3786 = vmatprep.subr.mxu0 0.0
    %3787 = vmatpush1.msra.mxu0 0.0
    %3788 = vmatprep.subr.mxu0 0.0
    %3789 = vmatpush1.msra.mxu0 0.0
    %3790 = vmatprep.subr.mxu0 0.0
    %3791 = vmatpush1.msra.mxu0 0.0
    %3792 = vmatprep.subr.mxu0 0.0
    %3793 = vmatpush1.msra.mxu0 0.0
    %3794 = vmatprep.subr.mxu0 0.0
    %3795 = vmatpush1.msra.mxu0 0.0
    %3796 = vmatprep.subr.mxu0 0.0
    %3797 = vmatpush1.msra.mxu0 0.0
    %3798 = vmatprep.subr.mxu0 0.0
    %3799 = vmatpush1.msra.mxu0 0.0
    %3800 = vmatprep.subr.mxu0 0.0
    %3801 = vmatpush1.msra.mxu0 0.0
    %3802 = vmatprep.subr.mxu0 0.0
    %3803 = vmatpush1.msra.mxu0 0.0
    %3804 = vmatprep.subr.mxu0 0.0
    %3805 = vmatpush1.msra.mxu0 0.0
    %3806 = vmatprep.subr.mxu0 0.0
    %3807 = vmatpush1.msra.mxu0 0.0
    %3808 = vmatprep.subr.mxu0 0.0
    %3809 = vmatpush1.msra.mxu0 0.0
    %3810 = vmatprep.subr.mxu0 0.0
    %3811 = vmatpush1.msra.mxu0 0.0
    %3812 = vmatprep.subr.mxu0 0.0
    %3813 = vmatpush1.msra.mxu0 0.0
    %3814 = vmatprep.subr.mxu0 0.0
    %3815 = vmatpush1.msra.mxu0 0.0
    %3816 = vmatprep.subr.mxu0 0.0
    %3817 = vmatpush1.msra.mxu0 0.0
    %3818 = vmatprep.subr.mxu0 0.0
    %3819 = vmatpush1.msra.mxu0 0.0
    %3820 = vmatprep.subr.mxu0 0.0
    %3821 = vmatpush1.msra.mxu0 0.0
    %3822 = vmatprep.subr.mxu0 0.0
    %3823 = vmatpush1.msra.mxu0 0.0
    %3824 = vmatprep.mubr.f32.mxu0 0.0
    %v3825 = vand.u32 %v3317, 4294901760
    %3826 = vmatmul.mubr.f32.gmra.mrb[0].mxu0 %v3825
    %v3827 = vpop.f32.mrb[0].mxu0
    %v3828 = vadd.f32 %v3721, %v3827
    %v3829 = vpop.f32.mrb[0].mxu0
    %3830 = vmatprep.mubr.f32.mxu0 0.0
    %v3831 = vand.u32 %v3320, 4294901760
    %3832 = vmatmul.mubr.f32.gmra.mrb[0].mxu0 %v3831
    %v3833 = vpop.f32.mrb[0].mxu0
    %v3834 = vadd.f32 %v3729, %v3833
    %v3835 = vpop.f32.mrb[0].mxu0
    %3836 = vmatprep.mubr.f32.mxu0 0.0
    %v3837 = vand.u32 %v3323, 4294901760
    %3838 = vmatmul.mubr.f32.gmra.mrb[0].mxu0 %v3837
    %v3839 = vpop.f32.mrb[0].mxu0
    %v3840 = vadd.f32 %v3737, %v3839
    %v3841 = vpop.f32.mrb[0].mxu0
    %3842 = vmatprep.mubr.f32.mxu0 0.0
    %v3843 = vand.u32 %v3326, 4294901760
    %3844 = vmatmul.mubr.f32.gmra.mrb[0].mxu0 %v3843
    %v3845 = vpop.f32.mrb[0].mxu0
    %v3846 = vadd.f32 %v3745, %v3845
    %v3847 = vpop.f32.mrb[0].mxu0
    %3848 = vdwg.mxu0
    %3849 = vmatprep.subr.mxu0 0.0
    %v3850 = vand.u32 %v3307, 4294901760
    %3851 = vmatpush1.msra.mxu0 %v3850
    %3852 = vmatprep.subr.mxu0 0.0
    %v3853 = vand.u32 %v3308, 4294901760
    %3854 = vmatpush1.msra.mxu0 %v3853
    %3855 = vmatprep.subr.mxu0 0.0
    %v3856 = vand.u32 %v3309, 4294901760
    %3857 = vmatpush1.msra.mxu0 %v3856
    %3858 = vmatprep.subr.mxu0 0.0
    %v3859 = vand.u32 %v3310, 4294901760
    %3860 = vmatpush1.msra.mxu0 %v3859
    %3861 = vmatprep.subr.mxu0 0.0
    %3862 = vmatpush1.msra.mxu0 0.0
    %3863 = vmatprep.subr.mxu0 0.0
    %3864 = vmatpush1.msra.mxu0 0.0
    %3865 = vmatprep.subr.mxu0 0.0
    %3866 = vmatpush1.msra.mxu0 0.0
    %3867 = vmatprep.subr.mxu0 0.0
    %3868 = vmatpush1.msra.mxu0 0.0
    %3869 = vmatprep.subr.mxu0 0.0
    %3870 = vmatpush1.msra.mxu0 0.0
    %3871 = vmatprep.subr.mxu0 0.0
    %3872 = vmatpush1.msra.mxu0 0.0
    %3873 = vmatprep.subr.mxu0 0.0
    %3874 = vmatpush1.msra.mxu0 0.0
    %3875 = vmatprep.subr.mxu0 0.0
    %3876 = vmatpush1.msra.mxu0 0.0
    %3877 = vmatprep.subr.mxu0 0.0
    %3878 = vmatpush1.msra.mxu0 0.0
    %3879 = vmatprep.subr.mxu0 0.0
    %3880 = vmatpush1.msra.mxu0 0.0
    %3881 = vmatprep.subr.mxu0 0.0
    %3882 = vmatpush1.msra.mxu0 0.0
    %3883 = vmatprep.subr.mxu0 0.0
    %3884 = vmatpush1.msra.mxu0 0.0
    %3885 = vmatprep.subr.mxu0 0.0
    %3886 = vmatpush1.msra.mxu0 0.0
    %3887 = vmatprep.subr.mxu0 0.0
    %3888 = vmatpush1.msra.mxu0 0.0
    %3889 = vmatprep.subr.mxu0 0.0
    %3890 = vmatpush1.msra.mxu0 0.0
    %3891 = vmatprep.subr.mxu0 0.0
    %3892 = vmatpush1.msra.mxu0 0.0
    %3893 = vmatprep.subr.mxu0 0.0
    %3894 = vmatpush1.msra.mxu0 0.0
    %3895 = vmatprep.subr.mxu0 0.0
    %3896 = vmatpush1.msra.mxu0 0.0
    %3897 = vmatprep.subr.mxu0 0.0
    %3898 = vmatpush1.msra.mxu0 0.0
    %3899 = vmatprep.subr.mxu0 0.0
    %3900 = vmatpush1.msra.mxu0 0.0
    %3901 = vmatprep.subr.mxu0 0.0
    %3902 = vmatpush1.msra.mxu0 0.0
    %3903 = vmatprep.subr.mxu0 0.0
    %3904 = vmatpush1.msra.mxu0 0.0
    %3905 = vmatprep.subr.mxu0 0.0
    %3906 = vmatpush1.msra.mxu0 0.0
    %3907 = vmatprep.subr.mxu0 0.0
    %3908 = vmatpush1.msra.mxu0 0.0
    %3909 = vmatprep.subr.mxu0 0.0
    %3910 = vmatpush1.msra.mxu0 0.0
    %3911 = vmatprep.subr.mxu0 0.0
    %3912 = vmatpush1.msra.mxu0 0.0
    %3913 = vmatprep.subr.mxu0 0.0
    %3914 = vmatpush1.msra.mxu0 0.0
    %3915 = vmatprep.subr.mxu0 0.0
    %3916 = vmatpush1.msra.mxu0 0.0
    %3917 = vmatprep.mubr.f32.mxu0 0.0
    %v3918 = vand.u32 %v3317, 4294901760
    %3919 = vmatmul.mubr.f32.gmra.mrb[0].mxu0 %v3918
    %v3920 = vpop.f32.mrb[0].mxu0
    %v3921 = vadd.f32 %v3828, %v3920
    %v3922 = vpop.f32.mrb[0].mxu0
    %3923 = vmatprep.mubr.f32.mxu0 0.0
    %v3924 = vand.u32 %v3320, 4294901760
    %3925 = vmatmul.mubr.f32.gmra.mrb[0].mxu0 %v3924
    %v3926 = vpop.f32.mrb[0].mxu0
    %v3927 = vadd.f32 %v3834, %v3926
    %v3928 = vpop.f32.mrb[0].mxu0
    %3929 = vmatprep.mubr.f32.mxu0 0.0
    %v3930 = vand.u32 %v3323, 4294901760
    %3931 = vmatmul.mubr.f32.gmra.mrb[0].mxu0 %v3930
    %v3932 = vpop.f32.mrb[0].mxu0
    %v3933 = vadd.f32 %v3840, %v3932
    %v3934 = vpop.f32.mrb[0].mxu0
    %3935 = vmatprep.mubr.f32.mxu0 0.0
    %v3936 = vand.u32 %v3326, 4294901760
    %3937 = vmatmul.mubr.f32.gmra.mrb[0].mxu0 %v3936
    %v3938 = vpop.f32.mrb[0].mxu0
    %v3939 = vadd.f32 %v3846, %v3938
    %v3940 = vpop.f32.mrb[0].mxu0
    %3941 = vdwg.mxu0
    %v3942 = vadd.f32 %v3290, %v3921
    %v3943 = vadd.f32 %v3291, %v3927
    %v3944 = vadd.f32 %v3292, %v3933
    %v3945 = vadd.f32 %v3293, %v3939
    %v3946 = vld [vmem:[#allocation2 + $0x6] sm:$0x1]
    %v3947 = vlaneseq
    %v3948 = vshrl.u32 %v3947, 7
    %v3949 = vsub.s32 0, %v3948
    %v3950 = vrot.slane %v3946, %v3949
    %vm3951 = vcmp.eq.s32.totalorder %v3950, %v38
    %vm3952 = vcmp.eq.s32.totalorder %v3950, %v39
    %vm3953 = vcmp.eq.s32.totalorder %v3950, %v40
    %vm3954 = vcmp.eq.s32.totalorder %v3950, %v41
    %v3955 = vsel %vm3951, 1, 0
    %v3956 = vsel %vm3952, 1, 0
    %v3957 = vsel %vm3953, 1, 0
    %v3958 = vsel %vm3954, 1, 0
    %v3959 = vcvt.s32.f32 %v3955
    %v3960 = vcvt.s32.f32 %v3956
    %v3961 = vcvt.s32.f32 %v3957
    %v3962 = vcvt.s32.f32 %v3958
    %s3963 = scalar_lea.vmem [#allocation4], 192
    %v3964 = vld [vmem:[%s3963] sm:$0xff]
    %v3965 = vld [vmem:[%s3963 + $0x8] sm:$0xff]
    %v3966 = vld [vmem:[%s3963 + $0x10] sm:$0xff]
    %v3967 = vld [vmem:[%s3963 + $0x18] sm:$0xff]
    %v3969 = vsel %vm85, %v3964, 0
    %v3972 = vsel %vm85, %v3965, 0
    %v3975 = vsel %vm85, %v3966, 0
    %v3978 = vsel %vm85, %v3967, 0
    %3980 = vmatprep.subr.mxu0 0.0
    %v3981 = vand.u32 %v3959, 4294901760
    %3982 = vmatpush1.msra.mxu0 %v3981
    %3983 = vmatprep.subr.mxu0 0.0
    %v3984 = vand.u32 %v3960, 4294901760
    %3985 = vmatpush1.msra.mxu0 %v3984
    %3986 = vmatprep.subr.mxu0 0.0
    %v3987 = vand.u32 %v3961, 4294901760
    %3988 = vmatpush1.msra.mxu0 %v3987
    %3989 = vmatprep.subr.mxu0 0.0
    %v3990 = vand.u32 %v3962, 4294901760
    %3991 = vmatpush1.msra.mxu0 %v3990
    %3992 = vmatprep.subr.mxu0 0.0
    %3993 = vmatpush1.msra.mxu0 0.0
    %3994 = vmatprep.subr.mxu0 0.0
    %3995 = vmatpush1.msra.mxu0 0.0
    %3996 = vmatprep.subr.mxu0 0.0
    %3997 = vmatpush1.msra.mxu0 0.0
    %3998 = vmatprep.subr.mxu0 0.0
    %3999 = vmatpush1.msra.mxu0 0.0
    %4000 = vmatprep.subr.mxu0 0.0
    %4001 = vmatpush1.msra.mxu0 0.0
    %4002 = vmatprep.subr.mxu0 0.0
    %4003 = vmatpush1.msra.mxu0 0.0
    %4004 = vmatprep.subr.mxu0 0.0
    %4005 = vmatpush1.msra.mxu0 0.0
    %4006 = vmatprep.subr.mxu0 0.0
    %4007 = vmatpush1.msra.mxu0 0.0
    %4008 = vmatprep.subr.mxu0 0.0
    %4009 = vmatpush1.msra.mxu0 0.0
    %4010 = vmatprep.subr.mxu0 0.0
    %4011 = vmatpush1.msra.mxu0 0.0
    %4012 = vmatprep.subr.mxu0 0.0
    %4013 = vmatpush1.msra.mxu0 0.0
    %4014 = vmatprep.subr.mxu0 0.0
    %4015 = vmatpush1.msra.mxu0 0.0
    %4016 = vmatprep.subr.mxu0 0.0
    %4017 = vmatpush1.msra.mxu0 0.0
    %4018 = vmatprep.subr.mxu0 0.0
    %4019 = vmatpush1.msra.mxu0 0.0
    %4020 = vmatprep.subr.mxu0 0.0
    %4021 = vmatpush1.msra.mxu0 0.0
    %4022 = vmatprep.subr.mxu0 0.0
    %4023 = vmatpush1.msra.mxu0 0.0
    %4024 = vmatprep.subr.mxu0 0.0
    %4025 = vmatpush1.msra.mxu0 0.0
    %4026 = vmatprep.subr.mxu0 0.0
    %4027 = vmatpush1.msra.mxu0 0.0
    %4028 = vmatprep.subr.mxu0 0.0
    %4029 = vmatpush1.msra.mxu0 0.0
    %4030 = vmatprep.subr.mxu0 0.0
    %4031 = vmatpush1.msra.mxu0 0.0
    %4032 = vmatprep.subr.mxu0 0.0
    %4033 = vmatpush1.msra.mxu0 0.0
    %4034 = vmatprep.subr.mxu0 0.0
    %4035 = vmatpush1.msra.mxu0 0.0
    %4036 = vmatprep.subr.mxu0 0.0
    %4037 = vmatpush1.msra.mxu0 0.0
    %4038 = vmatprep.subr.mxu0 0.0
    %4039 = vmatpush1.msra.mxu0 0.0
    %4040 = vmatprep.subr.mxu0 0.0
    %4041 = vmatpush1.msra.mxu0 0.0
    %4042 = vmatprep.subr.mxu0 0.0
    %4043 = vmatpush1.msra.mxu0 0.0
    %4044 = vmatprep.subr.mxu0 0.0
    %4045 = vmatpush1.msra.mxu0 0.0
    %4046 = vmatprep.subr.mxu0 0.0
    %4047 = vmatpush1.msra.mxu0 0.0
    %4048 = vmatprep.mubr.f32.mxu0 0.0
    %v4049 = vand.u32 %v3969, 4294901760
    %v4050 = vsub.f32 %v3969, %v4049
    %v4051 = vand.u32 %v4050, 4294901760
    %v4052 = vsub.f32 %v4050, %v4051
    %v4053 = vand.u32 %v4052, 4294901760
    %4054 = vmatmul.mubr.f32.gmra.mrb[0].mxu0 %v4053
    %v4055 = vpop.f32.mrb[0].mxu0
    %v4056 = vadd.f32 0.0, %v4055
    %v4057 = vpop.f32.mrb[0].mxu0
    %4058 = vmatprep.mubr.f32.mxu0 0.0
    %v4059 = vand.u32 %v3972, 4294901760
    %v4060 = vsub.f32 %v3972, %v4059
    %v4061 = vand.u32 %v4060, 4294901760
    %v4062 = vsub.f32 %v4060, %v4061
    %v4063 = vand.u32 %v4062, 4294901760
    %4064 = vmatmul.mubr.f32.gmra.mrb[0].mxu0 %v4063
    %v4065 = vpop.f32.mrb[0].mxu0
    %v4066 = vadd.f32 0.0, %v4065
    %v4067 = vpop.f32.mrb[0].mxu0
    %4068 = vmatprep.mubr.f32.mxu0 0.0
    %v4069 = vand.u32 %v3975, 4294901760
    %v4070 = vsub.f32 %v3975, %v4069
    %v4071 = vand.u32 %v4070, 4294901760
    %v4072 = vsub.f32 %v4070, %v4071
    %v4073 = vand.u32 %v4072, 4294901760
    %4074 = vmatmul.mubr.f32.gmra.mrb[0].mxu0 %v4073
    %v4075 = vpop.f32.mrb[0].mxu0
    %v4076 = vadd.f32 0.0, %v4075
    %v4077 = vpop.f32.mrb[0].mxu0
    %4078 = vmatprep.mubr.f32.mxu0 0.0
    %v4079 = vand.u32 %v3978, 4294901760
    %v4080 = vsub.f32 %v3978, %v4079
    %v4081 = vand.u32 %v4080, 4294901760
    %v4082 = vsub.f32 %v4080, %v4081
    %v4083 = vand.u32 %v4082, 4294901760
    %4084 = vmatmul.mubr.f32.gmra.mrb[0].mxu0 %v4083
    %v4085 = vpop.f32.mrb[0].mxu0
    %v4086 = vadd.f32 0.0, %v4085
    %v4087 = vpop.f32.mrb[0].mxu0
    %4088 = vdwg.mxu0
    %4089 = vmatprep.subr.mxu0 0.0
    %v4090 = vand.u32 %v3959, 4294901760
    %v4091 = vsub.f32 %v3959, %v4090
    %v4092 = vand.u32 %v4091, 4294901760
    %v4093 = vsub.f32 %v4091, %v4092
    %v4094 = vand.u32 %v4093, 4294901760
    %4095 = vmatpush1.msra.mxu0 %v4094
    %4096 = vmatprep.subr.mxu0 0.0
    %v4097 = vand.u32 %v3960, 4294901760
    %v4098 = vsub.f32 %v3960, %v4097
    %v4099 = vand.u32 %v4098, 4294901760
    %v4100 = vsub.f32 %v4098, %v4099
    %v4101 = vand.u32 %v4100, 4294901760
    %4102 = vmatpush1.msra.mxu0 %v4101
    %4103 = vmatprep.subr.mxu0 0.0
    %v4104 = vand.u32 %v3961, 4294901760
    %v4105 = vsub.f32 %v3961, %v4104
    %v4106 = vand.u32 %v4105, 4294901760
    %v4107 = vsub.f32 %v4105, %v4106
    %v4108 = vand.u32 %v4107, 4294901760
    %4109 = vmatpush1.msra.mxu0 %v4108
    %4110 = vmatprep.subr.mxu0 0.0
    %v4111 = vand.u32 %v3962, 4294901760
    %v4112 = vsub.f32 %v3962, %v4111
    %v4113 = vand.u32 %v4112, 4294901760
    %v4114 = vsub.f32 %v4112, %v4113
    %v4115 = vand.u32 %v4114, 4294901760
    %4116 = vmatpush1.msra.mxu0 %v4115
    %4117 = vmatprep.subr.mxu0 0.0
    %4118 = vmatpush1.msra.mxu0 0.0
    %4119 = vmatprep.subr.mxu0 0.0
    %4120 = vmatpush1.msra.mxu0 0.0
    %4121 = vmatprep.subr.mxu0 0.0
    %4122 = vmatpush1.msra.mxu0 0.0
    %4123 = vmatprep.subr.mxu0 0.0
    %4124 = vmatpush1.msra.mxu0 0.0
    %4125 = vmatprep.subr.mxu0 0.0
    %4126 = vmatpush1.msra.mxu0 0.0
    %4127 = vmatprep.subr.mxu0 0.0
    %4128 = vmatpush1.msra.mxu0 0.0
    %4129 = vmatprep.subr.mxu0 0.0
    %4130 = vmatpush1.msra.mxu0 0.0
    %4131 = vmatprep.subr.mxu0 0.0
    %4132 = vmatpush1.msra.mxu0 0.0
    %4133 = vmatprep.subr.mxu0 0.0
    %4134 = vmatpush1.msra.mxu0 0.0
    %4135 = vmatprep.subr.mxu0 0.0
    %4136 = vmatpush1.msra.mxu0 0.0
    %4137 = vmatprep.subr.mxu0 0.0
    %4138 = vmatpush1.msra.mxu0 0.0
    %4139 = vmatprep.subr.mxu0 0.0
    %4140 = vmatpush1.msra.mxu0 0.0
    %4141 = vmatprep.subr.mxu0 0.0
    %4142 = vmatpush1.msra.mxu0 0.0
    %4143 = vmatprep.subr.mxu0 0.0
    %4144 = vmatpush1.msra.mxu0 0.0
    %4145 = vmatprep.subr.mxu0 0.0
    %4146 = vmatpush1.msra.mxu0 0.0
    %4147 = vmatprep.subr.mxu0 0.0
    %4148 = vmatpush1.msra.mxu0 0.0
    %4149 = vmatprep.subr.mxu0 0.0
    %4150 = vmatpush1.msra.mxu0 0.0
    %4151 = vmatprep.subr.mxu0 0.0
    %4152 = vmatpush1.msra.mxu0 0.0
    %4153 = vmatprep.subr.mxu0 0.0
    %4154 = vmatpush1.msra.mxu0 0.0
    %4155 = vmatprep.subr.mxu0 0.0
    %4156 = vmatpush1.msra.mxu0 0.0
    %4157 = vmatprep.subr.mxu0 0.0
    %4158 = vmatpush1.msra.mxu0 0.0
    %4159 = vmatprep.subr.mxu0 0.0
    %4160 = vmatpush1.msra.mxu0 0.0
    %4161 = vmatprep.subr.mxu0 0.0
    %4162 = vmatpush1.msra.mxu0 0.0
    %4163 = vmatprep.subr.mxu0 0.0
    %4164 = vmatpush1.msra.mxu0 0.0
    %4165 = vmatprep.subr.mxu0 0.0
    %4166 = vmatpush1.msra.mxu0 0.0
    %4167 = vmatprep.subr.mxu0 0.0
    %4168 = vmatpush1.msra.mxu0 0.0
    %4169 = vmatprep.subr.mxu0 0.0
    %4170 = vmatpush1.msra.mxu0 0.0
    %4171 = vmatprep.subr.mxu0 0.0
    %4172 = vmatpush1.msra.mxu0 0.0
    %4173 = vmatprep.mubr.f32.mxu0 0.0
    %v4174 = vand.u32 %v3969, 4294901760
    %4175 = vmatmul.mubr.f32.gmra.mrb[0].mxu0 %v4174
    %v4176 = vpop.f32.mrb[0].mxu0
    %v4177 = vadd.f32 %v4056, %v4176
    %v4178 = vpop.f32.mrb[0].mxu0
    %4179 = vmatprep.mubr.f32.mxu0 0.0
    %v4180 = vand.u32 %v3972, 4294901760
    %4181 = vmatmul.mubr.f32.gmra.mrb[0].mxu0 %v4180
    %v4182 = vpop.f32.mrb[0].mxu0
    %v4183 = vadd.f32 %v4066, %v4182
    %v4184 = vpop.f32.mrb[0].mxu0
    %4185 = vmatprep.mubr.f32.mxu0 0.0
    %v4186 = vand.u32 %v3975, 4294901760
    %4187 = vmatmul.mubr.f32.gmra.mrb[0].mxu0 %v4186
    %v4188 = vpop.f32.mrb[0].mxu0
    %v4189 = vadd.f32 %v4076, %v4188
    %v4190 = vpop.f32.mrb[0].mxu0
    %4191 = vmatprep.mubr.f32.mxu0 0.0
    %v4192 = vand.u32 %v3978, 4294901760
    %4193 = vmatmul.mubr.f32.gmra.mrb[0].mxu0 %v4192
    %v4194 = vpop.f32.mrb[0].mxu0
    %v4195 = vadd.f32 %v4086, %v4194
    %v4196 = vpop.f32.mrb[0].mxu0
    %4197 = vdwg.mxu0
    %4198 = vmatprep.subr.mxu0 0.0
    %v4199 = vand.u32 %v3959, 4294901760
    %v4200 = vsub.f32 %v3959, %v4199
    %4201 = vmatpush1.msra.mxu0 %v4200
    %4202 = vmatprep.subr.mxu0 0.0
    %v4203 = vand.u32 %v3960, 4294901760
    %v4204 = vsub.f32 %v3960, %v4203
    %4205 = vmatpush1.msra.mxu0 %v4204
    %4206 = vmatprep.subr.mxu0 0.0
    %v4207 = vand.u32 %v3961, 4294901760
    %v4208 = vsub.f32 %v3961, %v4207
    %4209 = vmatpush1.msra.mxu0 %v4208
    %4210 = vmatprep.subr.mxu0 0.0
    %v4211 = vand.u32 %v3962, 4294901760
    %v4212 = vsub.f32 %v3962, %v4211
    %4213 = vmatpush1.msra.mxu0 %v4212
    %4214 = vmatprep.subr.mxu0 0.0
    %4215 = vmatpush1.msra.mxu0 0.0
    %4216 = vmatprep.subr.mxu0 0.0
    %4217 = vmatpush1.msra.mxu0 0.0
    %4218 = vmatprep.subr.mxu0 0.0
    %4219 = vmatpush1.msra.mxu0 0.0
    %4220 = vmatprep.subr.mxu0 0.0
    %4221 = vmatpush1.msra.mxu0 0.0
    %4222 = vmatprep.subr.mxu0 0.0
    %4223 = vmatpush1.msra.mxu0 0.0
    %4224 = vmatprep.subr.mxu0 0.0
    %4225 = vmatpush1.msra.mxu0 0.0
    %4226 = vmatprep.subr.mxu0 0.0
    %4227 = vmatpush1.msra.mxu0 0.0
    %4228 = vmatprep.subr.mxu0 0.0
    %4229 = vmatpush1.msra.mxu0 0.0
    %4230 = vmatprep.subr.mxu0 0.0
    %4231 = vmatpush1.msra.mxu0 0.0
    %4232 = vmatprep.subr.mxu0 0.0
    %4233 = vmatpush1.msra.mxu0 0.0
    %4234 = vmatprep.subr.mxu0 0.0
    %4235 = vmatpush1.msra.mxu0 0.0
    %4236 = vmatprep.subr.mxu0 0.0
    %4237 = vmatpush1.msra.mxu0 0.0
    %4238 = vmatprep.subr.mxu0 0.0
    %4239 = vmatpush1.msra.mxu0 0.0
    %4240 = vmatprep.subr.mxu0 0.0
    %4241 = vmatpush1.msra.mxu0 0.0
    %4242 = vmatprep.subr.mxu0 0.0
    %4243 = vmatpush1.msra.mxu0 0.0
    %4244 = vmatprep.subr.mxu0 0.0
    %4245 = vmatpush1.msra.mxu0 0.0
    %4246 = vmatprep.subr.mxu0 0.0
    %4247 = vmatpush1.msra.mxu0 0.0
    %4248 = vmatprep.subr.mxu0 0.0
    %4249 = vmatpush1.msra.mxu0 0.0
    %4250 = vmatprep.subr.mxu0 0.0
    %4251 = vmatpush1.msra.mxu0 0.0
    %4252 = vmatprep.subr.mxu0 0.0
    %4253 = vmatpush1.msra.mxu0 0.0
    %4254 = vmatprep.subr.mxu0 0.0
    %4255 = vmatpush1.msra.mxu0 0.0
    %4256 = vmatprep.subr.mxu0 0.0
    %4257 = vmatpush1.msra.mxu0 0.0
    %4258 = vmatprep.subr.mxu0 0.0
    %4259 = vmatpush1.msra.mxu0 0.0
    %4260 = vmatprep.subr.mxu0 0.0
    %4261 = vmatpush1.msra.mxu0 0.0
    %4262 = vmatprep.subr.mxu0 0.0
    %4263 = vmatpush1.msra.mxu0 0.0
    %4264 = vmatprep.subr.mxu0 0.0
    %4265 = vmatpush1.msra.mxu0 0.0
    %4266 = vmatprep.subr.mxu0 0.0
    %4267 = vmatpush1.msra.mxu0 0.0
    %4268 = vmatprep.subr.mxu0 0.0
    %4269 = vmatpush1.msra.mxu0 0.0
    %4270 = vmatprep.mubr.f32.mxu0 0.0
    %v4271 = vand.u32 %v3969, 4294901760
    %v4272 = vsub.f32 %v3969, %v4271
    %4273 = vmatmul.mubr.f32.gmra.mrb[0].mxu0 %v4272
    %v4274 = vpop.f32.mrb[0].mxu0
    %v4275 = vadd.f32 %v4177, %v4274
    %v4276 = vpop.f32.mrb[0].mxu0
    %4277 = vmatprep.mubr.f32.mxu0 0.0
    %v4278 = vand.u32 %v3972, 4294901760
    %v4279 = vsub.f32 %v3972, %v4278
    %4280 = vmatmul.mubr.f32.gmra.mrb[0].mxu0 %v4279
    %v4281 = vpop.f32.mrb[0].mxu0
    %v4282 = vadd.f32 %v4183, %v4281
    %v4283 = vpop.f32.mrb[0].mxu0
    %4284 = vmatprep.mubr.f32.mxu0 0.0
    %v4285 = vand.u32 %v3975, 4294901760
    %v4286 = vsub.f32 %v3975, %v4285
    %4287 = vmatmul.mubr.f32.gmra.mrb[0].mxu0 %v4286
    %v4288 = vpop.f32.mrb[0].mxu0
    %v4289 = vadd.f32 %v4189, %v4288
    %v4290 = vpop.f32.mrb[0].mxu0
    %4291 = vmatprep.mubr.f32.mxu0 0.0
    %v4292 = vand.u32 %v3978, 4294901760
    %v4293 = vsub.f32 %v3978, %v4292
    %4294 = vmatmul.mubr.f32.gmra.mrb[0].mxu0 %v4293
    %v4295 = vpop.f32.mrb[0].mxu0
    %v4296 = vadd.f32 %v4195, %v4295
    %v4297 = vpop.f32.mrb[0].mxu0
    %4298 = vdwg.mxu0
    %4299 = vmatprep.subr.mxu0 0.0
    %v4300 = vand.u32 %v3959, 4294901760
    %4301 = vmatpush1.msra.mxu0 %v4300
    %4302 = vmatprep.subr.mxu0 0.0
    %v4303 = vand.u32 %v3960, 4294901760
    %4304 = vmatpush1.msra.mxu0 %v4303
    %4305 = vmatprep.subr.mxu0 0.0
    %v4306 = vand.u32 %v3961, 4294901760
    %4307 = vmatpush1.msra.mxu0 %v4306
    %4308 = vmatprep.subr.mxu0 0.0
    %v4309 = vand.u32 %v3962, 4294901760
    %4310 = vmatpush1.msra.mxu0 %v4309
    %4311 = vmatprep.subr.mxu0 0.0
    %4312 = vmatpush1.msra.mxu0 0.0
    %4313 = vmatprep.subr.mxu0 0.0
    %4314 = vmatpush1.msra.mxu0 0.0
    %4315 = vmatprep.subr.mxu0 0.0
    %4316 = vmatpush1.msra.mxu0 0.0
    %4317 = vmatprep.subr.mxu0 0.0
    %4318 = vmatpush1.msra.mxu0 0.0
    %4319 = vmatprep.subr.mxu0 0.0
    %4320 = vmatpush1.msra.mxu0 0.0
    %4321 = vmatprep.subr.mxu0 0.0
    %4322 = vmatpush1.msra.mxu0 0.0
    %4323 = vmatprep.subr.mxu0 0.0
    %4324 = vmatpush1.msra.mxu0 0.0
    %4325 = vmatprep.subr.mxu0 0.0
    %4326 = vmatpush1.msra.mxu0 0.0
    %4327 = vmatprep.subr.mxu0 0.0
    %4328 = vmatpush1.msra.mxu0 0.0
    %4329 = vmatprep.subr.mxu0 0.0
    %4330 = vmatpush1.msra.mxu0 0.0
    %4331 = vmatprep.subr.mxu0 0.0
    %4332 = vmatpush1.msra.mxu0 0.0
    %4333 = vmatprep.subr.mxu0 0.0
    %4334 = vmatpush1.msra.mxu0 0.0
    %4335 = vmatprep.subr.mxu0 0.0
    %4336 = vmatpush1.msra.mxu0 0.0
    %4337 = vmatprep.subr.mxu0 0.0
    %4338 = vmatpush1.msra.mxu0 0.0
    %4339 = vmatprep.subr.mxu0 0.0
    %4340 = vmatpush1.msra.mxu0 0.0
    %4341 = vmatprep.subr.mxu0 0.0
    %4342 = vmatpush1.msra.mxu0 0.0
    %4343 = vmatprep.subr.mxu0 0.0
    %4344 = vmatpush1.msra.mxu0 0.0
    %4345 = vmatprep.subr.mxu0 0.0
    %4346 = vmatpush1.msra.mxu0 0.0
    %4347 = vmatprep.subr.mxu0 0.0
    %4348 = vmatpush1.msra.mxu0 0.0
    %4349 = vmatprep.subr.mxu0 0.0
    %4350 = vmatpush1.msra.mxu0 0.0
    %4351 = vmatprep.subr.mxu0 0.0
    %4352 = vmatpush1.msra.mxu0 0.0
    %4353 = vmatprep.subr.mxu0 0.0
    %4354 = vmatpush1.msra.mxu0 0.0
    %4355 = vmatprep.subr.mxu0 0.0
    %4356 = vmatpush1.msra.mxu0 0.0
    %4357 = vmatprep.subr.mxu0 0.0
    %4358 = vmatpush1.msra.mxu0 0.0
    %4359 = vmatprep.subr.mxu0 0.0
    %4360 = vmatpush1.msra.mxu0 0.0
    %4361 = vmatprep.subr.mxu0 0.0
    %4362 = vmatpush1.msra.mxu0 0.0
    %4363 = vmatprep.subr.mxu0 0.0
    %4364 = vmatpush1.msra.mxu0 0.0
    %4365 = vmatprep.subr.mxu0 0.0
    %4366 = vmatpush1.msra.mxu0 0.0
    %4367 = vmatprep.mubr.f32.mxu0 0.0
    %v4368 = vand.u32 %v3969, 4294901760
    %v4369 = vsub.f32 %v3969, %v4368
    %v4370 = vand.u32 %v4369, 4294901760
    %4371 = vmatmul.mubr.f32.gmra.mrb[0].mxu0 %v4370
    %v4372 = vpop.f32.mrb[0].mxu0
    %v4373 = vadd.f32 %v4275, %v4372
    %v4374 = vpop.f32.mrb[0].mxu0
    %4375 = vmatprep.mubr.f32.mxu0 0.0
    %v4376 = vand.u32 %v3972, 4294901760
    %v4377 = vsub.f32 %v3972, %v4376
    %v4378 = vand.u32 %v4377, 4294901760
    %4379 = vmatmul.mubr.f32.gmra.mrb[0].mxu0 %v4378
    %v4380 = vpop.f32.mrb[0].mxu0
    %v4381 = vadd.f32 %v4282, %v4380
    %v4382 = vpop.f32.mrb[0].mxu0
    %4383 = vmatprep.mubr.f32.mxu0 0.0
    %v4384 = vand.u32 %v3975, 4294901760
    %v4385 = vsub.f32 %v3975, %v4384
    %v4386 = vand.u32 %v4385, 4294901760
    %4387 = vmatmul.mubr.f32.gmra.mrb[0].mxu0 %v4386
    %v4388 = vpop.f32.mrb[0].mxu0
    %v4389 = vadd.f32 %v4289, %v4388
    %v4390 = vpop.f32.mrb[0].mxu0
    %4391 = vmatprep.mubr.f32.mxu0 0.0
    %v4392 = vand.u32 %v3978, 4294901760
    %v4393 = vsub.f32 %v3978, %v4392
    %v4394 = vand.u32 %v4393, 4294901760
    %4395 = vmatmul.mubr.f32.gmra.mrb[0].mxu0 %v4394
    %v4396 = vpop.f32.mrb[0].mxu0
    %v4397 = vadd.f32 %v4296, %v4396
    %v4398 = vpop.f32.mrb[0].mxu0
    %4399 = vdwg.mxu0
    %4400 = vmatprep.subr.mxu0 0.0
    %v4401 = vand.u32 %v3959, 4294901760
    %v4402 = vsub.f32 %v3959, %v4401
    %v4403 = vand.u32 %v4402, 4294901760
    %4404 = vmatpush1.msra.mxu0 %v4403
    %4405 = vmatprep.subr.mxu0 0.0
    %v4406 = vand.u32 %v3960, 4294901760
    %v4407 = vsub.f32 %v3960, %v4406
    %v4408 = vand.u32 %v4407, 4294901760
    %4409 = vmatpush1.msra.mxu0 %v4408
    %4410 = vmatprep.subr.mxu0 0.0
    %v4411 = vand.u32 %v3961, 4294901760
    %v4412 = vsub.f32 %v3961, %v4411
    %v4413 = vand.u32 %v4412, 4294901760
    %4414 = vmatpush1.msra.mxu0 %v4413
    %4415 = vmatprep.subr.mxu0 0.0
    %v4416 = vand.u32 %v3962, 4294901760
    %v4417 = vsub.f32 %v3962, %v4416
    %v4418 = vand.u32 %v4417, 4294901760
    %4419 = vmatpush1.msra.mxu0 %v4418
    %4420 = vmatprep.subr.mxu0 0.0
    %4421 = vmatpush1.msra.mxu0 0.0
    %4422 = vmatprep.subr.mxu0 0.0
    %4423 = vmatpush1.msra.mxu0 0.0
    %4424 = vmatprep.subr.mxu0 0.0
    %4425 = vmatpush1.msra.mxu0 0.0
    %4426 = vmatprep.subr.mxu0 0.0
    %4427 = vmatpush1.msra.mxu0 0.0
    %4428 = vmatprep.subr.mxu0 0.0
    %4429 = vmatpush1.msra.mxu0 0.0
    %4430 = vmatprep.subr.mxu0 0.0
    %4431 = vmatpush1.msra.mxu0 0.0
    %4432 = vmatprep.subr.mxu0 0.0
    %4433 = vmatpush1.msra.mxu0 0.0
    %4434 = vmatprep.subr.mxu0 0.0
    %4435 = vmatpush1.msra.mxu0 0.0
    %4436 = vmatprep.subr.mxu0 0.0
    %4437 = vmatpush1.msra.mxu0 0.0
    %4438 = vmatprep.subr.mxu0 0.0
    %4439 = vmatpush1.msra.mxu0 0.0
    %4440 = vmatprep.subr.mxu0 0.0
    %4441 = vmatpush1.msra.mxu0 0.0
    %4442 = vmatprep.subr.mxu0 0.0
    %4443 = vmatpush1.msra.mxu0 0.0
    %4444 = vmatprep.subr.mxu0 0.0
    %4445 = vmatpush1.msra.mxu0 0.0
    %4446 = vmatprep.subr.mxu0 0.0
    %4447 = vmatpush1.msra.mxu0 0.0
    %4448 = vmatprep.subr.mxu0 0.0
    %4449 = vmatpush1.msra.mxu0 0.0
    %4450 = vmatprep.subr.mxu0 0.0
    %4451 = vmatpush1.msra.mxu0 0.0
    %4452 = vmatprep.subr.mxu0 0.0
    %4453 = vmatpush1.msra.mxu0 0.0
    %4454 = vmatprep.subr.mxu0 0.0
    %4455 = vmatpush1.msra.mxu0 0.0
    %4456 = vmatprep.subr.mxu0 0.0
    %4457 = vmatpush1.msra.mxu0 0.0
    %4458 = vmatprep.subr.mxu0 0.0
    %4459 = vmatpush1.msra.mxu0 0.0
    %4460 = vmatprep.subr.mxu0 0.0
    %4461 = vmatpush1.msra.mxu0 0.0
    %4462 = vmatprep.subr.mxu0 0.0
    %4463 = vmatpush1.msra.mxu0 0.0
    %4464 = vmatprep.subr.mxu0 0.0
    %4465 = vmatpush1.msra.mxu0 0.0
    %4466 = vmatprep.subr.mxu0 0.0
    %4467 = vmatpush1.msra.mxu0 0.0
    %4468 = vmatprep.subr.mxu0 0.0
    %4469 = vmatpush1.msra.mxu0 0.0
    %4470 = vmatprep.subr.mxu0 0.0
    %4471 = vmatpush1.msra.mxu0 0.0
    %4472 = vmatprep.subr.mxu0 0.0
    %4473 = vmatpush1.msra.mxu0 0.0
    %4474 = vmatprep.subr.mxu0 0.0
    %4475 = vmatpush1.msra.mxu0 0.0
    %4476 = vmatprep.mubr.f32.mxu0 0.0
    %v4477 = vand.u32 %v3969, 4294901760
    %4478 = vmatmul.mubr.f32.gmra.mrb[0].mxu0 %v4477
    %v4479 = vpop.f32.mrb[0].mxu0
    %v4480 = vadd.f32 %v4373, %v4479
    %v4481 = vpop.f32.mrb[0].mxu0
    %4482 = vmatprep.mubr.f32.mxu0 0.0
    %v4483 = vand.u32 %v3972, 4294901760
    %4484 = vmatmul.mubr.f32.gmra.mrb[0].mxu0 %v4483
    %v4485 = vpop.f32.mrb[0].mxu0
    %v4486 = vadd.f32 %v4381, %v4485
    %v4487 = vpop.f32.mrb[0].mxu0
    %4488 = vmatprep.mubr.f32.mxu0 0.0
    %v4489 = vand.u32 %v3975, 4294901760
    %4490 = vmatmul.mubr.f32.gmra.mrb[0].mxu0 %v4489
    %v4491 = vpop.f32.mrb[0].mxu0
    %v4492 = vadd.f32 %v4389, %v4491
    %v4493 = vpop.f32.mrb[0].mxu0
    %4494 = vmatprep.mubr.f32.mxu0 0.0
    %v4495 = vand.u32 %v3978, 4294901760
    %4496 = vmatmul.mubr.f32.gmra.mrb[0].mxu0 %v4495
    %v4497 = vpop.f32.mrb[0].mxu0
    %v4498 = vadd.f32 %v4397, %v4497
    %v4499 = vpop.f32.mrb[0].mxu0
    %4500 = vdwg.mxu0
    %4501 = vmatprep.subr.mxu0 0.0
    %v4502 = vand.u32 %v3959, 4294901760
    %4503 = vmatpush1.msra.mxu0 %v4502
    %4504 = vmatprep.subr.mxu0 0.0
    %v4505 = vand.u32 %v3960, 4294901760
    %4506 = vmatpush1.msra.mxu0 %v4505
    %4507 = vmatprep.subr.mxu0 0.0
    %v4508 = vand.u32 %v3961, 4294901760
    %4509 = vmatpush1.msra.mxu0 %v4508
    %4510 = vmatprep.subr.mxu0 0.0
    %v4511 = vand.u32 %v3962, 4294901760
    %4512 = vmatpush1.msra.mxu0 %v4511
    %4513 = vmatprep.subr.mxu0 0.0
    %4514 = vmatpush1.msra.mxu0 0.0
    %4515 = vmatprep.subr.mxu0 0.0
    %4516 = vmatpush1.msra.mxu0 0.0
    %4517 = vmatprep.subr.mxu0 0.0
    %4518 = vmatpush1.msra.mxu0 0.0
    %4519 = vmatprep.subr.mxu0 0.0
    %4520 = vmatpush1.msra.mxu0 0.0
    %4521 = vmatprep.subr.mxu0 0.0
    %4522 = vmatpush1.msra.mxu0 0.0
    %4523 = vmatprep.subr.mxu0 0.0
    %4524 = vmatpush1.msra.mxu0 0.0
    %4525 = vmatprep.subr.mxu0 0.0
    %4526 = vmatpush1.msra.mxu0 0.0
    %4527 = vmatprep.subr.mxu0 0.0
    %4528 = vmatpush1.msra.mxu0 0.0
    %4529 = vmatprep.subr.mxu0 0.0
    %4530 = vmatpush1.msra.mxu0 0.0
    %4531 = vmatprep.subr.mxu0 0.0
    %4532 = vmatpush1.msra.mxu0 0.0
    %4533 = vmatprep.subr.mxu0 0.0
    %4534 = vmatpush1.msra.mxu0 0.0
    %4535 = vmatprep.subr.mxu0 0.0
    %4536 = vmatpush1.msra.mxu0 0.0
    %4537 = vmatprep.subr.mxu0 0.0
    %4538 = vmatpush1.msra.mxu0 0.0
    %4539 = vmatprep.subr.mxu0 0.0
    %4540 = vmatpush1.msra.mxu0 0.0
    %4541 = vmatprep.subr.mxu0 0.0
    %4542 = vmatpush1.msra.mxu0 0.0
    %4543 = vmatprep.subr.mxu0 0.0
    %4544 = vmatpush1.msra.mxu0 0.0
    %4545 = vmatprep.subr.mxu0 0.0
    %4546 = vmatpush1.msra.mxu0 0.0
    %4547 = vmatprep.subr.mxu0 0.0
    %4548 = vmatpush1.msra.mxu0 0.0
    %4549 = vmatprep.subr.mxu0 0.0
    %4550 = vmatpush1.msra.mxu0 0.0
    %4551 = vmatprep.subr.mxu0 0.0
    %4552 = vmatpush1.msra.mxu0 0.0
    %4553 = vmatprep.subr.mxu0 0.0
    %4554 = vmatpush1.msra.mxu0 0.0
    %4555 = vmatprep.subr.mxu0 0.0
    %4556 = vmatpush1.msra.mxu0 0.0
    %4557 = vmatprep.subr.mxu0 0.0
    %4558 = vmatpush1.msra.mxu0 0.0
    %4559 = vmatprep.subr.mxu0 0.0
    %4560 = vmatpush1.msra.mxu0 0.0
    %4561 = vmatprep.subr.mxu0 0.0
    %4562 = vmatpush1.msra.mxu0 0.0
    %4563 = vmatprep.subr.mxu0 0.0
    %4564 = vmatpush1.msra.mxu0 0.0
    %4565 = vmatprep.subr.mxu0 0.0
    %4566 = vmatpush1.msra.mxu0 0.0
    %4567 = vmatprep.subr.mxu0 0.0
    %4568 = vmatpush1.msra.mxu0 0.0
    %4569 = vmatprep.mubr.f32.mxu0 0.0
    %v4570 = vand.u32 %v3969, 4294901760
    %4571 = vmatmul.mubr.f32.gmra.mrb[0].mxu0 %v4570
    %v4572 = vpop.f32.mrb[0].mxu0
    %v4573 = vadd.f32 %v4480, %v4572
    %v4574 = vpop.f32.mrb[0].mxu0
    %4575 = vmatprep.mubr.f32.mxu0 0.0
    %v4576 = vand.u32 %v3972, 4294901760
    %4577 = vmatmul.mubr.f32.gmra.mrb[0].mxu0 %v4576
    %v4578 = vpop.f32.mrb[0].mxu0
    %v4579 = vadd.f32 %v4486, %v4578
    %v4580 = vpop.f32.mrb[0].mxu0
    %4581 = vmatprep.mubr.f32.mxu0 0.0
    %v4582 = vand.u32 %v3975, 4294901760
    %4583 = vmatmul.mubr.f32.gmra.mrb[0].mxu0 %v4582
    %v4584 = vpop.f32.mrb[0].mxu0
    %v4585 = vadd.f32 %v4492, %v4584
    %v4586 = vpop.f32.mrb[0].mxu0
    %4587 = vmatprep.mubr.f32.mxu0 0.0
    %v4588 = vand.u32 %v3978, 4294901760
    %4589 = vmatmul.mubr.f32.gmra.mrb[0].mxu0 %v4588
    %v4590 = vpop.f32.mrb[0].mxu0
    %v4591 = vadd.f32 %v4498, %v4590
    %v4592 = vpop.f32.mrb[0].mxu0
    %4593 = vdwg.mxu0
    %v4594 = vadd.f32 %v3942, %v4573
    %v4595 = vadd.f32 %v3943, %v4579
    %v4596 = vadd.f32 %v3944, %v4585
    %v4597 = vadd.f32 %v3945, %v4591
    %v4598 = vld [vmem:[#allocation2 + $0x7] sm:$0x1]
    %v4599 = vlaneseq
    %v4600 = vshrl.u32 %v4599, 7
    %v4601 = vsub.s32 0, %v4600
    %v4602 = vrot.slane %v4598, %v4601
    %vm4603 = vcmp.eq.s32.totalorder %v4602, %v38
    %vm4604 = vcmp.eq.s32.totalorder %v4602, %v39
    %vm4605 = vcmp.eq.s32.totalorder %v4602, %v40
    %vm4606 = vcmp.eq.s32.totalorder %v4602, %v41
    %v4607 = vsel %vm4603, 1, 0
    %v4608 = vsel %vm4604, 1, 0
    %v4609 = vsel %vm4605, 1, 0
    %v4610 = vsel %vm4606, 1, 0
    %v4611 = vcvt.s32.f32 %v4607
    %v4612 = vcvt.s32.f32 %v4608
    %v4613 = vcvt.s32.f32 %v4609
    %v4614 = vcvt.s32.f32 %v4610
    %s4615 = scalar_lea.vmem [#allocation4], 224
    %v4616 = vld [vmem:[%s4615] sm:$0xff]
    %v4617 = vld [vmem:[%s4615 + $0x8] sm:$0xff]
    %v4618 = vld [vmem:[%s4615 + $0x10] sm:$0xff]
    %v4619 = vld [vmem:[%s4615 + $0x18] sm:$0xff]
    %v4621 = vsel %vm85, %v4616, 0
    %v4624 = vsel %vm85, %v4617, 0
    %v4627 = vsel %vm85, %v4618, 0
    %v4630 = vsel %vm85, %v4619, 0
    %4632 = vmatprep.subr.mxu0 0.0
    %v4633 = vand.u32 %v4611, 4294901760
    %4634 = vmatpush1.msra.mxu0 %v4633
    %4635 = vmatprep.subr.mxu0 0.0
    %v4636 = vand.u32 %v4612, 4294901760
    %4637 = vmatpush1.msra.mxu0 %v4636
    %4638 = vmatprep.subr.mxu0 0.0
    %v4639 = vand.u32 %v4613, 4294901760
    %4640 = vmatpush1.msra.mxu0 %v4639
    %4641 = vmatprep.subr.mxu0 0.0
    %v4642 = vand.u32 %v4614, 4294901760
    %4643 = vmatpush1.msra.mxu0 %v4642
    %4644 = vmatprep.subr.mxu0 0.0
    %4645 = vmatpush1.msra.mxu0 0.0
    %4646 = vmatprep.subr.mxu0 0.0
    %4647 = vmatpush1.msra.mxu0 0.0
    %4648 = vmatprep.subr.mxu0 0.0
    %4649 = vmatpush1.msra.mxu0 0.0
    %4650 = vmatprep.subr.mxu0 0.0
    %4651 = vmatpush1.msra.mxu0 0.0
    %4652 = vmatprep.subr.mxu0 0.0
    %4653 = vmatpush1.msra.mxu0 0.0
    %4654 = vmatprep.subr.mxu0 0.0
    %4655 = vmatpush1.msra.mxu0 0.0
    %4656 = vmatprep.subr.mxu0 0.0
    %4657 = vmatpush1.msra.mxu0 0.0
    %4658 = vmatprep.subr.mxu0 0.0
    %4659 = vmatpush1.msra.mxu0 0.0
    %4660 = vmatprep.subr.mxu0 0.0
    %4661 = vmatpush1.msra.mxu0 0.0
    %4662 = vmatprep.subr.mxu0 0.0
    %4663 = vmatpush1.msra.mxu0 0.0
    %4664 = vmatprep.subr.mxu0 0.0
    %4665 = vmatpush1.msra.mxu0 0.0
    %4666 = vmatprep.subr.mxu0 0.0
    %4667 = vmatpush1.msra.mxu0 0.0
    %4668 = vmatprep.subr.mxu0 0.0
    %4669 = vmatpush1.msra.mxu0 0.0
    %4670 = vmatprep.subr.mxu0 0.0
    %4671 = vmatpush1.msra.mxu0 0.0
    %4672 = vmatprep.subr.mxu0 0.0
    %4673 = vmatpush1.msra.mxu0 0.0
    %4674 = vmatprep.subr.mxu0 0.0
    %4675 = vmatpush1.msra.mxu0 0.0
    %4676 = vmatprep.subr.mxu0 0.0
    %4677 = vmatpush1.msra.mxu0 0.0
    %4678 = vmatprep.subr.mxu0 0.0
    %4679 = vmatpush1.msra.mxu0 0.0
    %4680 = vmatprep.subr.mxu0 0.0
    %4681 = vmatpush1.msra.mxu0 0.0
    %4682 = vmatprep.subr.mxu0 0.0
    %4683 = vmatpush1.msra.mxu0 0.0
    %4684 = vmatprep.subr.mxu0 0.0
    %4685 = vmatpush1.msra.mxu0 0.0
    %4686 = vmatprep.subr.mxu0 0.0
    %4687 = vmatpush1.msra.mxu0 0.0
    %4688 = vmatprep.subr.mxu0 0.0
    %4689 = vmatpush1.msra.mxu0 0.0
    %4690 = vmatprep.subr.mxu0 0.0
    %4691 = vmatpush1.msra.mxu0 0.0
    %4692 = vmatprep.subr.mxu0 0.0
    %4693 = vmatpush1.msra.mxu0 0.0
    %4694 = vmatprep.subr.mxu0 0.0
    %4695 = vmatpush1.msra.mxu0 0.0
    %4696 = vmatprep.subr.mxu0 0.0
    %4697 = vmatpush1.msra.mxu0 0.0
    %4698 = vmatprep.subr.mxu0 0.0
    %4699 = vmatpush1.msra.mxu0 0.0
    %4700 = vmatprep.mubr.f32.mxu0 0.0
    %v4701 = vand.u32 %v4621, 4294901760
    %v4702 = vsub.f32 %v4621, %v4701
    %v4703 = vand.u32 %v4702, 4294901760
    %v4704 = vsub.f32 %v4702, %v4703
    %v4705 = vand.u32 %v4704, 4294901760
    %4706 = vmatmul.mubr.f32.gmra.mrb[0].mxu0 %v4705
    %v4707 = vpop.f32.mrb[0].mxu0
    %v4708 = vadd.f32 0.0, %v4707
    %v4709 = vpop.f32.mrb[0].mxu0
    %4710 = vmatprep.mubr.f32.mxu0 0.0
    %v4711 = vand.u32 %v4624, 4294901760
    %v4712 = vsub.f32 %v4624, %v4711
    %v4713 = vand.u32 %v4712, 4294901760
    %v4714 = vsub.f32 %v4712, %v4713
    %v4715 = vand.u32 %v4714, 4294901760
    %4716 = vmatmul.mubr.f32.gmra.mrb[0].mxu0 %v4715
    %v4717 = vpop.f32.mrb[0].mxu0
    %v4718 = vadd.f32 0.0, %v4717
    %v4719 = vpop.f32.mrb[0].mxu0
    %4720 = vmatprep.mubr.f32.mxu0 0.0
    %v4721 = vand.u32 %v4627, 4294901760
    %v4722 = vsub.f32 %v4627, %v4721
    %v4723 = vand.u32 %v4722, 4294901760
    %v4724 = vsub.f32 %v4722, %v4723
    %v4725 = vand.u32 %v4724, 4294901760
    %4726 = vmatmul.mubr.f32.gmra.mrb[0].mxu0 %v4725
    %v4727 = vpop.f32.mrb[0].mxu0
    %v4728 = vadd.f32 0.0, %v4727
    %v4729 = vpop.f32.mrb[0].mxu0
    %4730 = vmatprep.mubr.f32.mxu0 0.0
    %v4731 = vand.u32 %v4630, 4294901760
    %v4732 = vsub.f32 %v4630, %v4731
    %v4733 = vand.u32 %v4732, 4294901760
    %v4734 = vsub.f32 %v4732, %v4733
    %v4735 = vand.u32 %v4734, 4294901760
    %4736 = vmatmul.mubr.f32.gmra.mrb[0].mxu0 %v4735
    %v4737 = vpop.f32.mrb[0].mxu0
    %v4738 = vadd.f32 0.0, %v4737
    %v4739 = vpop.f32.mrb[0].mxu0
    %4740 = vdwg.mxu0
    %4741 = vmatprep.subr.mxu0 0.0
    %v4742 = vand.u32 %v4611, 4294901760
    %v4743 = vsub.f32 %v4611, %v4742
    %v4744 = vand.u32 %v4743, 4294901760
    %v4745 = vsub.f32 %v4743, %v4744
    %v4746 = vand.u32 %v4745, 4294901760
    %4747 = vmatpush1.msra.mxu0 %v4746
    %4748 = vmatprep.subr.mxu0 0.0
    %v4749 = vand.u32 %v4612, 4294901760
    %v4750 = vsub.f32 %v4612, %v4749
    %v4751 = vand.u32 %v4750, 4294901760
    %v4752 = vsub.f32 %v4750, %v4751
    %v4753 = vand.u32 %v4752, 4294901760
    %4754 = vmatpush1.msra.mxu0 %v4753
    %4755 = vmatprep.subr.mxu0 0.0
    %v4756 = vand.u32 %v4613, 4294901760
    %v4757 = vsub.f32 %v4613, %v4756
    %v4758 = vand.u32 %v4757, 4294901760
    %v4759 = vsub.f32 %v4757, %v4758
    %v4760 = vand.u32 %v4759, 4294901760
    %4761 = vmatpush1.msra.mxu0 %v4760
    %4762 = vmatprep.subr.mxu0 0.0
    %v4763 = vand.u32 %v4614, 4294901760
    %v4764 = vsub.f32 %v4614, %v4763
    %v4765 = vand.u32 %v4764, 4294901760
    %v4766 = vsub.f32 %v4764, %v4765
    %v4767 = vand.u32 %v4766, 4294901760
    %4768 = vmatpush1.msra.mxu0 %v4767
    %4769 = vmatprep.subr.mxu0 0.0
    %4770 = vmatpush1.msra.mxu0 0.0
    %4771 = vmatprep.subr.mxu0 0.0
    %4772 = vmatpush1.msra.mxu0 0.0
    %4773 = vmatprep.subr.mxu0 0.0
    %4774 = vmatpush1.msra.mxu0 0.0
    %4775 = vmatprep.subr.mxu0 0.0
    %4776 = vmatpush1.msra.mxu0 0.0
    %4777 = vmatprep.subr.mxu0 0.0
    %4778 = vmatpush1.msra.mxu0 0.0
    %4779 = vmatprep.subr.mxu0 0.0
    %4780 = vmatpush1.msra.mxu0 0.0
    %4781 = vmatprep.subr.mxu0 0.0
    %4782 = vmatpush1.msra.mxu0 0.0
    %4783 = vmatprep.subr.mxu0 0.0
    %4784 = vmatpush1.msra.mxu0 0.0
    %4785 = vmatprep.subr.mxu0 0.0
    %4786 = vmatpush1.msra.mxu0 0.0
    %4787 = vmatprep.subr.mxu0 0.0
    %4788 = vmatpush1.msra.mxu0 0.0
    %4789 = vmatprep.subr.mxu0 0.0
    %4790 = vmatpush1.msra.mxu0 0.0
    %4791 = vmatprep.subr.mxu0 0.0
    %4792 = vmatpush1.msra.mxu0 0.0
    %4793 = vmatprep.subr.mxu0 0.0
    %4794 = vmatpush1.msra.mxu0 0.0
    %4795 = vmatprep.subr.mxu0 0.0
    %4796 = vmatpush1.msra.mxu0 0.0
    %4797 = vmatprep.subr.mxu0 0.0
    %4798 = vmatpush1.msra.mxu0 0.0
    %4799 = vmatprep.subr.mxu0 0.0
    %4800 = vmatpush1.msra.mxu0 0.0
    %4801 = vmatprep.subr.mxu0 0.0
    %4802 = vmatpush1.msra.mxu0 0.0
    %4803 = vmatprep.subr.mxu0 0.0
    %4804 = vmatpush1.msra.mxu0 0.0
    %4805 = vmatprep.subr.mxu0 0.0
    %4806 = vmatpush1.msra.mxu0 0.0
    %4807 = vmatprep.subr.mxu0 0.0
    %4808 = vmatpush1.msra.mxu0 0.0
    %4809 = vmatprep.subr.mxu0 0.0
    %4810 = vmatpush1.msra.mxu0 0.0
    %4811 = vmatprep.subr.mxu0 0.0
    %4812 = vmatpush1.msra.mxu0 0.0
    %4813 = vmatprep.subr.mxu0 0.0
    %4814 = vmatpush1.msra.mxu0 0.0
    %4815 = vmatprep.subr.mxu0 0.0
    %4816 = vmatpush1.msra.mxu0 0.0
    %4817 = vmatprep.subr.mxu0 0.0
    %4818 = vmatpush1.msra.mxu0 0.0
    %4819 = vmatprep.subr.mxu0 0.0
    %4820 = vmatpush1.msra.mxu0 0.0
    %4821 = vmatprep.subr.mxu0 0.0
    %4822 = vmatpush1.msra.mxu0 0.0
    %4823 = vmatprep.subr.mxu0 0.0
    %4824 = vmatpush1.msra.mxu0 0.0
    %4825 = vmatprep.mubr.f32.mxu0 0.0
    %v4826 = vand.u32 %v4621, 4294901760
    %4827 = vmatmul.mubr.f32.gmra.mrb[0].mxu0 %v4826
    %v4828 = vpop.f32.mrb[0].mxu0
    %v4829 = vadd.f32 %v4708, %v4828
    %v4830 = vpop.f32.mrb[0].mxu0
    %4831 = vmatprep.mubr.f32.mxu0 0.0
    %v4832 = vand.u32 %v4624, 4294901760
    %4833 = vmatmul.mubr.f32.gmra.mrb[0].mxu0 %v4832
    %v4834 = vpop.f32.mrb[0].mxu0
    %v4835 = vadd.f32 %v4718, %v4834
    %v4836 = vpop.f32.mrb[0].mxu0
    %4837 = vmatprep.mubr.f32.mxu0 0.0
    %v4838 = vand.u32 %v4627, 4294901760
    %4839 = vmatmul.mubr.f32.gmra.mrb[0].mxu0 %v4838
    %v4840 = vpop.f32.mrb[0].mxu0
    %v4841 = vadd.f32 %v4728, %v4840
    %v4842 = vpop.f32.mrb[0].mxu0
    %4843 = vmatprep.mubr.f32.mxu0 0.0
    %v4844 = vand.u32 %v4630, 4294901760
    %4845 = vmatmul.mubr.f32.gmra.mrb[0].mxu0 %v4844
    %v4846 = vpop.f32.mrb[0].mxu0
    %v4847 = vadd.f32 %v4738, %v4846
    %v4848 = vpop.f32.mrb[0].mxu0
    %4849 = vdwg.mxu0
    %4850 = vmatprep.subr.mxu0 0.0
    %v4851 = vand.u32 %v4611, 4294901760
    %v4852 = vsub.f32 %v4611, %v4851
    %4853 = vmatpush1.msra.mxu0 %v4852
    %4854 = vmatprep.subr.mxu0 0.0
    %v4855 = vand.u32 %v4612, 4294901760
    %v4856 = vsub.f32 %v4612, %v4855
    %4857 = vmatpush1.msra.mxu0 %v4856
    %4858 = vmatprep.subr.mxu0 0.0
    %v4859 = vand.u32 %v4613, 4294901760
    %v4860 = vsub.f32 %v4613, %v4859
    %4861 = vmatpush1.msra.mxu0 %v4860
    %4862 = vmatprep.subr.mxu0 0.0
    %v4863 = vand.u32 %v4614, 4294901760
    %v4864 = vsub.f32 %v4614, %v4863
    %4865 = vmatpush1.msra.mxu0 %v4864
    %4866 = vmatprep.subr.mxu0 0.0
    %4867 = vmatpush1.msra.mxu0 0.0
    %4868 = vmatprep.subr.mxu0 0.0
    %4869 = vmatpush1.msra.mxu0 0.0
    %4870 = vmatprep.subr.mxu0 0.0
    %4871 = vmatpush1.msra.mxu0 0.0
    %4872 = vmatprep.subr.mxu0 0.0
    %4873 = vmatpush1.msra.mxu0 0.0
    %4874 = vmatprep.subr.mxu0 0.0
    %4875 = vmatpush1.msra.mxu0 0.0
    %4876 = vmatprep.subr.mxu0 0.0
    %4877 = vmatpush1.msra.mxu0 0.0
    %4878 = vmatprep.subr.mxu0 0.0
    %4879 = vmatpush1.msra.mxu0 0.0
    %4880 = vmatprep.subr.mxu0 0.0
    %4881 = vmatpush1.msra.mxu0 0.0
    %4882 = vmatprep.subr.mxu0 0.0
    %4883 = vmatpush1.msra.mxu0 0.0
    %4884 = vmatprep.subr.mxu0 0.0
    %4885 = vmatpush1.msra.mxu0 0.0
    %4886 = vmatprep.subr.mxu0 0.0
    %4887 = vmatpush1.msra.mxu0 0.0
    %4888 = vmatprep.subr.mxu0 0.0
    %4889 = vmatpush1.msra.mxu0 0.0
    %4890 = vmatprep.subr.mxu0 0.0
    %4891 = vmatpush1.msra.mxu0 0.0
    %4892 = vmatprep.subr.mxu0 0.0
    %4893 = vmatpush1.msra.mxu0 0.0
    %4894 = vmatprep.subr.mxu0 0.0
    %4895 = vmatpush1.msra.mxu0 0.0
    %4896 = vmatprep.subr.mxu0 0.0
    %4897 = vmatpush1.msra.mxu0 0.0
    %4898 = vmatprep.subr.mxu0 0.0
    %4899 = vmatpush1.msra.mxu0 0.0
    %4900 = vmatprep.subr.mxu0 0.0
    %4901 = vmatpush1.msra.mxu0 0.0
    %4902 = vmatprep.subr.mxu0 0.0
    %4903 = vmatpush1.msra.mxu0 0.0
    %4904 = vmatprep.subr.mxu0 0.0
    %4905 = vmatpush1.msra.mxu0 0.0
    %4906 = vmatprep.subr.mxu0 0.0
    %4907 = vmatpush1.msra.mxu0 0.0
    %4908 = vmatprep.subr.mxu0 0.0
    %4909 = vmatpush1.msra.mxu0 0.0
    %4910 = vmatprep.subr.mxu0 0.0
    %4911 = vmatpush1.msra.mxu0 0.0
    %4912 = vmatprep.subr.mxu0 0.0
    %4913 = vmatpush1.msra.mxu0 0.0
    %4914 = vmatprep.subr.mxu0 0.0
    %4915 = vmatpush1.msra.mxu0 0.0
    %4916 = vmatprep.subr.mxu0 0.0
    %4917 = vmatpush1.msra.mxu0 0.0
    %4918 = vmatprep.subr.mxu0 0.0
    %4919 = vmatpush1.msra.mxu0 0.0
    %4920 = vmatprep.subr.mxu0 0.0
    %4921 = vmatpush1.msra.mxu0 0.0
    %4922 = vmatprep.mubr.f32.mxu0 0.0
    %v4923 = vand.u32 %v4621, 4294901760
    %v4924 = vsub.f32 %v4621, %v4923
    %4925 = vmatmul.mubr.f32.gmra.mrb[0].mxu0 %v4924
    %v4926 = vpop.f32.mrb[0].mxu0
    %v4927 = vadd.f32 %v4829, %v4926
    %v4928 = vpop.f32.mrb[0].mxu0
    %4929 = vmatprep.mubr.f32.mxu0 0.0
    %v4930 = vand.u32 %v4624, 4294901760
    %v4931 = vsub.f32 %v4624, %v4930
    %4932 = vmatmul.mubr.f32.gmra.mrb[0].mxu0 %v4931
    %v4933 = vpop.f32.mrb[0].mxu0
    %v4934 = vadd.f32 %v4835, %v4933
    %v4935 = vpop.f32.mrb[0].mxu0
    %4936 = vmatprep.mubr.f32.mxu0 0.0
    %v4937 = vand.u32 %v4627, 4294901760
    %v4938 = vsub.f32 %v4627, %v4937
    %4939 = vmatmul.mubr.f32.gmra.mrb[0].mxu0 %v4938
    %v4940 = vpop.f32.mrb[0].mxu0
    %v4941 = vadd.f32 %v4841, %v4940
    %v4942 = vpop.f32.mrb[0].mxu0
    %4943 = vmatprep.mubr.f32.mxu0 0.0
    %v4944 = vand.u32 %v4630, 4294901760
    %v4945 = vsub.f32 %v4630, %v4944
    %4946 = vmatmul.mubr.f32.gmra.mrb[0].mxu0 %v4945
    %v4947 = vpop.f32.mrb[0].mxu0
    %v4948 = vadd.f32 %v4847, %v4947
    %v4949 = vpop.f32.mrb[0].mxu0
    %4950 = vdwg.mxu0
    %4951 = vmatprep.subr.mxu0 0.0
    %v4952 = vand.u32 %v4611, 4294901760
    %4953 = vmatpush1.msra.mxu0 %v4952
    %4954 = vmatprep.subr.mxu0 0.0
    %v4955 = vand.u32 %v4612, 4294901760
    %4956 = vmatpush1.msra.mxu0 %v4955
    %4957 = vmatprep.subr.mxu0 0.0
    %v4958 = vand.u32 %v4613, 4294901760
    %4959 = vmatpush1.msra.mxu0 %v4958
    %4960 = vmatprep.subr.mxu0 0.0
    %v4961 = vand.u32 %v4614, 4294901760
    %4962 = vmatpush1.msra.mxu0 %v4961
    %4963 = vmatprep.subr.mxu0 0.0
    %4964 = vmatpush1.msra.mxu0 0.0
    %4965 = vmatprep.subr.mxu0 0.0
    %4966 = vmatpush1.msra.mxu0 0.0
    %4967 = vmatprep.subr.mxu0 0.0
    %4968 = vmatpush1.msra.mxu0 0.0
    %4969 = vmatprep.subr.mxu0 0.0
    %4970 = vmatpush1.msra.mxu0 0.0
    %4971 = vmatprep.subr.mxu0 0.0
    %4972 = vmatpush1.msra.mxu0 0.0
    %4973 = vmatprep.subr.mxu0 0.0
    %4974 = vmatpush1.msra.mxu0 0.0
    %4975 = vmatprep.subr.mxu0 0.0
    %4976 = vmatpush1.msra.mxu0 0.0
    %4977 = vmatprep.subr.mxu0 0.0
    %4978 = vmatpush1.msra.mxu0 0.0
    %4979 = vmatprep.subr.mxu0 0.0
    %4980 = vmatpush1.msra.mxu0 0.0
    %4981 = vmatprep.subr.mxu0 0.0
    %4982 = vmatpush1.msra.mxu0 0.0
    %4983 = vmatprep.subr.mxu0 0.0
    %4984 = vmatpush1.msra.mxu0 0.0
    %4985 = vmatprep.subr.mxu0 0.0
    %4986 = vmatpush1.msra.mxu0 0.0
    %4987 = vmatprep.subr.mxu0 0.0
    %4988 = vmatpush1.msra.mxu0 0.0
    %4989 = vmatprep.subr.mxu0 0.0
    %4990 = vmatpush1.msra.mxu0 0.0
    %4991 = vmatprep.subr.mxu0 0.0
    %4992 = vmatpush1.msra.mxu0 0.0
    %4993 = vmatprep.subr.mxu0 0.0
    %4994 = vmatpush1.msra.mxu0 0.0
    %4995 = vmatprep.subr.mxu0 0.0
    %4996 = vmatpush1.msra.mxu0 0.0
    %4997 = vmatprep.subr.mxu0 0.0
    %4998 = vmatpush1.msra.mxu0 0.0
    %4999 = vmatprep.subr.mxu0 0.0
    %5000 = vmatpush1.msra.mxu0 0.0
    %5001 = vmatprep.subr.mxu0 0.0
    %5002 = vmatpush1.msra.mxu0 0.0
    %5003 = vmatprep.subr.mxu0 0.0
    %5004 = vmatpush1.msra.mxu0 0.0
    %5005 = vmatprep.subr.mxu0 0.0
    %5006 = vmatpush1.msra.mxu0 0.0
    %5007 = vmatprep.subr.mxu0 0.0
    %5008 = vmatpush1.msra.mxu0 0.0
    %5009 = vmatprep.subr.mxu0 0.0
    %5010 = vmatpush1.msra.mxu0 0.0
    %5011 = vmatprep.subr.mxu0 0.0
    %5012 = vmatpush1.msra.mxu0 0.0
    %5013 = vmatprep.subr.mxu0 0.0
    %5014 = vmatpush1.msra.mxu0 0.0
    %5015 = vmatprep.subr.mxu0 0.0
    %5016 = vmatpush1.msra.mxu0 0.0
    %5017 = vmatprep.subr.mxu0 0.0
    %5018 = vmatpush1.msra.mxu0 0.0
    %5019 = vmatprep.mubr.f32.mxu0 0.0
    %v5020 = vand.u32 %v4621, 4294901760
    %v5021 = vsub.f32 %v4621, %v5020
    %v5022 = vand.u32 %v5021, 4294901760
    %5023 = vmatmul.mubr.f32.gmra.mrb[0].mxu0 %v5022
    %v5024 = vpop.f32.mrb[0].mxu0
    %v5025 = vadd.f32 %v4927, %v5024
    %v5026 = vpop.f32.mrb[0].mxu0
    %5027 = vmatprep.mubr.f32.mxu0 0.0
    %v5028 = vand.u32 %v4624, 4294901760
    %v5029 = vsub.f32 %v4624, %v5028
    %v5030 = vand.u32 %v5029, 4294901760
    %5031 = vmatmul.mubr.f32.gmra.mrb[0].mxu0 %v5030
    %v5032 = vpop.f32.mrb[0].mxu0
    %v5033 = vadd.f32 %v4934, %v5032
    %v5034 = vpop.f32.mrb[0].mxu0
    %5035 = vmatprep.mubr.f32.mxu0 0.0
    %v5036 = vand.u32 %v4627, 4294901760
    %v5037 = vsub.f32 %v4627, %v5036
    %v5038 = vand.u32 %v5037, 4294901760
    %5039 = vmatmul.mubr.f32.gmra.mrb[0].mxu0 %v5038
    %v5040 = vpop.f32.mrb[0].mxu0
    %v5041 = vadd.f32 %v4941, %v5040
    %v5042 = vpop.f32.mrb[0].mxu0
    %5043 = vmatprep.mubr.f32.mxu0 0.0
    %v5044 = vand.u32 %v4630, 4294901760
    %v5045 = vsub.f32 %v4630, %v5044
    %v5046 = vand.u32 %v5045, 4294901760
    %5047 = vmatmul.mubr.f32.gmra.mrb[0].mxu0 %v5046
    %v5048 = vpop.f32.mrb[0].mxu0
    %v5049 = vadd.f32 %v4948, %v5048
    %v5050 = vpop.f32.mrb[0].mxu0
    %5051 = vdwg.mxu0
    %5052 = vmatprep.subr.mxu0 0.0
    %v5053 = vand.u32 %v4611, 4294901760
    %v5054 = vsub.f32 %v4611, %v5053
    %v5055 = vand.u32 %v5054, 4294901760
    %5056 = vmatpush1.msra.mxu0 %v5055
    %5057 = vmatprep.subr.mxu0 0.0
    %v5058 = vand.u32 %v4612, 4294901760
    %v5059 = vsub.f32 %v4612, %v5058
    %v5060 = vand.u32 %v5059, 4294901760
    %5061 = vmatpush1.msra.mxu0 %v5060
    %5062 = vmatprep.subr.mxu0 0.0
    %v5063 = vand.u32 %v4613, 4294901760
    %v5064 = vsub.f32 %v4613, %v5063
    %v5065 = vand.u32 %v5064, 4294901760
    %5066 = vmatpush1.msra.mxu0 %v5065
    %5067 = vmatprep.subr.mxu0 0.0
    %v5068 = vand.u32 %v4614, 4294901760
    %v5069 = vsub.f32 %v4614, %v5068
    %v5070 = vand.u32 %v5069, 4294901760
    %5071 = vmatpush1.msra.mxu0 %v5070
    %5072 = vmatprep.subr.mxu0 0.0
    %5073 = vmatpush1.msra.mxu0 0.0
    %5074 = vmatprep.subr.mxu0 0.0
    %5075 = vmatpush1.msra.mxu0 0.0
    %5076 = vmatprep.subr.mxu0 0.0
    %5077 = vmatpush1.msra.mxu0 0.0
    %5078 = vmatprep.subr.mxu0 0.0
    %5079 = vmatpush1.msra.mxu0 0.0
    %5080 = vmatprep.subr.mxu0 0.0
    %5081 = vmatpush1.msra.mxu0 0.0
    %5082 = vmatprep.subr.mxu0 0.0
    %5083 = vmatpush1.msra.mxu0 0.0
    %5084 = vmatprep.subr.mxu0 0.0
    %5085 = vmatpush1.msra.mxu0 0.0
    %5086 = vmatprep.subr.mxu0 0.0
    %5087 = vmatpush1.msra.mxu0 0.0
    %5088 = vmatprep.subr.mxu0 0.0
    %5089 = vmatpush1.msra.mxu0 0.0
    %5090 = vmatprep.subr.mxu0 0.0
    %5091 = vmatpush1.msra.mxu0 0.0
    %5092 = vmatprep.subr.mxu0 0.0
    %5093 = vmatpush1.msra.mxu0 0.0
    %5094 = vmatprep.subr.mxu0 0.0
    %5095 = vmatpush1.msra.mxu0 0.0
    %5096 = vmatprep.subr.mxu0 0.0
    %5097 = vmatpush1.msra.mxu0 0.0
    %5098 = vmatprep.subr.mxu0 0.0
    %5099 = vmatpush1.msra.mxu0 0.0
    %5100 = vmatprep.subr.mxu0 0.0
    %5101 = vmatpush1.msra.mxu0 0.0
    %5102 = vmatprep.subr.mxu0 0.0
    %5103 = vmatpush1.msra.mxu0 0.0
    %5104 = vmatprep.subr.mxu0 0.0
    %5105 = vmatpush1.msra.mxu0 0.0
    %5106 = vmatprep.subr.mxu0 0.0
    %5107 = vmatpush1.msra.mxu0 0.0
    %5108 = vmatprep.subr.mxu0 0.0
    %5109 = vmatpush1.msra.mxu0 0.0
    %5110 = vmatprep.subr.mxu0 0.0
    %5111 = vmatpush1.msra.mxu0 0.0
    %5112 = vmatprep.subr.mxu0 0.0
    %5113 = vmatpush1.msra.mxu0 0.0
    %5114 = vmatprep.subr.mxu0 0.0
    %5115 = vmatpush1.msra.mxu0 0.0
    %5116 = vmatprep.subr.mxu0 0.0
    %5117 = vmatpush1.msra.mxu0 0.0
    %5118 = vmatprep.subr.mxu0 0.0
    %5119 = vmatpush1.msra.mxu0 0.0
    %5120 = vmatprep.subr.mxu0 0.0
    %5121 = vmatpush1.msra.mxu0 0.0
    %5122 = vmatprep.subr.mxu0 0.0
    %5123 = vmatpush1.msra.mxu0 0.0
    %5124 = vmatprep.subr.mxu0 0.0
    %5125 = vmatpush1.msra.mxu0 0.0
    %5126 = vmatprep.subr.mxu0 0.0
    %5127 = vmatpush1.msra.mxu0 0.0
    %5128 = vmatprep.mubr.f32.mxu0 0.0
    %v5129 = vand.u32 %v4621, 4294901760
    %5130 = vmatmul.mubr.f32.gmra.mrb[0].mxu0 %v5129
    %v5131 = vpop.f32.mrb[0].mxu0
    %v5132 = vadd.f32 %v5025, %v5131
    %v5133 = vpop.f32.mrb[0].mxu0
    %5134 = vmatprep.mubr.f32.mxu0 0.0
    %v5135 = vand.u32 %v4624, 4294901760
    %5136 = vmatmul.mubr.f32.gmra.mrb[0].mxu0 %v5135
    %v5137 = vpop.f32.mrb[0].mxu0
    %v5138 = vadd.f32 %v5033, %v5137
    %v5139 = vpop.f32.mrb[0].mxu0
    %5140 = vmatprep.mubr.f32.mxu0 0.0
    %v5141 = vand.u32 %v4627, 4294901760
    %5142 = vmatmul.mubr.f32.gmra.mrb[0].mxu0 %v5141
    %v5143 = vpop.f32.mrb[0].mxu0
    %v5144 = vadd.f32 %v5041, %v5143
    %v5145 = vpop.f32.mrb[0].mxu0
    %5146 = vmatprep.mubr.f32.mxu0 0.0
    %v5147 = vand.u32 %v4630, 4294901760
    %5148 = vmatmul.mubr.f32.gmra.mrb[0].mxu0 %v5147
    %v5149 = vpop.f32.mrb[0].mxu0
    %v5150 = vadd.f32 %v5049, %v5149
    %v5151 = vpop.f32.mrb[0].mxu0
    %5152 = vdwg.mxu0
    %5153 = vmatprep.subr.mxu0 0.0
    %v5154 = vand.u32 %v4611, 4294901760
    %5155 = vmatpush1.msra.mxu0 %v5154
    %5156 = vmatprep.subr.mxu0 0.0
    %v5157 = vand.u32 %v4612, 4294901760
    %5158 = vmatpush1.msra.mxu0 %v5157
    %5159 = vmatprep.subr.mxu0 0.0
    %v5160 = vand.u32 %v4613, 4294901760
    %5161 = vmatpush1.msra.mxu0 %v5160
    %5162 = vmatprep.subr.mxu0 0.0
    %v5163 = vand.u32 %v4614, 4294901760
    %5164 = vmatpush1.msra.mxu0 %v5163
    %5165 = vmatprep.subr.mxu0 0.0
    %5166 = vmatpush1.msra.mxu0 0.0
    %5167 = vmatprep.subr.mxu0 0.0
    %5168 = vmatpush1.msra.mxu0 0.0
    %5169 = vmatprep.subr.mxu0 0.0
    %5170 = vmatpush1.msra.mxu0 0.0
    %5171 = vmatprep.subr.mxu0 0.0
    %5172 = vmatpush1.msra.mxu0 0.0
    %5173 = vmatprep.subr.mxu0 0.0
    %5174 = vmatpush1.msra.mxu0 0.0
    %5175 = vmatprep.subr.mxu0 0.0
    %5176 = vmatpush1.msra.mxu0 0.0
    %5177 = vmatprep.subr.mxu0 0.0
    %5178 = vmatpush1.msra.mxu0 0.0
    %5179 = vmatprep.subr.mxu0 0.0
    %5180 = vmatpush1.msra.mxu0 0.0
    %5181 = vmatprep.subr.mxu0 0.0
    %5182 = vmatpush1.msra.mxu0 0.0
    %5183 = vmatprep.subr.mxu0 0.0
    %5184 = vmatpush1.msra.mxu0 0.0
    %5185 = vmatprep.subr.mxu0 0.0
    %5186 = vmatpush1.msra.mxu0 0.0
    %5187 = vmatprep.subr.mxu0 0.0
    %5188 = vmatpush1.msra.mxu0 0.0
    %5189 = vmatprep.subr.mxu0 0.0
    %5190 = vmatpush1.msra.mxu0 0.0
    %5191 = vmatprep.subr.mxu0 0.0
    %5192 = vmatpush1.msra.mxu0 0.0
    %5193 = vmatprep.subr.mxu0 0.0
    %5194 = vmatpush1.msra.mxu0 0.0
    %5195 = vmatprep.subr.mxu0 0.0
    %5196 = vmatpush1.msra.mxu0 0.0
    %5197 = vmatprep.subr.mxu0 0.0
    %5198 = vmatpush1.msra.mxu0 0.0
    %5199 = vmatprep.subr.mxu0 0.0
    %5200 = vmatpush1.msra.mxu0 0.0
    %5201 = vmatprep.subr.mxu0 0.0
    %5202 = vmatpush1.msra.mxu0 0.0
    %5203 = vmatprep.subr.mxu0 0.0
    %5204 = vmatpush1.msra.mxu0 0.0
    %5205 = vmatprep.subr.mxu0 0.0
    %5206 = vmatpush1.msra.mxu0 0.0
    %5207 = vmatprep.subr.mxu0 0.0
    %5208 = vmatpush1.msra.mxu0 0.0
    %5209 = vmatprep.subr.mxu0 0.0
    %5210 = vmatpush1.msra.mxu0 0.0
    %5211 = vmatprep.subr.mxu0 0.0
    %5212 = vmatpush1.msra.mxu0 0.0
    %5213 = vmatprep.subr.mxu0 0.0
    %5214 = vmatpush1.msra.mxu0 0.0
    %5215 = vmatprep.subr.mxu0 0.0
    %5216 = vmatpush1.msra.mxu0 0.0
    %5217 = vmatprep.subr.mxu0 0.0
    %5218 = vmatpush1.msra.mxu0 0.0
    %5219 = vmatprep.subr.mxu0 0.0
    %5220 = vmatpush1.msra.mxu0 0.0
    %5221 = vmatprep.mubr.f32.mxu0 0.0
    %v5222 = vand.u32 %v4621, 4294901760
    %5223 = vmatmul.mubr.f32.gmra.mrb[0].mxu0 %v5222
    %v5224 = vpop.f32.mrb[0].mxu0
    %v5225 = vadd.f32 %v5132, %v5224
    %v5226 = vpop.f32.mrb[0].mxu0
    %5227 = vmatprep.mubr.f32.mxu0 0.0
    %v5228 = vand.u32 %v4624, 4294901760
    %5229 = vmatmul.mubr.f32.gmra.mrb[0].mxu0 %v5228
    %v5230 = vpop.f32.mrb[0].mxu0
    %v5231 = vadd.f32 %v5138, %v5230
    %v5232 = vpop.f32.mrb[0].mxu0
    %5233 = vmatprep.mubr.f32.mxu0 0.0
    %v5234 = vand.u32 %v4627, 4294901760
    %5235 = vmatmul.mubr.f32.gmra.mrb[0].mxu0 %v5234
    %v5236 = vpop.f32.mrb[0].mxu0
    %v5237 = vadd.f32 %v5144, %v5236
    %v5238 = vpop.f32.mrb[0].mxu0
    %5239 = vmatprep.mubr.f32.mxu0 0.0
    %v5240 = vand.u32 %v4630, 4294901760
    %5241 = vmatmul.mubr.f32.gmra.mrb[0].mxu0 %v5240
    %v5242 = vpop.f32.mrb[0].mxu0
    %v5243 = vadd.f32 %v5150, %v5242
    %v5244 = vpop.f32.mrb[0].mxu0
    %5245 = vdwg.mxu0
    %v5246 = vadd.f32 %v4594, %v5225
    %v5247 = vadd.f32 %v4595, %v5231
    %v5248 = vadd.f32 %v4596, %v5237
    %v5249 = vadd.f32 %v4597, %v5243
    %vm5250 = vcmask 130048
    %5251 = vst.msk [vmem:[%s2] sm:$0xff] %vm5250, %v5246
    %5252 = vst.msk [vmem:[%s2 + $0x8] sm:$0xff] %vm5250, %v5247
    %5253 = vst.msk [vmem:[%s2 + $0x10] sm:$0xff] %vm5250, %v5248
    %5254 = vst.msk [vmem:[%s2 + $0x18] sm:$0xff] %vm5250, %v5249
    // Predicated region
    $region18: #{tpu_custom_call.1} parent=1 // pred_check
      _
    $region19: #{tpu_custom_call.1} parent=1 // pred_check_branch
      %5256 = sbr.rel (0) target = $region21
    $region20: #{tpu_custom_call.1} parent=1 // pred_region
      _
    $region21: #{tpu_custom_call.1} parent=1 // pred_fallthru
      _
    // Predicated region
    $region22: #{tpu_custom_call.1} parent=1 // pred_check
      _
    $region23: #{tpu_custom_call.1} parent=1 // pred_check_branch
      %5258 = sbr.rel (0) target = $region25
    $region24: #{tpu_custom_call.1} parent=1 // pred_region
      _
    $region25: #{tpu_custom_call.1} parent=1 // pred_fallthru
      _
    %5259 = vsyncpa [#allocation3], 1
    %5260 = vsyncpa [#allocation5], 1

</llo_original>
